<compile_context>
chip_gen: v7x
topology: tpu7x:2x2x1
jax: 0.10.0
libtpu: 0.0.40
codegen_flags: <defaults>
</compile_context>

<pallas_src>
import jax
import jax.numpy as jnp
import numpy as np
from jax import lax
from jax.experimental import pallas as pl
from jax.experimental.pallas import tpu as pltpu

H_RAW = 100   # true feature / hidden width of the PyTorch module
H_PAD = 128   # lane-dense padded width used by all kernels


# --------------------------------------------------------------------------------------
# Kernel 1: img_compressor == Linear(4096 -> 1024) ; Linear(1024 -> 100 [padded to 128])
# Weights in bf16, f32 accumulation.  Grid: (nj=2) column blocks of w1 [parallel].
# Each j block emits a partial (n, 128) result = (x @ w1[:, Sj] + b1[Sj]) @ w2[Sj, :]
# (+ b2 only for j == 0); the two partials are summed in glue.  On v7x the parallel j
# axis lets both TensorCores stream half the weight each.
# --------------------------------------------------------------------------------------
def _compressor_kernel(x_ref, w1_ref, b1_ref, w2_ref, b2_ref, o_ref):
    j = pl.program_id(0)
    # bf16 x bf16 MXU matmul, f32 accumulation
    h = jnp.dot(x_ref[...], w1_ref[...], preferred_element_type=jnp.float32) + b1_ref[...]
    bias2 = b2_ref[...] * jnp.where(j == 0, 1.0, 0.0)   # add b2 exactly once (j == 0)
    o_ref[0] = (jnp.dot(h.astype(jnp.bfloat16), w2_ref[...],
                        preferred_element_type=jnp.float32) + bias2)


def img_compressor(x, w1, b1, w2, b2, *, nj=2):
    n, k_in = x.shape
    h_dim = w1.shape[1]
    out_dim = w2.shape[1]
    assert h_dim % nj == 0
    hj = h_dim // nj

    flops = 2 * n * k_in * h_dim + 2 * n * h_dim * out_dim
    bytes_accessed = (w1.size * w1.dtype.itemsize + w2.size * w2.dtype.itemsize
                      + x.size * x.dtype.itemsize + b1.size * 4 + b2.size * 4
                      + nj * n * out_dim * 4)

    return pl.pallas_call(
        _compressor_kernel,
        out_shape=jax.ShapeDtypeStruct((nj, n, out_dim), jnp.float32),
        grid_spec=pltpu.PrefetchScalarGridSpec(
            num_scalar_prefetch=0,
            grid=(nj,),
            in_specs=[
                pl.BlockSpec((n, k_in), lambda j: (0, 0)),
                pl.BlockSpec((k_in, hj), lambda j: (0, j)),
                pl.BlockSpec((1, hj), lambda j: (0, j)),
                pl.BlockSpec((hj, out_dim), lambda j: (j, 0)),
                pl.BlockSpec((1, out_dim), lambda j: (0, 0)),
            ],
            out_specs=pl.BlockSpec((1, n, out_dim), lambda j: (j, 0, 0)),
        ),
        compiler_params=pltpu.CompilerParams(dimension_semantics=("parallel",)),
        cost_estimate=pl.CostEstimate(flops=flops, transcendentals=0,
                                      bytes_accessed=bytes_accessed),
    )(x, w1, b1, w2, b2)


# --------------------------------------------------------------------------------------
# Kernel 2 (fused tail): both GRU recurrences (question + context, interleaved), the
# combined_encoder Linear(200 -> 100) (split into question/context halves), per-choice
# cosine similarity and sigmoid — one pallas_call.
# GRU input projections arrive precomputed (hoisted out of the recurrence); the serial
# path per step is one fused (B,H)@(H,3H) matmul + gates, and the two independent GRUs
# are interleaved so their MXU / EUP / VPU work overlaps.
# --------------------------------------------------------------------------------------
def _tail_kernel(qxp_ref, cxp_ref,
                 q_wh, q_bh, c_wh, c_bh,
                 wq_ref, wc_ref, b_ref, ch_ref,
                 logit_ref, prob_ref,
                 qh_sc, chh_sc):
    H = qh_sc.shape[1]
    Tq = qxp_ref.shape[0]
    Tc = cxp_ref.shape[0]

    qh_sc[...] = jnp.zeros_like(qh_sc)
    chh_sc[...] = jnp.zeros_like(chh_sc)

    def gru_step(gx, wh, bh, h_sc):
        h = h_sc[...]
        gh = jnp.dot(h, wh[...], preferred_element_type=jnp.float32) + bh[...]
        r = jax.nn.sigmoid(gx[:, 0:H] + gh[:, 0:H])
        z = jax.nn.sigmoid(gx[:, H:2 * H] + gh[:, H:2 * H])
        n = jnp.tanh(gx[:, 2 * H:3 * H] + r * gh[:, 2 * H:3 * H])
        h_sc[...] = (1.0 - z) * n + z * h

    # Interleaved recurrences: per iteration, one q-GRU step and one c-GRU step
    # back-to-back; the shorter sequence is masked off with pl.when.
    @pl.loop(0, max(Tq, Tc))
    def _(t):
        @pl.when(t < Tq)
        def _():
            gru_step(qxp_ref[t], q_wh, q_bh, qh_sc)

        @pl.when(t < Tc)
        def _():
            gru_step(cxp_ref[t], c_wh, c_bh, chh_sc)

    # combined_encoder Linear(200 -> 100), split into the two 128x128 halves
    eqc = (jnp.dot(qh_sc[...], wq_ref[...], preferred_element_type=jnp.float32)
           + jnp.dot(chh_sc[...], wc_ref[...], preferred_element_type=jnp.float32)
           + b_ref[...])                                              # (B, H)
    ch = ch_ref[...]                                                  # (B, C, H)

    # VPU multiply + XLU lane-reduce instead of a degenerate M=1 MXU matmul
    dots = jnp.sum(eqc[:, None, :] * ch, axis=-1)                     # (B, C)
    qn = jnp.sqrt(jnp.sum(eqc * eqc, axis=-1, keepdims=True))         # (B, 1)
    cn = jnp.sqrt(jnp.sum(ch * ch, axis=-1))                          # (B, C)
    # torch cosine_similarity clamps each norm to eps before dividing
    denom = jnp.maximum(qn, 1e-8) * jnp.maximum(cn, 1e-8)
    logits = dots * pl.reciprocal(denom, approx=True)                 # EUP reciprocal
    logit_ref[...] = logits
    prob_ref[...] = jax.nn.sigmoid(logits)


def relevance_tail(qxp, cxp, q_gru, c_gru, wq, wc, b, choices_enc):
    Tq, B, G = qxp.shape
    Tc = cxp.shape[0]
    H = G // 3
    C = choices_enc.shape[1]

    args = (qxp, cxp,
            q_gru["wh"], q_gru["bh"],
            c_gru["wh"], c_gru["bh"],
            wq, wc, b, choices_enc)

    def full_spec(shape):
        nd = len(shape)
        return pl.BlockSpec(shape, lambda i, _nd=nd: (0,) * _nd)

    return pl.pallas_call(
        _tail_kernel,
        out_shape=(jax.ShapeDtypeStruct((B, C), jnp.float32),
                   jax.ShapeDtypeStruct((B, C), jnp.float32)),
        grid_spec=pltpu.PrefetchScalarGridSpec(
            num_scalar_prefetch=0,
            grid=(1,),
            in_specs=[full_spec(a.shape) for a in args],
            out_specs=[pl.BlockSpec((B, C), lambda i: (0, 0)),
                       pl.BlockSpec((B, C), lambda i: (0, 0))],
            scratch_shapes=[pltpu.VMEM((B, H), jnp.float32),
                            pltpu.VMEM((B, H), jnp.float32)],
        ),
    )(*args)


# --------------------------------------------------------------------------------------
# Full forward (glue is only reshape / transpose / pad / the 2-way partial sum and the
# two tiny hoisted GRU input-projection matmuls, all overlappable with the compressor).
# --------------------------------------------------------------------------------------
def discriminator_forward(params, questions, contexts, choices):
    B, Sq, d_img = questions.shape
    _, C, _ = choices.shape
    Sc = contexts.shape[1]
    H = H_PAD

    # Single compressor pass: questions (time-major row order) + choices, bf16 in.
    q_rows = jnp.transpose(questions, (1, 0, 2)).reshape(Sq * B, d_img)
    ch_rows = choices.reshape(B * C, d_img)
    x_all = jnp.concatenate([q_rows, ch_rows], axis=0).astype(jnp.bfloat16)

    partials = img_compressor(x_all, params["comp_w1"], params["comp_b1"],
                              params["comp_w2"], params["comp_b2"])
    comp = partials.sum(axis=0)                          # (Sq*B + B*C, H_PAD) f32
    qx = comp[:Sq * B]                                   # time-major rows (t, b)
    ch_comp = comp[Sq * B:].reshape(B, C, H)

    # contexts: zero-pad feature dim 100 -> 128, time-major rows
    cx = jnp.transpose(
        jnp.pad(contexts, ((0, 0), (0, 0), (0, H - contexts.shape[-1]))),
        (1, 0, 2)).reshape(Sc * B, H)

    # Hoisted GRU input projections (independent of h): one M=T*B matmul each,
    # done in XLA glue so it overlaps the compressor's HBM stream.
    qxp = (qx @ params["q_gru"]["wi"] + params["q_gru"]["bi"]).reshape(Sq, B, 3 * H)
    cxp = (cx @ params["c_gru"]["wi"] + params["c_gru"]["bi"]).reshape(Sc, B, 3 * H)

    return relevance_tail(qxp, cxp, params["q_gru"], params["c_gru"],
                          params["comb_wq"], params["comb_wc"], params["comb_b"],
                          ch_comp)


# --------------------------------------------------------------------------------------
# Pure-JAX f32 reference (same bf16-rounded compressor weights cast back to f32;
# the 100->128 padding is mathematically inert)
# --------------------------------------------------------------------------------------
def _ref_gru(x, p):  # x: (B, T, H_PAD)
    B = x.shape[0]
    H = H_PAD

    def step(h, x_t):
        gx = x_t @ p["wi"] + p["bi"]
        gh = h @ p["wh"] + p["bh"]
        r = jax.nn.sigmoid(gx[:, :H] + gh[:, :H])
        z = jax.nn.sigmoid(gx[:, H:2 * H] + gh[:, H:2 * H])
        n = jnp.tanh(gx[:, 2 * H:] + r * gh[:, 2 * H:])
        return (1.0 - z) * n + z * h, None

    hT, _ = lax.scan(step, jnp.zeros((B, H), jnp.float32), jnp.transpose(x, (1, 0, 2)))
    return hT


def _ref_forward(params, questions, contexts, choices):
    B, Sq, d_img = questions.shape
    _, C, _ = choices.shape
    w1 = params["comp_w1"].astype(jnp.float32)
    w2 = params["comp_w2"].astype(jnp.float32)
    comp = lambda x: ((x @ w1 + params["comp_b1"]) @ w2 + params["comp_b2"])
    q_seq = comp(questions.reshape(B * Sq, d_img)).reshape(B, Sq, -1)
    ctx = jnp.pad(contexts, ((0, 0), (0, 0), (0, H_PAD - contexts.shape[-1])))
    q_enc = _ref_gru(q_seq, params["q_gru"])
    c_enc = _ref_gru(ctx, params["c_gru"])
    ch = comp(choices.reshape(B * C, d_img)).reshape(B, C, -1)
    eqc = q_enc @ params["comb_wq"] + c_enc @ params["comb_wc"] + params["comb_b"]
    dots = jnp.sum(eqc[:, None, :] * ch, axis=-1)
    qn = jnp.sqrt(jnp.sum(eqc * eqc, axis=-1, keepdims=True))
    cn = jnp.sqrt(jnp.sum(ch * ch, axis=-1))
    logits = dots / (jnp.maximum(qn, 1e-8) * jnp.maximum(cn, 1e-8))
    return logits, jax.nn.sigmoid(logits)


# --------------------------------------------------------------------------------------
# Deterministic parameter init (PyTorch-style uniform(-1/sqrt(fan), 1/sqrt(fan))),
# zero-padded to lane-dense 128-wide layouts; compressor weights stored in bf16.
# --------------------------------------------------------------------------------------
def _init_linear_padded(key, fan_in, fan_out, pad_out=None):
    pad_out = fan_out if pad_out is None else pad_out
    k1, k2 = jax.random.split(key)
    bound = 1.0 / np.sqrt(fan_in)
    w = jax.random.uniform(k1, (fan_in, fan_out), jnp.float32, -bound, bound)
    b = jax.random.uniform(k2, (1, fan_out), jnp.float32, -bound, bound)
    w = jnp.pad(w, ((0, 0), (0, pad_out - fan_out)))
    b = jnp.pad(b, ((0, 0), (0, pad_out - fan_out)))
    return w, b


def _init_gru(key, h_in, h):
    bound = 1.0 / np.sqrt(h)
    keys = jax.random.split(key, 12)
    u = lambda k, shape: jax.random.uniform(k, shape, jnp.float32, -bound, bound)
    pad_w = lambda w: jnp.pad(w, ((0, H_PAD - w.shape[0]), (0, H_PAD - w.shape[1])))
    pad_b = lambda b: jnp.pad(b, ((0, 0), (0, H_PAD - b.shape[1])))
    # fused gate order: [r | z | n], each padded to 128 columns
    wi = jnp.concatenate([pad_w(u(keys[i], (h_in, h))) for i in range(3)], axis=1)
    wh = jnp.concatenate([pad_w(u(keys[3 + i], (h, h))) for i in range(3)], axis=1)
    bi = jnp.concatenate([pad_b(u(keys[6 + i], (1, h))) for i in range(3)], axis=1)
    bh = jnp.concatenate([pad_b(u(keys[9 + i], (1, h))) for i in range(3)], axis=1)
    return {"wi": wi, "wh": wh, "bi": bi, "bh": bh}


def init_params(key):
    ks = jax.random.split(key, 6)
    comp_w1, comp_b1 = _init_linear_padded(ks[0], 4096, 1024)
    comp_w2, comp_b2 = _init_linear_padded(ks[1], 1024, H_RAW, pad_out=H_PAD)

    # combined_encoder Linear(200 -> 100), split into question/context halves, padded
    k1, k2 = jax.random.split(ks[2])
    bound = 1.0 / np.sqrt(2 * H_RAW)
    comb_w = jax.random.uniform(k1, (2 * H_RAW, H_RAW), jnp.float32, -bound, bound)
    comb_b = jax.random.uniform(k2, (1, H_RAW), jnp.float32, -bound, bound)
    pad2 = lambda w: jnp.pad(w, ((0, H_PAD - w.shape[0]), (0, H_PAD - w.shape[1])))
    return {
        "comp_w1": comp_w1.astype(jnp.bfloat16), "comp_b1": comp_b1,
        "comp_w2": comp_w2.astype(jnp.bfloat16), "comp_b2": comp_b2,
        "q_gru": _init_gru(ks[3], H_RAW, H_RAW),
        "c_gru": _init_gru(ks[4], H_RAW, H_RAW),
        "comb_wq": pad2(comb_w[:H_RAW, :]),
        "comb_wc": pad2(comb_w[H_RAW:, :]),
        "comb_b": jnp.pad(comb_b, ((0, 0), (0, H_PAD - H_RAW))),
    }


if __name__ == "__main__":
    key = jax.random.PRNGKey(0)
    k_par, k_q, k_c, k_ch = jax.random.split(key, 4)

    B, Sq, Sc, C = 2, 3, 5, 4
    params = init_params(k_par)

    questions = jax.random.normal(k_q, (B, Sq, 4096), jnp.float32)
    contexts = jax.random.normal(k_c, (B, Sc, 100), jnp.float32)
    choices = jax.random.normal(k_ch, (B, C, 4096), jnp.float32)

    fwd = jax.jit(discriminator_forward)
    logits, probs = fwd(params, questions, contexts, choices)
    jax.block_until_ready((logits, probs))

    ref_logits, ref_probs = _ref_forward(params, questions, contexts, choices)
    np.testing.assert_allclose(np.asarray(logits), np.asarray(ref_logits), rtol=2e-2, atol=2e-2)
    np.testing.assert_allclose(np.asarray(probs), np.asarray(ref_probs), rtol=2e-2, atol=2e-2)
    assert logits.shape == (B, C) and probs.shape == (B, C)

    print("KERNEL_OK")
</pallas_src>

<mosaic_0001>
module attributes {stable_mosaic.version = 11 : i64} {
  func.func @_compressor_kernel(%arg0: i32, %arg1: memref<14x4096xbf16, #tpu.memory_space<vmem>>, %arg2: memref<4096x512xbf16, #tpu.memory_space<vmem>>, %arg3: memref<1x512xf32, #tpu.memory_space<vmem>>, %arg4: memref<512x128xbf16, #tpu.memory_space<vmem>>, %arg5: memref<1x128xf32, #tpu.memory_space<vmem>>, %arg6: memref<1x14x128xf32, #tpu.memory_space<vmem>>) attributes {dimension_semantics = [#tpu.dimension_semantics<parallel>], iteration_bounds = array<i64: 2>, scalar_prefetch = 0 : i64, scratch_operands = 0 : i64, tpu.core_type = #tpu.core_type<tc>, window_params = [{pipeline_mode = #tpu.pipeline_mode<synchronous>, transform_indices = @transform_0, window_bounds = array<i64: 14, 4096>}, {transform_indices = @transform_1, window_bounds = array<i64: 4096, 512>}, {transform_indices = @transform_2, window_bounds = array<i64: 1, 512>}, {transform_indices = @transform_3, window_bounds = array<i64: 512, 128>}, {pipeline_mode = #tpu.pipeline_mode<synchronous>, transform_indices = @transform_4, window_bounds = array<i64: 1, 128>}, {transform_indices = @transform_5, window_bounds = array<i64: 1, 14, 128>}]} {
    %c0 = arith.constant 0 : index
    %c0_0 = arith.constant 0 : index
    %0 = vector.load %arg1[%c0, %c0_0] : memref<14x4096xbf16, #tpu.memory_space<vmem>>, vector<14x4096xbf16>
    %c0_1 = arith.constant 0 : index
    %c0_2 = arith.constant 0 : index
    %1 = vector.load %arg2[%c0_1, %c0_2] : memref<4096x512xbf16, #tpu.memory_space<vmem>>, vector<4096x512xbf16>
    %cst = arith.constant dense<0.000000e+00> : vector<14x512xf32>
    %2 = tpu.matmul %0, %1, %cst {dimension_numbers = #tpu.dot_dimension_numbers<[1], [0], [0], [1], [0, 0, 1, 1], [], []>} : vector<14x4096xbf16>, vector<4096x512xbf16>, vector<14x512xf32> -> vector<14x512xf32>
    %c0_3 = arith.constant 0 : index
    %c0_4 = arith.constant 0 : index
    %3 = vector.load %arg3[%c0_3, %c0_4] : memref<1x512xf32, #tpu.memory_space<vmem>>, vector<1x512xf32>
    %4 = vector.broadcast %3 : vector<1x512xf32> to vector<14x512xf32>
    %5 = arith.addf %2, %4 : vector<14x512xf32>
    %c0_5 = arith.constant 0 : index
    %c0_6 = arith.constant 0 : index
    %6 = vector.load %arg5[%c0_5, %c0_6] : memref<1x128xf32, #tpu.memory_space<vmem>>, vector<1x128xf32>
    %c0_i32 = arith.constant 0 : i32
    %7 = arith.cmpi eq, %arg0, %c0_i32 : i32
    %cst_7 = arith.constant 1.000000e+00 : f32
    %cst_8 = arith.constant 0.000000e+00 : f32
    %8 = arith.select %7, %cst_7, %cst_8 : f32
    %9 = vector.broadcast %8 : f32 to vector<1x128xf32>
    %10 = arith.mulf %6, %9 : vector<1x128xf32>
    %11 = arith.truncf %5 : vector<14x512xf32> to vector<14x512xbf16>
    %c0_9 = arith.constant 0 : index
    %c0_10 = arith.constant 0 : index
    %12 = vector.load %arg4[%c0_9, %c0_10] : memref<512x128xbf16, #tpu.memory_space<vmem>>, vector<512x128xbf16>
    %cst_11 = arith.constant dense<0.000000e+00> : vector<14x128xf32>
    %13 = tpu.matmul %11, %12, %cst_11 {dimension_numbers = #tpu.dot_dimension_numbers<[1], [0], [0], [1], [0, 0, 1, 1], [], []>} : vector<14x512xbf16>, vector<512x128xbf16>, vector<14x128xf32> -> vector<14x128xf32>
    %14 = vector.broadcast %10 : vector<1x128xf32> to vector<14x128xf32>
    %15 = arith.addf %13, %14 : vector<14x128xf32>
    %c0_12 = arith.constant 0 : index
    %c0_13 = arith.constant 0 : index
    %c0_14 = arith.constant 0 : index
    %16 = vector.load %arg6[%c0_12, %c0_13, %c0_14] : memref<1x14x128xf32, #tpu.memory_space<vmem>>, vector<1x14x128xf32>
    %17 = vector.shape_cast %16 : vector<1x14x128xf32> to vector<14x128xf32>
    %18 = vector.shape_cast %15 : vector<14x128xf32> to vector<1x14x128xf32>
    tpu.vector_store %arg6[%c0_12, %c0_13, %c0_14], %18 {strides = array<i32>} : memref<1x14x128xf32, #tpu.memory_space<vmem>>, vector<1x14x128xf32>,
    return
  }
  func.func @transform_0(%arg0: i32) -> (i32, i32) {
    %c0_i32 = arith.constant 0 : i32
    %c0_i32_0 = arith.constant 0 : i32
    %c0_i32_1 = arith.constant 0 : i32
    return %c0_i32, %c0_i32_0 : i32, i32
  }
  func.func @transform_1(%arg0: i32) -> (i32, i32) {
    %c0_i32 = arith.constant 0 : i32
    %c0_i32_0 = arith.constant 0 : i32
    return %c0_i32, %arg0 : i32, i32
  }
  func.func @transform_2(%arg0: i32) -> (i32, i32) {
    %c0_i32 = arith.constant 0 : i32
    %c0_i32_0 = arith.constant 0 : i32
    return %c0_i32, %arg0 : i32, i32
  }
  func.func @transform_3(%arg0: i32) -> (i32, i32) {
    %c0_i32 = arith.constant 0 : i32
    %c0_i32_0 = arith.constant 0 : i32
    return %arg0, %c0_i32 : i32, i32
  }
  func.func @transform_4(%arg0: i32) -> (i32, i32) {
    %c0_i32 = arith.constant 0 : i32
    %c0_i32_0 = arith.constant 0 : i32
    %c0_i32_1 = arith.constant 0 : i32
    return %c0_i32, %c0_i32_0 : i32, i32
  }
  func.func @transform_5(%arg0: i32) -> (i32, i32, i32) {
    %c0_i32 = arith.constant 0 : i32
    %c0_i32_0 = arith.constant 0 : i32
    %c0_i32_1 = arith.constant 0 : i32
    return %arg0, %c0_i32, %c0_i32_0 : i32, i32, i32
  }
}

module attributes {stable_mosaic.version = 11 : i64} {
  func.func @_tail_kernel(%arg0: i32, %arg1: memref<3x2x384xf32, #tpu.memory_space<vmem>>, %arg2: memref<5x2x384xf32, #tpu.memory_space<vmem>>, %arg3: memref<128x384xf32, #tpu.memory_space<vmem>>, %arg4: memref<1x384xf32, #tpu.memory_space<vmem>>, %arg5: memref<128x384xf32, #tpu.memory_space<vmem>>, %arg6: memref<1x384xf32, #tpu.memory_space<vmem>>, %arg7: memref<128x128xf32, #tpu.memory_space<vmem>>, %arg8: memref<128x128xf32, #tpu.memory_space<vmem>>, %arg9: memref<1x128xf32, #tpu.memory_space<vmem>>, %arg10: memref<2x4x128xf32, #tpu.memory_space<vmem>>, %arg11: memref<2x4xf32, #tpu.memory_space<vmem>>, %arg12: memref<2x4xf32, #tpu.memory_space<vmem>>, %arg13: memref<2x128xf32, #tpu.memory_space<vmem>>, %arg14: memref<2x128xf32, #tpu.memory_space<vmem>>) attributes {dimension_semantics = [#tpu.dimension_semantics<arbitrary>], iteration_bounds = array<i64: 1>, scalar_prefetch = 0 : i64, scratch_operands = 2 : i64, tpu.core_type = #tpu.core_type<tc>, window_params = [{pipeline_mode = #tpu.pipeline_mode<synchronous>, transform_indices = @transform_0, window_bounds = array<i64: 3, 2, 384>}, {pipeline_mode = #tpu.pipeline_mode<synchronous>, transform_indices = @transform_1, window_bounds = array<i64: 5, 2, 384>}, {pipeline_mode = #tpu.pipeline_mode<synchronous>, transform_indices = @transform_2, window_bounds = array<i64: 128, 384>}, {pipeline_mode = #tpu.pipeline_mode<synchronous>, transform_indices = @transform_3, window_bounds = array<i64: 1, 384>}, {pipeline_mode = #tpu.pipeline_mode<synchronous>, transform_indices = @transform_4, window_bounds = array<i64: 128, 384>}, {pipeline_mode = #tpu.pipeline_mode<synchronous>, transform_indices = @transform_5, window_bounds = array<i64: 1, 384>}, {pipeline_mode = #tpu.pipeline_mode<synchronous>, transform_indices = @transform_6, window_bounds = array<i64: 128, 128>}, {pipeline_mode = #tpu.pipeline_mode<synchronous>, transform_indices = @transform_7, window_bounds = array<i64: 128, 128>}, {pipeline_mode = #tpu.pipeline_mode<synchronous>, transform_indices = @transform_8, window_bounds = array<i64: 1, 128>}, {pipeline_mode = #tpu.pipeline_mode<synchronous>, transform_indices = @transform_9, window_bounds = array<i64: 2, 4, 128>}, {pipeline_mode = #tpu.pipeline_mode<synchronous>, transform_indices = @transform_10, window_bounds = array<i64: 2, 4>}, {pipeline_mode = #tpu.pipeline_mode<synchronous>, transform_indices = @transform_11, window_bounds = array<i64: 2, 4>}]} {
    %cst = arith.constant 0.000000e+00 : f32
    %0 = vector.broadcast %cst : f32 to vector<2x128xf32>
    %c0 = arith.constant 0 : index
    %c0_0 = arith.constant 0 : index
    %1 = vector.load %arg13[%c0, %c0_0] : memref<2x128xf32, #tpu.memory_space<vmem>>, vector<2x128xf32>
    tpu.vector_store %arg13[%c0, %c0_0], %0 {strides = array<i32>} : memref<2x128xf32, #tpu.memory_space<vmem>>, vector<2x128xf32>,
    %cst_1 = arith.constant 0.000000e+00 : f32
    %2 = vector.broadcast %cst_1 : f32 to vector<2x128xf32>
    %c0_2 = arith.constant 0 : index
    %c0_3 = arith.constant 0 : index
    %3 = vector.load %arg14[%c0_2, %c0_3] : memref<2x128xf32, #tpu.memory_space<vmem>>, vector<2x128xf32>
    tpu.vector_store %arg14[%c0_2, %c0_3], %2 {strides = array<i32>} : memref<2x128xf32, #tpu.memory_space<vmem>>, vector<2x128xf32>,
    %c0_i32 = arith.constant 0 : i32
    %c5_i32 = arith.constant 5 : i32
    %4 = arith.addi %c0_i32, %c5_i32 : i32
    %c1_i32 = arith.constant 1 : i32
    scf.for %arg15 = %c0_i32 to %4 step %c1_i32  : i32 {
      %c1_i32_30 = arith.constant 1 : i32
      %42 = arith.muli %arg15, %c1_i32_30 : i32
      %c0_i32_31 = arith.constant 0 : i32
      %43 = arith.addi %c0_i32_31, %42 : i32
      %c3_i32 = arith.constant 3 : i32
      %44 = arith.cmpi slt, %43, %c3_i32 : i32
      %45 = arith.extui %44 : i1 to i32
      %c0_i32_32 = arith.constant 0 : i32
      %46 = arith.cmpi ne, %45, %c0_i32_32 : i32
      scf.if %46 {
        %50 = arith.index_cast %43 : i32 to index
        %c0_35 = arith.constant 0 : index
        %c0_36 = arith.constant 0 : index
        %51 = vector.load %arg1[%50, %c0_35, %c0_36] : memref<3x2x384xf32, #tpu.memory_space<vmem>>, vector<1x2x384xf32>
        %52 = vector.shape_cast %51 : vector<1x2x384xf32> to vector<2x384xf32>
        %c0_37 = arith.constant 0 : index
        %c0_38 = arith.constant 0 : index
        %53 = vector.load %arg13[%c0_37, %c0_38] : memref<2x128xf32, #tpu.memory_space<vmem>>, vector<2x128xf32>
        %c0_39 = arith.constant 0 : index
        %c0_40 = arith.constant 0 : index
        %54 = vector.load %arg3[%c0_39, %c0_40] : memref<128x384xf32, #tpu.memory_space<vmem>>, vector<128x384xf32>
        %cst_41 = arith.constant dense<0.000000e+00> : vector<2x384xf32>
        %55 = tpu.matmul %53, %54, %cst_41 {dimension_numbers = #tpu.dot_dimension_numbers<[1], [0], [0], [1], [0, 0, 1, 1], [], []>} : vector<2x128xf32>, vector<128x384xf32>, vector<2x384xf32> -> vector<2x384xf32>
        %c0_42 = arith.constant 0 : index
        %c0_43 = arith.constant 0 : index
        %56 = vector.load %arg4[%c0_42, %c0_43] : memref<1x384xf32, #tpu.memory_space<vmem>>, vector<1x384xf32>
        %57 = vector.broadcast %56 : vector<1x384xf32> to vector<2x384xf32>
        %58 = arith.addf %55, %57 : vector<2x384xf32>
        %59 = vector.extract_strided_slice %52 {offsets = [0, 0], sizes = [2, 128], strides = [1, 1]} : vector<2x384xf32> to vector<2x128xf32>
        %60 = vector.extract_strided_slice %58 {offsets = [0, 0], sizes = [2, 128], strides = [1, 1]} : vector<2x384xf32> to vector<2x128xf32>
        %61 = arith.addf %59, %60 : vector<2x128xf32>
        %62 = arith.negf %61 : vector<2x128xf32>
        %63 = math.exp %62 : vector<2x128xf32>
        %cst_44 = arith.constant 1.000000e+00 : f32
        %64 = vector.broadcast %cst_44 : f32 to vector<2x128xf32>
        %65 = arith.addf %64, %63 : vector<2x128xf32>
        %66 = arith.divf %64, %65 : vector<2x128xf32>
        %67 = vector.extract_strided_slice %52 {offsets = [0, 128], sizes = [2, 128], strides = [1, 1]} : vector<2x384xf32> to vector<2x128xf32>
        %68 = vector.extract_strided_slice %58 {offsets = [0, 128], sizes = [2, 128], strides = [1, 1]} : vector<2x384xf32> to vector<2x128xf32>
        %69 = arith.addf %67, %68 : vector<2x128xf32>
        %70 = arith.negf %69 : vector<2x128xf32>
        %71 = math.exp %70 : vector<2x128xf32>
        %cst_45 = arith.constant 1.000000e+00 : f32
        %72 = vector.broadcast %cst_45 : f32 to vector<2x128xf32>
        %73 = arith.addf %72, %71 : vector<2x128xf32>
        %74 = arith.divf %72, %73 : vector<2x128xf32>
        %75 = vector.extract_strided_slice %52 {offsets = [0, 256], sizes = [2, 128], strides = [1, 1]} : vector<2x384xf32> to vector<2x128xf32>
        %76 = vector.extract_strided_slice %58 {offsets = [0, 256], sizes = [2, 128], strides = [1, 1]} : vector<2x384xf32> to vector<2x128xf32>
        %77 = arith.mulf %66, %76 : vector<2x128xf32>
        %78 = arith.addf %75, %77 : vector<2x128xf32>
        %79 = math.tanh %78 : vector<2x128xf32>
        %cst_46 = arith.constant 1.000000e+00 : f32
        %80 = vector.broadcast %cst_46 : f32 to vector<2x128xf32>
        %81 = arith.subf %80, %74 : vector<2x128xf32>
        %82 = arith.mulf %81, %79 : vector<2x128xf32>
        %83 = arith.mulf %74, %53 : vector<2x128xf32>
        %84 = arith.addf %82, %83 : vector<2x128xf32>
        %c0_47 = arith.constant 0 : index
        %c0_48 = arith.constant 0 : index
        %85 = vector.load %arg13[%c0_47, %c0_48] : memref<2x128xf32, #tpu.memory_space<vmem>>, vector<2x128xf32>
        tpu.vector_store %arg13[%c0_47, %c0_48], %84 {strides = array<i32>} : memref<2x128xf32, #tpu.memory_space<vmem>>, vector<2x128xf32>,
      } else {
      }
      %c5_i32_33 = arith.constant 5 : i32
      %47 = arith.cmpi slt, %43, %c5_i32_33 : i32
      %48 = arith.extui %47 : i1 to i32
      %c0_i32_34 = arith.constant 0 : i32
      %49 = arith.cmpi ne, %48, %c0_i32_34 : i32
      scf.if %49 {
        %50 = arith.index_cast %43 : i32 to index
        %c0_35 = arith.constant 0 : index
        %c0_36 = arith.constant 0 : index
        %51 = vector.load %arg2[%50, %c0_35, %c0_36] : memref<5x2x384xf32, #tpu.memory_space<vmem>>, vector<1x2x384xf32>
        %52 = vector.shape_cast %51 : vector<1x2x384xf32> to vector<2x384xf32>
        %c0_37 = arith.constant 0 : index
        %c0_38 = arith.constant 0 : index
        %53 = vector.load %arg14[%c0_37, %c0_38] : memref<2x128xf32, #tpu.memory_space<vmem>>, vector<2x128xf32>
        %c0_39 = arith.constant 0 : index
        %c0_40 = arith.constant 0 : index
        %54 = vector.load %arg5[%c0_39, %c0_40] : memref<128x384xf32, #tpu.memory_space<vmem>>, vector<128x384xf32>
        %cst_41 = arith.constant dense<0.000000e+00> : vector<2x384xf32>
        %55 = tpu.matmul %53, %54, %cst_41 {dimension_numbers = #tpu.dot_dimension_numbers<[1], [0], [0], [1], [0, 0, 1, 1], [], []>} : vector<2x128xf32>, vector<128x384xf32>, vector<2x384xf32> -> vector<2x384xf32>
        %c0_42 = arith.constant 0 : index
        %c0_43 = arith.constant 0 : index
        %56 = vector.load %arg6[%c0_42, %c0_43] : memref<1x384xf32, #tpu.memory_space<vmem>>, vector<1x384xf32>
        %57 = vector.broadcast %56 : vector<1x384xf32> to vector<2x384xf32>
        %58 = arith.addf %55, %57 : vector<2x384xf32>
        %59 = vector.extract_strided_slice %52 {offsets = [0, 0], sizes = [2, 128], strides = [1, 1]} : vector<2x384xf32> to vector<2x128xf32>
        %60 = vector.extract_strided_slice %58 {offsets = [0, 0], sizes = [2, 128], strides = [1, 1]} : vector<2x384xf32> to vector<2x128xf32>
        %61 = arith.addf %59, %60 : vector<2x128xf32>
        %62 = arith.negf %61 : vector<2x128xf32>
        %63 = math.exp %62 : vector<2x128xf32>
        %cst_44 = arith.constant 1.000000e+00 : f32
        %64 = vector.broadcast %cst_44 : f32 to vector<2x128xf32>
        %65 = arith.addf %64, %63 : vector<2x128xf32>
        %66 = arith.divf %64, %65 : vector<2x128xf32>
        %67 = vector.extract_strided_slice %52 {offsets = [0, 128], sizes = [2, 128], strides = [1, 1]} : vector<2x384xf32> to vector<2x128xf32>
        %68 = vector.extract_strided_slice %58 {offsets = [0, 128], sizes = [2, 128], strides = [1, 1]} : vector<2x384xf32> to vector<2x128xf32>
        %69 = arith.addf %67, %68 : vector<2x128xf32>
        %70 = arith.negf %69 : vector<2x128xf32>
        %71 = math.exp %70 : vector<2x128xf32>
        %cst_45 = arith.constant 1.000000e+00 : f32
        %72 = vector.broadcast %cst_45 : f32 to vector<2x128xf32>
        %73 = arith.addf %72, %71 : vector<2x128xf32>
        %74 = arith.divf %72, %73 : vector<2x128xf32>
        %75 = vector.extract_strided_slice %52 {offsets = [0, 256], sizes = [2, 128], strides = [1, 1]} : vector<2x384xf32> to vector<2x128xf32>
        %76 = vector.extract_strided_slice %58 {offsets = [0, 256], sizes = [2, 128], strides = [1, 1]} : vector<2x384xf32> to vector<2x128xf32>
        %77 = arith.mulf %66, %76 : vector<2x128xf32>
        %78 = arith.addf %75, %77 : vector<2x128xf32>
        %79 = math.tanh %78 : vector<2x128xf32>
        %cst_46 = arith.constant 1.000000e+00 : f32
        %80 = vector.broadcast %cst_46 : f32 to vector<2x128xf32>
        %81 = arith.subf %80, %74 : vector<2x128xf32>
        %82 = arith.mulf %81, %79 : vector<2x128xf32>
        %83 = arith.mulf %74, %53 : vector<2x128xf32>
        %84 = arith.addf %82, %83 : vector<2x128xf32>
        %c0_47 = arith.constant 0 : index
        %c0_48 = arith.constant 0 : index
        %85 = vector.load %arg14[%c0_47, %c0_48] : memref<2x128xf32, #tpu.memory_space<vmem>>, vector<2x128xf32>
        tpu.vector_store %arg14[%c0_47, %c0_48], %84 {strides = array<i32>} : memref<2x128xf32, #tpu.memory_space<vmem>>, vector<2x128xf32>,
      } else {
      }
    }
    %c5_i32_4 = arith.constant 5 : i32
    %c0_5 = arith.constant 0 : index
    %c0_6 = arith.constant 0 : index
    %5 = vector.load %arg13[%c0_5, %c0_6] : memref<2x128xf32, #tpu.memory_space<vmem>>, vector<2x128xf32>
    %c0_7 = arith.constant 0 : index
    %c0_8 = arith.constant 0 : index
    %6 = vector.load %arg7[%c0_7, %c0_8] : memref<128x128xf32, #tpu.memory_space<vmem>>, vector<128x128xf32>
    %cst_9 = arith.constant dense<0.000000e+00> : vector<2x128xf32>
    %7 = tpu.matmul %5, %6, %cst_9 {dimension_numbers = #tpu.dot_dimension_numbers<[1], [0], [0], [1], [0, 0, 1, 1], [], []>} : vector<2x128xf32>, vector<128x128xf32>, vector<2x128xf32> -> vector<2x128xf32>
    %c0_10 = arith.constant 0 : index
    %c0_11 = arith.constant 0 : index
    %8 = vector.load %arg14[%c0_10, %c0_11] : memref<2x128xf32, #tpu.memory_space<vmem>>, vector<2x128xf32>
    %c0_12 = arith.constant 0 : index
    %c0_13 = arith.constant 0 : index
    %9 = vector.load %arg8[%c0_12, %c0_13] : memref<128x128xf32, #tpu.memory_space<vmem>>, vector<128x128xf32>
    %cst_14 = arith.constant dense<0.000000e+00> : vector<2x128xf32>
    %10 = tpu.matmul %8, %9, %cst_14 {dimension_numbers = #tpu.dot_dimension_numbers<[1], [0], [0], [1], [0, 0, 1, 1], [], []>} : vector<2x128xf32>, vector<128x128xf32>, vector<2x128xf32> -> vector<2x128xf32>
    %11 = arith.addf %7, %10 : vector<2x128xf32>
    %c0_15 = arith.constant 0 : index
    %c0_16 = arith.constant 0 : index
    %12 = vector.load %arg9[%c0_15, %c0_16] : memref<1x128xf32, #tpu.memory_space<vmem>>, vector<1x128xf32>
    %13 = vector.broadcast %12 : vector<1x128xf32> to vector<2x128xf32>
    %14 = arith.addf %11, %13 : vector<2x128xf32>
    %c0_17 = arith.constant 0 : index
    %c0_18 = arith.constant 0 : index
    %c0_19 = arith.constant 0 : index
    %15 = vector.load %arg10[%c0_17, %c0_18, %c0_19] : memref<2x4x128xf32, #tpu.memory_space<vmem>>, vector<2x4x128xf32>
    %16 = vector.shape_cast %14 : vector<2x128xf32> to vector<2x1x128xf32>
    %17 = vector.broadcast %16 : vector<2x1x128xf32> to vector<2x4x128xf32>
    %18 = arith.mulf %17, %15 : vector<2x4x128xf32>
    %cst_20 = arith.constant dense<0.000000e+00> : vector<2x4xf32>
    %19 = vector.multi_reduction <add>, %18, %cst_20 [2] : vector<2x4x128xf32> to vector<2x4xf32>
    %20 = arith.mulf %14, %14 : vector<2x128xf32>
    %cst_21 = arith.constant dense<0.000000e+00> : vector<2xf32>
    %21 = vector.multi_reduction <add>, %20, %cst_21 [1] : vector<2x128xf32> to vector<2xf32>
    %22 = vector.shape_cast %21 : vector<2xf32> to vector<2x1xf32>
    %23 = math.sqrt %22 : vector<2x1xf32>
    %24 = arith.mulf %15, %15 : vector<2x4x128xf32>
    %cst_22 = arith.constant dense<0.000000e+00> : vector<2x4xf32>
    %25 = vector.multi_reduction <add>, %24, %cst_22 [2] : vector<2x4x128xf32> to vector<2x4xf32>
    %26 = math.sqrt %25 : vector<2x4xf32>
    %cst_23 = arith.constant 9.99999993E-9 : f32
    %27 = vector.broadcast %cst_23 : f32 to vector<2x1xf32>
    %28 = arith.maximumf %23, %27 : vector<2x1xf32>
    %cst_24 = arith.constant 9.99999993E-9 : f32
    %29 = vector.broadcast %cst_24 : f32 to vector<2x4xf32>
    %30 = arith.maximumf %26, %29 : vector<2x4xf32>
    %31 = vector.broadcast %28 : vector<2x1xf32> to vector<2x4xf32>
    %32 = arith.mulf %31, %30 : vector<2x4xf32>
    %33 = tpu.reciprocal %32 {approx = true} : vector<2x4xf32> -> vector<2x4xf32>
    %34 = arith.mulf %19, %33 : vector<2x4xf32>
    %c0_25 = arith.constant 0 : index
    %c0_26 = arith.constant 0 : index
    %35 = vector.load %arg11[%c0_25, %c0_26] : memref<2x4xf32, #tpu.memory_space<vmem>>, vector<2x4xf32>
    tpu.vector_store %arg11[%c0_25, %c0_26], %34 {strides = array<i32>} : memref<2x4xf32, #tpu.memory_space<vmem>>, vector<2x4xf32>,
    %36 = arith.negf %34 : vector<2x4xf32>
    %37 = math.exp %36 : vector<2x4xf32>
    %cst_27 = arith.constant 1.000000e+00 : f32
    %38 = vector.broadcast %cst_27 : f32 to vector<2x4xf32>
    %39 = arith.addf %38, %37 : vector<2x4xf32>
    %40 = arith.divf %38, %39 : vector<2x4xf32>
    %c0_28 = arith.constant 0 : index
    %c0_29 = arith.constant 0 : index
    %41 = vector.load %arg12[%c0_28, %c0_29] : memref<2x4xf32, #tpu.memory_space<vmem>>, vector<2x4xf32>
    tpu.vector_store %arg12[%c0_28, %c0_29], %40 {strides = array<i32>} : memref<2x4xf32, #tpu.memory_space<vmem>>, vector<2x4xf32>,
    return
  }
  func.func @transform_0(%arg0: i32) -> (i32, i32, i32) {
    %c0_i32 = arith.constant 0 : i32
    %c0_i32_0 = arith.constant 0 : i32
    %c0_i32_1 = arith.constant 0 : i32
    %c0_i32_2 = arith.constant 0 : i32
    return %c0_i32, %c0_i32_0, %c0_i32_1 : i32, i32, i32
  }
  func.func @transform_1(%arg0: i32) -> (i32, i32, i32) {
    %c0_i32 = arith.constant 0 : i32
    %c0_i32_0 = arith.constant 0 : i32
    %c0_i32_1 = arith.constant 0 : i32
    %c0_i32_2 = arith.constant 0 : i32
    return %c0_i32, %c0_i32_0, %c0_i32_1 : i32, i32, i32
  }
  func.func @transform_2(%arg0: i32) -> (i32, i32) {
    %c0_i32 = arith.constant 0 : i32
    %c0_i32_0 = arith.constant 0 : i32
    %c0_i32_1 = arith.constant 0 : i32
    return %c0_i32, %c0_i32_0 : i32, i32
  }
  func.func @transform_3(%arg0: i32) -> (i32, i32) {
    %c0_i32 = arith.constant 0 : i32
    %c0_i32_0 = arith.constant 0 : i32
    %c0_i32_1 = arith.constant 0 : i32
    return %c0_i32, %c0_i32_0 : i32, i32
  }
  func.func @transform_4(%arg0: i32) -> (i32, i32) {
    %c0_i32 = arith.constant 0 : i32
    %c0_i32_0 = arith.constant 0 : i32
    %c0_i32_1 = arith.constant 0 : i32
    return %c0_i32, %c0_i32_0 : i32, i32
  }
  func.func @transform_5(%arg0: i32) -> (i32, i32) {
    %c0_i32 = arith.constant 0 : i32
    %c0_i32_0 = arith.constant 0 : i32
    %c0_i32_1 = arith.constant 0 : i32
    return %c0_i32, %c0_i32_0 : i32, i32
  }
  func.func @transform_6(%arg0: i32) -> (i32, i32) {
    %c0_i32 = arith.constant 0 : i32
    %c0_i32_0 = arith.constant 0 : i32
    %c0_i32_1 = arith.constant 0 : i32
    return %c0_i32, %c0_i32_0 : i32, i32
  }
  func.func @transform_7(%arg0: i32) -> (i32, i32) {
    %c0_i32 = arith.constant 0 : i32
    %c0_i32_0 = arith.constant 0 : i32
    %c0_i32_1 = arith.constant 0 : i32
    return %c0_i32, %c0_i32_0 : i32, i32
  }
  func.func @transform_8(%arg0: i32) -> (i32, i32) {
    %c0_i32 = arith.constant 0 : i32
    %c0_i32_0 = arith.constant 0 : i32
    %c0_i32_1 = arith.constant 0 : i32
    return %c0_i32, %c0_i32_0 : i32, i32
  }
  func.func @transform_9(%arg0: i32) -> (i32, i32, i32) {
    %c0_i32 = arith.constant 0 : i32
    %c0_i32_0 = arith.constant 0 : i32
    %c0_i32_1 = arith.constant 0 : i32
    %c0_i32_2 = arith.constant 0 : i32
    return %c0_i32, %c0_i32_0, %c0_i32_1 : i32, i32, i32
  }
  func.func @transform_10(%arg0: i32) -> (i32, i32) {
    %c0_i32 = arith.constant 0 : i32
    %c0_i32_0 = arith.constant 0 : i32
    %c0_i32_1 = arith.constant 0 : i32
    return %c0_i32, %c0_i32_0 : i32, i32
  }
  func.func @transform_11(%arg0: i32) -> (i32, i32) {
    %c0_i32 = arith.constant 0 : i32
    %c0_i32_0 = arith.constant 0 : i32
    %c0_i32_1 = arith.constant 0 : i32
    return %c0_i32, %c0_i32_0 : i32, i32
  }
}

</mosaic_0001>

<llo_original>
// kernel: discriminator_forward.3
$region0: #{discriminator_forward.3}
  #allocation0 [shape = 'u32[]', space=smem, size = 0x4, offset = 0x4, fixed_abs, tag = 'smem constant byte address 0x4 - core index']
  #allocation1 [shape = 'u32[144,128]{1,0:T(1,128)}', space=vmem, size = 0x12000, scoped, tag = 'internal scratch']
  #allocation2 [shape = 'f32[2,128]{1,0:T(2,128)}', space=vmem, size = 0x400, scoped, tag = 'scratch operand']
  #allocation3 [shape = 'f32[2,128]{1,0:T(2,128)}', space=vmem, size = 0x400, scoped, tag = 'scratch operand']
  %s0 = inlined_call_operand.vmem [shape: f32[3,2,384], index: 0, kind: input, shape index: {}]
  %s1 = inlined_call_operand.vmem [shape: f32[5,2,384], index: 1, kind: input, shape index: {}]
  %s2 = inlined_call_operand.vmem [shape: f32[128,384], index: 2, kind: input, shape index: {}]
  %s3 = inlined_call_operand.vmem [shape: f32[1,384], index: 3, kind: input, shape index: {}]
  %s4 = inlined_call_operand.vmem [shape: f32[128,384], index: 4, kind: input, shape index: {}]
  %s5 = inlined_call_operand.vmem [shape: f32[1,384], index: 5, kind: input, shape index: {}]
  %s6 = inlined_call_operand.vmem [shape: f32[128,128], index: 6, kind: input, shape index: {}]
  %s7 = inlined_call_operand.vmem [shape: f32[128,128], index: 7, kind: input, shape index: {}]
  %s8 = inlined_call_operand.vmem [shape: f32[1,128], index: 8, kind: input, shape index: {}]
  %s9 = inlined_call_operand.vmem [shape: f32[2,4,128], index: 9, kind: input, shape index: {}]
  %s10 = inlined_call_operand.hbm [shape: f32[2,4], index: 10, kind: output, shape index: {0}]
  %s11 = inlined_call_operand.hbm [shape: f32[2,4], index: 11, kind: output, shape index: {1}]
  %12 = xla_tuple %s10, %s11
  %s13 = sld [smem:[#allocation0]]
  $region73: #{discriminator_forward.3} parent=0
    _
  %s15 = ssub.s32 1, %s13
  %s16 = scalar_select 0, %s15, %s13
  $region1: #{discriminator_forward.3} parent=0
    #allocation4 [shape = 'u8[1024]{0}', space=vmem, size = 0x400, scoped, tag = 'output window, operand 0, single buffered']
    #allocation5 [shape = 's32[1]{0}', space=sflag, size = 0x4, scoped, tag = 'scoped memory for discriminator_forward.3']
    #allocation6 [shape = 'u8[1024]{0}', space=vmem, size = 0x400, scoped, tag = 'output window, operand 1, single buffered']
    #allocation7 [shape = 's32[1]{0}', space=sflag, size = 0x4, scoped, tag = 'scoped memory for discriminator_forward.3']
    %17 = vsyncpa [#allocation5], 0
    %18 = vsyncpa [#allocation7], 0
    // Predicated region
    $region2: #{discriminator_forward.3} parent=1 // pred_check
      _
    $region3: #{discriminator_forward.3} parent=1 // pred_check_branch
      %20 = sbr.rel (0) target = $region5
    $region4: #{discriminator_forward.3} parent=1 // pred_region
      _
    $region5: #{discriminator_forward.3} parent=1 // pred_fallthru
      _
    // Predicated region
    $region6: #{discriminator_forward.3} parent=1 // pred_check
      _
    $region7: #{discriminator_forward.3} parent=1 // pred_check_branch
      %22 = sbr.rel (0) target = $region9
    $region8: #{discriminator_forward.3} parent=1 // pred_region
      _
    $region9: #{discriminator_forward.3} parent=1 // pred_fallthru
      _
    // Predicated region
    $region10: #{discriminator_forward.3} parent=1 // pred_check
      _
    $region11: #{discriminator_forward.3} parent=1 // pred_check_branch
      %24 = sbr.rel (0) target = $region13
    $region12: #{discriminator_forward.3} parent=1 // pred_region
      _
    $region13: #{discriminator_forward.3} parent=1 // pred_fallthru
      _
    // Predicated region
    $region14: #{discriminator_forward.3} parent=1 // pred_check
      _
    $region15: #{discriminator_forward.3} parent=1 // pred_check_branch
      %26 = sbr.rel (0) target = $region17
    $region16: #{discriminator_forward.3} parent=1 // pred_region
      _
    $region17: #{discriminator_forward.3} parent=1 // pred_fallthru
      _
    // Predicated region
    $region18: #{discriminator_forward.3} parent=1 // pred_check
      _
    $region19: #{discriminator_forward.3} parent=1 // pred_check_branch
      %28 = sbr.rel (0) target = $region21
    $region20: #{discriminator_forward.3} parent=1 // pred_region
      _
    $region21: #{discriminator_forward.3} parent=1 // pred_fallthru
      _
    // Predicated region
    $region22: #{discriminator_forward.3} parent=1 // pred_check
      _
    $region23: #{discriminator_forward.3} parent=1 // pred_check_branch
      %30 = sbr.rel (0) target = $region25
    $region24: #{discriminator_forward.3} parent=1 // pred_region
      _
    $region25: #{discriminator_forward.3} parent=1 // pred_fallthru
      _
    // Predicated region
    $region26: #{discriminator_forward.3} parent=1 // pred_check
      _
    $region27: #{discriminator_forward.3} parent=1 // pred_check_branch
      %32 = sbr.rel (0) target = $region29
    $region28: #{discriminator_forward.3} parent=1 // pred_region
      _
    $region29: #{discriminator_forward.3} parent=1 // pred_fallthru
      _
    // Predicated region
    $region30: #{discriminator_forward.3} parent=1 // pred_check
      _
    $region31: #{discriminator_forward.3} parent=1 // pred_check_branch
      %34 = sbr.rel (0) target = $region33
    $region32: #{discriminator_forward.3} parent=1 // pred_region
      _
    $region33: #{discriminator_forward.3} parent=1 // pred_fallthru
      _
    // Predicated region
    $region34: #{discriminator_forward.3} parent=1 // pred_check
      _
    $region35: #{discriminator_forward.3} parent=1 // pred_check_branch
      %36 = sbr.rel (0) target = $region37
    $region36: #{discriminator_forward.3} parent=1 // pred_region
      _
    $region37: #{discriminator_forward.3} parent=1 // pred_fallthru
      _
    // Predicated region
    $region38: #{discriminator_forward.3} parent=1 // pred_check
      _
    $region39: #{discriminator_forward.3} parent=1 // pred_check_branch
      %38 = sbr.rel (0) target = $region41
    $region40: #{discriminator_forward.3} parent=1 // pred_region
      _
    $region41: #{discriminator_forward.3} parent=1 // pred_fallthru
      _
    %39 = vst [vmem:[#allocation2] sm:$0x3] 0.0
    %40 = vst [vmem:[#allocation3] sm:$0x3] 0.0
    loop: start=0, step=1, limit=5
    $region42: #{discriminator_forward.3} parent=1 // loop_pre_header
      _
    $region43: #{discriminator_forward.3} parent=1 // loop_header
      %s42 = sphi 0, %s46
      %p43 = scmp.ge.s32.totalorder %s42, 5
    $region44: #{discriminator_forward.3} parent=1 // loop_header_branch
      %45 = sbr.rel (%p43) target = $region48
    $region45: #{discriminator_forward.3} parent=1 // loop_body
      %p47 = scmp.lt.s32.totalorder %s42, 3
      // Predicated region
      $region49: #{discriminator_forward.3} parent=45 // pred_check
        %p48 = pneg %p47
      $region50: #{discriminator_forward.3} parent=45 // pred_check_branch
        %50 = sbr.rel (%p48) target = $region52
      $region51: #{discriminator_forward.3} parent=45 // pred_region
        %s51 = smul.u32 %s42, 3
        %s52 = smul.addr %s51, 2
        %s53 = scalar_lea.vmem %s0, %s52
        %v54 = vld [vmem:[%s53] sm:$0x3f]
        %v55 = vld [vmem:[#allocation2] sm:$0x3]
        %v56 = vld [vmem:[%s2] sm:$0xff]
        %v57 = vld [vmem:[%s2 + $0x8] sm:$0xff]
        %v58 = vld [vmem:[%s2 + $0x10] sm:$0xff]
        %v59 = vld [vmem:[%s2 + $0x18] sm:$0xff]
        %v60 = vld [vmem:[%s2 + $0x20] sm:$0xff]
        %v61 = vld [vmem:[%s2 + $0x28] sm:$0xff]
        %v62 = vld [vmem:[%s2 + $0x30] sm:$0xff]
        %v63 = vld [vmem:[%s2 + $0x38] sm:$0xff]
        %v64 = vld [vmem:[%s2 + $0x40] sm:$0xff]
        %v65 = vld [vmem:[%s2 + $0x48] sm:$0xff]
        %v66 = vld [vmem:[%s2 + $0x50] sm:$0xff]
        %v67 = vld [vmem:[%s2 + $0x58] sm:$0xff]
        %v68 = vld [vmem:[%s2 + $0x60] sm:$0xff]
        %v69 = vld [vmem:[%s2 + $0x68] sm:$0xff]
        %v70 = vld [vmem:[%s2 + $0x70] sm:$0xff]
        %v71 = vld [vmem:[%s2 + $0x78] sm:$0xff]
        %v72 = vld [vmem:[%s2 + $0x80] sm:$0xff]
        %v73 = vld [vmem:[%s2 + $0x88] sm:$0xff]
        %v74 = vld [vmem:[%s2 + $0x90] sm:$0xff]
        %v75 = vld [vmem:[%s2 + $0x98] sm:$0xff]
        %v76 = vld [vmem:[%s2 + $0xa0] sm:$0xff]
        %v77 = vld [vmem:[%s2 + $0xa8] sm:$0xff]
        %v78 = vld [vmem:[%s2 + $0xb0] sm:$0xff]
        %v79 = vld [vmem:[%s2 + $0xb8] sm:$0xff]
        %v80 = vld [vmem:[%s2 + $0xc0] sm:$0xff]
        %v81 = vld [vmem:[%s2 + $0xc8] sm:$0xff]
        %v82 = vld [vmem:[%s2 + $0xd0] sm:$0xff]
        %v83 = vld [vmem:[%s2 + $0xd8] sm:$0xff]
        %v84 = vld [vmem:[%s2 + $0xe0] sm:$0xff]
        %v85 = vld [vmem:[%s2 + $0xe8] sm:$0xff]
        %v86 = vld [vmem:[%s2 + $0xf0] sm:$0xff]
        %v87 = vld [vmem:[%s2 + $0xf8] sm:$0xff]
        %v88 = vld [vmem:[%s2 + $0x100] sm:$0xff]
        %v89 = vld [vmem:[%s2 + $0x108] sm:$0xff]
        %v90 = vld [vmem:[%s2 + $0x110] sm:$0xff]
        %v91 = vld [vmem:[%s2 + $0x118] sm:$0xff]
        %v92 = vld [vmem:[%s2 + $0x120] sm:$0xff]
        %v93 = vld [vmem:[%s2 + $0x128] sm:$0xff]
        %v94 = vld [vmem:[%s2 + $0x130] sm:$0xff]
        %v95 = vld [vmem:[%s2 + $0x138] sm:$0xff]
        %v96 = vld [vmem:[%s2 + $0x140] sm:$0xff]
        %v97 = vld [vmem:[%s2 + $0x148] sm:$0xff]
        %v98 = vld [vmem:[%s2 + $0x150] sm:$0xff]
        %v99 = vld [vmem:[%s2 + $0x158] sm:$0xff]
        %v100 = vld [vmem:[%s2 + $0x160] sm:$0xff]
        %v101 = vld [vmem:[%s2 + $0x168] sm:$0xff]
        %v102 = vld [vmem:[%s2 + $0x170] sm:$0xff]
        %v103 = vld [vmem:[%s2 + $0x178] sm:$0xff]
        %v104 = vld [vmem:[%s3] sm:$0x7]
        %v106 = vlaneseq
        %v107 = vshrl.u32 %v106, 7
        %v108 = vsub.s32 0, %v107
        %v109 = vrot.slane %v104, %v108
        %v110 = vlaneseq
        %v111 = vshrl.u32 %v110, 7
        %v112 = vsub.s32 1, %v111
        %v113 = vrot.slane %v104, %v112
        %v114 = vlaneseq
        %v115 = vshrl.u32 %v114, 7
        %v116 = vsub.s32 2, %v115
        %v117 = vrot.slane %v104, %v116
        %121 = vmatprep.subr.mxu0 %v57
        %122 = vmatpush1.msra.mxu0 %v56
        %123 = vmatprep.subr.mxu0 %v60
        %124 = vmatpush1.msra.mxu0 %v59
        %125 = vmatprep.subr.mxu0 %v63
        %126 = vmatpush1.msra.mxu0 %v62
        %127 = vmatprep.subr.mxu0 %v66
        %128 = vmatpush1.msra.mxu0 %v65
        %129 = vmatprep.subr.mxu0 %v69
        %130 = vmatpush1.msra.mxu0 %v68
        %131 = vmatprep.subr.mxu0 %v72
        %132 = vmatpush1.msra.mxu0 %v71
        %133 = vmatprep.subr.mxu0 %v75
        %134 = vmatpush1.msra.mxu0 %v74
        %135 = vmatprep.subr.mxu0 %v78
        %136 = vmatpush1.msra.mxu0 %v77
        %137 = vmatprep.subr.mxu0 %v81
        %138 = vmatpush1.msra.mxu0 %v80
        %139 = vmatprep.subr.mxu0 %v84
        %140 = vmatpush1.msra.mxu0 %v83
        %141 = vmatprep.subr.mxu0 %v87
        %142 = vmatpush1.msra.mxu0 %v86
        %143 = vmatprep.subr.mxu0 %v90
        %144 = vmatpush1.msra.mxu0 %v89
        %145 = vmatprep.subr.mxu0 %v93
        %146 = vmatpush1.msra.mxu0 %v92
        %147 = vmatprep.subr.mxu0 %v96
        %148 = vmatpush1.msra.mxu0 %v95
        %149 = vmatprep.subr.mxu0 %v99
        %150 = vmatpush1.msra.mxu0 %v98
        %151 = vmatprep.subr.mxu0 %v102
        %152 = vmatpush1.msra.mxu0 %v101
        %153 = vmatprep.subr.mxu0 0.0
        %154 = vmatpush1.msra.mxu0 0.0
        %155 = vmatprep.subr.mxu0 0.0
        %156 = vmatpush1.msra.mxu0 0.0
        %157 = vmatprep.subr.mxu0 0.0
        %158 = vmatpush1.msra.mxu0 0.0
        %159 = vmatprep.subr.mxu0 0.0
        %160 = vmatpush1.msra.mxu0 0.0
        %161 = vmatprep.subr.mxu0 0.0
        %162 = vmatpush1.msra.mxu0 0.0
        %163 = vmatprep.subr.mxu0 0.0
        %164 = vmatpush1.msra.mxu0 0.0
        %165 = vmatprep.subr.mxu0 0.0
        %166 = vmatpush1.msra.mxu0 0.0
        %167 = vmatprep.subr.mxu0 0.0
        %168 = vmatpush1.msra.mxu0 0.0
        %169 = vmatprep.subr.mxu0 0.0
        %170 = vmatpush1.msra.mxu0 0.0
        %171 = vmatprep.subr.mxu0 0.0
        %172 = vmatpush1.msra.mxu0 0.0
        %173 = vmatprep.subr.mxu0 0.0
        %174 = vmatpush1.msra.mxu0 0.0
        %175 = vmatprep.subr.mxu0 0.0
        %176 = vmatpush1.msra.mxu0 0.0
        %177 = vmatprep.subr.mxu0 0.0
        %178 = vmatpush1.msra.mxu0 0.0
        %179 = vmatprep.subr.mxu0 0.0
        %180 = vmatpush1.msra.mxu0 0.0
        %181 = vmatprep.subr.mxu0 0.0
        %182 = vmatpush1.msra.mxu0 0.0
        %183 = vmatprep.subr.mxu0 0.0
        %184 = vmatpush1.msra.mxu0 0.0
        %185 = vmatprep.mubr.f32.mxu0 0.0
        %186 = vmatmul.mubr.f32.gmra.mrb[0].mxu0 %v55
        %v187 = vpop.f32.mrb[0].mxu0
        %v188 = vadd.f32 %v109, %v187
        %v189 = vpop.f32.mrb[0].mxu0
        %v190 = vadd.f32 %v113, %v189
        %191 = vdwg.mxu0
        %192 = vmatprep.subr.mxu0 0.0
        %193 = vmatpush1.msra.mxu0 %v58
        %194 = vmatprep.subr.mxu0 0.0
        %195 = vmatpush1.msra.mxu0 %v61
        %196 = vmatprep.subr.mxu0 0.0
        %197 = vmatpush1.msra.mxu0 %v64
        %198 = vmatprep.subr.mxu0 0.0
        %199 = vmatpush1.msra.mxu0 %v67
        %200 = vmatprep.subr.mxu0 0.0
        %201 = vmatpush1.msra.mxu0 %v70
        %202 = vmatprep.subr.mxu0 0.0
        %203 = vmatpush1.msra.mxu0 %v73
        %204 = vmatprep.subr.mxu0 0.0
        %205 = vmatpush1.msra.mxu0 %v76
        %206 = vmatprep.subr.mxu0 0.0
        %207 = vmatpush1.msra.mxu0 %v79
        %208 = vmatprep.subr.mxu0 0.0
        %209 = vmatpush1.msra.mxu0 %v82
        %210 = vmatprep.subr.mxu0 0.0
        %211 = vmatpush1.msra.mxu0 %v85
        %212 = vmatprep.subr.mxu0 0.0
        %213 = vmatpush1.msra.mxu0 %v88
        %214 = vmatprep.subr.mxu0 0.0
        %215 = vmatpush1.msra.mxu0 %v91
        %216 = vmatprep.subr.mxu0 0.0
        %217 = vmatpush1.msra.mxu0 %v94
        %218 = vmatprep.subr.mxu0 0.0
        %219 = vmatpush1.msra.mxu0 %v97
        %220 = vmatprep.subr.mxu0 0.0
        %221 = vmatpush1.msra.mxu0 %v100
        %222 = vmatprep.subr.mxu0 0.0
        %223 = vmatpush1.msra.mxu0 %v103
        %224 = vmatprep.subr.mxu0 0.0
        %225 = vmatpush1.msra.mxu0 0.0
        %226 = vmatprep.subr.mxu0 0.0
        %227 = vmatpush1.msra.mxu0 0.0
        %228 = vmatprep.subr.mxu0 0.0
        %229 = vmatpush1.msra.mxu0 0.0
        %230 = vmatprep.subr.mxu0 0.0
        %231 = vmatpush1.msra.mxu0 0.0
        %232 = vmatprep.subr.mxu0 0.0
        %233 = vmatpush1.msra.mxu0 0.0
        %234 = vmatprep.subr.mxu0 0.0
        %235 = vmatpush1.msra.mxu0 0.0
        %236 = vmatprep.subr.mxu0 0.0
        %237 = vmatpush1.msra.mxu0 0.0
        %238 = vmatprep.subr.mxu0 0.0
        %239 = vmatpush1.msra.mxu0 0.0
        %240 = vmatprep.subr.mxu0 0.0
        %241 = vmatpush1.msra.mxu0 0.0
        %242 = vmatprep.subr.mxu0 0.0
        %243 = vmatpush1.msra.mxu0 0.0
        %244 = vmatprep.subr.mxu0 0.0
        %245 = vmatpush1.msra.mxu0 0.0
        %246 = vmatprep.subr.mxu0 0.0
        %247 = vmatpush1.msra.mxu0 0.0
        %248 = vmatprep.subr.mxu0 0.0
        %249 = vmatpush1.msra.mxu0 0.0
        %250 = vmatprep.subr.mxu0 0.0
        %251 = vmatpush1.msra.mxu0 0.0
        %252 = vmatprep.subr.mxu0 0.0
        %253 = vmatpush1.msra.mxu0 0.0
        %254 = vmatprep.subr.mxu0 0.0
        %255 = vmatpush1.msra.mxu0 0.0
        %256 = vmatprep.mubr.f32.mxu0 0.0
        %257 = vmatmul.mubr.f32.gmra.mrb[0].mxu0 %v55
        %v258 = vpop.f32.mrb[0].mxu0
        %v259 = vadd.f32 %v117, %v258
        %v260 = vpop.f32.mrb[0].mxu0
        %261 = vdwg.mxu0
        %v262 = vadd.f32 %v54, %v188
        %v263 = vxor.u32 %v262, 2147483648
        %v264 = vmul.f32 %v263, 1.442695
        %v265 = vpow.pop %v264
        %v266 = vadd.f32 %v265, 1.0
        %v267 = vrcp.pop %v266
        %v268 = vmul.f32 1.0, %v267
        %v270 = vrot.slane %v54, 2
        %v272 = vadd.f32 %v270, %v190
        %v273 = vxor.u32 %v272, 2147483648
        %v274 = vmul.f32 %v273, 1.442695
        %v275 = vpow.pop %v274
        %v276 = vadd.f32 %v275, 1.0
        %v277 = vrcp.pop %v276
        %v278 = vmul.f32 1.0, %v277
        %v279 = vmul.f32 %v268, %v259
        %v280 = vrot.slane %v54, 4
        %v282 = vadd.f32 %v280, %v279
        %v283 = vtanh.pop %v282
        %v284 = vsub.f32 1.0, %v278
        %v285 = vmul.f32 %v284, %v283
        %v286 = vmul.f32 %v278, %v55
        %v287 = vadd.f32 %v285, %v286
        %288 = vst [vmem:[#allocation2] sm:$0x3] %v287
      $region52: #{discriminator_forward.3} parent=45 // pred_fallthru
        _
      %p289 = scmp.lt.s32.totalorder %s42, 5
      // Predicated region
      $region53: #{discriminator_forward.3} parent=45 // pred_check
        %p290 = pneg %p289
      $region54: #{discriminator_forward.3} parent=45 // pred_check_branch
        %292 = sbr.rel (%p290) target = $region56
      $region55: #{discriminator_forward.3} parent=45 // pred_region
        %s293 = smul.u32 %s42, 3
        %s294 = smul.addr %s293, 2
        %s295 = scalar_lea.vmem %s1, %s294
        %v296 = vld [vmem:[%s295] sm:$0x3f]
        %v297 = vld [vmem:[#allocation3] sm:$0x3]
        %v298 = vld [vmem:[%s4] sm:$0xff]
        %v299 = vld [vmem:[%s4 + $0x8] sm:$0xff]
        %v300 = vld [vmem:[%s4 + $0x10] sm:$0xff]
        %v301 = vld [vmem:[%s4 + $0x18] sm:$0xff]
        %v302 = vld [vmem:[%s4 + $0x20] sm:$0xff]
        %v303 = vld [vmem:[%s4 + $0x28] sm:$0xff]
        %v304 = vld [vmem:[%s4 + $0x30] sm:$0xff]
        %v305 = vld [vmem:[%s4 + $0x38] sm:$0xff]
        %v306 = vld [vmem:[%s4 + $0x40] sm:$0xff]
        %v307 = vld [vmem:[%s4 + $0x48] sm:$0xff]
        %v308 = vld [vmem:[%s4 + $0x50] sm:$0xff]
        %v309 = vld [vmem:[%s4 + $0x58] sm:$0xff]
        %v310 = vld [vmem:[%s4 + $0x60] sm:$0xff]
        %v311 = vld [vmem:[%s4 + $0x68] sm:$0xff]
        %v312 = vld [vmem:[%s4 + $0x70] sm:$0xff]
        %v313 = vld [vmem:[%s4 + $0x78] sm:$0xff]
        %v314 = vld [vmem:[%s4 + $0x80] sm:$0xff]
        %v315 = vld [vmem:[%s4 + $0x88] sm:$0xff]
        %v316 = vld [vmem:[%s4 + $0x90] sm:$0xff]
        %v317 = vld [vmem:[%s4 + $0x98] sm:$0xff]
        %v318 = vld [vmem:[%s4 + $0xa0] sm:$0xff]
        %v319 = vld [vmem:[%s4 + $0xa8] sm:$0xff]
        %v320 = vld [vmem:[%s4 + $0xb0] sm:$0xff]
        %v321 = vld [vmem:[%s4 + $0xb8] sm:$0xff]
        %v322 = vld [vmem:[%s4 + $0xc0] sm:$0xff]
        %v323 = vld [vmem:[%s4 + $0xc8] sm:$0xff]
        %v324 = vld [vmem:[%s4 + $0xd0] sm:$0xff]
        %v325 = vld [vmem:[%s4 + $0xd8] sm:$0xff]
        %v326 = vld [vmem:[%s4 + $0xe0] sm:$0xff]
        %v327 = vld [vmem:[%s4 + $0xe8] sm:$0xff]
        %v328 = vld [vmem:[%s4 + $0xf0] sm:$0xff]
        %v329 = vld [vmem:[%s4 + $0xf8] sm:$0xff]
        %v330 = vld [vmem:[%s4 + $0x100] sm:$0xff]
        %v331 = vld [vmem:[%s4 + $0x108] sm:$0xff]
        %v332 = vld [vmem:[%s4 + $0x110] sm:$0xff]
        %v333 = vld [vmem:[%s4 + $0x118] sm:$0xff]
        %v334 = vld [vmem:[%s4 + $0x120] sm:$0xff]
        %v335 = vld [vmem:[%s4 + $0x128] sm:$0xff]
        %v336 = vld [vmem:[%s4 + $0x130] sm:$0xff]
        %v337 = vld [vmem:[%s4 + $0x138] sm:$0xff]
        %v338 = vld [vmem:[%s4 + $0x140] sm:$0xff]
        %v339 = vld [vmem:[%s4 + $0x148] sm:$0xff]
        %v340 = vld [vmem:[%s4 + $0x150] sm:$0xff]
        %v341 = vld [vmem:[%s4 + $0x158] sm:$0xff]
        %v342 = vld [vmem:[%s4 + $0x160] sm:$0xff]
        %v343 = vld [vmem:[%s4 + $0x168] sm:$0xff]
        %v344 = vld [vmem:[%s4 + $0x170] sm:$0xff]
        %v345 = vld [vmem:[%s4 + $0x178] sm:$0xff]
        %v346 = vld [vmem:[%s5] sm:$0x7]
        %v348 = vlaneseq
        %v349 = vshrl.u32 %v348, 7
        %v350 = vsub.s32 0, %v349
        %v351 = vrot.slane %v346, %v350
        %v352 = vlaneseq
        %v353 = vshrl.u32 %v352, 7
        %v354 = vsub.s32 1, %v353
        %v355 = vrot.slane %v346, %v354
        %v356 = vlaneseq
        %v357 = vshrl.u32 %v356, 7
        %v358 = vsub.s32 2, %v357
        %v359 = vrot.slane %v346, %v358
        %363 = vmatprep.subr.mxu0 %v299
        %364 = vmatpush1.msra.mxu0 %v298
        %365 = vmatprep.subr.mxu0 %v302
        %366 = vmatpush1.msra.mxu0 %v301
        %367 = vmatprep.subr.mxu0 %v305
        %368 = vmatpush1.msra.mxu0 %v304
        %369 = vmatprep.subr.mxu0 %v308
        %370 = vmatpush1.msra.mxu0 %v307
        %371 = vmatprep.subr.mxu0 %v311
        %372 = vmatpush1.msra.mxu0 %v310
        %373 = vmatprep.subr.mxu0 %v314
        %374 = vmatpush1.msra.mxu0 %v313
        %375 = vmatprep.subr.mxu0 %v317
        %376 = vmatpush1.msra.mxu0 %v316
        %377 = vmatprep.subr.mxu0 %v320
        %378 = vmatpush1.msra.mxu0 %v319
        %379 = vmatprep.subr.mxu0 %v323
        %380 = vmatpush1.msra.mxu0 %v322
        %381 = vmatprep.subr.mxu0 %v326
        %382 = vmatpush1.msra.mxu0 %v325
        %383 = vmatprep.subr.mxu0 %v329
        %384 = vmatpush1.msra.mxu0 %v328
        %385 = vmatprep.subr.mxu0 %v332
        %386 = vmatpush1.msra.mxu0 %v331
        %387 = vmatprep.subr.mxu0 %v335
        %388 = vmatpush1.msra.mxu0 %v334
        %389 = vmatprep.subr.mxu0 %v338
        %390 = vmatpush1.msra.mxu0 %v337
        %391 = vmatprep.subr.mxu0 %v341
        %392 = vmatpush1.msra.mxu0 %v340
        %393 = vmatprep.subr.mxu0 %v344
        %394 = vmatpush1.msra.mxu0 %v343
        %395 = vmatprep.subr.mxu0 0.0
        %396 = vmatpush1.msra.mxu0 0.0
        %397 = vmatprep.subr.mxu0 0.0
        %398 = vmatpush1.msra.mxu0 0.0
        %399 = vmatprep.subr.mxu0 0.0
        %400 = vmatpush1.msra.mxu0 0.0
        %401 = vmatprep.subr.mxu0 0.0
        %402 = vmatpush1.msra.mxu0 0.0
        %403 = vmatprep.subr.mxu0 0.0
        %404 = vmatpush1.msra.mxu0 0.0
        %405 = vmatprep.subr.mxu0 0.0
        %406 = vmatpush1.msra.mxu0 0.0
        %407 = vmatprep.subr.mxu0 0.0
        %408 = vmatpush1.msra.mxu0 0.0
        %409 = vmatprep.subr.mxu0 0.0
        %410 = vmatpush1.msra.mxu0 0.0
        %411 = vmatprep.subr.mxu0 0.0
        %412 = vmatpush1.msra.mxu0 0.0
        %413 = vmatprep.subr.mxu0 0.0
        %414 = vmatpush1.msra.mxu0 0.0
        %415 = vmatprep.subr.mxu0 0.0
        %416 = vmatpush1.msra.mxu0 0.0
        %417 = vmatprep.subr.mxu0 0.0
        %418 = vmatpush1.msra.mxu0 0.0
        %419 = vmatprep.subr.mxu0 0.0
        %420 = vmatpush1.msra.mxu0 0.0
        %421 = vmatprep.subr.mxu0 0.0
        %422 = vmatpush1.msra.mxu0 0.0
        %423 = vmatprep.subr.mxu0 0.0
        %424 = vmatpush1.msra.mxu0 0.0
        %425 = vmatprep.subr.mxu0 0.0
        %426 = vmatpush1.msra.mxu0 0.0
        %427 = vmatprep.mubr.f32.mxu0 0.0
        %428 = vmatmul.mubr.f32.gmra.mrb[0].mxu0 %v297
        %v429 = vpop.f32.mrb[0].mxu0
        %v430 = vadd.f32 %v351, %v429
        %v431 = vpop.f32.mrb[0].mxu0
        %v432 = vadd.f32 %v355, %v431
        %433 = vdwg.mxu0
        %434 = vmatprep.subr.mxu0 0.0
        %435 = vmatpush1.msra.mxu0 %v300
        %436 = vmatprep.subr.mxu0 0.0
        %437 = vmatpush1.msra.mxu0 %v303
        %438 = vmatprep.subr.mxu0 0.0
        %439 = vmatpush1.msra.mxu0 %v306
        %440 = vmatprep.subr.mxu0 0.0
        %441 = vmatpush1.msra.mxu0 %v309
        %442 = vmatprep.subr.mxu0 0.0
        %443 = vmatpush1.msra.mxu0 %v312
        %444 = vmatprep.subr.mxu0 0.0
        %445 = vmatpush1.msra.mxu0 %v315
        %446 = vmatprep.subr.mxu0 0.0
        %447 = vmatpush1.msra.mxu0 %v318
        %448 = vmatprep.subr.mxu0 0.0
        %449 = vmatpush1.msra.mxu0 %v321
        %450 = vmatprep.subr.mxu0 0.0
        %451 = vmatpush1.msra.mxu0 %v324
        %452 = vmatprep.subr.mxu0 0.0
        %453 = vmatpush1.msra.mxu0 %v327
        %454 = vmatprep.subr.mxu0 0.0
        %455 = vmatpush1.msra.mxu0 %v330
        %456 = vmatprep.subr.mxu0 0.0
        %457 = vmatpush1.msra.mxu0 %v333
        %458 = vmatprep.subr.mxu0 0.0
        %459 = vmatpush1.msra.mxu0 %v336
        %460 = vmatprep.subr.mxu0 0.0
        %461 = vmatpush1.msra.mxu0 %v339
        %462 = vmatprep.subr.mxu0 0.0
        %463 = vmatpush1.msra.mxu0 %v342
        %464 = vmatprep.subr.mxu0 0.0
        %465 = vmatpush1.msra.mxu0 %v345
        %466 = vmatprep.subr.mxu0 0.0
        %467 = vmatpush1.msra.mxu0 0.0
        %468 = vmatprep.subr.mxu0 0.0
        %469 = vmatpush1.msra.mxu0 0.0
        %470 = vmatprep.subr.mxu0 0.0
        %471 = vmatpush1.msra.mxu0 0.0
        %472 = vmatprep.subr.mxu0 0.0
        %473 = vmatpush1.msra.mxu0 0.0
        %474 = vmatprep.subr.mxu0 0.0
        %475 = vmatpush1.msra.mxu0 0.0
        %476 = vmatprep.subr.mxu0 0.0
        %477 = vmatpush1.msra.mxu0 0.0
        %478 = vmatprep.subr.mxu0 0.0
        %479 = vmatpush1.msra.mxu0 0.0
        %480 = vmatprep.subr.mxu0 0.0
        %481 = vmatpush1.msra.mxu0 0.0
        %482 = vmatprep.subr.mxu0 0.0
        %483 = vmatpush1.msra.mxu0 0.0
        %484 = vmatprep.subr.mxu0 0.0
        %485 = vmatpush1.msra.mxu0 0.0
        %486 = vmatprep.subr.mxu0 0.0
        %487 = vmatpush1.msra.mxu0 0.0
        %488 = vmatprep.subr.mxu0 0.0
        %489 = vmatpush1.msra.mxu0 0.0
        %490 = vmatprep.subr.mxu0 0.0
        %491 = vmatpush1.msra.mxu0 0.0
        %492 = vmatprep.subr.mxu0 0.0
        %493 = vmatpush1.msra.mxu0 0.0
        %494 = vmatprep.subr.mxu0 0.0
        %495 = vmatpush1.msra.mxu0 0.0
        %496 = vmatprep.subr.mxu0 0.0
        %497 = vmatpush1.msra.mxu0 0.0
        %498 = vmatprep.mubr.f32.mxu0 0.0
        %499 = vmatmul.mubr.f32.gmra.mrb[0].mxu0 %v297
        %v500 = vpop.f32.mrb[0].mxu0
        %v501 = vadd.f32 %v359, %v500
        %v502 = vpop.f32.mrb[0].mxu0
        %503 = vdwg.mxu0
        %v504 = vadd.f32 %v296, %v430
        %v505 = vxor.u32 %v504, 2147483648
        %v506 = vmul.f32 %v505, 1.442695
        %v507 = vpow.pop %v506
        %v508 = vadd.f32 %v507, 1.0
        %v509 = vrcp.pop %v508
        %v510 = vmul.f32 1.0, %v509
        %v512 = vrot.slane %v296, 2
        %v514 = vadd.f32 %v512, %v432
        %v515 = vxor.u32 %v514, 2147483648
        %v516 = vmul.f32 %v515, 1.442695
        %v517 = vpow.pop %v516
        %v518 = vadd.f32 %v517, 1.0
        %v519 = vrcp.pop %v518
        %v520 = vmul.f32 1.0, %v519
        %v521 = vmul.f32 %v510, %v501
        %v522 = vrot.slane %v296, 4
        %v524 = vadd.f32 %v522, %v521
        %v525 = vtanh.pop %v524
        %v526 = vsub.f32 1.0, %v520
        %v527 = vmul.f32 %v526, %v525
        %v528 = vmul.f32 %v520, %v297
        %v529 = vadd.f32 %v527, %v528
        %530 = vst [vmem:[#allocation3] sm:$0x3] %v529
      $region56: #{discriminator_forward.3} parent=45 // pred_fallthru
        _
    $region46: #{discriminator_forward.3} parent=1 // loop_footer
      %s46 = sadd.s32 1, %s42
    $region47: #{discriminator_forward.3} parent=1 // loop_footer_branch
      %41 = sbr.rel target = $region43
    $region48: #{discriminator_forward.3} parent=1 // loop_exit
      _
    %v531 = vld [vmem:[#allocation2] sm:$0x3]
    %v532 = vld [vmem:[%s6] sm:$0xff]
    %v533 = vld [vmem:[%s6 + $0x8] sm:$0xff]
    %v534 = vld [vmem:[%s6 + $0x10] sm:$0xff]
    %v535 = vld [vmem:[%s6 + $0x18] sm:$0xff]
    %v536 = vld [vmem:[%s6 + $0x20] sm:$0xff]
    %v537 = vld [vmem:[%s6 + $0x28] sm:$0xff]
    %v538 = vld [vmem:[%s6 + $0x30] sm:$0xff]
    %v539 = vld [vmem:[%s6 + $0x38] sm:$0xff]
    %v540 = vld [vmem:[%s6 + $0x40] sm:$0xff]
    %v541 = vld [vmem:[%s6 + $0x48] sm:$0xff]
    %v542 = vld [vmem:[%s6 + $0x50] sm:$0xff]
    %v543 = vld [vmem:[%s6 + $0x58] sm:$0xff]
    %v544 = vld [vmem:[%s6 + $0x60] sm:$0xff]
    %v545 = vld [vmem:[%s6 + $0x68] sm:$0xff]
    %v546 = vld [vmem:[%s6 + $0x70] sm:$0xff]
    %v547 = vld [vmem:[%s6 + $0x78] sm:$0xff]
    %v548 = vld [vmem:[#allocation3] sm:$0x3]
    %v549 = vld [vmem:[%s7] sm:$0xff]
    %v550 = vld [vmem:[%s7 + $0x8] sm:$0xff]
    %v551 = vld [vmem:[%s7 + $0x10] sm:$0xff]
    %v552 = vld [vmem:[%s7 + $0x18] sm:$0xff]
    %v553 = vld [vmem:[%s7 + $0x20] sm:$0xff]
    %v554 = vld [vmem:[%s7 + $0x28] sm:$0xff]
    %v555 = vld [vmem:[%s7 + $0x30] sm:$0xff]
    %v556 = vld [vmem:[%s7 + $0x38] sm:$0xff]
    %v557 = vld [vmem:[%s7 + $0x40] sm:$0xff]
    %v558 = vld [vmem:[%s7 + $0x48] sm:$0xff]
    %v559 = vld [vmem:[%s7 + $0x50] sm:$0xff]
    %v560 = vld [vmem:[%s7 + $0x58] sm:$0xff]
    %v561 = vld [vmem:[%s7 + $0x60] sm:$0xff]
    %v562 = vld [vmem:[%s7 + $0x68] sm:$0xff]
    %v563 = vld [vmem:[%s7 + $0x70] sm:$0xff]
    %v564 = vld [vmem:[%s7 + $0x78] sm:$0xff]
    %565 = vmatprep.subr.mxu0 0.0
    %566 = vmatpush1.msra.mxu0 %v549
    %567 = vmatprep.subr.mxu0 0.0
    %568 = vmatpush1.msra.mxu0 %v550
    %569 = vmatprep.subr.mxu0 0.0
    %570 = vmatpush1.msra.mxu0 %v551
    %571 = vmatprep.subr.mxu0 0.0
    %572 = vmatpush1.msra.mxu0 %v552
    %573 = vmatprep.subr.mxu0 0.0
    %574 = vmatpush1.msra.mxu0 %v553
    %575 = vmatprep.subr.mxu0 0.0
    %576 = vmatpush1.msra.mxu0 %v554
    %577 = vmatprep.subr.mxu0 0.0
    %578 = vmatpush1.msra.mxu0 %v555
    %579 = vmatprep.subr.mxu0 0.0
    %580 = vmatpush1.msra.mxu0 %v556
    %581 = vmatprep.subr.mxu0 0.0
    %582 = vmatpush1.msra.mxu0 %v557
    %583 = vmatprep.subr.mxu0 0.0
    %584 = vmatpush1.msra.mxu0 %v558
    %585 = vmatprep.subr.mxu0 0.0
    %586 = vmatpush1.msra.mxu0 %v559
    %587 = vmatprep.subr.mxu0 0.0
    %588 = vmatpush1.msra.mxu0 %v560
    %589 = vmatprep.subr.mxu0 0.0
    %590 = vmatpush1.msra.mxu0 %v561
    %591 = vmatprep.subr.mxu0 0.0
    %592 = vmatpush1.msra.mxu0 %v562
    %593 = vmatprep.subr.mxu0 0.0
    %594 = vmatpush1.msra.mxu0 %v563
    %595 = vmatprep.subr.mxu0 0.0
    %596 = vmatpush1.msra.mxu0 %v564
    %597 = vmatprep.subr.mxu0 0.0
    %598 = vmatpush1.msra.mxu0 0.0
    %599 = vmatprep.subr.mxu0 0.0
    %600 = vmatpush1.msra.mxu0 0.0
    %601 = vmatprep.subr.mxu0 0.0
    %602 = vmatpush1.msra.mxu0 0.0
    %603 = vmatprep.subr.mxu0 0.0
    %604 = vmatpush1.msra.mxu0 0.0
    %605 = vmatprep.subr.mxu0 0.0
    %606 = vmatpush1.msra.mxu0 0.0
    %607 = vmatprep.subr.mxu0 0.0
    %608 = vmatpush1.msra.mxu0 0.0
    %609 = vmatprep.subr.mxu0 0.0
    %610 = vmatpush1.msra.mxu0 0.0
    %611 = vmatprep.subr.mxu0 0.0
    %612 = vmatpush1.msra.mxu0 0.0
    %613 = vmatprep.subr.mxu0 0.0
    %614 = vmatpush1.msra.mxu0 0.0
    %615 = vmatprep.subr.mxu0 0.0
    %616 = vmatpush1.msra.mxu0 0.0
    %617 = vmatprep.subr.mxu0 0.0
    %618 = vmatpush1.msra.mxu0 0.0
    %619 = vmatprep.subr.mxu0 0.0
    %620 = vmatpush1.msra.mxu0 0.0
    %621 = vmatprep.subr.mxu0 0.0
    %622 = vmatpush1.msra.mxu0 0.0
    %623 = vmatprep.subr.mxu0 0.0
    %624 = vmatpush1.msra.mxu0 0.0
    %625 = vmatprep.subr.mxu0 0.0
    %626 = vmatpush1.msra.mxu0 0.0
    %627 = vmatprep.subr.mxu0 0.0
    %628 = vmatpush1.msra.mxu0 0.0
    %629 = vmatprep.mubr.f32.mxu0 0.0
    %630 = vmatmul.mubr.f32.gmra.mrb[0].mxu0 %v548
    %v631 = vpop.f32.mrb[0].mxu0
    %v632 = vadd.f32 0.0, %v631
    %v633 = vpop.f32.mrb[0].mxu0
    %634 = vdwg.mxu0
    %635 = vmatprep.subr.mxu0 0.0
    %636 = vmatpush1.msra.mxu0 %v532
    %637 = vmatprep.subr.mxu0 0.0
    %638 = vmatpush1.msra.mxu0 %v533
    %639 = vmatprep.subr.mxu0 0.0
    %640 = vmatpush1.msra.mxu0 %v534
    %641 = vmatprep.subr.mxu0 0.0
    %642 = vmatpush1.msra.mxu0 %v535
    %643 = vmatprep.subr.mxu0 0.0
    %644 = vmatpush1.msra.mxu0 %v536
    %645 = vmatprep.subr.mxu0 0.0
    %646 = vmatpush1.msra.mxu0 %v537
    %647 = vmatprep.subr.mxu0 0.0
    %648 = vmatpush1.msra.mxu0 %v538
    %649 = vmatprep.subr.mxu0 0.0
    %650 = vmatpush1.msra.mxu0 %v539
    %651 = vmatprep.subr.mxu0 0.0
    %652 = vmatpush1.msra.mxu0 %v540
    %653 = vmatprep.subr.mxu0 0.0
    %654 = vmatpush1.msra.mxu0 %v541
    %655 = vmatprep.subr.mxu0 0.0
    %656 = vmatpush1.msra.mxu0 %v542
    %657 = vmatprep.subr.mxu0 0.0
    %658 = vmatpush1.msra.mxu0 %v543
    %659 = vmatprep.subr.mxu0 0.0
    %660 = vmatpush1.msra.mxu0 %v544
    %661 = vmatprep.subr.mxu0 0.0
    %662 = vmatpush1.msra.mxu0 %v545
    %663 = vmatprep.subr.mxu0 0.0
    %664 = vmatpush1.msra.mxu0 %v546
    %665 = vmatprep.subr.mxu0 0.0
    %666 = vmatpush1.msra.mxu0 %v547
    %667 = vmatprep.subr.mxu0 0.0
    %668 = vmatpush1.msra.mxu0 0.0
    %669 = vmatprep.subr.mxu0 0.0
    %670 = vmatpush1.msra.mxu0 0.0
    %671 = vmatprep.subr.mxu0 0.0
    %672 = vmatpush1.msra.mxu0 0.0
    %673 = vmatprep.subr.mxu0 0.0
    %674 = vmatpush1.msra.mxu0 0.0
    %675 = vmatprep.subr.mxu0 0.0
    %676 = vmatpush1.msra.mxu0 0.0
    %677 = vmatprep.subr.mxu0 0.0
    %678 = vmatpush1.msra.mxu0 0.0
    %679 = vmatprep.subr.mxu0 0.0
    %680 = vmatpush1.msra.mxu0 0.0
    %681 = vmatprep.subr.mxu0 0.0
    %682 = vmatpush1.msra.mxu0 0.0
    %683 = vmatprep.subr.mxu0 0.0
    %684 = vmatpush1.msra.mxu0 0.0
    %685 = vmatprep.subr.mxu0 0.0
    %686 = vmatpush1.msra.mxu0 0.0
    %687 = vmatprep.subr.mxu0 0.0
    %688 = vmatpush1.msra.mxu0 0.0
    %689 = vmatprep.subr.mxu0 0.0
    %690 = vmatpush1.msra.mxu0 0.0
    %691 = vmatprep.subr.mxu0 0.0
    %692 = vmatpush1.msra.mxu0 0.0
    %693 = vmatprep.subr.mxu0 0.0
    %694 = vmatpush1.msra.mxu0 0.0
    %695 = vmatprep.subr.mxu0 0.0
    %696 = vmatpush1.msra.mxu0 0.0
    %697 = vmatprep.subr.mxu0 0.0
    %698 = vmatpush1.msra.mxu0 0.0
    %699 = vmatprep.mubr.f32.mxu0 0.0
    %700 = vmatmul.mubr.f32.gmra.mrb[0].mxu0 %v531
    %v701 = vpop.f32.mrb[0].mxu0
    %v702 = vadd.f32 %v632, %v701
    %v703 = vpop.f32.mrb[0].mxu0
    %704 = vdwg.mxu0
    %v705 = vld [vmem:[%s8] sm:$0x1]
    %v707 = vlaneseq
    %v708 = vshrl.u32 %v707, 7
    %v709 = vsub.s32 0, %v708
    %v710 = vrot.slane %v705, %v709
    %v712 = vadd.f32 %v702, %v710
    %v713 = vld [vmem:[%s9] sm:$0xf]
    %v714 = vld [vmem:[%s9 + $0x4] sm:$0xf]
    %v717 = vunpack.c.l.s4 1966171168
    %v718 = vunpack.c.0.s8 %v717
    %v719 = vlaneseq
    %v720 = vshrl.u32 %v719, 7
    %v721 = vsub.s32 %v718, %v720
    %v722 = vrot.slane %v712, %v721
    %v723 = vcombine.high %v722, %v722
    %v725 = vunpack.c.l.s4 1966171168
    %v726 = vunpack.c.0.s8 %v725
    %v727 = vlaneseq
    %v728 = vshrl.u32 %v727, 7
    %v729 = vsub.s32 %v726, %v728
    %v730 = vrot.slane %v722, %v729
    %v732 = vunpack.c.l.s4 1966171168
    %v733 = vunpack.c.0.s8 %v732
    %v734 = vlaneseq
    %v735 = vshrl.u32 %v734, 7
    %v736 = vsub.s32 %v733, %v735
    %v737 = vrot.slane %v723, %v736
    %v738 = vlaneseq
    %v739 = vshrl.u32 %v738, 7
    %v740 = vsub.s32 0, %v739
    %v741 = vrot.slane %v730, %v740
    %v742 = vlaneseq
    %v743 = vshrl.u32 %v742, 7
    %v744 = vsub.s32 0, %v743
    %v745 = vrot.slane %v737, %v744
    %v748 = vmul.f32 %v741, %v713
    %v749 = vmul.f32 %v745, %v714
    %vm750 = vcmask 1043456
    %v751 = vsel %vm750, %v748, 0.0
    %752 = vadd.xlane.f32.xlu0 %v751
    %v753 = vpop.xlane.xlu0 %752
    %v754 = vsel %vm750, %v749, 0.0
    %755 = vadd.xlane.f32.xlu0 %v754
    %v756 = vpop.xlane.xlu0 %755
    %v757 = vmul.f32 %v712, %v712
    %vm758 = vcmask 1041408
    %v759 = vsel %vm758, %v757, 0.0
    %760 = vadd.xlane.f32.xlu0 %v759
    %v761 = vpop.xlane.xlu0 %760
    %v762 = vrsqrt.pop %v761
    %v763 = vmul.f32 %v761, %v762
    %vm764 = vcmp.eq.f32.partialorder %v761, inf
    %v765 = vsel %vm764, %v761, %v763
    %vm766 = vcmp.eq.f32.partialorder %v761, 0.0
    %v767 = vand.u32 %v761, 2147483648
    %v768 = vsel %vm766, %v767, %v765
    %v769 = vmul.f32 %v713, %v713
    %v770 = vmul.f32 %v714, %v714
    %v771 = vsel %vm750, %v769, 0.0
    %772 = vadd.xlane.f32.xlu0 %v771
    %v773 = vpop.xlane.xlu0 %772
    %v774 = vsel %vm750, %v770, 0.0
    %775 = vadd.xlane.f32.xlu0 %v774
    %v776 = vpop.xlane.xlu0 %775
    %v777 = vrsqrt.pop %v773
    %v778 = vmul.f32 %v773, %v777
    %vm779 = vcmp.eq.f32.partialorder %v773, inf
    %v780 = vsel %vm779, %v773, %v778
    %vm781 = vcmp.eq.f32.partialorder %v773, 0.0
    %v782 = vand.u32 %v773, 2147483648
    %v783 = vsel %vm781, %v782, %v780
    %v784 = vrsqrt.pop %v776
    %v785 = vmul.f32 %v776, %v784
    %vm786 = vcmp.eq.f32.partialorder %v776, inf
    %v787 = vsel %vm786, %v776, %v785
    %vm788 = vcmp.eq.f32.partialorder %v776, 0.0
    %v789 = vand.u32 %v776, 2147483648
    %v790 = vsel %vm788, %v789, %v787
    %v791 = vmax.f32 %v768, 1e-08
    %v792 = vmax.f32 %v783, 1e-08
    %v793 = vmax.f32 %v790, 1e-08
    %v796 = vlaneseq
    %v797 = vand.u32 %v796, 127
    %v798 = vlaneseq
    %v799 = vshrl.u32 %v798, 7
    %v800 = vsub.s32 %v797, %v799
    %v801 = vrot.slane %v792, %v800
    %v802 = vlaneseq
    %v803 = vshrl.u32 %v802, 7
    %v804 = vsub.s32 %v797, %v803
    %v805 = vrot.slane %v793, %v804
    %vm806 = vcmask 1041409
    %v807 = vsel %vm806, %v805, %v801
    %v809 = vmul.f32 %v791, %v807
    %v810 = vrcp.pop %v809
    %v812 = vlaneseq
    %v813 = vshrl.u32 %v812, 7
    %v814 = vsub.s32 0, %v813
    %v815 = vrot.slane %v810, %v814
    %817 = vbcast.lane.b32.xlu0 %v815, 256
    %v818 = vpop.permute.xlu0 %817
    %v819 = vlaneseq
    %v820 = vshrl.u32 %v819, 7
    %v821 = vsub.s32 1, %v820
    %v822 = vrot.slane %v810, %v821
    %824 = vbcast.lane.b32.xlu0 %v822, 256
    %v825 = vpop.permute.xlu0 %824
    %v828 = vmul.f32 %v753, %v818
    %v829 = vmul.f32 %v756, %v825
    %832 = vset.pattern.permute.xlu0 0
    %833 = vperm.xlu0 %832, %v828
    %v834 = vpop.permute.xlu0 %833
    %835 = vset.pattern.permute.xlu0 0
    %836 = vperm.xlu0 %835, %v829
    %v837 = vpop.permute.xlu0 %836
    %v838 = vlaneseq
    %v839 = vshrl.u32 %v838, 7
    %v840 = vsub.s32 %v797, %v839
    %v841 = vrot.slane %v834, %v840
    %v842 = vlaneseq
    %v843 = vshrl.u32 %v842, 7
    %v844 = vsub.s32 %v797, %v843
    %v845 = vrot.slane %v837, %v844
    %v846 = vsel %vm806, %v845, %v841
    %vm848 = vcmask 25600
    %849 = vst.msk [vmem:[#allocation4] sm:$0x3] %vm848, %v846
    %v850 = vxor.u32 %v828, 2147483648
    %v851 = vxor.u32 %v829, 2147483648
    %v852 = vmul.f32 %v850, 1.442695
    %v853 = vpow.pop %v852
    %v854 = vmul.f32 %v851, 1.442695
    %v855 = vpow.pop %v854
    %v856 = vadd.f32 %v853, 1.0
    %v857 = vadd.f32 %v855, 1.0
    %v858 = vrcp.pop %v856
    %v859 = vmul.f32 1.0, %v858
    %v860 = vrcp.pop %v857
    %v861 = vmul.f32 1.0, %v860
    %864 = vset.pattern.permute.xlu0 0
    %865 = vperm.xlu0 %864, %v859
    %v866 = vpop.permute.xlu0 %865
    %867 = vset.pattern.permute.xlu0 0
    %868 = vperm.xlu0 %867, %v861
    %v869 = vpop.permute.xlu0 %868
    %v870 = vlaneseq
    %v871 = vshrl.u32 %v870, 7
    %v872 = vsub.s32 %v797, %v871
    %v873 = vrot.slane %v866, %v872
    %v874 = vlaneseq
    %v875 = vshrl.u32 %v874, 7
    %v876 = vsub.s32 %v797, %v875
    %v877 = vrot.slane %v869, %v876
    %v878 = vsel %vm806, %v877, %v873
    %880 = vst.msk [vmem:[#allocation6] sm:$0x3] %vm848, %v878
    // Predicated region
    $region57: #{discriminator_forward.3} parent=1 // pred_check
      _
    $region58: #{discriminator_forward.3} parent=1 // pred_check_branch
      %882 = sbr.rel (0) target = $region60
    $region59: #{discriminator_forward.3} parent=1 // pred_region
      %s884 = ssub.s32 32, 32
      %885 = vsyncadd [#allocation5], %s884
      %s887 = sshll.u32 [#allocation4], 4
      %s888 = int_to_ptr.vmem [resolvable:$true] %s887
      %890 = dma.vmem_to_hbm [thread:$0]  %s888, 32, %s10, [#allocation5]
    $region60: #{discriminator_forward.3} parent=1 // pred_fallthru
      _
    // Predicated region
    $region61: #{discriminator_forward.3} parent=1 // pred_check
      _
    $region62: #{discriminator_forward.3} parent=1 // pred_check_branch
      %892 = sbr.rel (0) target = $region64
    $region63: #{discriminator_forward.3} parent=1 // pred_region
      %s894 = ssub.s32 32, 32
      %895 = vsyncadd [#allocation7], %s894
      %s897 = sshll.u32 [#allocation6], 4
      %s898 = int_to_ptr.vmem [resolvable:$true] %s897
      %900 = dma.vmem_to_hbm [thread:$0]  %s898, 32, %s11, [#allocation7]
    $region64: #{discriminator_forward.3} parent=1 // pred_fallthru
      _
    // Predicated region
    $region65: #{discriminator_forward.3} parent=1 // pred_check
      _
    $region66: #{discriminator_forward.3} parent=1 // pred_check_branch
      %902 = sbr.rel (0) target = $region68
    $region67: #{discriminator_forward.3} parent=1 // pred_region
      %903 = dma.done [#allocation5], 32
    $region68: #{discriminator_forward.3} parent=1 // pred_fallthru
      _
    // Predicated region
    $region69: #{discriminator_forward.3} parent=1 // pred_check
      _
    $region70: #{discriminator_forward.3} parent=1 // pred_check_branch
      %905 = sbr.rel (0) target = $region72
    $region71: #{discriminator_forward.3} parent=1 // pred_region
      %906 = dma.done [#allocation7], 32
    $region72: #{discriminator_forward.3} parent=1 // pred_fallthru
      _
    %907 = vsyncpa [#allocation5], 1
    %908 = vsyncpa [#allocation7], 1

// kernel: discriminator_forward.2
$region0: #{discriminator_forward.2}
  #allocation0 [shape = 'u32[]', space=smem, size = 0x4, offset = 0x4, fixed_abs, tag = 'smem constant byte address 0x4 - core index']
  #allocation1 [shape = 'u32[144,128]{1,0:T(1,128)}', space=vmem, size = 0x12000, scoped, tag = 'internal scratch']
  %s0 = inlined_call_operand.vmem [shape: bf16[14,4096], index: 0, kind: input, shape index: {}]
  %s1 = inlined_call_operand.hbm [shape: bf16[4096,1024], index: 1, kind: input, shape index: {}]
  %s2 = inlined_call_operand.hbm [shape: f32[1,1024], index: 2, kind: input, shape index: {}]
  %s3 = inlined_call_operand.hbm [shape: bf16[1024,128], index: 3, kind: input, shape index: {}]
  %s4 = inlined_call_operand.hbm [shape: f32[1,128], index: 4, kind: input, shape index: {}]
  %s5 = inlined_call_operand.vmem [shape: f32[2,14,128], index: 5, kind: output, shape index: {}]
  %s6 = sld [smem:[#allocation0]]
  $region69: #{discriminator_forward.2} parent=0
    _
  %s8 = ssub.s32 1, %s6
  %s9 = scalar_select 0, %s8, %s6
  $region1: #{discriminator_forward.2} parent=0
    #allocation2 [shape = 'u8[8388608]{0}', space=vmem, size = 0x800000, scoped, tag = 'input window, operand 1']
    #allocation3 [shape = 's32[2]{0}', space=sflag, size = 0x8, scoped, tag = 'scoped memory for discriminator_forward.2']
    #allocation4 [shape = 'u8[4096]{0}', space=vmem, size = 0x1000, scoped, tag = 'input window, operand 2']
    #allocation5 [shape = 's32[2]{0}', space=sflag, size = 0x8, scoped, tag = 'scoped memory for discriminator_forward.2']
    #allocation6 [shape = 'u8[262144]{0}', space=vmem, size = 0x40000, scoped, tag = 'input window, operand 3']
    #allocation7 [shape = 'u8[512]{0}', space=vmem, size = 0x400, scoped, tag = 'input window, operand 4, single buffered']
    #allocation8 [shape = 's32[1]{0}', space=sflag, size = 0x4, scoped, tag = 'scoped memory for discriminator_forward.2']
    %10 = vsyncpa [#allocation3], 0
    %s11 = scalar_lea.sflag [#allocation3], 1
    %12 = vsyncpa %s11, 0
    %13 = vsyncpa [#allocation5], 0
    %s14 = scalar_lea.sflag [#allocation5], 1
    %15 = vsyncpa %s14, 0
    %16 = vsyncpa [#allocation8], 0
    loop: start=0, step=1, limit=4
    $region2: #{discriminator_forward.2} parent=1 // loop_pre_header
      _
    $region3: #{discriminator_forward.2} parent=1 // loop_header
      %s18 = sphi 0, %s22
      %p19 = scmp.ge.s32.totalorder %s18, 4
      %s26 = sphi 0, %s26
      %s28 = sphi 0, %s26
      %s29 = sphi 0, %s28
      %s43 = sphi 0, %s29
      %s49 = sphi 0, %s51
      %s52 = sphi 0, %s49
      %s53 = sphi 0, %s52
      %s69 = sphi 0, %s53
      %s75 = sphi 0, %s77
      %s78 = sphi 0, %s75
      %s79 = sphi 0, %s78
      %s95 = sphi 0, %s79
      %s101 = sphi 0, %s103
      %s104 = sphi 0, %s101
      %s105 = sphi 0, %s104
      %s121 = sphi 0, %s105
      %s125 = sphi 0, %s125
      %s127 = sphi 0, %s125
      %s128 = sphi 0, %s127
      %s142 = sphi 0, %s128
      %s148 = sphi 0, %s150
      %s151 = sphi 0, %s148
      %s152 = sphi 0, %s151
      %s168 = sphi 0, %s152
    $region4: #{discriminator_forward.2} parent=1 // loop_header_branch
      %21 = sbr.rel (%p19) target = $region8
    $region5: #{discriminator_forward.2} parent=1 // loop_body
      %s23 = ssub.s32 %s18, 1
      %s24 = ssub.s32 %s18, 2
      %s25 = sadd.s32 %s18, 1
      %s27 = sadd.s32 %s26, 1
      %p30 = scmp.eq.s32.totalorder %s18, 1
      %p31 = scmp.ne.s32.totalorder %s26, %s28
      %p32 = scmp.eq.s32.totalorder %s18, 0
      %p33 = por %p31, %p32
      %p34 = scmp.ne.s32.totalorder %s26, %s28
      %p35 = scmp.eq.s32.totalorder %s23, 1
      %p36 = por %p34, %p35
      %p37 = scmp.ne.s32.totalorder %s28, %s29
      %p38 = scmp.eq.s32.totalorder %s23, 0
      %p39 = por %p37, %p38
      %p40 = scmp.ne.s32.totalorder %s28, %s29
      %p41 = scmp.eq.s32.totalorder %s24, 1
      %p42 = por %p40, %p41
      %p44 = scmp.ne.s32.totalorder %s29, %s43
      %p45 = scmp.eq.s32.totalorder %s24, 0
      %p46 = por %p44, %p45
      %s47 = ssub.s32 %s18, %s25
      %p48 = scmp.eq.s32.totalorder %s47, 0
      %s50 = sadd.s32 %s49, 1
      %s51 = scalar_select %p48, %s49, %s50
      %p54 = pneg %p48
      %p55 = scmp.eq.s32.totalorder %s18, 1
      %p56 = por %p54, %p55
      %p57 = scmp.ne.s32.totalorder %s49, %s52
      %p58 = scmp.eq.s32.totalorder %s18, 0
      %p59 = por %p57, %p58
      %p60 = scmp.ne.s32.totalorder %s49, %s52
      %p61 = scmp.eq.s32.totalorder %s23, 1
      %p62 = por %p60, %p61
      %p63 = scmp.ne.s32.totalorder %s52, %s53
      %p64 = scmp.eq.s32.totalorder %s23, 0
      %p65 = por %p63, %p64
      %p66 = scmp.ne.s32.totalorder %s52, %s53
      %p67 = scmp.eq.s32.totalorder %s24, 1
      %p68 = por %p66, %p67
      %p70 = scmp.ne.s32.totalorder %s53, %s69
      %p71 = scmp.eq.s32.totalorder %s24, 0
      %p72 = por %p70, %p71
      %s73 = ssub.s32 %s18, %s25
      %p74 = scmp.eq.s32.totalorder %s73, 0
      %s76 = sadd.s32 %s75, 1
      %s77 = scalar_select %p74, %s75, %s76
      %p80 = pneg %p74
      %p81 = scmp.eq.s32.totalorder %s18, 1
      %p82 = por %p80, %p81
      %p83 = scmp.ne.s32.totalorder %s75, %s78
      %p84 = scmp.eq.s32.totalorder %s18, 0
      %p85 = por %p83, %p84
      %p86 = scmp.ne.s32.totalorder %s75, %s78
      %p87 = scmp.eq.s32.totalorder %s23, 1
      %p88 = por %p86, %p87
      %p89 = scmp.ne.s32.totalorder %s78, %s79
      %p90 = scmp.eq.s32.totalorder %s23, 0
      %p91 = por %p89, %p90
      %p92 = scmp.ne.s32.totalorder %s78, %s79
      %p93 = scmp.eq.s32.totalorder %s24, 1
      %p94 = por %p92, %p93
      %p96 = scmp.ne.s32.totalorder %s79, %s95
      %p97 = scmp.eq.s32.totalorder %s24, 0
      %p98 = por %p96, %p97
      %s99 = ssub.s32 %s18, %s25
      %p100 = scmp.eq.s32.totalorder %s99, 0
      %s102 = sadd.s32 %s101, 1
      %s103 = scalar_select %p100, %s101, %s102
      %p106 = pneg %p100
      %p107 = scmp.eq.s32.totalorder %s18, 1
      %p108 = por %p106, %p107
      %p109 = scmp.ne.s32.totalorder %s101, %s104
      %p110 = scmp.eq.s32.totalorder %s18, 0
      %p111 = por %p109, %p110
      %p112 = scmp.ne.s32.totalorder %s101, %s104
      %p113 = scmp.eq.s32.totalorder %s23, 1
      %p114 = por %p112, %p113
      %p115 = scmp.ne.s32.totalorder %s104, %s105
      %p116 = scmp.eq.s32.totalorder %s23, 0
      %p117 = por %p115, %p116
      %p118 = scmp.ne.s32.totalorder %s104, %s105
      %p119 = scmp.eq.s32.totalorder %s24, 1
      %p120 = por %p118, %p119
      %p122 = scmp.ne.s32.totalorder %s105, %s121
      %p123 = scmp.eq.s32.totalorder %s24, 0
      %p124 = por %p122, %p123
      %s126 = sadd.s32 %s125, 1
      %p129 = scmp.eq.s32.totalorder %s18, 1
      %p130 = scmp.ne.s32.totalorder %s125, %s127
      %p131 = scmp.eq.s32.totalorder %s18, 0
      %p132 = por %p130, %p131
      %p133 = scmp.ne.s32.totalorder %s125, %s127
      %p134 = scmp.eq.s32.totalorder %s23, 1
      %p135 = por %p133, %p134
      %p136 = scmp.ne.s32.totalorder %s127, %s128
      %p137 = scmp.eq.s32.totalorder %s23, 0
      %p138 = por %p136, %p137
      %p139 = scmp.ne.s32.totalorder %s127, %s128
      %p140 = scmp.eq.s32.totalorder %s24, 1
      %p141 = por %p139, %p140
      %p143 = scmp.ne.s32.totalorder %s128, %s142
      %p144 = scmp.eq.s32.totalorder %s24, 0
      %p145 = por %p143, %p144
      %s146 = ssub.s32 %s18, %s25
      %p147 = scmp.eq.s32.totalorder %s146, 0
      %s149 = sadd.s32 %s148, 1
      %s150 = scalar_select %p147, %s148, %s149
      %p153 = pneg %p147
      %p154 = scmp.eq.s32.totalorder %s18, 1
      %p155 = por %p153, %p154
      %p156 = scmp.ne.s32.totalorder %s148, %s151
      %p157 = scmp.eq.s32.totalorder %s18, 0
      %p158 = por %p156, %p157
      %p159 = scmp.ne.s32.totalorder %s148, %s151
      %p160 = scmp.eq.s32.totalorder %s23, 1
      %p161 = por %p159, %p160
      %p162 = scmp.ne.s32.totalorder %s151, %s152
      %p163 = scmp.eq.s32.totalorder %s23, 0
      %p164 = por %p162, %p163
      %p165 = scmp.ne.s32.totalorder %s151, %s152
      %p166 = scmp.eq.s32.totalorder %s24, 1
      %p167 = por %p165, %p166
      %p169 = scmp.ne.s32.totalorder %s152, %s168
      %p170 = scmp.eq.s32.totalorder %s24, 0
      %p171 = por %p169, %p170
      %p172 = scmp.le.s32.totalorder 1, %s18
      %p173 = scmp.lt.s32.totalorder %s18, 3
      %p174 = pnand %p172, %p173
      %p175 = pneg %p174
      // Predicated region
      $region9: #{discriminator_forward.2} parent=5 // pred_check
        _
      $region10: #{discriminator_forward.2} parent=5 // pred_check_branch
        %177 = sbr.rel (%p174) target = $region12
      $region11: #{discriminator_forward.2} parent=5 // pred_region
        %s178 = ssub.s32 %s18, 1
        // Predicated region
        $region13: #{discriminator_forward.2} parent=11 // pred_check
          %p179 = pneg %p39
        $region14: #{discriminator_forward.2} parent=11 // pred_check_branch
          %181 = sbr.rel (%p179) target = $region16
        $region15: #{discriminator_forward.2} parent=11 // pred_region
          _
        $region16: #{discriminator_forward.2} parent=11 // pred_fallthru
          _
        // Predicated region
        $region17: #{discriminator_forward.2} parent=11 // pred_check
          %p182 = pneg %p138
        $region18: #{discriminator_forward.2} parent=11 // pred_check_branch
          %184 = sbr.rel (%p182) target = $region20
        $region19: #{discriminator_forward.2} parent=11 // pred_region
          %s186 = ssub.s32 16, 16
          %187 = vsyncadd [#allocation8], %s186
          %s189 = sshll.u32 [#allocation7], 4
          %s190 = int_to_ptr.vmem [resolvable:$true] %s189
          %192 = dma.hbm_to_vmem [thread:$0]  %s4, 16, %s190, [#allocation8]
        $region20: #{discriminator_forward.2} parent=11 // pred_fallthru
          _
      $region12: #{discriminator_forward.2} parent=5 // pred_fallthru
        _
      %p193 = scmp.lt.s32.totalorder %s18, 2
      // Predicated region
      $region21: #{discriminator_forward.2} parent=5 // pred_check
        %p194 = pneg %p193
      $region22: #{discriminator_forward.2} parent=5 // pred_check_branch
        %196 = sbr.rel (%p194) target = $region24
      $region23: #{discriminator_forward.2} parent=5 // pred_region
        // Predicated region
        $region25: #{discriminator_forward.2} parent=23 // pred_check
          %p197 = pneg %p59
        $region26: #{discriminator_forward.2} parent=23 // pred_check_branch
          %199 = sbr.rel (%p197) target = $region28
        $region27: #{discriminator_forward.2} parent=23 // pred_region
          %s200 = sand.u32 %s49, 1
          %s201 = scalar_lea.sflag [#allocation3], %s200
          %s202 = sand.u32 %s49, 1
          %s203 = smul.addr %s202, 8192
          %s204 = scalar_lea.vmem [#allocation2], %s203
          %s205 = smul.u32 4, %s18
          %s207 = ssub.s32 131072, 131072
          %208 = vsyncadd %s201, %s207
          %s209 = smul.addr %s205, 64
          %s210 = scalar_lea.hbm %s1, %s209
          %s211 = sshll.u32 %s204, 4
          %s212 = int_to_ptr.vmem [resolvable:$true] %s211
          %217 = dma.hbm_to_vmem [thread:$0]  %s210, 131072, %s212, %s201, 512, 256, 16
        $region28: #{discriminator_forward.2} parent=23 // pred_fallthru
          _
        // Predicated region
        $region29: #{discriminator_forward.2} parent=23 // pred_check
          %p218 = pneg %p85
        $region30: #{discriminator_forward.2} parent=23 // pred_check_branch
          %220 = sbr.rel (%p218) target = $region32
        $region31: #{discriminator_forward.2} parent=23 // pred_region
          %s221 = sand.u32 %s18, 1
          %s222 = scalar_lea.sflag [#allocation5], %s221
          %s223 = sand.u32 %s75, 1
          %s224 = smul.addr %s223, 4
          %s225 = scalar_lea.vmem [#allocation4], %s224
          %s226 = smul.u32 4, %s18
          %s228 = ssub.s32 64, 64
          %229 = vsyncadd %s222, %s228
          %s230 = smul.addr %s226, 16
          %s231 = scalar_lea.hbm %s2, %s230
          %s233 = sshll.u32 %s225, 4
          %s234 = int_to_ptr.vmem [resolvable:$true] %s233
          %236 = dma.hbm_to_vmem [thread:$0]  %s231, 64, %s234, %s222
        $region32: #{discriminator_forward.2} parent=23 // pred_fallthru
          _
        // Predicated region
        $region33: #{discriminator_forward.2} parent=23 // pred_check
          %p237 = pneg %p111
        $region34: #{discriminator_forward.2} parent=23 // pred_check_branch
          %239 = sbr.rel (%p237) target = $region36
        $region35: #{discriminator_forward.2} parent=23 // pred_region
          %s240 = sand.u32 %s18, 1
          %s241 = scalar_lea.sflag [#allocation5], %s240
          %s242 = sand.u32 %s101, 1
          %s243 = smul.addr %s242, 256
          %s244 = scalar_lea.vmem [#allocation6], %s243
          %s245 = smul.u32 64, %s18
          %s247 = ssub.s32 4096, 4096
          %248 = vsyncadd %s241, %s247
          %s249 = smul.addr %s245, 64
          %s250 = scalar_lea.hbm %s3, %s249
          %s251 = sshll.u32 %s244, 4
          %s252 = int_to_ptr.vmem [resolvable:$true] %s251
          %257 = dma.hbm_to_vmem [thread:$0]  %s250, 4096, %s252, %s241, 64, 64, 4
        $region36: #{discriminator_forward.2} parent=23 // pred_fallthru
          _
      $region24: #{discriminator_forward.2} parent=5 // pred_fallthru
        _
      %p258 = scmp.le.s32.totalorder 1, %s18
      %p259 = scmp.lt.s32.totalorder %s18, 3
      %p260 = pnand %p258, %p259
      %p261 = pneg %p260
      // Predicated region
      $region37: #{discriminator_forward.2} parent=5 // pred_check
        _
      $region38: #{discriminator_forward.2} parent=5 // pred_check_branch
        %263 = sbr.rel (%p260) target = $region40
      $region39: #{discriminator_forward.2} parent=5 // pred_region
        %s264 = ssub.s32 %s18, 1
        %s265 = sand.u32 %s52, 1
        %s266 = scalar_lea.sflag [#allocation3], %s265
        %s267 = sand.u32 %s52, 1
        %s268 = smul.addr %s267, 8192
        %s269 = scalar_lea.vmem [#allocation2], %s268
        // Predicated region
        $region41: #{discriminator_forward.2} parent=39 // pred_check
          %p270 = pneg %p65
        $region42: #{discriminator_forward.2} parent=39 // pred_check_branch
          %272 = sbr.rel (%p270) target = $region44
        $region43: #{discriminator_forward.2} parent=39 // pred_region
          %273 = dma.done %s266, 131072
        $region44: #{discriminator_forward.2} parent=39 // pred_fallthru
          _
        %s274 = sand.u32 %s23, 1
        %s275 = scalar_lea.sflag [#allocation5], %s274
        %s276 = sand.u32 %s78, 1
        %s277 = smul.addr %s276, 4
        %s278 = scalar_lea.vmem [#allocation4], %s277
        // Predicated region
        $region45: #{discriminator_forward.2} parent=39 // pred_check
          %p279 = pneg %p91
        $region46: #{discriminator_forward.2} parent=39 // pred_check_branch
          %281 = sbr.rel (%p279) target = $region48
        $region47: #{discriminator_forward.2} parent=39 // pred_region
          %282 = dma.done %s275, 64
        $region48: #{discriminator_forward.2} parent=39 // pred_fallthru
          _
        %s283 = sand.u32 %s23, 1
        %s284 = scalar_lea.sflag [#allocation5], %s283
        %s285 = sand.u32 %s104, 1
        %s286 = smul.addr %s285, 256
        %s287 = scalar_lea.vmem [#allocation6], %s286
        // Predicated region
        $region49: #{discriminator_forward.2} parent=39 // pred_check
          %p288 = pneg %p117
        $region50: #{discriminator_forward.2} parent=39 // pred_check_branch
          %290 = sbr.rel (%p288) target = $region52
        $region51: #{discriminator_forward.2} parent=39 // pred_region
          %291 = dma.done %s284, 4096
        $region52: #{discriminator_forward.2} parent=39 // pred_fallthru
          _
        // Predicated region
        $region53: #{discriminator_forward.2} parent=39 // pred_check
          %p292 = pneg %p138
        $region54: #{discriminator_forward.2} parent=39 // pred_check_branch
          %294 = sbr.rel (%p292) target = $region56
        $region55: #{discriminator_forward.2} parent=39 // pred_region
          %295 = dma.done [#allocation8], 16
        $region56: #{discriminator_forward.2} parent=39 // pred_fallthru
          _
        %p296 = pneg %p39
        %p297 = pneg %p36
        %s298 = sand.u32 %s52, 1
        %s299 = scalar_lea.sflag [#allocation3], %s298
        %s300 = sand.u32 %s52, 1
        %s301 = smul.addr %s300, 8192
        %s302 = scalar_lea.vmem [#allocation2], %s301
        %p303 = pneg %p65
        %p304 = pneg %p62
        %s305 = sand.u32 %s23, 1
        %s306 = scalar_lea.sflag [#allocation5], %s305
        %s307 = sand.u32 %s78, 1
        %s308 = smul.addr %s307, 4
        %s309 = scalar_lea.vmem [#allocation4], %s308
        %p310 = pneg %p91
        %p311 = pneg %p88
        %s312 = sand.u32 %s23, 1
        %s313 = scalar_lea.sflag [#allocation5], %s312
        %s314 = sand.u32 %s104, 1
        %s315 = smul.addr %s314, 256
        %s316 = scalar_lea.vmem [#allocation6], %s315
        %p317 = pneg %p117
        %p318 = pneg %p114
        %p319 = pneg %p138
        %p320 = pneg %p135
        %p321 = pneg %p164
        %p322 = pneg %p161
        %p323 = scmp.lt.s32.totalorder %s23, 1
        %s324 = scalar_select %p323, %s23, 1
        %s325 = smul.addr %s324, 2
        %s326 = smul.addr %s325, 8
        %s327 = scalar_lea.vmem %s5, %s326
        %s328 = smul.u32 4, %s23
        %s329 = smul.u32 4, %s23
        %s330 = smul.u32 64, %s23
        %p331 = scmp.lt.s32.totalorder %s23, 1
        %s332 = scalar_select %p331, %s23, 1
        %s333 = smul.addr %s332, 2
        %s334 = smul.addr %s333, 8
        %s335 = scalar_lea.vmem %s5, %s334
        %v337 = vld [vmem:[%s0] sm:$0xff]
        %v338 = vld [vmem:[%s0 + $0x8] sm:$0xff]
        %v339 = vld [vmem:[%s0 + $0x10] sm:$0xff]
        %v340 = vld [vmem:[%s0 + $0x18] sm:$0xff]
        %v341 = vld [vmem:[%s0 + $0x20] sm:$0xff]
        %v342 = vld [vmem:[%s0 + $0x28] sm:$0xff]
        %v343 = vld [vmem:[%s0 + $0x30] sm:$0xff]
        %v344 = vld [vmem:[%s0 + $0x38] sm:$0xff]
        %v345 = vld [vmem:[%s0 + $0x40] sm:$0xff]
        %v346 = vld [vmem:[%s0 + $0x48] sm:$0xff]
        %v347 = vld [vmem:[%s0 + $0x50] sm:$0xff]
        %v348 = vld [vmem:[%s0 + $0x58] sm:$0xff]
        %v349 = vld [vmem:[%s0 + $0x60] sm:$0xff]
        %v350 = vld [vmem:[%s0 + $0x68] sm:$0xff]
        %v351 = vld [vmem:[%s0 + $0x70] sm:$0xff]
        %v352 = vld [vmem:[%s0 + $0x78] sm:$0xff]
        %v353 = vld [vmem:[%s0 + $0x80] sm:$0x77]
        %v354 = vld [vmem:[%s0 + $0x88] sm:$0x77]
        %v355 = vld [vmem:[%s0 + $0x90] sm:$0x77]
        %v356 = vld [vmem:[%s0 + $0x98] sm:$0x77]
        %v357 = vld [vmem:[%s0 + $0xa0] sm:$0x77]
        %v358 = vld [vmem:[%s0 + $0xa8] sm:$0x77]
        %v359 = vld [vmem:[%s0 + $0xb0] sm:$0x77]
        %v360 = vld [vmem:[%s0 + $0xb8] sm:$0x77]
        %v361 = vld [vmem:[%s0 + $0xc0] sm:$0x77]
        %v362 = vld [vmem:[%s0 + $0xc8] sm:$0x77]
        %v363 = vld [vmem:[%s0 + $0xd0] sm:$0x77]
        %v364 = vld [vmem:[%s0 + $0xd8] sm:$0x77]
        %v365 = vld [vmem:[%s0 + $0xe0] sm:$0x77]
        %v366 = vld [vmem:[%s0 + $0xe8] sm:$0x77]
        %v367 = vld [vmem:[%s0 + $0xf0] sm:$0x77]
        %v368 = vld [vmem:[%s0 + $0xf8] sm:$0x77]
        %v369 = vld [vmem:[%s269] sm:$0xff]
        %v370 = vld [vmem:[%s269 + $0x8] sm:$0xff]
        %v371 = vld [vmem:[%s269 + $0x10] sm:$0xff]
        %v372 = vld [vmem:[%s269 + $0x18] sm:$0xff]
        %v373 = vld [vmem:[%s269 + $0x20] sm:$0xff]
        %v374 = vld [vmem:[%s269 + $0x28] sm:$0xff]
        %v375 = vld [vmem:[%s269 + $0x30] sm:$0xff]
        %v376 = vld [vmem:[%s269 + $0x38] sm:$0xff]
        %v377 = vld [vmem:[%s269 + $0x40] sm:$0xff]
        %v378 = vld [vmem:[%s269 + $0x48] sm:$0xff]
        %v379 = vld [vmem:[%s269 + $0x50] sm:$0xff]
        %v380 = vld [vmem:[%s269 + $0x58] sm:$0xff]
        %v381 = vld [vmem:[%s269 + $0x60] sm:$0xff]
        %v382 = vld [vmem:[%s269 + $0x68] sm:$0xff]
        %v383 = vld [vmem:[%s269 + $0x70] sm:$0xff]
        %v384 = vld [vmem:[%s269 + $0x78] sm:$0xff]
        %v385 = vld [vmem:[%s269 + $0x80] sm:$0xff]
        %v386 = vld [vmem:[%s269 + $0x88] sm:$0xff]
        %v387 = vld [vmem:[%s269 + $0x90] sm:$0xff]
        %v388 = vld [vmem:[%s269 + $0x98] sm:$0xff]
        %v389 = vld [vmem:[%s269 + $0xa0] sm:$0xff]
        %v390 = vld [vmem:[%s269 + $0xa8] sm:$0xff]
        %v391 = vld [vmem:[%s269 + $0xb0] sm:$0xff]
        %v392 = vld [vmem:[%s269 + $0xb8] sm:$0xff]
        %v393 = vld [vmem:[%s269 + $0xc0] sm:$0xff]
        %v394 = vld [vmem:[%s269 + $0xc8] sm:$0xff]
        %v395 = vld [vmem:[%s269 + $0xd0] sm:$0xff]
        %v396 = vld [vmem:[%s269 + $0xd8] sm:$0xff]
        %v397 = vld [vmem:[%s269 + $0xe0] sm:$0xff]
        %v398 = vld [vmem:[%s269 + $0xe8] sm:$0xff]
        %v399 = vld [vmem:[%s269 + $0xf0] sm:$0xff]
        %v400 = vld [vmem:[%s269 + $0xf8] sm:$0xff]
        %v401 = vld [vmem:[%s269 + $0x100] sm:$0xff]
        %v402 = vld [vmem:[%s269 + $0x108] sm:$0xff]
        %v403 = vld [vmem:[%s269 + $0x110] sm:$0xff]
        %v404 = vld [vmem:[%s269 + $0x118] sm:$0xff]
        %v405 = vld [vmem:[%s269 + $0x120] sm:$0xff]
        %v406 = vld [vmem:[%s269 + $0x128] sm:$0xff]
        %v407 = vld [vmem:[%s269 + $0x130] sm:$0xff]
        %v408 = vld [vmem:[%s269 + $0x138] sm:$0xff]
        %v409 = vld [vmem:[%s269 + $0x140] sm:$0xff]
        %v410 = vld [vmem:[%s269 + $0x148] sm:$0xff]
        %v411 = vld [vmem:[%s269 + $0x150] sm:$0xff]
        %v412 = vld [vmem:[%s269 + $0x158] sm:$0xff]
        %v413 = vld [vmem:[%s269 + $0x160] sm:$0xff]
        %v414 = vld [vmem:[%s269 + $0x168] sm:$0xff]
        %v415 = vld [vmem:[%s269 + $0x170] sm:$0xff]
        %v416 = vld [vmem:[%s269 + $0x178] sm:$0xff]
        %v417 = vld [vmem:[%s269 + $0x180] sm:$0xff]
        %v418 = vld [vmem:[%s269 + $0x188] sm:$0xff]
        %v419 = vld [vmem:[%s269 + $0x190] sm:$0xff]
        %v420 = vld [vmem:[%s269 + $0x198] sm:$0xff]
        %v421 = vld [vmem:[%s269 + $0x1a0] sm:$0xff]
        %v422 = vld [vmem:[%s269 + $0x1a8] sm:$0xff]
        %v423 = vld [vmem:[%s269 + $0x1b0] sm:$0xff]
        %v424 = vld [vmem:[%s269 + $0x1b8] sm:$0xff]
        %v425 = vld [vmem:[%s269 + $0x1c0] sm:$0xff]
        %v426 = vld [vmem:[%s269 + $0x1c8] sm:$0xff]
        %v427 = vld [vmem:[%s269 + $0x1d0] sm:$0xff]
        %v428 = vld [vmem:[%s269 + $0x1d8] sm:$0xff]
        %v429 = vld [vmem:[%s269 + $0x1e0] sm:$0xff]
        %v430 = vld [vmem:[%s269 + $0x1e8] sm:$0xff]
        %v431 = vld [vmem:[%s269 + $0x1f0] sm:$0xff]
        %v432 = vld [vmem:[%s269 + $0x1f8] sm:$0xff]
        %v433 = vld [vmem:[%s269 + $0x200] sm:$0xff]
        %v434 = vld [vmem:[%s269 + $0x208] sm:$0xff]
        %v435 = vld [vmem:[%s269 + $0x210] sm:$0xff]
        %v436 = vld [vmem:[%s269 + $0x218] sm:$0xff]
        %v437 = vld [vmem:[%s269 + $0x220] sm:$0xff]
        %v438 = vld [vmem:[%s269 + $0x228] sm:$0xff]
        %v439 = vld [vmem:[%s269 + $0x230] sm:$0xff]
        %v440 = vld [vmem:[%s269 + $0x238] sm:$0xff]
        %v441 = vld [vmem:[%s269 + $0x240] sm:$0xff]
        %v442 = vld [vmem:[%s269 + $0x248] sm:$0xff]
        %v443 = vld [vmem:[%s269 + $0x250] sm:$0xff]
        %v444 = vld [vmem:[%s269 + $0x258] sm:$0xff]
        %v445 = vld [vmem:[%s269 + $0x260] sm:$0xff]
        %v446 = vld [vmem:[%s269 + $0x268] sm:$0xff]
        %v447 = vld [vmem:[%s269 + $0x270] sm:$0xff]
        %v448 = vld [vmem:[%s269 + $0x278] sm:$0xff]
        %v449 = vld [vmem:[%s269 + $0x280] sm:$0xff]
        %v450 = vld [vmem:[%s269 + $0x288] sm:$0xff]
        %v451 = vld [vmem:[%s269 + $0x290] sm:$0xff]
        %v452 = vld [vmem:[%s269 + $0x298] sm:$0xff]
        %v453 = vld [vmem:[%s269 + $0x2a0] sm:$0xff]
        %v454 = vld [vmem:[%s269 + $0x2a8] sm:$0xff]
        %v455 = vld [vmem:[%s269 + $0x2b0] sm:$0xff]
        %v456 = vld [vmem:[%s269 + $0x2b8] sm:$0xff]
        %v457 = vld [vmem:[%s269 + $0x2c0] sm:$0xff]
        %v458 = vld [vmem:[%s269 + $0x2c8] sm:$0xff]
        %v459 = vld [vmem:[%s269 + $0x2d0] sm:$0xff]
        %v460 = vld [vmem:[%s269 + $0x2d8] sm:$0xff]
        %v461 = vld [vmem:[%s269 + $0x2e0] sm:$0xff]
        %v462 = vld [vmem:[%s269 + $0x2e8] sm:$0xff]
        %v463 = vld [vmem:[%s269 + $0x2f0] sm:$0xff]
        %v464 = vld [vmem:[%s269 + $0x2f8] sm:$0xff]
        %v465 = vld [vmem:[%s269 + $0x300] sm:$0xff]
        %v466 = vld [vmem:[%s269 + $0x308] sm:$0xff]
        %v467 = vld [vmem:[%s269 + $0x310] sm:$0xff]
        %v468 = vld [vmem:[%s269 + $0x318] sm:$0xff]
        %v469 = vld [vmem:[%s269 + $0x320] sm:$0xff]
        %v470 = vld [vmem:[%s269 + $0x328] sm:$0xff]
        %v471 = vld [vmem:[%s269 + $0x330] sm:$0xff]
        %v472 = vld [vmem:[%s269 + $0x338] sm:$0xff]
        %v473 = vld [vmem:[%s269 + $0x340] sm:$0xff]
        %v474 = vld [vmem:[%s269 + $0x348] sm:$0xff]
        %v475 = vld [vmem:[%s269 + $0x350] sm:$0xff]
        %v476 = vld [vmem:[%s269 + $0x358] sm:$0xff]
        %v477 = vld [vmem:[%s269 + $0x360] sm:$0xff]
        %v478 = vld [vmem:[%s269 + $0x368] sm:$0xff]
        %v479 = vld [vmem:[%s269 + $0x370] sm:$0xff]
        %v480 = vld [vmem:[%s269 + $0x378] sm:$0xff]
        %v481 = vld [vmem:[%s269 + $0x380] sm:$0xff]
        %v482 = vld [vmem:[%s269 + $0x388] sm:$0xff]
        %v483 = vld [vmem:[%s269 + $0x390] sm:$0xff]
        %v484 = vld [vmem:[%s269 + $0x398] sm:$0xff]
        %v485 = vld [vmem:[%s269 + $0x3a0] sm:$0xff]
        %v486 = vld [vmem:[%s269 + $0x3a8] sm:$0xff]
        %v487 = vld [vmem:[%s269 + $0x3b0] sm:$0xff]
        %v488 = vld [vmem:[%s269 + $0x3b8] sm:$0xff]
        %v489 = vld [vmem:[%s269 + $0x3c0] sm:$0xff]
        %v490 = vld [vmem:[%s269 + $0x3c8] sm:$0xff]
        %v491 = vld [vmem:[%s269 + $0x3d0] sm:$0xff]
        %v492 = vld [vmem:[%s269 + $0x3d8] sm:$0xff]
        %v493 = vld [vmem:[%s269 + $0x3e0] sm:$0xff]
        %v494 = vld [vmem:[%s269 + $0x3e8] sm:$0xff]
        %v495 = vld [vmem:[%s269 + $0x3f0] sm:$0xff]
        %v496 = vld [vmem:[%s269 + $0x3f8] sm:$0xff]
        %v497 = vld [vmem:[%s269 + $0x400] sm:$0xff]
        %v498 = vld [vmem:[%s269 + $0x408] sm:$0xff]
        %v499 = vld [vmem:[%s269 + $0x410] sm:$0xff]
        %v500 = vld [vmem:[%s269 + $0x418] sm:$0xff]
        %v501 = vld [vmem:[%s269 + $0x420] sm:$0xff]
        %v502 = vld [vmem:[%s269 + $0x428] sm:$0xff]
        %v503 = vld [vmem:[%s269 + $0x430] sm:$0xff]
        %v504 = vld [vmem:[%s269 + $0x438] sm:$0xff]
        %v505 = vld [vmem:[%s269 + $0x440] sm:$0xff]
        %v506 = vld [vmem:[%s269 + $0x448] sm:$0xff]
        %v507 = vld [vmem:[%s269 + $0x450] sm:$0xff]
        %v508 = vld [vmem:[%s269 + $0x458] sm:$0xff]
        %v509 = vld [vmem:[%s269 + $0x460] sm:$0xff]
        %v510 = vld [vmem:[%s269 + $0x468] sm:$0xff]
        %v511 = vld [vmem:[%s269 + $0x470] sm:$0xff]
        %v512 = vld [vmem:[%s269 + $0x478] sm:$0xff]
        %v513 = vld [vmem:[%s269 + $0x480] sm:$0xff]
        %v514 = vld [vmem:[%s269 + $0x488] sm:$0xff]
        %v515 = vld [vmem:[%s269 + $0x490] sm:$0xff]
        %v516 = vld [vmem:[%s269 + $0x498] sm:$0xff]
        %v517 = vld [vmem:[%s269 + $0x4a0] sm:$0xff]
        %v518 = vld [vmem:[%s269 + $0x4a8] sm:$0xff]
        %v519 = vld [vmem:[%s269 + $0x4b0] sm:$0xff]
        %v520 = vld [vmem:[%s269 + $0x4b8] sm:$0xff]
        %v521 = vld [vmem:[%s269 + $0x4c0] sm:$0xff]
        %v522 = vld [vmem:[%s269 + $0x4c8] sm:$0xff]
        %v523 = vld [vmem:[%s269 + $0x4d0] sm:$0xff]
        %v524 = vld [vmem:[%s269 + $0x4d8] sm:$0xff]
        %v525 = vld [vmem:[%s269 + $0x4e0] sm:$0xff]
        %v526 = vld [vmem:[%s269 + $0x4e8] sm:$0xff]
        %v527 = vld [vmem:[%s269 + $0x4f0] sm:$0xff]
        %v528 = vld [vmem:[%s269 + $0x4f8] sm:$0xff]
        %v529 = vld [vmem:[%s269 + $0x500] sm:$0xff]
        %v530 = vld [vmem:[%s269 + $0x508] sm:$0xff]
        %v531 = vld [vmem:[%s269 + $0x510] sm:$0xff]
        %v532 = vld [vmem:[%s269 + $0x518] sm:$0xff]
        %v533 = vld [vmem:[%s269 + $0x520] sm:$0xff]
        %v534 = vld [vmem:[%s269 + $0x528] sm:$0xff]
        %v535 = vld [vmem:[%s269 + $0x530] sm:$0xff]
        %v536 = vld [vmem:[%s269 + $0x538] sm:$0xff]
        %v537 = vld [vmem:[%s269 + $0x540] sm:$0xff]
        %v538 = vld [vmem:[%s269 + $0x548] sm:$0xff]
        %v539 = vld [vmem:[%s269 + $0x550] sm:$0xff]
        %v540 = vld [vmem:[%s269 + $0x558] sm:$0xff]
        %v541 = vld [vmem:[%s269 + $0x560] sm:$0xff]
        %v542 = vld [vmem:[%s269 + $0x568] sm:$0xff]
        %v543 = vld [vmem:[%s269 + $0x570] sm:$0xff]
        %v544 = vld [vmem:[%s269 + $0x578] sm:$0xff]
        %v545 = vld [vmem:[%s269 + $0x580] sm:$0xff]
        %v546 = vld [vmem:[%s269 + $0x588] sm:$0xff]
        %v547 = vld [vmem:[%s269 + $0x590] sm:$0xff]
        %v548 = vld [vmem:[%s269 + $0x598] sm:$0xff]
        %v549 = vld [vmem:[%s269 + $0x5a0] sm:$0xff]
        %v550 = vld [vmem:[%s269 + $0x5a8] sm:$0xff]
        %v551 = vld [vmem:[%s269 + $0x5b0] sm:$0xff]
        %v552 = vld [vmem:[%s269 + $0x5b8] sm:$0xff]
        %v553 = vld [vmem:[%s269 + $0x5c0] sm:$0xff]
        %v554 = vld [vmem:[%s269 + $0x5c8] sm:$0xff]
        %v555 = vld [vmem:[%s269 + $0x5d0] sm:$0xff]
        %v556 = vld [vmem:[%s269 + $0x5d8] sm:$0xff]
        %v557 = vld [vmem:[%s269 + $0x5e0] sm:$0xff]
        %v558 = vld [vmem:[%s269 + $0x5e8] sm:$0xff]
        %v559 = vld [vmem:[%s269 + $0x5f0] sm:$0xff]
        %v560 = vld [vmem:[%s269 + $0x5f8] sm:$0xff]
        %v561 = vld [vmem:[%s269 + $0x600] sm:$0xff]
        %v562 = vld [vmem:[%s269 + $0x608] sm:$0xff]
        %v563 = vld [vmem:[%s269 + $0x610] sm:$0xff]
        %v564 = vld [vmem:[%s269 + $0x618] sm:$0xff]
        %v565 = vld [vmem:[%s269 + $0x620] sm:$0xff]
        %v566 = vld [vmem:[%s269 + $0x628] sm:$0xff]
        %v567 = vld [vmem:[%s269 + $0x630] sm:$0xff]
        %v568 = vld [vmem:[%s269 + $0x638] sm:$0xff]
        %v569 = vld [vmem:[%s269 + $0x640] sm:$0xff]
        %v570 = vld [vmem:[%s269 + $0x648] sm:$0xff]
        %v571 = vld [vmem:[%s269 + $0x650] sm:$0xff]
        %v572 = vld [vmem:[%s269 + $0x658] sm:$0xff]
        %v573 = vld [vmem:[%s269 + $0x660] sm:$0xff]
        %v574 = vld [vmem:[%s269 + $0x668] sm:$0xff]
        %v575 = vld [vmem:[%s269 + $0x670] sm:$0xff]
        %v576 = vld [vmem:[%s269 + $0x678] sm:$0xff]
        %v577 = vld [vmem:[%s269 + $0x680] sm:$0xff]
        %v578 = vld [vmem:[%s269 + $0x688] sm:$0xff]
        %v579 = vld [vmem:[%s269 + $0x690] sm:$0xff]
        %v580 = vld [vmem:[%s269 + $0x698] sm:$0xff]
        %v581 = vld [vmem:[%s269 + $0x6a0] sm:$0xff]
        %v582 = vld [vmem:[%s269 + $0x6a8] sm:$0xff]
        %v583 = vld [vmem:[%s269 + $0x6b0] sm:$0xff]
        %v584 = vld [vmem:[%s269 + $0x6b8] sm:$0xff]
        %v585 = vld [vmem:[%s269 + $0x6c0] sm:$0xff]
        %v586 = vld [vmem:[%s269 + $0x6c8] sm:$0xff]
        %v587 = vld [vmem:[%s269 + $0x6d0] sm:$0xff]
        %v588 = vld [vmem:[%s269 + $0x6d8] sm:$0xff]
        %v589 = vld [vmem:[%s269 + $0x6e0] sm:$0xff]
        %v590 = vld [vmem:[%s269 + $0x6e8] sm:$0xff]
        %v591 = vld [vmem:[%s269 + $0x6f0] sm:$0xff]
        %v592 = vld [vmem:[%s269 + $0x6f8] sm:$0xff]
        %v593 = vld [vmem:[%s269 + $0x700] sm:$0xff]
        %v594 = vld [vmem:[%s269 + $0x708] sm:$0xff]
        %v595 = vld [vmem:[%s269 + $0x710] sm:$0xff]
        %v596 = vld [vmem:[%s269 + $0x718] sm:$0xff]
        %v597 = vld [vmem:[%s269 + $0x720] sm:$0xff]
        %v598 = vld [vmem:[%s269 + $0x728] sm:$0xff]
        %v599 = vld [vmem:[%s269 + $0x730] sm:$0xff]
        %v600 = vld [vmem:[%s269 + $0x738] sm:$0xff]
        %v601 = vld [vmem:[%s269 + $0x740] sm:$0xff]
        %v602 = vld [vmem:[%s269 + $0x748] sm:$0xff]
        %v603 = vld [vmem:[%s269 + $0x750] sm:$0xff]
        %v604 = vld [vmem:[%s269 + $0x758] sm:$0xff]
        %v605 = vld [vmem:[%s269 + $0x760] sm:$0xff]
        %v606 = vld [vmem:[%s269 + $0x768] sm:$0xff]
        %v607 = vld [vmem:[%s269 + $0x770] sm:$0xff]
        %v608 = vld [vmem:[%s269 + $0x778] sm:$0xff]
        %v609 = vld [vmem:[%s269 + $0x780] sm:$0xff]
        %v610 = vld [vmem:[%s269 + $0x788] sm:$0xff]
        %v611 = vld [vmem:[%s269 + $0x790] sm:$0xff]
        %v612 = vld [vmem:[%s269 + $0x798] sm:$0xff]
        %v613 = vld [vmem:[%s269 + $0x7a0] sm:$0xff]
        %v614 = vld [vmem:[%s269 + $0x7a8] sm:$0xff]
        %v615 = vld [vmem:[%s269 + $0x7b0] sm:$0xff]
        %v616 = vld [vmem:[%s269 + $0x7b8] sm:$0xff]
        %v617 = vld [vmem:[%s269 + $0x7c0] sm:$0xff]
        %v618 = vld [vmem:[%s269 + $0x7c8] sm:$0xff]
        %v619 = vld [vmem:[%s269 + $0x7d0] sm:$0xff]
        %v620 = vld [vmem:[%s269 + $0x7d8] sm:$0xff]
        %v621 = vld [vmem:[%s269 + $0x7e0] sm:$0xff]
        %v622 = vld [vmem:[%s269 + $0x7e8] sm:$0xff]
        %v623 = vld [vmem:[%s269 + $0x7f0] sm:$0xff]
        %v624 = vld [vmem:[%s269 + $0x7f8] sm:$0xff]
        %v625 = vld [vmem:[%s269 + $0x800] sm:$0xff]
        %v626 = vld [vmem:[%s269 + $0x808] sm:$0xff]
        %v627 = vld [vmem:[%s269 + $0x810] sm:$0xff]
        %v628 = vld [vmem:[%s269 + $0x818] sm:$0xff]
        %v629 = vld [vmem:[%s269 + $0x820] sm:$0xff]
        %v630 = vld [vmem:[%s269 + $0x828] sm:$0xff]
        %v631 = vld [vmem:[%s269 + $0x830] sm:$0xff]
        %v632 = vld [vmem:[%s269 + $0x838] sm:$0xff]
        %v633 = vld [vmem:[%s269 + $0x840] sm:$0xff]
        %v634 = vld [vmem:[%s269 + $0x848] sm:$0xff]
        %v635 = vld [vmem:[%s269 + $0x850] sm:$0xff]
        %v636 = vld [vmem:[%s269 + $0x858] sm:$0xff]
        %v637 = vld [vmem:[%s269 + $0x860] sm:$0xff]
        %v638 = vld [vmem:[%s269 + $0x868] sm:$0xff]
        %v639 = vld [vmem:[%s269 + $0x870] sm:$0xff]
        %v640 = vld [vmem:[%s269 + $0x878] sm:$0xff]
        %v641 = vld [vmem:[%s269 + $0x880] sm:$0xff]
        %v642 = vld [vmem:[%s269 + $0x888] sm:$0xff]
        %v643 = vld [vmem:[%s269 + $0x890] sm:$0xff]
        %v644 = vld [vmem:[%s269 + $0x898] sm:$0xff]
        %v645 = vld [vmem:[%s269 + $0x8a0] sm:$0xff]
        %v646 = vld [vmem:[%s269 + $0x8a8] sm:$0xff]
        %v647 = vld [vmem:[%s269 + $0x8b0] sm:$0xff]
        %v648 = vld [vmem:[%s269 + $0x8b8] sm:$0xff]
        %v649 = vld [vmem:[%s269 + $0x8c0] sm:$0xff]
        %v650 = vld [vmem:[%s269 + $0x8c8] sm:$0xff]
        %v651 = vld [vmem:[%s269 + $0x8d0] sm:$0xff]
        %v652 = vld [vmem:[%s269 + $0x8d8] sm:$0xff]
        %v653 = vld [vmem:[%s269 + $0x8e0] sm:$0xff]
        %v654 = vld [vmem:[%s269 + $0x8e8] sm:$0xff]
        %v655 = vld [vmem:[%s269 + $0x8f0] sm:$0xff]
        %v656 = vld [vmem:[%s269 + $0x8f8] sm:$0xff]
        %v657 = vld [vmem:[%s269 + $0x900] sm:$0xff]
        %v658 = vld [vmem:[%s269 + $0x908] sm:$0xff]
        %v659 = vld [vmem:[%s269 + $0x910] sm:$0xff]
        %v660 = vld [vmem:[%s269 + $0x918] sm:$0xff]
        %v661 = vld [vmem:[%s269 + $0x920] sm:$0xff]
        %v662 = vld [vmem:[%s269 + $0x928] sm:$0xff]
        %v663 = vld [vmem:[%s269 + $0x930] sm:$0xff]
        %v664 = vld [vmem:[%s269 + $0x938] sm:$0xff]
        %v665 = vld [vmem:[%s269 + $0x940] sm:$0xff]
        %v666 = vld [vmem:[%s269 + $0x948] sm:$0xff]
        %v667 = vld [vmem:[%s269 + $0x950] sm:$0xff]
        %v668 = vld [vmem:[%s269 + $0x958] sm:$0xff]
        %v669 = vld [vmem:[%s269 + $0x960] sm:$0xff]
        %v670 = vld [vmem:[%s269 + $0x968] sm:$0xff]
        %v671 = vld [vmem:[%s269 + $0x970] sm:$0xff]
        %v672 = vld [vmem:[%s269 + $0x978] sm:$0xff]
        %v673 = vld [vmem:[%s269 + $0x980] sm:$0xff]
        %v674 = vld [vmem:[%s269 + $0x988] sm:$0xff]
        %v675 = vld [vmem:[%s269 + $0x990] sm:$0xff]
        %v676 = vld [vmem:[%s269 + $0x998] sm:$0xff]
        %v677 = vld [vmem:[%s269 + $0x9a0] sm:$0xff]
        %v678 = vld [vmem:[%s269 + $0x9a8] sm:$0xff]
        %v679 = vld [vmem:[%s269 + $0x9b0] sm:$0xff]
        %v680 = vld [vmem:[%s269 + $0x9b8] sm:$0xff]
        %v681 = vld [vmem:[%s269 + $0x9c0] sm:$0xff]
        %v682 = vld [vmem:[%s269 + $0x9c8] sm:$0xff]
        %v683 = vld [vmem:[%s269 + $0x9d0] sm:$0xff]
        %v684 = vld [vmem:[%s269 + $0x9d8] sm:$0xff]
        %v685 = vld [vmem:[%s269 + $0x9e0] sm:$0xff]
        %v686 = vld [vmem:[%s269 + $0x9e8] sm:$0xff]
        %v687 = vld [vmem:[%s269 + $0x9f0] sm:$0xff]
        %v688 = vld [vmem:[%s269 + $0x9f8] sm:$0xff]
        %v689 = vld [vmem:[%s269 + $0xa00] sm:$0xff]
        %v690 = vld [vmem:[%s269 + $0xa08] sm:$0xff]
        %v691 = vld [vmem:[%s269 + $0xa10] sm:$0xff]
        %v692 = vld [vmem:[%s269 + $0xa18] sm:$0xff]
        %v693 = vld [vmem:[%s269 + $0xa20] sm:$0xff]
        %v694 = vld [vmem:[%s269 + $0xa28] sm:$0xff]
        %v695 = vld [vmem:[%s269 + $0xa30] sm:$0xff]
        %v696 = vld [vmem:[%s269 + $0xa38] sm:$0xff]
        %v697 = vld [vmem:[%s269 + $0xa40] sm:$0xff]
        %v698 = vld [vmem:[%s269 + $0xa48] sm:$0xff]
        %v699 = vld [vmem:[%s269 + $0xa50] sm:$0xff]
        %v700 = vld [vmem:[%s269 + $0xa58] sm:$0xff]
        %v701 = vld [vmem:[%s269 + $0xa60] sm:$0xff]
        %v702 = vld [vmem:[%s269 + $0xa68] sm:$0xff]
        %v703 = vld [vmem:[%s269 + $0xa70] sm:$0xff]
        %v704 = vld [vmem:[%s269 + $0xa78] sm:$0xff]
        %v705 = vld [vmem:[%s269 + $0xa80] sm:$0xff]
        %v706 = vld [vmem:[%s269 + $0xa88] sm:$0xff]
        %v707 = vld [vmem:[%s269 + $0xa90] sm:$0xff]
        %v708 = vld [vmem:[%s269 + $0xa98] sm:$0xff]
        %v709 = vld [vmem:[%s269 + $0xaa0] sm:$0xff]
        %v710 = vld [vmem:[%s269 + $0xaa8] sm:$0xff]
        %v711 = vld [vmem:[%s269 + $0xab0] sm:$0xff]
        %v712 = vld [vmem:[%s269 + $0xab8] sm:$0xff]
        %v713 = vld [vmem:[%s269 + $0xac0] sm:$0xff]
        %v714 = vld [vmem:[%s269 + $0xac8] sm:$0xff]
        %v715 = vld [vmem:[%s269 + $0xad0] sm:$0xff]
        %v716 = vld [vmem:[%s269 + $0xad8] sm:$0xff]
        %v717 = vld [vmem:[%s269 + $0xae0] sm:$0xff]
        %v718 = vld [vmem:[%s269 + $0xae8] sm:$0xff]
        %v719 = vld [vmem:[%s269 + $0xaf0] sm:$0xff]
        %v720 = vld [vmem:[%s269 + $0xaf8] sm:$0xff]
        %v721 = vld [vmem:[%s269 + $0xb00] sm:$0xff]
        %v722 = vld [vmem:[%s269 + $0xb08] sm:$0xff]
        %v723 = vld [vmem:[%s269 + $0xb10] sm:$0xff]
        %v724 = vld [vmem:[%s269 + $0xb18] sm:$0xff]
        %v725 = vld [vmem:[%s269 + $0xb20] sm:$0xff]
        %v726 = vld [vmem:[%s269 + $0xb28] sm:$0xff]
        %v727 = vld [vmem:[%s269 + $0xb30] sm:$0xff]
        %v728 = vld [vmem:[%s269 + $0xb38] sm:$0xff]
        %v729 = vld [vmem:[%s269 + $0xb40] sm:$0xff]
        %v730 = vld [vmem:[%s269 + $0xb48] sm:$0xff]
        %v731 = vld [vmem:[%s269 + $0xb50] sm:$0xff]
        %v732 = vld [vmem:[%s269 + $0xb58] sm:$0xff]
        %v733 = vld [vmem:[%s269 + $0xb60] sm:$0xff]
        %v734 = vld [vmem:[%s269 + $0xb68] sm:$0xff]
        %v735 = vld [vmem:[%s269 + $0xb70] sm:$0xff]
        %v736 = vld [vmem:[%s269 + $0xb78] sm:$0xff]
        %v737 = vld [vmem:[%s269 + $0xb80] sm:$0xff]
        %v738 = vld [vmem:[%s269 + $0xb88] sm:$0xff]
        %v739 = vld [vmem:[%s269 + $0xb90] sm:$0xff]
        %v740 = vld [vmem:[%s269 + $0xb98] sm:$0xff]
        %v741 = vld [vmem:[%s269 + $0xba0] sm:$0xff]
        %v742 = vld [vmem:[%s269 + $0xba8] sm:$0xff]
        %v743 = vld [vmem:[%s269 + $0xbb0] sm:$0xff]
        %v744 = vld [vmem:[%s269 + $0xbb8] sm:$0xff]
        %v745 = vld [vmem:[%s269 + $0xbc0] sm:$0xff]
        %v746 = vld [vmem:[%s269 + $0xbc8] sm:$0xff]
        %v747 = vld [vmem:[%s269 + $0xbd0] sm:$0xff]
        %v748 = vld [vmem:[%s269 + $0xbd8] sm:$0xff]
        %v749 = vld [vmem:[%s269 + $0xbe0] sm:$0xff]
        %v750 = vld [vmem:[%s269 + $0xbe8] sm:$0xff]
        %v751 = vld [vmem:[%s269 + $0xbf0] sm:$0xff]
        %v752 = vld [vmem:[%s269 + $0xbf8] sm:$0xff]
        %v753 = vld [vmem:[%s269 + $0xc00] sm:$0xff]
        %v754 = vld [vmem:[%s269 + $0xc08] sm:$0xff]
        %v755 = vld [vmem:[%s269 + $0xc10] sm:$0xff]
        %v756 = vld [vmem:[%s269 + $0xc18] sm:$0xff]
        %v757 = vld [vmem:[%s269 + $0xc20] sm:$0xff]
        %v758 = vld [vmem:[%s269 + $0xc28] sm:$0xff]
        %v759 = vld [vmem:[%s269 + $0xc30] sm:$0xff]
        %v760 = vld [vmem:[%s269 + $0xc38] sm:$0xff]
        %v761 = vld [vmem:[%s269 + $0xc40] sm:$0xff]
        %v762 = vld [vmem:[%s269 + $0xc48] sm:$0xff]
        %v763 = vld [vmem:[%s269 + $0xc50] sm:$0xff]
        %v764 = vld [vmem:[%s269 + $0xc58] sm:$0xff]
        %v765 = vld [vmem:[%s269 + $0xc60] sm:$0xff]
        %v766 = vld [vmem:[%s269 + $0xc68] sm:$0xff]
        %v767 = vld [vmem:[%s269 + $0xc70] sm:$0xff]
        %v768 = vld [vmem:[%s269 + $0xc78] sm:$0xff]
        %v769 = vld [vmem:[%s269 + $0xc80] sm:$0xff]
        %v770 = vld [vmem:[%s269 + $0xc88] sm:$0xff]
        %v771 = vld [vmem:[%s269 + $0xc90] sm:$0xff]
        %v772 = vld [vmem:[%s269 + $0xc98] sm:$0xff]
        %v773 = vld [vmem:[%s269 + $0xca0] sm:$0xff]
        %v774 = vld [vmem:[%s269 + $0xca8] sm:$0xff]
        %v775 = vld [vmem:[%s269 + $0xcb0] sm:$0xff]
        %v776 = vld [vmem:[%s269 + $0xcb8] sm:$0xff]
        %v777 = vld [vmem:[%s269 + $0xcc0] sm:$0xff]
        %v778 = vld [vmem:[%s269 + $0xcc8] sm:$0xff]
        %v779 = vld [vmem:[%s269 + $0xcd0] sm:$0xff]
        %v780 = vld [vmem:[%s269 + $0xcd8] sm:$0xff]
        %v781 = vld [vmem:[%s269 + $0xce0] sm:$0xff]
        %v782 = vld [vmem:[%s269 + $0xce8] sm:$0xff]
        %v783 = vld [vmem:[%s269 + $0xcf0] sm:$0xff]
        %v784 = vld [vmem:[%s269 + $0xcf8] sm:$0xff]
        %v785 = vld [vmem:[%s269 + $0xd00] sm:$0xff]
        %v786 = vld [vmem:[%s269 + $0xd08] sm:$0xff]
        %v787 = vld [vmem:[%s269 + $0xd10] sm:$0xff]
        %v788 = vld [vmem:[%s269 + $0xd18] sm:$0xff]
        %v789 = vld [vmem:[%s269 + $0xd20] sm:$0xff]
        %v790 = vld [vmem:[%s269 + $0xd28] sm:$0xff]
        %v791 = vld [vmem:[%s269 + $0xd30] sm:$0xff]
        %v792 = vld [vmem:[%s269 + $0xd38] sm:$0xff]
        %v793 = vld [vmem:[%s269 + $0xd40] sm:$0xff]
        %v794 = vld [vmem:[%s269 + $0xd48] sm:$0xff]
        %v795 = vld [vmem:[%s269 + $0xd50] sm:$0xff]
        %v796 = vld [vmem:[%s269 + $0xd58] sm:$0xff]
        %v797 = vld [vmem:[%s269 + $0xd60] sm:$0xff]
        %v798 = vld [vmem:[%s269 + $0xd68] sm:$0xff]
        %v799 = vld [vmem:[%s269 + $0xd70] sm:$0xff]
        %v800 = vld [vmem:[%s269 + $0xd78] sm:$0xff]
        %v801 = vld [vmem:[%s269 + $0xd80] sm:$0xff]
        %v802 = vld [vmem:[%s269 + $0xd88] sm:$0xff]
        %v803 = vld [vmem:[%s269 + $0xd90] sm:$0xff]
        %v804 = vld [vmem:[%s269 + $0xd98] sm:$0xff]
        %v805 = vld [vmem:[%s269 + $0xda0] sm:$0xff]
        %v806 = vld [vmem:[%s269 + $0xda8] sm:$0xff]
        %v807 = vld [vmem:[%s269 + $0xdb0] sm:$0xff]
        %v808 = vld [vmem:[%s269 + $0xdb8] sm:$0xff]
        %v809 = vld [vmem:[%s269 + $0xdc0] sm:$0xff]
        %v810 = vld [vmem:[%s269 + $0xdc8] sm:$0xff]
        %v811 = vld [vmem:[%s269 + $0xdd0] sm:$0xff]
        %v812 = vld [vmem:[%s269 + $0xdd8] sm:$0xff]
        %v813 = vld [vmem:[%s269 + $0xde0] sm:$0xff]
        %v814 = vld [vmem:[%s269 + $0xde8] sm:$0xff]
        %v815 = vld [vmem:[%s269 + $0xdf0] sm:$0xff]
        %v816 = vld [vmem:[%s269 + $0xdf8] sm:$0xff]
        %v817 = vld [vmem:[%s269 + $0xe00] sm:$0xff]
        %v818 = vld [vmem:[%s269 + $0xe08] sm:$0xff]
        %v819 = vld [vmem:[%s269 + $0xe10] sm:$0xff]
        %v820 = vld [vmem:[%s269 + $0xe18] sm:$0xff]
        %v821 = vld [vmem:[%s269 + $0xe20] sm:$0xff]
        %v822 = vld [vmem:[%s269 + $0xe28] sm:$0xff]
        %v823 = vld [vmem:[%s269 + $0xe30] sm:$0xff]
        %v824 = vld [vmem:[%s269 + $0xe38] sm:$0xff]
        %v825 = vld [vmem:[%s269 + $0xe40] sm:$0xff]
        %v826 = vld [vmem:[%s269 + $0xe48] sm:$0xff]
        %v827 = vld [vmem:[%s269 + $0xe50] sm:$0xff]
        %v828 = vld [vmem:[%s269 + $0xe58] sm:$0xff]
        %v829 = vld [vmem:[%s269 + $0xe60] sm:$0xff]
        %v830 = vld [vmem:[%s269 + $0xe68] sm:$0xff]
        %v831 = vld [vmem:[%s269 + $0xe70] sm:$0xff]
        %v832 = vld [vmem:[%s269 + $0xe78] sm:$0xff]
        %v833 = vld [vmem:[%s269 + $0xe80] sm:$0xff]
        %v834 = vld [vmem:[%s269 + $0xe88] sm:$0xff]
        %v835 = vld [vmem:[%s269 + $0xe90] sm:$0xff]
        %v836 = vld [vmem:[%s269 + $0xe98] sm:$0xff]
        %v837 = vld [vmem:[%s269 + $0xea0] sm:$0xff]
        %v838 = vld [vmem:[%s269 + $0xea8] sm:$0xff]
        %v839 = vld [vmem:[%s269 + $0xeb0] sm:$0xff]
        %v840 = vld [vmem:[%s269 + $0xeb8] sm:$0xff]
        %v841 = vld [vmem:[%s269 + $0xec0] sm:$0xff]
        %v842 = vld [vmem:[%s269 + $0xec8] sm:$0xff]
        %v843 = vld [vmem:[%s269 + $0xed0] sm:$0xff]
        %v844 = vld [vmem:[%s269 + $0xed8] sm:$0xff]
        %v845 = vld [vmem:[%s269 + $0xee0] sm:$0xff]
        %v846 = vld [vmem:[%s269 + $0xee8] sm:$0xff]
        %v847 = vld [vmem:[%s269 + $0xef0] sm:$0xff]
        %v848 = vld [vmem:[%s269 + $0xef8] sm:$0xff]
        %v849 = vld [vmem:[%s269 + $0xf00] sm:$0xff]
        %v850 = vld [vmem:[%s269 + $0xf08] sm:$0xff]
        %v851 = vld [vmem:[%s269 + $0xf10] sm:$0xff]
        %v852 = vld [vmem:[%s269 + $0xf18] sm:$0xff]
        %v853 = vld [vmem:[%s269 + $0xf20] sm:$0xff]
        %v854 = vld [vmem:[%s269 + $0xf28] sm:$0xff]
        %v855 = vld [vmem:[%s269 + $0xf30] sm:$0xff]
        %v856 = vld [vmem:[%s269 + $0xf38] sm:$0xff]
        %v857 = vld [vmem:[%s269 + $0xf40] sm:$0xff]
        %v858 = vld [vmem:[%s269 + $0xf48] sm:$0xff]
        %v859 = vld [vmem:[%s269 + $0xf50] sm:$0xff]
        %v860 = vld [vmem:[%s269 + $0xf58] sm:$0xff]
        %v861 = vld [vmem:[%s269 + $0xf60] sm:$0xff]
        %v862 = vld [vmem:[%s269 + $0xf68] sm:$0xff]
        %v863 = vld [vmem:[%s269 + $0xf70] sm:$0xff]
        %v864 = vld [vmem:[%s269 + $0xf78] sm:$0xff]
        %v865 = vld [vmem:[%s269 + $0xf80] sm:$0xff]
        %v866 = vld [vmem:[%s269 + $0xf88] sm:$0xff]
        %v867 = vld [vmem:[%s269 + $0xf90] sm:$0xff]
        %v868 = vld [vmem:[%s269 + $0xf98] sm:$0xff]
        %v869 = vld [vmem:[%s269 + $0xfa0] sm:$0xff]
        %v870 = vld [vmem:[%s269 + $0xfa8] sm:$0xff]
        %v871 = vld [vmem:[%s269 + $0xfb0] sm:$0xff]
        %v872 = vld [vmem:[%s269 + $0xfb8] sm:$0xff]
        %v873 = vld [vmem:[%s269 + $0xfc0] sm:$0xff]
        %v874 = vld [vmem:[%s269 + $0xfc8] sm:$0xff]
        %v875 = vld [vmem:[%s269 + $0xfd0] sm:$0xff]
        %v876 = vld [vmem:[%s269 + $0xfd8] sm:$0xff]
        %v877 = vld [vmem:[%s269 + $0xfe0] sm:$0xff]
        %v878 = vld [vmem:[%s269 + $0xfe8] sm:$0xff]
        %v879 = vld [vmem:[%s269 + $0xff0] sm:$0xff]
        %v880 = vld [vmem:[%s269 + $0xff8] sm:$0xff]
        %v881 = vld [vmem:[%s269 + $0x1000] sm:$0xff]
        %v882 = vld [vmem:[%s269 + $0x1008] sm:$0xff]
        %v883 = vld [vmem:[%s269 + $0x1010] sm:$0xff]
        %v884 = vld [vmem:[%s269 + $0x1018] sm:$0xff]
        %v885 = vld [vmem:[%s269 + $0x1020] sm:$0xff]
        %v886 = vld [vmem:[%s269 + $0x1028] sm:$0xff]
        %v887 = vld [vmem:[%s269 + $0x1030] sm:$0xff]
        %v888 = vld [vmem:[%s269 + $0x1038] sm:$0xff]
        %v889 = vld [vmem:[%s269 + $0x1040] sm:$0xff]
        %v890 = vld [vmem:[%s269 + $0x1048] sm:$0xff]
        %v891 = vld [vmem:[%s269 + $0x1050] sm:$0xff]
        %v892 = vld [vmem:[%s269 + $0x1058] sm:$0xff]
        %v893 = vld [vmem:[%s269 + $0x1060] sm:$0xff]
        %v894 = vld [vmem:[%s269 + $0x1068] sm:$0xff]
        %v895 = vld [vmem:[%s269 + $0x1070] sm:$0xff]
        %v896 = vld [vmem:[%s269 + $0x1078] sm:$0xff]
        %v897 = vld [vmem:[%s269 + $0x1080] sm:$0xff]
        %v898 = vld [vmem:[%s269 + $0x1088] sm:$0xff]
        %v899 = vld [vmem:[%s269 + $0x1090] sm:$0xff]
        %v900 = vld [vmem:[%s269 + $0x1098] sm:$0xff]
        %v901 = vld [vmem:[%s269 + $0x10a0] sm:$0xff]
        %v902 = vld [vmem:[%s269 + $0x10a8] sm:$0xff]
        %v903 = vld [vmem:[%s269 + $0x10b0] sm:$0xff]
        %v904 = vld [vmem:[%s269 + $0x10b8] sm:$0xff]
        %v905 = vld [vmem:[%s269 + $0x10c0] sm:$0xff]
        %v906 = vld [vmem:[%s269 + $0x10c8] sm:$0xff]
        %v907 = vld [vmem:[%s269 + $0x10d0] sm:$0xff]
        %v908 = vld [vmem:[%s269 + $0x10d8] sm:$0xff]
        %v909 = vld [vmem:[%s269 + $0x10e0] sm:$0xff]
        %v910 = vld [vmem:[%s269 + $0x10e8] sm:$0xff]
        %v911 = vld [vmem:[%s269 + $0x10f0] sm:$0xff]
        %v912 = vld [vmem:[%s269 + $0x10f8] sm:$0xff]
        %v913 = vld [vmem:[%s269 + $0x1100] sm:$0xff]
        %v914 = vld [vmem:[%s269 + $0x1108] sm:$0xff]
        %v915 = vld [vmem:[%s269 + $0x1110] sm:$0xff]
        %v916 = vld [vmem:[%s269 + $0x1118] sm:$0xff]
        %v917 = vld [vmem:[%s269 + $0x1120] sm:$0xff]
        %v918 = vld [vmem:[%s269 + $0x1128] sm:$0xff]
        %v919 = vld [vmem:[%s269 + $0x1130] sm:$0xff]
        %v920 = vld [vmem:[%s269 + $0x1138] sm:$0xff]
        %v921 = vld [vmem:[%s269 + $0x1140] sm:$0xff]
        %v922 = vld [vmem:[%s269 + $0x1148] sm:$0xff]
        %v923 = vld [vmem:[%s269 + $0x1150] sm:$0xff]
        %v924 = vld [vmem:[%s269 + $0x1158] sm:$0xff]
        %v925 = vld [vmem:[%s269 + $0x1160] sm:$0xff]
        %v926 = vld [vmem:[%s269 + $0x1168] sm:$0xff]
        %v927 = vld [vmem:[%s269 + $0x1170] sm:$0xff]
        %v928 = vld [vmem:[%s269 + $0x1178] sm:$0xff]
        %v929 = vld [vmem:[%s269 + $0x1180] sm:$0xff]
        %v930 = vld [vmem:[%s269 + $0x1188] sm:$0xff]
        %v931 = vld [vmem:[%s269 + $0x1190] sm:$0xff]
        %v932 = vld [vmem:[%s269 + $0x1198] sm:$0xff]
        %v933 = vld [vmem:[%s269 + $0x11a0] sm:$0xff]
        %v934 = vld [vmem:[%s269 + $0x11a8] sm:$0xff]
        %v935 = vld [vmem:[%s269 + $0x11b0] sm:$0xff]
        %v936 = vld [vmem:[%s269 + $0x11b8] sm:$0xff]
        %v937 = vld [vmem:[%s269 + $0x11c0] sm:$0xff]
        %v938 = vld [vmem:[%s269 + $0x11c8] sm:$0xff]
        %v939 = vld [vmem:[%s269 + $0x11d0] sm:$0xff]
        %v940 = vld [vmem:[%s269 + $0x11d8] sm:$0xff]
        %v941 = vld [vmem:[%s269 + $0x11e0] sm:$0xff]
        %v942 = vld [vmem:[%s269 + $0x11e8] sm:$0xff]
        %v943 = vld [vmem:[%s269 + $0x11f0] sm:$0xff]
        %v944 = vld [vmem:[%s269 + $0x11f8] sm:$0xff]
        %v945 = vld [vmem:[%s269 + $0x1200] sm:$0xff]
        %v946 = vld [vmem:[%s269 + $0x1208] sm:$0xff]
        %v947 = vld [vmem:[%s269 + $0x1210] sm:$0xff]
        %v948 = vld [vmem:[%s269 + $0x1218] sm:$0xff]
        %v949 = vld [vmem:[%s269 + $0x1220] sm:$0xff]
        %v950 = vld [vmem:[%s269 + $0x1228] sm:$0xff]
        %v951 = vld [vmem:[%s269 + $0x1230] sm:$0xff]
        %v952 = vld [vmem:[%s269 + $0x1238] sm:$0xff]
        %v953 = vld [vmem:[%s269 + $0x1240] sm:$0xff]
        %v954 = vld [vmem:[%s269 + $0x1248] sm:$0xff]
        %v955 = vld [vmem:[%s269 + $0x1250] sm:$0xff]
        %v956 = vld [vmem:[%s269 + $0x1258] sm:$0xff]
        %v957 = vld [vmem:[%s269 + $0x1260] sm:$0xff]
        %v958 = vld [vmem:[%s269 + $0x1268] sm:$0xff]
        %v959 = vld [vmem:[%s269 + $0x1270] sm:$0xff]
        %v960 = vld [vmem:[%s269 + $0x1278] sm:$0xff]
        %v961 = vld [vmem:[%s269 + $0x1280] sm:$0xff]
        %v962 = vld [vmem:[%s269 + $0x1288] sm:$0xff]
        %v963 = vld [vmem:[%s269 + $0x1290] sm:$0xff]
        %v964 = vld [vmem:[%s269 + $0x1298] sm:$0xff]
        %v965 = vld [vmem:[%s269 + $0x12a0] sm:$0xff]
        %v966 = vld [vmem:[%s269 + $0x12a8] sm:$0xff]
        %v967 = vld [vmem:[%s269 + $0x12b0] sm:$0xff]
        %v968 = vld [vmem:[%s269 + $0x12b8] sm:$0xff]
        %v969 = vld [vmem:[%s269 + $0x12c0] sm:$0xff]
        %v970 = vld [vmem:[%s269 + $0x12c8] sm:$0xff]
        %v971 = vld [vmem:[%s269 + $0x12d0] sm:$0xff]
        %v972 = vld [vmem:[%s269 + $0x12d8] sm:$0xff]
        %v973 = vld [vmem:[%s269 + $0x12e0] sm:$0xff]
        %v974 = vld [vmem:[%s269 + $0x12e8] sm:$0xff]
        %v975 = vld [vmem:[%s269 + $0x12f0] sm:$0xff]
        %v976 = vld [vmem:[%s269 + $0x12f8] sm:$0xff]
        %v977 = vld [vmem:[%s269 + $0x1300] sm:$0xff]
        %v978 = vld [vmem:[%s269 + $0x1308] sm:$0xff]
        %v979 = vld [vmem:[%s269 + $0x1310] sm:$0xff]
        %v980 = vld [vmem:[%s269 + $0x1318] sm:$0xff]
        %v981 = vld [vmem:[%s269 + $0x1320] sm:$0xff]
        %v982 = vld [vmem:[%s269 + $0x1328] sm:$0xff]
        %v983 = vld [vmem:[%s269 + $0x1330] sm:$0xff]
        %v984 = vld [vmem:[%s269 + $0x1338] sm:$0xff]
        %v985 = vld [vmem:[%s269 + $0x1340] sm:$0xff]
        %v986 = vld [vmem:[%s269 + $0x1348] sm:$0xff]
        %v987 = vld [vmem:[%s269 + $0x1350] sm:$0xff]
        %v988 = vld [vmem:[%s269 + $0x1358] sm:$0xff]
        %v989 = vld [vmem:[%s269 + $0x1360] sm:$0xff]
        %v990 = vld [vmem:[%s269 + $0x1368] sm:$0xff]
        %v991 = vld [vmem:[%s269 + $0x1370] sm:$0xff]
        %v992 = vld [vmem:[%s269 + $0x1378] sm:$0xff]
        %v993 = vld [vmem:[%s269 + $0x1380] sm:$0xff]
        %v994 = vld [vmem:[%s269 + $0x1388] sm:$0xff]
        %v995 = vld [vmem:[%s269 + $0x1390] sm:$0xff]
        %v996 = vld [vmem:[%s269 + $0x1398] sm:$0xff]
        %v997 = vld [vmem:[%s269 + $0x13a0] sm:$0xff]
        %v998 = vld [vmem:[%s269 + $0x13a8] sm:$0xff]
        %v999 = vld [vmem:[%s269 + $0x13b0] sm:$0xff]
        %v1000 = vld [vmem:[%s269 + $0x13b8] sm:$0xff]
        %v1001 = vld [vmem:[%s269 + $0x13c0] sm:$0xff]
        %v1002 = vld [vmem:[%s269 + $0x13c8] sm:$0xff]
        %v1003 = vld [vmem:[%s269 + $0x13d0] sm:$0xff]
        %v1004 = vld [vmem:[%s269 + $0x13d8] sm:$0xff]
        %v1005 = vld [vmem:[%s269 + $0x13e0] sm:$0xff]
        %v1006 = vld [vmem:[%s269 + $0x13e8] sm:$0xff]
        %v1007 = vld [vmem:[%s269 + $0x13f0] sm:$0xff]
        %v1008 = vld [vmem:[%s269 + $0x13f8] sm:$0xff]
        %v1009 = vld [vmem:[%s269 + $0x1400] sm:$0xff]
        %v1010 = vld [vmem:[%s269 + $0x1408] sm:$0xff]
        %v1011 = vld [vmem:[%s269 + $0x1410] sm:$0xff]
        %v1012 = vld [vmem:[%s269 + $0x1418] sm:$0xff]
        %v1013 = vld [vmem:[%s269 + $0x1420] sm:$0xff]
        %v1014 = vld [vmem:[%s269 + $0x1428] sm:$0xff]
        %v1015 = vld [vmem:[%s269 + $0x1430] sm:$0xff]
        %v1016 = vld [vmem:[%s269 + $0x1438] sm:$0xff]
        %v1017 = vld [vmem:[%s269 + $0x1440] sm:$0xff]
        %v1018 = vld [vmem:[%s269 + $0x1448] sm:$0xff]
        %v1019 = vld [vmem:[%s269 + $0x1450] sm:$0xff]
        %v1020 = vld [vmem:[%s269 + $0x1458] sm:$0xff]
        %v1021 = vld [vmem:[%s269 + $0x1460] sm:$0xff]
        %v1022 = vld [vmem:[%s269 + $0x1468] sm:$0xff]
        %v1023 = vld [vmem:[%s269 + $0x1470] sm:$0xff]
        %v1024 = vld [vmem:[%s269 + $0x1478] sm:$0xff]
        %v1025 = vld [vmem:[%s269 + $0x1480] sm:$0xff]
        %v1026 = vld [vmem:[%s269 + $0x1488] sm:$0xff]
        %v1027 = vld [vmem:[%s269 + $0x1490] sm:$0xff]
        %v1028 = vld [vmem:[%s269 + $0x1498] sm:$0xff]
        %v1029 = vld [vmem:[%s269 + $0x14a0] sm:$0xff]
        %v1030 = vld [vmem:[%s269 + $0x14a8] sm:$0xff]
        %v1031 = vld [vmem:[%s269 + $0x14b0] sm:$0xff]
        %v1032 = vld [vmem:[%s269 + $0x14b8] sm:$0xff]
        %v1033 = vld [vmem:[%s269 + $0x14c0] sm:$0xff]
        %v1034 = vld [vmem:[%s269 + $0x14c8] sm:$0xff]
        %v1035 = vld [vmem:[%s269 + $0x14d0] sm:$0xff]
        %v1036 = vld [vmem:[%s269 + $0x14d8] sm:$0xff]
        %v1037 = vld [vmem:[%s269 + $0x14e0] sm:$0xff]
        %v1038 = vld [vmem:[%s269 + $0x14e8] sm:$0xff]
        %v1039 = vld [vmem:[%s269 + $0x14f0] sm:$0xff]
        %v1040 = vld [vmem:[%s269 + $0x14f8] sm:$0xff]
        %v1041 = vld [vmem:[%s269 + $0x1500] sm:$0xff]
        %v1042 = vld [vmem:[%s269 + $0x1508] sm:$0xff]
        %v1043 = vld [vmem:[%s269 + $0x1510] sm:$0xff]
        %v1044 = vld [vmem:[%s269 + $0x1518] sm:$0xff]
        %v1045 = vld [vmem:[%s269 + $0x1520] sm:$0xff]
        %v1046 = vld [vmem:[%s269 + $0x1528] sm:$0xff]
        %v1047 = vld [vmem:[%s269 + $0x1530] sm:$0xff]
        %v1048 = vld [vmem:[%s269 + $0x1538] sm:$0xff]
        %v1049 = vld [vmem:[%s269 + $0x1540] sm:$0xff]
        %v1050 = vld [vmem:[%s269 + $0x1548] sm:$0xff]
        %v1051 = vld [vmem:[%s269 + $0x1550] sm:$0xff]
        %v1052 = vld [vmem:[%s269 + $0x1558] sm:$0xff]
        %v1053 = vld [vmem:[%s269 + $0x1560] sm:$0xff]
        %v1054 = vld [vmem:[%s269 + $0x1568] sm:$0xff]
        %v1055 = vld [vmem:[%s269 + $0x1570] sm:$0xff]
        %v1056 = vld [vmem:[%s269 + $0x1578] sm:$0xff]
        %v1057 = vld [vmem:[%s269 + $0x1580] sm:$0xff]
        %v1058 = vld [vmem:[%s269 + $0x1588] sm:$0xff]
        %v1059 = vld [vmem:[%s269 + $0x1590] sm:$0xff]
        %v1060 = vld [vmem:[%s269 + $0x1598] sm:$0xff]
        %v1061 = vld [vmem:[%s269 + $0x15a0] sm:$0xff]
        %v1062 = vld [vmem:[%s269 + $0x15a8] sm:$0xff]
        %v1063 = vld [vmem:[%s269 + $0x15b0] sm:$0xff]
        %v1064 = vld [vmem:[%s269 + $0x15b8] sm:$0xff]
        %v1065 = vld [vmem:[%s269 + $0x15c0] sm:$0xff]
        %v1066 = vld [vmem:[%s269 + $0x15c8] sm:$0xff]
        %v1067 = vld [vmem:[%s269 + $0x15d0] sm:$0xff]
        %v1068 = vld [vmem:[%s269 + $0x15d8] sm:$0xff]
        %v1069 = vld [vmem:[%s269 + $0x15e0] sm:$0xff]
        %v1070 = vld [vmem:[%s269 + $0x15e8] sm:$0xff]
        %v1071 = vld [vmem:[%s269 + $0x15f0] sm:$0xff]
        %v1072 = vld [vmem:[%s269 + $0x15f8] sm:$0xff]
        %v1073 = vld [vmem:[%s269 + $0x1600] sm:$0xff]
        %v1074 = vld [vmem:[%s269 + $0x1608] sm:$0xff]
        %v1075 = vld [vmem:[%s269 + $0x1610] sm:$0xff]
        %v1076 = vld [vmem:[%s269 + $0x1618] sm:$0xff]
        %v1077 = vld [vmem:[%s269 + $0x1620] sm:$0xff]
        %v1078 = vld [vmem:[%s269 + $0x1628] sm:$0xff]
        %v1079 = vld [vmem:[%s269 + $0x1630] sm:$0xff]
        %v1080 = vld [vmem:[%s269 + $0x1638] sm:$0xff]
        %v1081 = vld [vmem:[%s269 + $0x1640] sm:$0xff]
        %v1082 = vld [vmem:[%s269 + $0x1648] sm:$0xff]
        %v1083 = vld [vmem:[%s269 + $0x1650] sm:$0xff]
        %v1084 = vld [vmem:[%s269 + $0x1658] sm:$0xff]
        %v1085 = vld [vmem:[%s269 + $0x1660] sm:$0xff]
        %v1086 = vld [vmem:[%s269 + $0x1668] sm:$0xff]
        %v1087 = vld [vmem:[%s269 + $0x1670] sm:$0xff]
        %v1088 = vld [vmem:[%s269 + $0x1678] sm:$0xff]
        %v1089 = vld [vmem:[%s269 + $0x1680] sm:$0xff]
        %v1090 = vld [vmem:[%s269 + $0x1688] sm:$0xff]
        %v1091 = vld [vmem:[%s269 + $0x1690] sm:$0xff]
        %v1092 = vld [vmem:[%s269 + $0x1698] sm:$0xff]
        %v1093 = vld [vmem:[%s269 + $0x16a0] sm:$0xff]
        %v1094 = vld [vmem:[%s269 + $0x16a8] sm:$0xff]
        %v1095 = vld [vmem:[%s269 + $0x16b0] sm:$0xff]
        %v1096 = vld [vmem:[%s269 + $0x16b8] sm:$0xff]
        %v1097 = vld [vmem:[%s269 + $0x16c0] sm:$0xff]
        %v1098 = vld [vmem:[%s269 + $0x16c8] sm:$0xff]
        %v1099 = vld [vmem:[%s269 + $0x16d0] sm:$0xff]
        %v1100 = vld [vmem:[%s269 + $0x16d8] sm:$0xff]
        %v1101 = vld [vmem:[%s269 + $0x16e0] sm:$0xff]
        %v1102 = vld [vmem:[%s269 + $0x16e8] sm:$0xff]
        %v1103 = vld [vmem:[%s269 + $0x16f0] sm:$0xff]
        %v1104 = vld [vmem:[%s269 + $0x16f8] sm:$0xff]
        %v1105 = vld [vmem:[%s269 + $0x1700] sm:$0xff]
        %v1106 = vld [vmem:[%s269 + $0x1708] sm:$0xff]
        %v1107 = vld [vmem:[%s269 + $0x1710] sm:$0xff]
        %v1108 = vld [vmem:[%s269 + $0x1718] sm:$0xff]
        %v1109 = vld [vmem:[%s269 + $0x1720] sm:$0xff]
        %v1110 = vld [vmem:[%s269 + $0x1728] sm:$0xff]
        %v1111 = vld [vmem:[%s269 + $0x1730] sm:$0xff]
        %v1112 = vld [vmem:[%s269 + $0x1738] sm:$0xff]
        %v1113 = vld [vmem:[%s269 + $0x1740] sm:$0xff]
        %v1114 = vld [vmem:[%s269 + $0x1748] sm:$0xff]
        %v1115 = vld [vmem:[%s269 + $0x1750] sm:$0xff]
        %v1116 = vld [vmem:[%s269 + $0x1758] sm:$0xff]
        %v1117 = vld [vmem:[%s269 + $0x1760] sm:$0xff]
        %v1118 = vld [vmem:[%s269 + $0x1768] sm:$0xff]
        %v1119 = vld [vmem:[%s269 + $0x1770] sm:$0xff]
        %v1120 = vld [vmem:[%s269 + $0x1778] sm:$0xff]
        %v1121 = vld [vmem:[%s269 + $0x1780] sm:$0xff]
        %v1122 = vld [vmem:[%s269 + $0x1788] sm:$0xff]
        %v1123 = vld [vmem:[%s269 + $0x1790] sm:$0xff]
        %v1124 = vld [vmem:[%s269 + $0x1798] sm:$0xff]
        %v1125 = vld [vmem:[%s269 + $0x17a0] sm:$0xff]
        %v1126 = vld [vmem:[%s269 + $0x17a8] sm:$0xff]
        %v1127 = vld [vmem:[%s269 + $0x17b0] sm:$0xff]
        %v1128 = vld [vmem:[%s269 + $0x17b8] sm:$0xff]
        %v1129 = vld [vmem:[%s269 + $0x17c0] sm:$0xff]
        %v1130 = vld [vmem:[%s269 + $0x17c8] sm:$0xff]
        %v1131 = vld [vmem:[%s269 + $0x17d0] sm:$0xff]
        %v1132 = vld [vmem:[%s269 + $0x17d8] sm:$0xff]
        %v1133 = vld [vmem:[%s269 + $0x17e0] sm:$0xff]
        %v1134 = vld [vmem:[%s269 + $0x17e8] sm:$0xff]
        %v1135 = vld [vmem:[%s269 + $0x17f0] sm:$0xff]
        %v1136 = vld [vmem:[%s269 + $0x17f8] sm:$0xff]
        %v1137 = vld [vmem:[%s269 + $0x1800] sm:$0xff]
        %v1138 = vld [vmem:[%s269 + $0x1808] sm:$0xff]
        %v1139 = vld [vmem:[%s269 + $0x1810] sm:$0xff]
        %v1140 = vld [vmem:[%s269 + $0x1818] sm:$0xff]
        %v1141 = vld [vmem:[%s269 + $0x1820] sm:$0xff]
        %v1142 = vld [vmem:[%s269 + $0x1828] sm:$0xff]
        %v1143 = vld [vmem:[%s269 + $0x1830] sm:$0xff]
        %v1144 = vld [vmem:[%s269 + $0x1838] sm:$0xff]
        %v1145 = vld [vmem:[%s269 + $0x1840] sm:$0xff]
        %v1146 = vld [vmem:[%s269 + $0x1848] sm:$0xff]
        %v1147 = vld [vmem:[%s269 + $0x1850] sm:$0xff]
        %v1148 = vld [vmem:[%s269 + $0x1858] sm:$0xff]
        %v1149 = vld [vmem:[%s269 + $0x1860] sm:$0xff]
        %v1150 = vld [vmem:[%s269 + $0x1868] sm:$0xff]
        %v1151 = vld [vmem:[%s269 + $0x1870] sm:$0xff]
        %v1152 = vld [vmem:[%s269 + $0x1878] sm:$0xff]
        %v1153 = vld [vmem:[%s269 + $0x1880] sm:$0xff]
        %v1154 = vld [vmem:[%s269 + $0x1888] sm:$0xff]
        %v1155 = vld [vmem:[%s269 + $0x1890] sm:$0xff]
        %v1156 = vld [vmem:[%s269 + $0x1898] sm:$0xff]
        %v1157 = vld [vmem:[%s269 + $0x18a0] sm:$0xff]
        %v1158 = vld [vmem:[%s269 + $0x18a8] sm:$0xff]
        %v1159 = vld [vmem:[%s269 + $0x18b0] sm:$0xff]
        %v1160 = vld [vmem:[%s269 + $0x18b8] sm:$0xff]
        %v1161 = vld [vmem:[%s269 + $0x18c0] sm:$0xff]
        %v1162 = vld [vmem:[%s269 + $0x18c8] sm:$0xff]
        %v1163 = vld [vmem:[%s269 + $0x18d0] sm:$0xff]
        %v1164 = vld [vmem:[%s269 + $0x18d8] sm:$0xff]
        %v1165 = vld [vmem:[%s269 + $0x18e0] sm:$0xff]
        %v1166 = vld [vmem:[%s269 + $0x18e8] sm:$0xff]
        %v1167 = vld [vmem:[%s269 + $0x18f0] sm:$0xff]
        %v1168 = vld [vmem:[%s269 + $0x18f8] sm:$0xff]
        %v1169 = vld [vmem:[%s269 + $0x1900] sm:$0xff]
        %v1170 = vld [vmem:[%s269 + $0x1908] sm:$0xff]
        %v1171 = vld [vmem:[%s269 + $0x1910] sm:$0xff]
        %v1172 = vld [vmem:[%s269 + $0x1918] sm:$0xff]
        %v1173 = vld [vmem:[%s269 + $0x1920] sm:$0xff]
        %v1174 = vld [vmem:[%s269 + $0x1928] sm:$0xff]
        %v1175 = vld [vmem:[%s269 + $0x1930] sm:$0xff]
        %v1176 = vld [vmem:[%s269 + $0x1938] sm:$0xff]
        %v1177 = vld [vmem:[%s269 + $0x1940] sm:$0xff]
        %v1178 = vld [vmem:[%s269 + $0x1948] sm:$0xff]
        %v1179 = vld [vmem:[%s269 + $0x1950] sm:$0xff]
        %v1180 = vld [vmem:[%s269 + $0x1958] sm:$0xff]
        %v1181 = vld [vmem:[%s269 + $0x1960] sm:$0xff]
        %v1182 = vld [vmem:[%s269 + $0x1968] sm:$0xff]
        %v1183 = vld [vmem:[%s269 + $0x1970] sm:$0xff]
        %v1184 = vld [vmem:[%s269 + $0x1978] sm:$0xff]
        %v1185 = vld [vmem:[%s269 + $0x1980] sm:$0xff]
        %v1186 = vld [vmem:[%s269 + $0x1988] sm:$0xff]
        %v1187 = vld [vmem:[%s269 + $0x1990] sm:$0xff]
        %v1188 = vld [vmem:[%s269 + $0x1998] sm:$0xff]
        %v1189 = vld [vmem:[%s269 + $0x19a0] sm:$0xff]
        %v1190 = vld [vmem:[%s269 + $0x19a8] sm:$0xff]
        %v1191 = vld [vmem:[%s269 + $0x19b0] sm:$0xff]
        %v1192 = vld [vmem:[%s269 + $0x19b8] sm:$0xff]
        %v1193 = vld [vmem:[%s269 + $0x19c0] sm:$0xff]
        %v1194 = vld [vmem:[%s269 + $0x19c8] sm:$0xff]
        %v1195 = vld [vmem:[%s269 + $0x19d0] sm:$0xff]
        %v1196 = vld [vmem:[%s269 + $0x19d8] sm:$0xff]
        %v1197 = vld [vmem:[%s269 + $0x19e0] sm:$0xff]
        %v1198 = vld [vmem:[%s269 + $0x19e8] sm:$0xff]
        %v1199 = vld [vmem:[%s269 + $0x19f0] sm:$0xff]
        %v1200 = vld [vmem:[%s269 + $0x19f8] sm:$0xff]
        %v1201 = vld [vmem:[%s269 + $0x1a00] sm:$0xff]
        %v1202 = vld [vmem:[%s269 + $0x1a08] sm:$0xff]
        %v1203 = vld [vmem:[%s269 + $0x1a10] sm:$0xff]
        %v1204 = vld [vmem:[%s269 + $0x1a18] sm:$0xff]
        %v1205 = vld [vmem:[%s269 + $0x1a20] sm:$0xff]
        %v1206 = vld [vmem:[%s269 + $0x1a28] sm:$0xff]
        %v1207 = vld [vmem:[%s269 + $0x1a30] sm:$0xff]
        %v1208 = vld [vmem:[%s269 + $0x1a38] sm:$0xff]
        %v1209 = vld [vmem:[%s269 + $0x1a40] sm:$0xff]
        %v1210 = vld [vmem:[%s269 + $0x1a48] sm:$0xff]
        %v1211 = vld [vmem:[%s269 + $0x1a50] sm:$0xff]
        %v1212 = vld [vmem:[%s269 + $0x1a58] sm:$0xff]
        %v1213 = vld [vmem:[%s269 + $0x1a60] sm:$0xff]
        %v1214 = vld [vmem:[%s269 + $0x1a68] sm:$0xff]
        %v1215 = vld [vmem:[%s269 + $0x1a70] sm:$0xff]
        %v1216 = vld [vmem:[%s269 + $0x1a78] sm:$0xff]
        %v1217 = vld [vmem:[%s269 + $0x1a80] sm:$0xff]
        %v1218 = vld [vmem:[%s269 + $0x1a88] sm:$0xff]
        %v1219 = vld [vmem:[%s269 + $0x1a90] sm:$0xff]
        %v1220 = vld [vmem:[%s269 + $0x1a98] sm:$0xff]
        %v1221 = vld [vmem:[%s269 + $0x1aa0] sm:$0xff]
        %v1222 = vld [vmem:[%s269 + $0x1aa8] sm:$0xff]
        %v1223 = vld [vmem:[%s269 + $0x1ab0] sm:$0xff]
        %v1224 = vld [vmem:[%s269 + $0x1ab8] sm:$0xff]
        %v1225 = vld [vmem:[%s269 + $0x1ac0] sm:$0xff]
        %v1226 = vld [vmem:[%s269 + $0x1ac8] sm:$0xff]
        %v1227 = vld [vmem:[%s269 + $0x1ad0] sm:$0xff]
        %v1228 = vld [vmem:[%s269 + $0x1ad8] sm:$0xff]
        %v1229 = vld [vmem:[%s269 + $0x1ae0] sm:$0xff]
        %v1230 = vld [vmem:[%s269 + $0x1ae8] sm:$0xff]
        %v1231 = vld [vmem:[%s269 + $0x1af0] sm:$0xff]
        %v1232 = vld [vmem:[%s269 + $0x1af8] sm:$0xff]
        %v1233 = vld [vmem:[%s269 + $0x1b00] sm:$0xff]
        %v1234 = vld [vmem:[%s269 + $0x1b08] sm:$0xff]
        %v1235 = vld [vmem:[%s269 + $0x1b10] sm:$0xff]
        %v1236 = vld [vmem:[%s269 + $0x1b18] sm:$0xff]
        %v1237 = vld [vmem:[%s269 + $0x1b20] sm:$0xff]
        %v1238 = vld [vmem:[%s269 + $0x1b28] sm:$0xff]
        %v1239 = vld [vmem:[%s269 + $0x1b30] sm:$0xff]
        %v1240 = vld [vmem:[%s269 + $0x1b38] sm:$0xff]
        %v1241 = vld [vmem:[%s269 + $0x1b40] sm:$0xff]
        %v1242 = vld [vmem:[%s269 + $0x1b48] sm:$0xff]
        %v1243 = vld [vmem:[%s269 + $0x1b50] sm:$0xff]
        %v1244 = vld [vmem:[%s269 + $0x1b58] sm:$0xff]
        %v1245 = vld [vmem:[%s269 + $0x1b60] sm:$0xff]
        %v1246 = vld [vmem:[%s269 + $0x1b68] sm:$0xff]
        %v1247 = vld [vmem:[%s269 + $0x1b70] sm:$0xff]
        %v1248 = vld [vmem:[%s269 + $0x1b78] sm:$0xff]
        %v1249 = vld [vmem:[%s269 + $0x1b80] sm:$0xff]
        %v1250 = vld [vmem:[%s269 + $0x1b88] sm:$0xff]
        %v1251 = vld [vmem:[%s269 + $0x1b90] sm:$0xff]
        %v1252 = vld [vmem:[%s269 + $0x1b98] sm:$0xff]
        %v1253 = vld [vmem:[%s269 + $0x1ba0] sm:$0xff]
        %v1254 = vld [vmem:[%s269 + $0x1ba8] sm:$0xff]
        %v1255 = vld [vmem:[%s269 + $0x1bb0] sm:$0xff]
        %v1256 = vld [vmem:[%s269 + $0x1bb8] sm:$0xff]
        %v1257 = vld [vmem:[%s269 + $0x1bc0] sm:$0xff]
        %v1258 = vld [vmem:[%s269 + $0x1bc8] sm:$0xff]
        %v1259 = vld [vmem:[%s269 + $0x1bd0] sm:$0xff]
        %v1260 = vld [vmem:[%s269 + $0x1bd8] sm:$0xff]
        %v1261 = vld [vmem:[%s269 + $0x1be0] sm:$0xff]
        %v1262 = vld [vmem:[%s269 + $0x1be8] sm:$0xff]
        %v1263 = vld [vmem:[%s269 + $0x1bf0] sm:$0xff]
        %v1264 = vld [vmem:[%s269 + $0x1bf8] sm:$0xff]
        %v1265 = vld [vmem:[%s269 + $0x1c00] sm:$0xff]
        %v1266 = vld [vmem:[%s269 + $0x1c08] sm:$0xff]
        %v1267 = vld [vmem:[%s269 + $0x1c10] sm:$0xff]
        %v1268 = vld [vmem:[%s269 + $0x1c18] sm:$0xff]
        %v1269 = vld [vmem:[%s269 + $0x1c20] sm:$0xff]
        %v1270 = vld [vmem:[%s269 + $0x1c28] sm:$0xff]
        %v1271 = vld [vmem:[%s269 + $0x1c30] sm:$0xff]
        %v1272 = vld [vmem:[%s269 + $0x1c38] sm:$0xff]
        %v1273 = vld [vmem:[%s269 + $0x1c40] sm:$0xff]
        %v1274 = vld [vmem:[%s269 + $0x1c48] sm:$0xff]
        %v1275 = vld [vmem:[%s269 + $0x1c50] sm:$0xff]
        %v1276 = vld [vmem:[%s269 + $0x1c58] sm:$0xff]
        %v1277 = vld [vmem:[%s269 + $0x1c60] sm:$0xff]
        %v1278 = vld [vmem:[%s269 + $0x1c68] sm:$0xff]
        %v1279 = vld [vmem:[%s269 + $0x1c70] sm:$0xff]
        %v1280 = vld [vmem:[%s269 + $0x1c78] sm:$0xff]
        %v1281 = vld [vmem:[%s269 + $0x1c80] sm:$0xff]
        %v1282 = vld [vmem:[%s269 + $0x1c88] sm:$0xff]
        %v1283 = vld [vmem:[%s269 + $0x1c90] sm:$0xff]
        %v1284 = vld [vmem:[%s269 + $0x1c98] sm:$0xff]
        %v1285 = vld [vmem:[%s269 + $0x1ca0] sm:$0xff]
        %v1286 = vld [vmem:[%s269 + $0x1ca8] sm:$0xff]
        %v1287 = vld [vmem:[%s269 + $0x1cb0] sm:$0xff]
        %v1288 = vld [vmem:[%s269 + $0x1cb8] sm:$0xff]
        %v1289 = vld [vmem:[%s269 + $0x1cc0] sm:$0xff]
        %v1290 = vld [vmem:[%s269 + $0x1cc8] sm:$0xff]
        %v1291 = vld [vmem:[%s269 + $0x1cd0] sm:$0xff]
        %v1292 = vld [vmem:[%s269 + $0x1cd8] sm:$0xff]
        %v1293 = vld [vmem:[%s269 + $0x1ce0] sm:$0xff]
        %v1294 = vld [vmem:[%s269 + $0x1ce8] sm:$0xff]
        %v1295 = vld [vmem:[%s269 + $0x1cf0] sm:$0xff]
        %v1296 = vld [vmem:[%s269 + $0x1cf8] sm:$0xff]
        %v1297 = vld [vmem:[%s269 + $0x1d00] sm:$0xff]
        %v1298 = vld [vmem:[%s269 + $0x1d08] sm:$0xff]
        %v1299 = vld [vmem:[%s269 + $0x1d10] sm:$0xff]
        %v1300 = vld [vmem:[%s269 + $0x1d18] sm:$0xff]
        %v1301 = vld [vmem:[%s269 + $0x1d20] sm:$0xff]
        %v1302 = vld [vmem:[%s269 + $0x1d28] sm:$0xff]
        %v1303 = vld [vmem:[%s269 + $0x1d30] sm:$0xff]
        %v1304 = vld [vmem:[%s269 + $0x1d38] sm:$0xff]
        %v1305 = vld [vmem:[%s269 + $0x1d40] sm:$0xff]
        %v1306 = vld [vmem:[%s269 + $0x1d48] sm:$0xff]
        %v1307 = vld [vmem:[%s269 + $0x1d50] sm:$0xff]
        %v1308 = vld [vmem:[%s269 + $0x1d58] sm:$0xff]
        %v1309 = vld [vmem:[%s269 + $0x1d60] sm:$0xff]
        %v1310 = vld [vmem:[%s269 + $0x1d68] sm:$0xff]
        %v1311 = vld [vmem:[%s269 + $0x1d70] sm:$0xff]
        %v1312 = vld [vmem:[%s269 + $0x1d78] sm:$0xff]
        %v1313 = vld [vmem:[%s269 + $0x1d80] sm:$0xff]
        %v1314 = vld [vmem:[%s269 + $0x1d88] sm:$0xff]
        %v1315 = vld [vmem:[%s269 + $0x1d90] sm:$0xff]
        %v1316 = vld [vmem:[%s269 + $0x1d98] sm:$0xff]
        %v1317 = vld [vmem:[%s269 + $0x1da0] sm:$0xff]
        %v1318 = vld [vmem:[%s269 + $0x1da8] sm:$0xff]
        %v1319 = vld [vmem:[%s269 + $0x1db0] sm:$0xff]
        %v1320 = vld [vmem:[%s269 + $0x1db8] sm:$0xff]
        %v1321 = vld [vmem:[%s269 + $0x1dc0] sm:$0xff]
        %v1322 = vld [vmem:[%s269 + $0x1dc8] sm:$0xff]
        %v1323 = vld [vmem:[%s269 + $0x1dd0] sm:$0xff]
        %v1324 = vld [vmem:[%s269 + $0x1dd8] sm:$0xff]
        %v1325 = vld [vmem:[%s269 + $0x1de0] sm:$0xff]
        %v1326 = vld [vmem:[%s269 + $0x1de8] sm:$0xff]
        %v1327 = vld [vmem:[%s269 + $0x1df0] sm:$0xff]
        %v1328 = vld [vmem:[%s269 + $0x1df8] sm:$0xff]
        %v1329 = vld [vmem:[%s269 + $0x1e00] sm:$0xff]
        %v1330 = vld [vmem:[%s269 + $0x1e08] sm:$0xff]
        %v1331 = vld [vmem:[%s269 + $0x1e10] sm:$0xff]
        %v1332 = vld [vmem:[%s269 + $0x1e18] sm:$0xff]
        %v1333 = vld [vmem:[%s269 + $0x1e20] sm:$0xff]
        %v1334 = vld [vmem:[%s269 + $0x1e28] sm:$0xff]
        %v1335 = vld [vmem:[%s269 + $0x1e30] sm:$0xff]
        %v1336 = vld [vmem:[%s269 + $0x1e38] sm:$0xff]
        %v1337 = vld [vmem:[%s269 + $0x1e40] sm:$0xff]
        %v1338 = vld [vmem:[%s269 + $0x1e48] sm:$0xff]
        %v1339 = vld [vmem:[%s269 + $0x1e50] sm:$0xff]
        %v1340 = vld [vmem:[%s269 + $0x1e58] sm:$0xff]
        %v1341 = vld [vmem:[%s269 + $0x1e60] sm:$0xff]
        %v1342 = vld [vmem:[%s269 + $0x1e68] sm:$0xff]
        %v1343 = vld [vmem:[%s269 + $0x1e70] sm:$0xff]
        %v1344 = vld [vmem:[%s269 + $0x1e78] sm:$0xff]
        %v1345 = vld [vmem:[%s269 + $0x1e80] sm:$0xff]
        %v1346 = vld [vmem:[%s269 + $0x1e88] sm:$0xff]
        %v1347 = vld [vmem:[%s269 + $0x1e90] sm:$0xff]
        %v1348 = vld [vmem:[%s269 + $0x1e98] sm:$0xff]
        %v1349 = vld [vmem:[%s269 + $0x1ea0] sm:$0xff]
        %v1350 = vld [vmem:[%s269 + $0x1ea8] sm:$0xff]
        %v1351 = vld [vmem:[%s269 + $0x1eb0] sm:$0xff]
        %v1352 = vld [vmem:[%s269 + $0x1eb8] sm:$0xff]
        %v1353 = vld [vmem:[%s269 + $0x1ec0] sm:$0xff]
        %v1354 = vld [vmem:[%s269 + $0x1ec8] sm:$0xff]
        %v1355 = vld [vmem:[%s269 + $0x1ed0] sm:$0xff]
        %v1356 = vld [vmem:[%s269 + $0x1ed8] sm:$0xff]
        %v1357 = vld [vmem:[%s269 + $0x1ee0] sm:$0xff]
        %v1358 = vld [vmem:[%s269 + $0x1ee8] sm:$0xff]
        %v1359 = vld [vmem:[%s269 + $0x1ef0] sm:$0xff]
        %v1360 = vld [vmem:[%s269 + $0x1ef8] sm:$0xff]
        %v1361 = vld [vmem:[%s269 + $0x1f00] sm:$0xff]
        %v1362 = vld [vmem:[%s269 + $0x1f08] sm:$0xff]
        %v1363 = vld [vmem:[%s269 + $0x1f10] sm:$0xff]
        %v1364 = vld [vmem:[%s269 + $0x1f18] sm:$0xff]
        %v1365 = vld [vmem:[%s269 + $0x1f20] sm:$0xff]
        %v1366 = vld [vmem:[%s269 + $0x1f28] sm:$0xff]
        %v1367 = vld [vmem:[%s269 + $0x1f30] sm:$0xff]
        %v1368 = vld [vmem:[%s269 + $0x1f38] sm:$0xff]
        %v1369 = vld [vmem:[%s269 + $0x1f40] sm:$0xff]
        %v1370 = vld [vmem:[%s269 + $0x1f48] sm:$0xff]
        %v1371 = vld [vmem:[%s269 + $0x1f50] sm:$0xff]
        %v1372 = vld [vmem:[%s269 + $0x1f58] sm:$0xff]
        %v1373 = vld [vmem:[%s269 + $0x1f60] sm:$0xff]
        %v1374 = vld [vmem:[%s269 + $0x1f68] sm:$0xff]
        %v1375 = vld [vmem:[%s269 + $0x1f70] sm:$0xff]
        %v1376 = vld [vmem:[%s269 + $0x1f78] sm:$0xff]
        %v1377 = vld [vmem:[%s269 + $0x1f80] sm:$0xff]
        %v1378 = vld [vmem:[%s269 + $0x1f88] sm:$0xff]
        %v1379 = vld [vmem:[%s269 + $0x1f90] sm:$0xff]
        %v1380 = vld [vmem:[%s269 + $0x1f98] sm:$0xff]
        %v1381 = vld [vmem:[%s269 + $0x1fa0] sm:$0xff]
        %v1382 = vld [vmem:[%s269 + $0x1fa8] sm:$0xff]
        %v1383 = vld [vmem:[%s269 + $0x1fb0] sm:$0xff]
        %v1384 = vld [vmem:[%s269 + $0x1fb8] sm:$0xff]
        %v1385 = vld [vmem:[%s269 + $0x1fc0] sm:$0xff]
        %v1386 = vld [vmem:[%s269 + $0x1fc8] sm:$0xff]
        %v1387 = vld [vmem:[%s269 + $0x1fd0] sm:$0xff]
        %v1388 = vld [vmem:[%s269 + $0x1fd8] sm:$0xff]
        %v1389 = vld [vmem:[%s269 + $0x1fe0] sm:$0xff]
        %v1390 = vld [vmem:[%s269 + $0x1fe8] sm:$0xff]
        %v1391 = vld [vmem:[%s269 + $0x1ff0] sm:$0xff]
        %v1392 = vld [vmem:[%s269 + $0x1ff8] sm:$0xff]
        %v1393 = vld [vmem:[%s278] sm:$0xf]
        %v1395 = vlaneseq
        %v1396 = vshrl.u32 %v1395, 7
        %v1397 = vsub.s32 0, %v1396
        %v1398 = vrot.slane %v1393, %v1397
        %v1399 = vlaneseq
        %v1400 = vshrl.u32 %v1399, 7
        %v1401 = vsub.s32 1, %v1400
        %v1402 = vrot.slane %v1393, %v1401
        %v1403 = vlaneseq
        %v1404 = vshrl.u32 %v1403, 7
        %v1405 = vsub.s32 2, %v1404
        %v1406 = vrot.slane %v1393, %v1405
        %v1407 = vlaneseq
        %v1408 = vshrl.u32 %v1407, 7
        %v1409 = vsub.s32 3, %v1408
        %v1410 = vrot.slane %v1393, %v1409
        %v1447 = vunpack.c.l.b16 %v337
        %v1448 = vunpack.c.h.b16 %v337
        %v1449 = vunpack.c.l.b16 %v338
        %v1450 = vunpack.c.h.b16 %v338
        %v1451 = vunpack.c.l.b16 %v339
        %v1452 = vunpack.c.h.b16 %v339
        %v1453 = vunpack.c.l.b16 %v340
        %v1454 = vunpack.c.h.b16 %v340
        %v1455 = vunpack.c.l.b16 %v341
        %v1456 = vunpack.c.h.b16 %v341
        %v1457 = vunpack.c.l.b16 %v342
        %v1458 = vunpack.c.h.b16 %v342
        %v1459 = vunpack.c.l.b16 %v343
        %v1460 = vunpack.c.h.b16 %v343
        %v1461 = vunpack.c.l.b16 %v344
        %v1462 = vunpack.c.h.b16 %v344
        %v1463 = vunpack.c.l.b16 %v345
        %v1464 = vunpack.c.h.b16 %v345
        %v1465 = vunpack.c.l.b16 %v346
        %v1466 = vunpack.c.h.b16 %v346
        %v1467 = vunpack.c.l.b16 %v347
        %v1468 = vunpack.c.h.b16 %v347
        %v1469 = vunpack.c.l.b16 %v348
        %v1470 = vunpack.c.h.b16 %v348
        %v1471 = vunpack.c.l.b16 %v349
        %v1472 = vunpack.c.h.b16 %v349
        %v1473 = vunpack.c.l.b16 %v350
        %v1474 = vunpack.c.h.b16 %v350
        %v1475 = vunpack.c.l.b16 %v351
        %v1476 = vunpack.c.h.b16 %v351
        %v1477 = vunpack.c.l.b16 %v352
        %v1478 = vunpack.c.h.b16 %v352
        %v1479 = vunpack.c.l.b16 %v353
        %v1480 = vunpack.c.h.b16 %v353
        %v1481 = vunpack.c.l.b16 %v354
        %v1482 = vunpack.c.h.b16 %v354
        %v1483 = vunpack.c.l.b16 %v355
        %v1484 = vunpack.c.h.b16 %v355
        %v1485 = vunpack.c.l.b16 %v356
        %v1486 = vunpack.c.h.b16 %v356
        %v1487 = vunpack.c.l.b16 %v357
        %v1488 = vunpack.c.h.b16 %v357
        %v1489 = vunpack.c.l.b16 %v358
        %v1490 = vunpack.c.h.b16 %v358
        %v1491 = vunpack.c.l.b16 %v359
        %v1492 = vunpack.c.h.b16 %v359
        %v1493 = vunpack.c.l.b16 %v360
        %v1494 = vunpack.c.h.b16 %v360
        %v1495 = vunpack.c.l.b16 %v361
        %v1496 = vunpack.c.h.b16 %v361
        %v1497 = vunpack.c.l.b16 %v362
        %v1498 = vunpack.c.h.b16 %v362
        %v1499 = vunpack.c.l.b16 %v363
        %v1500 = vunpack.c.h.b16 %v363
        %v1501 = vunpack.c.l.b16 %v364
        %v1502 = vunpack.c.h.b16 %v364
        %v1503 = vunpack.c.l.b16 %v365
        %v1504 = vunpack.c.h.b16 %v365
        %v1505 = vunpack.c.l.b16 %v366
        %v1506 = vunpack.c.h.b16 %v366
        %v1507 = vunpack.c.l.b16 %v367
        %v1508 = vunpack.c.h.b16 %v367
        %v1509 = vunpack.c.l.b16 %v368
        %v1510 = vunpack.c.h.b16 %v368
        %v1511 = vpack.c.b16 %v1479, %v1447
        %v1512 = vpack.c.b16 %v1480, %v1448
        %v1513 = vpack.c.b16 %v1481, %v1449
        %v1514 = vpack.c.b16 %v1482, %v1450
        %v1515 = vpack.c.b16 %v1483, %v1451
        %v1516 = vpack.c.b16 %v1484, %v1452
        %v1517 = vpack.c.b16 %v1485, %v1453
        %v1518 = vpack.c.b16 %v1486, %v1454
        %v1519 = vpack.c.b16 %v1487, %v1455
        %v1520 = vpack.c.b16 %v1488, %v1456
        %v1521 = vpack.c.b16 %v1489, %v1457
        %v1522 = vpack.c.b16 %v1490, %v1458
        %v1523 = vpack.c.b16 %v1491, %v1459
        %v1524 = vpack.c.b16 %v1492, %v1460
        %v1525 = vpack.c.b16 %v1493, %v1461
        %v1526 = vpack.c.b16 %v1494, %v1462
        %v1527 = vpack.c.b16 %v1495, %v1463
        %v1528 = vpack.c.b16 %v1496, %v1464
        %v1529 = vpack.c.b16 %v1497, %v1465
        %v1530 = vpack.c.b16 %v1498, %v1466
        %v1531 = vpack.c.b16 %v1499, %v1467
        %v1532 = vpack.c.b16 %v1500, %v1468
        %v1533 = vpack.c.b16 %v1501, %v1469
        %v1534 = vpack.c.b16 %v1502, %v1470
        %v1535 = vpack.c.b16 %v1503, %v1471
        %v1536 = vpack.c.b16 %v1504, %v1472
        %v1537 = vpack.c.b16 %v1505, %v1473
        %v1538 = vpack.c.b16 %v1506, %v1474
        %v1539 = vpack.c.b16 %v1507, %v1475
        %v1540 = vpack.c.b16 %v1508, %v1476
        %v1541 = vpack.c.b16 %v1509, %v1477
        %v1542 = vpack.c.b16 %v1510, %v1478
        %v2599 = vunpack.c.l.b16 %v369
        %v2600 = vunpack.c.h.b16 %v369
        %v2601 = vunpack.c.l.b16 %v370
        %v2602 = vunpack.c.h.b16 %v370
        %v2603 = vunpack.c.l.b16 %v371
        %v2604 = vunpack.c.h.b16 %v371
        %v2605 = vunpack.c.l.b16 %v372
        %v2606 = vunpack.c.h.b16 %v372
        %v2607 = vunpack.c.l.b16 %v373
        %v2608 = vunpack.c.h.b16 %v373
        %v2609 = vunpack.c.l.b16 %v374
        %v2610 = vunpack.c.h.b16 %v374
        %v2611 = vunpack.c.l.b16 %v375
        %v2612 = vunpack.c.h.b16 %v375
        %v2613 = vunpack.c.l.b16 %v376
        %v2614 = vunpack.c.h.b16 %v376
        %v2615 = vunpack.c.l.b16 %v377
        %v2616 = vunpack.c.h.b16 %v377
        %v2617 = vunpack.c.l.b16 %v378
        %v2618 = vunpack.c.h.b16 %v378
        %v2619 = vunpack.c.l.b16 %v379
        %v2620 = vunpack.c.h.b16 %v379
        %v2621 = vunpack.c.l.b16 %v380
        %v2622 = vunpack.c.h.b16 %v380
        %v2623 = vunpack.c.l.b16 %v381
        %v2624 = vunpack.c.h.b16 %v381
        %v2625 = vunpack.c.l.b16 %v382
        %v2626 = vunpack.c.h.b16 %v382
        %v2627 = vunpack.c.l.b16 %v383
        %v2628 = vunpack.c.h.b16 %v383
        %v2629 = vunpack.c.l.b16 %v384
        %v2630 = vunpack.c.h.b16 %v384
        %v2631 = vunpack.c.l.b16 %v385
        %v2632 = vunpack.c.h.b16 %v385
        %v2633 = vunpack.c.l.b16 %v386
        %v2634 = vunpack.c.h.b16 %v386
        %v2635 = vunpack.c.l.b16 %v387
        %v2636 = vunpack.c.h.b16 %v387
        %v2637 = vunpack.c.l.b16 %v388
        %v2638 = vunpack.c.h.b16 %v388
        %v2639 = vunpack.c.l.b16 %v389
        %v2640 = vunpack.c.h.b16 %v389
        %v2641 = vunpack.c.l.b16 %v390
        %v2642 = vunpack.c.h.b16 %v390
        %v2643 = vunpack.c.l.b16 %v391
        %v2644 = vunpack.c.h.b16 %v391
        %v2645 = vunpack.c.l.b16 %v392
        %v2646 = vunpack.c.h.b16 %v392
        %v2647 = vunpack.c.l.b16 %v393
        %v2648 = vunpack.c.h.b16 %v393
        %v2649 = vunpack.c.l.b16 %v394
        %v2650 = vunpack.c.h.b16 %v394
        %v2651 = vunpack.c.l.b16 %v395
        %v2652 = vunpack.c.h.b16 %v395
        %v2653 = vunpack.c.l.b16 %v396
        %v2654 = vunpack.c.h.b16 %v396
        %v2655 = vunpack.c.l.b16 %v397
        %v2656 = vunpack.c.h.b16 %v397
        %v2657 = vunpack.c.l.b16 %v398
        %v2658 = vunpack.c.h.b16 %v398
        %v2659 = vunpack.c.l.b16 %v399
        %v2660 = vunpack.c.h.b16 %v399
        %v2661 = vunpack.c.l.b16 %v400
        %v2662 = vunpack.c.h.b16 %v400
        %v2663 = vunpack.c.l.b16 %v401
        %v2664 = vunpack.c.h.b16 %v401
        %v2665 = vunpack.c.l.b16 %v402
        %v2666 = vunpack.c.h.b16 %v402
        %v2667 = vunpack.c.l.b16 %v403
        %v2668 = vunpack.c.h.b16 %v403
        %v2669 = vunpack.c.l.b16 %v404
        %v2670 = vunpack.c.h.b16 %v404
        %v2671 = vunpack.c.l.b16 %v405
        %v2672 = vunpack.c.h.b16 %v405
        %v2673 = vunpack.c.l.b16 %v406
        %v2674 = vunpack.c.h.b16 %v406
        %v2675 = vunpack.c.l.b16 %v407
        %v2676 = vunpack.c.h.b16 %v407
        %v2677 = vunpack.c.l.b16 %v408
        %v2678 = vunpack.c.h.b16 %v408
        %v2679 = vunpack.c.l.b16 %v409
        %v2680 = vunpack.c.h.b16 %v409
        %v2681 = vunpack.c.l.b16 %v410
        %v2682 = vunpack.c.h.b16 %v410
        %v2683 = vunpack.c.l.b16 %v411
        %v2684 = vunpack.c.h.b16 %v411
        %v2685 = vunpack.c.l.b16 %v412
        %v2686 = vunpack.c.h.b16 %v412
        %v2687 = vunpack.c.l.b16 %v413
        %v2688 = vunpack.c.h.b16 %v413
        %v2689 = vunpack.c.l.b16 %v414
        %v2690 = vunpack.c.h.b16 %v414
        %v2691 = vunpack.c.l.b16 %v415
        %v2692 = vunpack.c.h.b16 %v415
        %v2693 = vunpack.c.l.b16 %v416
        %v2694 = vunpack.c.h.b16 %v416
        %v2695 = vunpack.c.l.b16 %v417
        %v2696 = vunpack.c.h.b16 %v417
        %v2697 = vunpack.c.l.b16 %v418
        %v2698 = vunpack.c.h.b16 %v418
        %v2699 = vunpack.c.l.b16 %v419
        %v2700 = vunpack.c.h.b16 %v419
        %v2701 = vunpack.c.l.b16 %v420
        %v2702 = vunpack.c.h.b16 %v420
        %v2703 = vunpack.c.l.b16 %v421
        %v2704 = vunpack.c.h.b16 %v421
        %v2705 = vunpack.c.l.b16 %v422
        %v2706 = vunpack.c.h.b16 %v422
        %v2707 = vunpack.c.l.b16 %v423
        %v2708 = vunpack.c.h.b16 %v423
        %v2709 = vunpack.c.l.b16 %v424
        %v2710 = vunpack.c.h.b16 %v424
        %v2711 = vunpack.c.l.b16 %v425
        %v2712 = vunpack.c.h.b16 %v425
        %v2713 = vunpack.c.l.b16 %v426
        %v2714 = vunpack.c.h.b16 %v426
        %v2715 = vunpack.c.l.b16 %v427
        %v2716 = vunpack.c.h.b16 %v427
        %v2717 = vunpack.c.l.b16 %v428
        %v2718 = vunpack.c.h.b16 %v428
        %v2719 = vunpack.c.l.b16 %v429
        %v2720 = vunpack.c.h.b16 %v429
        %v2721 = vunpack.c.l.b16 %v430
        %v2722 = vunpack.c.h.b16 %v430
        %v2723 = vunpack.c.l.b16 %v431
        %v2724 = vunpack.c.h.b16 %v431
        %v2725 = vunpack.c.l.b16 %v432
        %v2726 = vunpack.c.h.b16 %v432
        %v2727 = vunpack.c.l.b16 %v433
        %v2728 = vunpack.c.h.b16 %v433
        %v2729 = vunpack.c.l.b16 %v434
        %v2730 = vunpack.c.h.b16 %v434
        %v2731 = vunpack.c.l.b16 %v435
        %v2732 = vunpack.c.h.b16 %v435
        %v2733 = vunpack.c.l.b16 %v436
        %v2734 = vunpack.c.h.b16 %v436
        %v2735 = vunpack.c.l.b16 %v437
        %v2736 = vunpack.c.h.b16 %v437
        %v2737 = vunpack.c.l.b16 %v438
        %v2738 = vunpack.c.h.b16 %v438
        %v2739 = vunpack.c.l.b16 %v439
        %v2740 = vunpack.c.h.b16 %v439
        %v2741 = vunpack.c.l.b16 %v440
        %v2742 = vunpack.c.h.b16 %v440
        %v2743 = vunpack.c.l.b16 %v441
        %v2744 = vunpack.c.h.b16 %v441
        %v2745 = vunpack.c.l.b16 %v442
        %v2746 = vunpack.c.h.b16 %v442
        %v2747 = vunpack.c.l.b16 %v443
        %v2748 = vunpack.c.h.b16 %v443
        %v2749 = vunpack.c.l.b16 %v444
        %v2750 = vunpack.c.h.b16 %v444
        %v2751 = vunpack.c.l.b16 %v445
        %v2752 = vunpack.c.h.b16 %v445
        %v2753 = vunpack.c.l.b16 %v446
        %v2754 = vunpack.c.h.b16 %v446
        %v2755 = vunpack.c.l.b16 %v447
        %v2756 = vunpack.c.h.b16 %v447
        %v2757 = vunpack.c.l.b16 %v448
        %v2758 = vunpack.c.h.b16 %v448
        %v2759 = vunpack.c.l.b16 %v449
        %v2760 = vunpack.c.h.b16 %v449
        %v2761 = vunpack.c.l.b16 %v450
        %v2762 = vunpack.c.h.b16 %v450
        %v2763 = vunpack.c.l.b16 %v451
        %v2764 = vunpack.c.h.b16 %v451
        %v2765 = vunpack.c.l.b16 %v452
        %v2766 = vunpack.c.h.b16 %v452
        %v2767 = vunpack.c.l.b16 %v453
        %v2768 = vunpack.c.h.b16 %v453
        %v2769 = vunpack.c.l.b16 %v454
        %v2770 = vunpack.c.h.b16 %v454
        %v2771 = vunpack.c.l.b16 %v455
        %v2772 = vunpack.c.h.b16 %v455
        %v2773 = vunpack.c.l.b16 %v456
        %v2774 = vunpack.c.h.b16 %v456
        %v2775 = vunpack.c.l.b16 %v457
        %v2776 = vunpack.c.h.b16 %v457
        %v2777 = vunpack.c.l.b16 %v458
        %v2778 = vunpack.c.h.b16 %v458
        %v2779 = vunpack.c.l.b16 %v459
        %v2780 = vunpack.c.h.b16 %v459
        %v2781 = vunpack.c.l.b16 %v460
        %v2782 = vunpack.c.h.b16 %v460
        %v2783 = vunpack.c.l.b16 %v461
        %v2784 = vunpack.c.h.b16 %v461
        %v2785 = vunpack.c.l.b16 %v462
        %v2786 = vunpack.c.h.b16 %v462
        %v2787 = vunpack.c.l.b16 %v463
        %v2788 = vunpack.c.h.b16 %v463
        %v2789 = vunpack.c.l.b16 %v464
        %v2790 = vunpack.c.h.b16 %v464
        %v2791 = vunpack.c.l.b16 %v465
        %v2792 = vunpack.c.h.b16 %v465
        %v2793 = vunpack.c.l.b16 %v466
        %v2794 = vunpack.c.h.b16 %v466
        %v2795 = vunpack.c.l.b16 %v467
        %v2796 = vunpack.c.h.b16 %v467
        %v2797 = vunpack.c.l.b16 %v468
        %v2798 = vunpack.c.h.b16 %v468
        %v2799 = vunpack.c.l.b16 %v469
        %v2800 = vunpack.c.h.b16 %v469
        %v2801 = vunpack.c.l.b16 %v470
        %v2802 = vunpack.c.h.b16 %v470
        %v2803 = vunpack.c.l.b16 %v471
        %v2804 = vunpack.c.h.b16 %v471
        %v2805 = vunpack.c.l.b16 %v472
        %v2806 = vunpack.c.h.b16 %v472
        %v2807 = vunpack.c.l.b16 %v473
        %v2808 = vunpack.c.h.b16 %v473
        %v2809 = vunpack.c.l.b16 %v474
        %v2810 = vunpack.c.h.b16 %v474
        %v2811 = vunpack.c.l.b16 %v475
        %v2812 = vunpack.c.h.b16 %v475
        %v2813 = vunpack.c.l.b16 %v476
        %v2814 = vunpack.c.h.b16 %v476
        %v2815 = vunpack.c.l.b16 %v477
        %v2816 = vunpack.c.h.b16 %v477
        %v2817 = vunpack.c.l.b16 %v478
        %v2818 = vunpack.c.h.b16 %v478
        %v2819 = vunpack.c.l.b16 %v479
        %v2820 = vunpack.c.h.b16 %v479
        %v2821 = vunpack.c.l.b16 %v480
        %v2822 = vunpack.c.h.b16 %v480
        %v2823 = vunpack.c.l.b16 %v481
        %v2824 = vunpack.c.h.b16 %v481
        %v2825 = vunpack.c.l.b16 %v482
        %v2826 = vunpack.c.h.b16 %v482
        %v2827 = vunpack.c.l.b16 %v483
        %v2828 = vunpack.c.h.b16 %v483
        %v2829 = vunpack.c.l.b16 %v484
        %v2830 = vunpack.c.h.b16 %v484
        %v2831 = vunpack.c.l.b16 %v485
        %v2832 = vunpack.c.h.b16 %v485
        %v2833 = vunpack.c.l.b16 %v486
        %v2834 = vunpack.c.h.b16 %v486
        %v2835 = vunpack.c.l.b16 %v487
        %v2836 = vunpack.c.h.b16 %v487
        %v2837 = vunpack.c.l.b16 %v488
        %v2838 = vunpack.c.h.b16 %v488
        %v2839 = vunpack.c.l.b16 %v489
        %v2840 = vunpack.c.h.b16 %v489
        %v2841 = vunpack.c.l.b16 %v490
        %v2842 = vunpack.c.h.b16 %v490
        %v2843 = vunpack.c.l.b16 %v491
        %v2844 = vunpack.c.h.b16 %v491
        %v2845 = vunpack.c.l.b16 %v492
        %v2846 = vunpack.c.h.b16 %v492
        %v2847 = vunpack.c.l.b16 %v493
        %v2848 = vunpack.c.h.b16 %v493
        %v2849 = vunpack.c.l.b16 %v494
        %v2850 = vunpack.c.h.b16 %v494
        %v2851 = vunpack.c.l.b16 %v495
        %v2852 = vunpack.c.h.b16 %v495
        %v2853 = vunpack.c.l.b16 %v496
        %v2854 = vunpack.c.h.b16 %v496
        %v2855 = vunpack.c.l.b16 %v497
        %v2856 = vunpack.c.h.b16 %v497
        %v2857 = vunpack.c.l.b16 %v498
        %v2858 = vunpack.c.h.b16 %v498
        %v2859 = vunpack.c.l.b16 %v499
        %v2860 = vunpack.c.h.b16 %v499
        %v2861 = vunpack.c.l.b16 %v500
        %v2862 = vunpack.c.h.b16 %v500
        %v2863 = vunpack.c.l.b16 %v501
        %v2864 = vunpack.c.h.b16 %v501
        %v2865 = vunpack.c.l.b16 %v502
        %v2866 = vunpack.c.h.b16 %v502
        %v2867 = vunpack.c.l.b16 %v503
        %v2868 = vunpack.c.h.b16 %v503
        %v2869 = vunpack.c.l.b16 %v504
        %v2870 = vunpack.c.h.b16 %v504
        %v2871 = vunpack.c.l.b16 %v505
        %v2872 = vunpack.c.h.b16 %v505
        %v2873 = vunpack.c.l.b16 %v506
        %v2874 = vunpack.c.h.b16 %v506
        %v2875 = vunpack.c.l.b16 %v507
        %v2876 = vunpack.c.h.b16 %v507
        %v2877 = vunpack.c.l.b16 %v508
        %v2878 = vunpack.c.h.b16 %v508
        %v2879 = vunpack.c.l.b16 %v509
        %v2880 = vunpack.c.h.b16 %v509
        %v2881 = vunpack.c.l.b16 %v510
        %v2882 = vunpack.c.h.b16 %v510
        %v2883 = vunpack.c.l.b16 %v511
        %v2884 = vunpack.c.h.b16 %v511
        %v2885 = vunpack.c.l.b16 %v512
        %v2886 = vunpack.c.h.b16 %v512
        %v2887 = vunpack.c.l.b16 %v513
        %v2888 = vunpack.c.h.b16 %v513
        %v2889 = vunpack.c.l.b16 %v514
        %v2890 = vunpack.c.h.b16 %v514
        %v2891 = vunpack.c.l.b16 %v515
        %v2892 = vunpack.c.h.b16 %v515
        %v2893 = vunpack.c.l.b16 %v516
        %v2894 = vunpack.c.h.b16 %v516
        %v2895 = vunpack.c.l.b16 %v517
        %v2896 = vunpack.c.h.b16 %v517
        %v2897 = vunpack.c.l.b16 %v518
        %v2898 = vunpack.c.h.b16 %v518
        %v2899 = vunpack.c.l.b16 %v519
        %v2900 = vunpack.c.h.b16 %v519
        %v2901 = vunpack.c.l.b16 %v520
        %v2902 = vunpack.c.h.b16 %v520
        %v2903 = vunpack.c.l.b16 %v521
        %v2904 = vunpack.c.h.b16 %v521
        %v2905 = vunpack.c.l.b16 %v522
        %v2906 = vunpack.c.h.b16 %v522
        %v2907 = vunpack.c.l.b16 %v523
        %v2908 = vunpack.c.h.b16 %v523
        %v2909 = vunpack.c.l.b16 %v524
        %v2910 = vunpack.c.h.b16 %v524
        %v2911 = vunpack.c.l.b16 %v525
        %v2912 = vunpack.c.h.b16 %v525
        %v2913 = vunpack.c.l.b16 %v526
        %v2914 = vunpack.c.h.b16 %v526
        %v2915 = vunpack.c.l.b16 %v527
        %v2916 = vunpack.c.h.b16 %v527
        %v2917 = vunpack.c.l.b16 %v528
        %v2918 = vunpack.c.h.b16 %v528
        %v2919 = vunpack.c.l.b16 %v529
        %v2920 = vunpack.c.h.b16 %v529
        %v2921 = vunpack.c.l.b16 %v530
        %v2922 = vunpack.c.h.b16 %v530
        %v2923 = vunpack.c.l.b16 %v531
        %v2924 = vunpack.c.h.b16 %v531
        %v2925 = vunpack.c.l.b16 %v532
        %v2926 = vunpack.c.h.b16 %v532
        %v2927 = vunpack.c.l.b16 %v533
        %v2928 = vunpack.c.h.b16 %v533
        %v2929 = vunpack.c.l.b16 %v534
        %v2930 = vunpack.c.h.b16 %v534
        %v2931 = vunpack.c.l.b16 %v535
        %v2932 = vunpack.c.h.b16 %v535
        %v2933 = vunpack.c.l.b16 %v536
        %v2934 = vunpack.c.h.b16 %v536
        %v2935 = vunpack.c.l.b16 %v537
        %v2936 = vunpack.c.h.b16 %v537
        %v2937 = vunpack.c.l.b16 %v538
        %v2938 = vunpack.c.h.b16 %v538
        %v2939 = vunpack.c.l.b16 %v539
        %v2940 = vunpack.c.h.b16 %v539
        %v2941 = vunpack.c.l.b16 %v540
        %v2942 = vunpack.c.h.b16 %v540
        %v2943 = vunpack.c.l.b16 %v541
        %v2944 = vunpack.c.h.b16 %v541
        %v2945 = vunpack.c.l.b16 %v542
        %v2946 = vunpack.c.h.b16 %v542
        %v2947 = vunpack.c.l.b16 %v543
        %v2948 = vunpack.c.h.b16 %v543
        %v2949 = vunpack.c.l.b16 %v544
        %v2950 = vunpack.c.h.b16 %v544
        %v2951 = vunpack.c.l.b16 %v545
        %v2952 = vunpack.c.h.b16 %v545
        %v2953 = vunpack.c.l.b16 %v546
        %v2954 = vunpack.c.h.b16 %v546
        %v2955 = vunpack.c.l.b16 %v547
        %v2956 = vunpack.c.h.b16 %v547
        %v2957 = vunpack.c.l.b16 %v548
        %v2958 = vunpack.c.h.b16 %v548
        %v2959 = vunpack.c.l.b16 %v549
        %v2960 = vunpack.c.h.b16 %v549
        %v2961 = vunpack.c.l.b16 %v550
        %v2962 = vunpack.c.h.b16 %v550
        %v2963 = vunpack.c.l.b16 %v551
        %v2964 = vunpack.c.h.b16 %v551
        %v2965 = vunpack.c.l.b16 %v552
        %v2966 = vunpack.c.h.b16 %v552
        %v2967 = vunpack.c.l.b16 %v553
        %v2968 = vunpack.c.h.b16 %v553
        %v2969 = vunpack.c.l.b16 %v554
        %v2970 = vunpack.c.h.b16 %v554
        %v2971 = vunpack.c.l.b16 %v555
        %v2972 = vunpack.c.h.b16 %v555
        %v2973 = vunpack.c.l.b16 %v556
        %v2974 = vunpack.c.h.b16 %v556
        %v2975 = vunpack.c.l.b16 %v557
        %v2976 = vunpack.c.h.b16 %v557
        %v2977 = vunpack.c.l.b16 %v558
        %v2978 = vunpack.c.h.b16 %v558
        %v2979 = vunpack.c.l.b16 %v559
        %v2980 = vunpack.c.h.b16 %v559
        %v2981 = vunpack.c.l.b16 %v560
        %v2982 = vunpack.c.h.b16 %v560
        %v2983 = vunpack.c.l.b16 %v561
        %v2984 = vunpack.c.h.b16 %v561
        %v2985 = vunpack.c.l.b16 %v562
        %v2986 = vunpack.c.h.b16 %v562
        %v2987 = vunpack.c.l.b16 %v563
        %v2988 = vunpack.c.h.b16 %v563
        %v2989 = vunpack.c.l.b16 %v564
        %v2990 = vunpack.c.h.b16 %v564
        %v2991 = vunpack.c.l.b16 %v565
        %v2992 = vunpack.c.h.b16 %v565
        %v2993 = vunpack.c.l.b16 %v566
        %v2994 = vunpack.c.h.b16 %v566
        %v2995 = vunpack.c.l.b16 %v567
        %v2996 = vunpack.c.h.b16 %v567
        %v2997 = vunpack.c.l.b16 %v568
        %v2998 = vunpack.c.h.b16 %v568
        %v2999 = vunpack.c.l.b16 %v569
        %v3000 = vunpack.c.h.b16 %v569
        %v3001 = vunpack.c.l.b16 %v570
        %v3002 = vunpack.c.h.b16 %v570
        %v3003 = vunpack.c.l.b16 %v571
        %v3004 = vunpack.c.h.b16 %v571
        %v3005 = vunpack.c.l.b16 %v572
        %v3006 = vunpack.c.h.b16 %v572
        %v3007 = vunpack.c.l.b16 %v573
        %v3008 = vunpack.c.h.b16 %v573
        %v3009 = vunpack.c.l.b16 %v574
        %v3010 = vunpack.c.h.b16 %v574
        %v3011 = vunpack.c.l.b16 %v575
        %v3012 = vunpack.c.h.b16 %v575
        %v3013 = vunpack.c.l.b16 %v576
        %v3014 = vunpack.c.h.b16 %v576
        %v3015 = vunpack.c.l.b16 %v577
        %v3016 = vunpack.c.h.b16 %v577
        %v3017 = vunpack.c.l.b16 %v578
        %v3018 = vunpack.c.h.b16 %v578
        %v3019 = vunpack.c.l.b16 %v579
        %v3020 = vunpack.c.h.b16 %v579
        %v3021 = vunpack.c.l.b16 %v580
        %v3022 = vunpack.c.h.b16 %v580
        %v3023 = vunpack.c.l.b16 %v581
        %v3024 = vunpack.c.h.b16 %v581
        %v3025 = vunpack.c.l.b16 %v582
        %v3026 = vunpack.c.h.b16 %v582
        %v3027 = vunpack.c.l.b16 %v583
        %v3028 = vunpack.c.h.b16 %v583
        %v3029 = vunpack.c.l.b16 %v584
        %v3030 = vunpack.c.h.b16 %v584
        %v3031 = vunpack.c.l.b16 %v585
        %v3032 = vunpack.c.h.b16 %v585
        %v3033 = vunpack.c.l.b16 %v586
        %v3034 = vunpack.c.h.b16 %v586
        %v3035 = vunpack.c.l.b16 %v587
        %v3036 = vunpack.c.h.b16 %v587
        %v3037 = vunpack.c.l.b16 %v588
        %v3038 = vunpack.c.h.b16 %v588
        %v3039 = vunpack.c.l.b16 %v589
        %v3040 = vunpack.c.h.b16 %v589
        %v3041 = vunpack.c.l.b16 %v590
        %v3042 = vunpack.c.h.b16 %v590
        %v3043 = vunpack.c.l.b16 %v591
        %v3044 = vunpack.c.h.b16 %v591
        %v3045 = vunpack.c.l.b16 %v592
        %v3046 = vunpack.c.h.b16 %v592
        %v3047 = vunpack.c.l.b16 %v593
        %v3048 = vunpack.c.h.b16 %v593
        %v3049 = vunpack.c.l.b16 %v594
        %v3050 = vunpack.c.h.b16 %v594
        %v3051 = vunpack.c.l.b16 %v595
        %v3052 = vunpack.c.h.b16 %v595
        %v3053 = vunpack.c.l.b16 %v596
        %v3054 = vunpack.c.h.b16 %v596
        %v3055 = vunpack.c.l.b16 %v597
        %v3056 = vunpack.c.h.b16 %v597
        %v3057 = vunpack.c.l.b16 %v598
        %v3058 = vunpack.c.h.b16 %v598
        %v3059 = vunpack.c.l.b16 %v599
        %v3060 = vunpack.c.h.b16 %v599
        %v3061 = vunpack.c.l.b16 %v600
        %v3062 = vunpack.c.h.b16 %v600
        %v3063 = vunpack.c.l.b16 %v601
        %v3064 = vunpack.c.h.b16 %v601
        %v3065 = vunpack.c.l.b16 %v602
        %v3066 = vunpack.c.h.b16 %v602
        %v3067 = vunpack.c.l.b16 %v603
        %v3068 = vunpack.c.h.b16 %v603
        %v3069 = vunpack.c.l.b16 %v604
        %v3070 = vunpack.c.h.b16 %v604
        %v3071 = vunpack.c.l.b16 %v605
        %v3072 = vunpack.c.h.b16 %v605
        %v3073 = vunpack.c.l.b16 %v606
        %v3074 = vunpack.c.h.b16 %v606
        %v3075 = vunpack.c.l.b16 %v607
        %v3076 = vunpack.c.h.b16 %v607
        %v3077 = vunpack.c.l.b16 %v608
        %v3078 = vunpack.c.h.b16 %v608
        %v3079 = vunpack.c.l.b16 %v609
        %v3080 = vunpack.c.h.b16 %v609
        %v3081 = vunpack.c.l.b16 %v610
        %v3082 = vunpack.c.h.b16 %v610
        %v3083 = vunpack.c.l.b16 %v611
        %v3084 = vunpack.c.h.b16 %v611
        %v3085 = vunpack.c.l.b16 %v612
        %v3086 = vunpack.c.h.b16 %v612
        %v3087 = vunpack.c.l.b16 %v613
        %v3088 = vunpack.c.h.b16 %v613
        %v3089 = vunpack.c.l.b16 %v614
        %v3090 = vunpack.c.h.b16 %v614
        %v3091 = vunpack.c.l.b16 %v615
        %v3092 = vunpack.c.h.b16 %v615
        %v3093 = vunpack.c.l.b16 %v616
        %v3094 = vunpack.c.h.b16 %v616
        %v3095 = vunpack.c.l.b16 %v617
        %v3096 = vunpack.c.h.b16 %v617
        %v3097 = vunpack.c.l.b16 %v618
        %v3098 = vunpack.c.h.b16 %v618
        %v3099 = vunpack.c.l.b16 %v619
        %v3100 = vunpack.c.h.b16 %v619
        %v3101 = vunpack.c.l.b16 %v620
        %v3102 = vunpack.c.h.b16 %v620
        %v3103 = vunpack.c.l.b16 %v621
        %v3104 = vunpack.c.h.b16 %v621
        %v3105 = vunpack.c.l.b16 %v622
        %v3106 = vunpack.c.h.b16 %v622
        %v3107 = vunpack.c.l.b16 %v623
        %v3108 = vunpack.c.h.b16 %v623
        %v3109 = vunpack.c.l.b16 %v624
        %v3110 = vunpack.c.h.b16 %v624
        %v3111 = vunpack.c.l.b16 %v625
        %v3112 = vunpack.c.h.b16 %v625
        %v3113 = vunpack.c.l.b16 %v626
        %v3114 = vunpack.c.h.b16 %v626
        %v3115 = vunpack.c.l.b16 %v627
        %v3116 = vunpack.c.h.b16 %v627
        %v3117 = vunpack.c.l.b16 %v628
        %v3118 = vunpack.c.h.b16 %v628
        %v3119 = vunpack.c.l.b16 %v629
        %v3120 = vunpack.c.h.b16 %v629
        %v3121 = vunpack.c.l.b16 %v630
        %v3122 = vunpack.c.h.b16 %v630
        %v3123 = vunpack.c.l.b16 %v631
        %v3124 = vunpack.c.h.b16 %v631
        %v3125 = vunpack.c.l.b16 %v632
        %v3126 = vunpack.c.h.b16 %v632
        %v3127 = vunpack.c.l.b16 %v633
        %v3128 = vunpack.c.h.b16 %v633
        %v3129 = vunpack.c.l.b16 %v634
        %v3130 = vunpack.c.h.b16 %v634
        %v3131 = vunpack.c.l.b16 %v635
        %v3132 = vunpack.c.h.b16 %v635
        %v3133 = vunpack.c.l.b16 %v636
        %v3134 = vunpack.c.h.b16 %v636
        %v3135 = vunpack.c.l.b16 %v637
        %v3136 = vunpack.c.h.b16 %v637
        %v3137 = vunpack.c.l.b16 %v638
        %v3138 = vunpack.c.h.b16 %v638
        %v3139 = vunpack.c.l.b16 %v639
        %v3140 = vunpack.c.h.b16 %v639
        %v3141 = vunpack.c.l.b16 %v640
        %v3142 = vunpack.c.h.b16 %v640
        %v3143 = vunpack.c.l.b16 %v641
        %v3144 = vunpack.c.h.b16 %v641
        %v3145 = vunpack.c.l.b16 %v642
        %v3146 = vunpack.c.h.b16 %v642
        %v3147 = vunpack.c.l.b16 %v643
        %v3148 = vunpack.c.h.b16 %v643
        %v3149 = vunpack.c.l.b16 %v644
        %v3150 = vunpack.c.h.b16 %v644
        %v3151 = vunpack.c.l.b16 %v645
        %v3152 = vunpack.c.h.b16 %v645
        %v3153 = vunpack.c.l.b16 %v646
        %v3154 = vunpack.c.h.b16 %v646
        %v3155 = vunpack.c.l.b16 %v647
        %v3156 = vunpack.c.h.b16 %v647
        %v3157 = vunpack.c.l.b16 %v648
        %v3158 = vunpack.c.h.b16 %v648
        %v3159 = vunpack.c.l.b16 %v649
        %v3160 = vunpack.c.h.b16 %v649
        %v3161 = vunpack.c.l.b16 %v650
        %v3162 = vunpack.c.h.b16 %v650
        %v3163 = vunpack.c.l.b16 %v651
        %v3164 = vunpack.c.h.b16 %v651
        %v3165 = vunpack.c.l.b16 %v652
        %v3166 = vunpack.c.h.b16 %v652
        %v3167 = vunpack.c.l.b16 %v653
        %v3168 = vunpack.c.h.b16 %v653
        %v3169 = vunpack.c.l.b16 %v654
        %v3170 = vunpack.c.h.b16 %v654
        %v3171 = vunpack.c.l.b16 %v655
        %v3172 = vunpack.c.h.b16 %v655
        %v3173 = vunpack.c.l.b16 %v656
        %v3174 = vunpack.c.h.b16 %v656
        %v3175 = vunpack.c.l.b16 %v657
        %v3176 = vunpack.c.h.b16 %v657
        %v3177 = vunpack.c.l.b16 %v658
        %v3178 = vunpack.c.h.b16 %v658
        %v3179 = vunpack.c.l.b16 %v659
        %v3180 = vunpack.c.h.b16 %v659
        %v3181 = vunpack.c.l.b16 %v660
        %v3182 = vunpack.c.h.b16 %v660
        %v3183 = vunpack.c.l.b16 %v661
        %v3184 = vunpack.c.h.b16 %v661
        %v3185 = vunpack.c.l.b16 %v662
        %v3186 = vunpack.c.h.b16 %v662
        %v3187 = vunpack.c.l.b16 %v663
        %v3188 = vunpack.c.h.b16 %v663
        %v3189 = vunpack.c.l.b16 %v664
        %v3190 = vunpack.c.h.b16 %v664
        %v3191 = vunpack.c.l.b16 %v665
        %v3192 = vunpack.c.h.b16 %v665
        %v3193 = vunpack.c.l.b16 %v666
        %v3194 = vunpack.c.h.b16 %v666
        %v3195 = vunpack.c.l.b16 %v667
        %v3196 = vunpack.c.h.b16 %v667
        %v3197 = vunpack.c.l.b16 %v668
        %v3198 = vunpack.c.h.b16 %v668
        %v3199 = vunpack.c.l.b16 %v669
        %v3200 = vunpack.c.h.b16 %v669
        %v3201 = vunpack.c.l.b16 %v670
        %v3202 = vunpack.c.h.b16 %v670
        %v3203 = vunpack.c.l.b16 %v671
        %v3204 = vunpack.c.h.b16 %v671
        %v3205 = vunpack.c.l.b16 %v672
        %v3206 = vunpack.c.h.b16 %v672
        %v3207 = vunpack.c.l.b16 %v673
        %v3208 = vunpack.c.h.b16 %v673
        %v3209 = vunpack.c.l.b16 %v674
        %v3210 = vunpack.c.h.b16 %v674
        %v3211 = vunpack.c.l.b16 %v675
        %v3212 = vunpack.c.h.b16 %v675
        %v3213 = vunpack.c.l.b16 %v676
        %v3214 = vunpack.c.h.b16 %v676
        %v3215 = vunpack.c.l.b16 %v677
        %v3216 = vunpack.c.h.b16 %v677
        %v3217 = vunpack.c.l.b16 %v678
        %v3218 = vunpack.c.h.b16 %v678
        %v3219 = vunpack.c.l.b16 %v679
        %v3220 = vunpack.c.h.b16 %v679
        %v3221 = vunpack.c.l.b16 %v680
        %v3222 = vunpack.c.h.b16 %v680
        %v3223 = vunpack.c.l.b16 %v681
        %v3224 = vunpack.c.h.b16 %v681
        %v3225 = vunpack.c.l.b16 %v682
        %v3226 = vunpack.c.h.b16 %v682
        %v3227 = vunpack.c.l.b16 %v683
        %v3228 = vunpack.c.h.b16 %v683
        %v3229 = vunpack.c.l.b16 %v684
        %v3230 = vunpack.c.h.b16 %v684
        %v3231 = vunpack.c.l.b16 %v685
        %v3232 = vunpack.c.h.b16 %v685
        %v3233 = vunpack.c.l.b16 %v686
        %v3234 = vunpack.c.h.b16 %v686
        %v3235 = vunpack.c.l.b16 %v687
        %v3236 = vunpack.c.h.b16 %v687
        %v3237 = vunpack.c.l.b16 %v688
        %v3238 = vunpack.c.h.b16 %v688
        %v3239 = vunpack.c.l.b16 %v689
        %v3240 = vunpack.c.h.b16 %v689
        %v3241 = vunpack.c.l.b16 %v690
        %v3242 = vunpack.c.h.b16 %v690
        %v3243 = vunpack.c.l.b16 %v691
        %v3244 = vunpack.c.h.b16 %v691
        %v3245 = vunpack.c.l.b16 %v692
        %v3246 = vunpack.c.h.b16 %v692
        %v3247 = vunpack.c.l.b16 %v693
        %v3248 = vunpack.c.h.b16 %v693
        %v3249 = vunpack.c.l.b16 %v694
        %v3250 = vunpack.c.h.b16 %v694
        %v3251 = vunpack.c.l.b16 %v695
        %v3252 = vunpack.c.h.b16 %v695
        %v3253 = vunpack.c.l.b16 %v696
        %v3254 = vunpack.c.h.b16 %v696
        %v3255 = vunpack.c.l.b16 %v697
        %v3256 = vunpack.c.h.b16 %v697
        %v3257 = vunpack.c.l.b16 %v698
        %v3258 = vunpack.c.h.b16 %v698
        %v3259 = vunpack.c.l.b16 %v699
        %v3260 = vunpack.c.h.b16 %v699
        %v3261 = vunpack.c.l.b16 %v700
        %v3262 = vunpack.c.h.b16 %v700
        %v3263 = vunpack.c.l.b16 %v701
        %v3264 = vunpack.c.h.b16 %v701
        %v3265 = vunpack.c.l.b16 %v702
        %v3266 = vunpack.c.h.b16 %v702
        %v3267 = vunpack.c.l.b16 %v703
        %v3268 = vunpack.c.h.b16 %v703
        %v3269 = vunpack.c.l.b16 %v704
        %v3270 = vunpack.c.h.b16 %v704
        %v3271 = vunpack.c.l.b16 %v705
        %v3272 = vunpack.c.h.b16 %v705
        %v3273 = vunpack.c.l.b16 %v706
        %v3274 = vunpack.c.h.b16 %v706
        %v3275 = vunpack.c.l.b16 %v707
        %v3276 = vunpack.c.h.b16 %v707
        %v3277 = vunpack.c.l.b16 %v708
        %v3278 = vunpack.c.h.b16 %v708
        %v3279 = vunpack.c.l.b16 %v709
        %v3280 = vunpack.c.h.b16 %v709
        %v3281 = vunpack.c.l.b16 %v710
        %v3282 = vunpack.c.h.b16 %v710
        %v3283 = vunpack.c.l.b16 %v711
        %v3284 = vunpack.c.h.b16 %v711
        %v3285 = vunpack.c.l.b16 %v712
        %v3286 = vunpack.c.h.b16 %v712
        %v3287 = vunpack.c.l.b16 %v713
        %v3288 = vunpack.c.h.b16 %v713
        %v3289 = vunpack.c.l.b16 %v714
        %v3290 = vunpack.c.h.b16 %v714
        %v3291 = vunpack.c.l.b16 %v715
        %v3292 = vunpack.c.h.b16 %v715
        %v3293 = vunpack.c.l.b16 %v716
        %v3294 = vunpack.c.h.b16 %v716
        %v3295 = vunpack.c.l.b16 %v717
        %v3296 = vunpack.c.h.b16 %v717
        %v3297 = vunpack.c.l.b16 %v718
        %v3298 = vunpack.c.h.b16 %v718
        %v3299 = vunpack.c.l.b16 %v719
        %v3300 = vunpack.c.h.b16 %v719
        %v3301 = vunpack.c.l.b16 %v720
        %v3302 = vunpack.c.h.b16 %v720
        %v3303 = vunpack.c.l.b16 %v721
        %v3304 = vunpack.c.h.b16 %v721
        %v3305 = vunpack.c.l.b16 %v722
        %v3306 = vunpack.c.h.b16 %v722
        %v3307 = vunpack.c.l.b16 %v723
        %v3308 = vunpack.c.h.b16 %v723
        %v3309 = vunpack.c.l.b16 %v724
        %v3310 = vunpack.c.h.b16 %v724
        %v3311 = vunpack.c.l.b16 %v725
        %v3312 = vunpack.c.h.b16 %v725
        %v3313 = vunpack.c.l.b16 %v726
        %v3314 = vunpack.c.h.b16 %v726
        %v3315 = vunpack.c.l.b16 %v727
        %v3316 = vunpack.c.h.b16 %v727
        %v3317 = vunpack.c.l.b16 %v728
        %v3318 = vunpack.c.h.b16 %v728
        %v3319 = vunpack.c.l.b16 %v729
        %v3320 = vunpack.c.h.b16 %v729
        %v3321 = vunpack.c.l.b16 %v730
        %v3322 = vunpack.c.h.b16 %v730
        %v3323 = vunpack.c.l.b16 %v731
        %v3324 = vunpack.c.h.b16 %v731
        %v3325 = vunpack.c.l.b16 %v732
        %v3326 = vunpack.c.h.b16 %v732
        %v3327 = vunpack.c.l.b16 %v733
        %v3328 = vunpack.c.h.b16 %v733
        %v3329 = vunpack.c.l.b16 %v734
        %v3330 = vunpack.c.h.b16 %v734
        %v3331 = vunpack.c.l.b16 %v735
        %v3332 = vunpack.c.h.b16 %v735
        %v3333 = vunpack.c.l.b16 %v736
        %v3334 = vunpack.c.h.b16 %v736
        %v3335 = vunpack.c.l.b16 %v737
        %v3336 = vunpack.c.h.b16 %v737
        %v3337 = vunpack.c.l.b16 %v738
        %v3338 = vunpack.c.h.b16 %v738
        %v3339 = vunpack.c.l.b16 %v739
        %v3340 = vunpack.c.h.b16 %v739
        %v3341 = vunpack.c.l.b16 %v740
        %v3342 = vunpack.c.h.b16 %v740
        %v3343 = vunpack.c.l.b16 %v741
        %v3344 = vunpack.c.h.b16 %v741
        %v3345 = vunpack.c.l.b16 %v742
        %v3346 = vunpack.c.h.b16 %v742
        %v3347 = vunpack.c.l.b16 %v743
        %v3348 = vunpack.c.h.b16 %v743
        %v3349 = vunpack.c.l.b16 %v744
        %v3350 = vunpack.c.h.b16 %v744
        %v3351 = vunpack.c.l.b16 %v745
        %v3352 = vunpack.c.h.b16 %v745
        %v3353 = vunpack.c.l.b16 %v746
        %v3354 = vunpack.c.h.b16 %v746
        %v3355 = vunpack.c.l.b16 %v747
        %v3356 = vunpack.c.h.b16 %v747
        %v3357 = vunpack.c.l.b16 %v748
        %v3358 = vunpack.c.h.b16 %v748
        %v3359 = vunpack.c.l.b16 %v749
        %v3360 = vunpack.c.h.b16 %v749
        %v3361 = vunpack.c.l.b16 %v750
        %v3362 = vunpack.c.h.b16 %v750
        %v3363 = vunpack.c.l.b16 %v751
        %v3364 = vunpack.c.h.b16 %v751
        %v3365 = vunpack.c.l.b16 %v752
        %v3366 = vunpack.c.h.b16 %v752
        %v3367 = vunpack.c.l.b16 %v753
        %v3368 = vunpack.c.h.b16 %v753
        %v3369 = vunpack.c.l.b16 %v754
        %v3370 = vunpack.c.h.b16 %v754
        %v3371 = vunpack.c.l.b16 %v755
        %v3372 = vunpack.c.h.b16 %v755
        %v3373 = vunpack.c.l.b16 %v756
        %v3374 = vunpack.c.h.b16 %v756
        %v3375 = vunpack.c.l.b16 %v757
        %v3376 = vunpack.c.h.b16 %v757
        %v3377 = vunpack.c.l.b16 %v758
        %v3378 = vunpack.c.h.b16 %v758
        %v3379 = vunpack.c.l.b16 %v759
        %v3380 = vunpack.c.h.b16 %v759
        %v3381 = vunpack.c.l.b16 %v760
        %v3382 = vunpack.c.h.b16 %v760
        %v3383 = vunpack.c.l.b16 %v761
        %v3384 = vunpack.c.h.b16 %v761
        %v3385 = vunpack.c.l.b16 %v762
        %v3386 = vunpack.c.h.b16 %v762
        %v3387 = vunpack.c.l.b16 %v763
        %v3388 = vunpack.c.h.b16 %v763
        %v3389 = vunpack.c.l.b16 %v764
        %v3390 = vunpack.c.h.b16 %v764
        %v3391 = vunpack.c.l.b16 %v765
        %v3392 = vunpack.c.h.b16 %v765
        %v3393 = vunpack.c.l.b16 %v766
        %v3394 = vunpack.c.h.b16 %v766
        %v3395 = vunpack.c.l.b16 %v767
        %v3396 = vunpack.c.h.b16 %v767
        %v3397 = vunpack.c.l.b16 %v768
        %v3398 = vunpack.c.h.b16 %v768
        %v3399 = vunpack.c.l.b16 %v769
        %v3400 = vunpack.c.h.b16 %v769
        %v3401 = vunpack.c.l.b16 %v770
        %v3402 = vunpack.c.h.b16 %v770
        %v3403 = vunpack.c.l.b16 %v771
        %v3404 = vunpack.c.h.b16 %v771
        %v3405 = vunpack.c.l.b16 %v772
        %v3406 = vunpack.c.h.b16 %v772
        %v3407 = vunpack.c.l.b16 %v773
        %v3408 = vunpack.c.h.b16 %v773
        %v3409 = vunpack.c.l.b16 %v774
        %v3410 = vunpack.c.h.b16 %v774
        %v3411 = vunpack.c.l.b16 %v775
        %v3412 = vunpack.c.h.b16 %v775
        %v3413 = vunpack.c.l.b16 %v776
        %v3414 = vunpack.c.h.b16 %v776
        %v3415 = vunpack.c.l.b16 %v777
        %v3416 = vunpack.c.h.b16 %v777
        %v3417 = vunpack.c.l.b16 %v778
        %v3418 = vunpack.c.h.b16 %v778
        %v3419 = vunpack.c.l.b16 %v779
        %v3420 = vunpack.c.h.b16 %v779
        %v3421 = vunpack.c.l.b16 %v780
        %v3422 = vunpack.c.h.b16 %v780
        %v3423 = vunpack.c.l.b16 %v781
        %v3424 = vunpack.c.h.b16 %v781
        %v3425 = vunpack.c.l.b16 %v782
        %v3426 = vunpack.c.h.b16 %v782
        %v3427 = vunpack.c.l.b16 %v783
        %v3428 = vunpack.c.h.b16 %v783
        %v3429 = vunpack.c.l.b16 %v784
        %v3430 = vunpack.c.h.b16 %v784
        %v3431 = vunpack.c.l.b16 %v785
        %v3432 = vunpack.c.h.b16 %v785
        %v3433 = vunpack.c.l.b16 %v786
        %v3434 = vunpack.c.h.b16 %v786
        %v3435 = vunpack.c.l.b16 %v787
        %v3436 = vunpack.c.h.b16 %v787
        %v3437 = vunpack.c.l.b16 %v788
        %v3438 = vunpack.c.h.b16 %v788
        %v3439 = vunpack.c.l.b16 %v789
        %v3440 = vunpack.c.h.b16 %v789
        %v3441 = vunpack.c.l.b16 %v790
        %v3442 = vunpack.c.h.b16 %v790
        %v3443 = vunpack.c.l.b16 %v791
        %v3444 = vunpack.c.h.b16 %v791
        %v3445 = vunpack.c.l.b16 %v792
        %v3446 = vunpack.c.h.b16 %v792
        %v3447 = vunpack.c.l.b16 %v793
        %v3448 = vunpack.c.h.b16 %v793
        %v3449 = vunpack.c.l.b16 %v794
        %v3450 = vunpack.c.h.b16 %v794
        %v3451 = vunpack.c.l.b16 %v795
        %v3452 = vunpack.c.h.b16 %v795
        %v3453 = vunpack.c.l.b16 %v796
        %v3454 = vunpack.c.h.b16 %v796
        %v3455 = vunpack.c.l.b16 %v797
        %v3456 = vunpack.c.h.b16 %v797
        %v3457 = vunpack.c.l.b16 %v798
        %v3458 = vunpack.c.h.b16 %v798
        %v3459 = vunpack.c.l.b16 %v799
        %v3460 = vunpack.c.h.b16 %v799
        %v3461 = vunpack.c.l.b16 %v800
        %v3462 = vunpack.c.h.b16 %v800
        %v3463 = vunpack.c.l.b16 %v801
        %v3464 = vunpack.c.h.b16 %v801
        %v3465 = vunpack.c.l.b16 %v802
        %v3466 = vunpack.c.h.b16 %v802
        %v3467 = vunpack.c.l.b16 %v803
        %v3468 = vunpack.c.h.b16 %v803
        %v3469 = vunpack.c.l.b16 %v804
        %v3470 = vunpack.c.h.b16 %v804
        %v3471 = vunpack.c.l.b16 %v805
        %v3472 = vunpack.c.h.b16 %v805
        %v3473 = vunpack.c.l.b16 %v806
        %v3474 = vunpack.c.h.b16 %v806
        %v3475 = vunpack.c.l.b16 %v807
        %v3476 = vunpack.c.h.b16 %v807
        %v3477 = vunpack.c.l.b16 %v808
        %v3478 = vunpack.c.h.b16 %v808
        %v3479 = vunpack.c.l.b16 %v809
        %v3480 = vunpack.c.h.b16 %v809
        %v3481 = vunpack.c.l.b16 %v810
        %v3482 = vunpack.c.h.b16 %v810
        %v3483 = vunpack.c.l.b16 %v811
        %v3484 = vunpack.c.h.b16 %v811
        %v3485 = vunpack.c.l.b16 %v812
        %v3486 = vunpack.c.h.b16 %v812
        %v3487 = vunpack.c.l.b16 %v813
        %v3488 = vunpack.c.h.b16 %v813
        %v3489 = vunpack.c.l.b16 %v814
        %v3490 = vunpack.c.h.b16 %v814
        %v3491 = vunpack.c.l.b16 %v815
        %v3492 = vunpack.c.h.b16 %v815
        %v3493 = vunpack.c.l.b16 %v816
        %v3494 = vunpack.c.h.b16 %v816
        %v3495 = vunpack.c.l.b16 %v817
        %v3496 = vunpack.c.h.b16 %v817
        %v3497 = vunpack.c.l.b16 %v818
        %v3498 = vunpack.c.h.b16 %v818
        %v3499 = vunpack.c.l.b16 %v819
        %v3500 = vunpack.c.h.b16 %v819
        %v3501 = vunpack.c.l.b16 %v820
        %v3502 = vunpack.c.h.b16 %v820
        %v3503 = vunpack.c.l.b16 %v821
        %v3504 = vunpack.c.h.b16 %v821
        %v3505 = vunpack.c.l.b16 %v822
        %v3506 = vunpack.c.h.b16 %v822
        %v3507 = vunpack.c.l.b16 %v823
        %v3508 = vunpack.c.h.b16 %v823
        %v3509 = vunpack.c.l.b16 %v824
        %v3510 = vunpack.c.h.b16 %v824
        %v3511 = vunpack.c.l.b16 %v825
        %v3512 = vunpack.c.h.b16 %v825
        %v3513 = vunpack.c.l.b16 %v826
        %v3514 = vunpack.c.h.b16 %v826
        %v3515 = vunpack.c.l.b16 %v827
        %v3516 = vunpack.c.h.b16 %v827
        %v3517 = vunpack.c.l.b16 %v828
        %v3518 = vunpack.c.h.b16 %v828
        %v3519 = vunpack.c.l.b16 %v829
        %v3520 = vunpack.c.h.b16 %v829
        %v3521 = vunpack.c.l.b16 %v830
        %v3522 = vunpack.c.h.b16 %v830
        %v3523 = vunpack.c.l.b16 %v831
        %v3524 = vunpack.c.h.b16 %v831
        %v3525 = vunpack.c.l.b16 %v832
        %v3526 = vunpack.c.h.b16 %v832
        %v3527 = vunpack.c.l.b16 %v833
        %v3528 = vunpack.c.h.b16 %v833
        %v3529 = vunpack.c.l.b16 %v834
        %v3530 = vunpack.c.h.b16 %v834
        %v3531 = vunpack.c.l.b16 %v835
        %v3532 = vunpack.c.h.b16 %v835
        %v3533 = vunpack.c.l.b16 %v836
        %v3534 = vunpack.c.h.b16 %v836
        %v3535 = vunpack.c.l.b16 %v837
        %v3536 = vunpack.c.h.b16 %v837
        %v3537 = vunpack.c.l.b16 %v838
        %v3538 = vunpack.c.h.b16 %v838
        %v3539 = vunpack.c.l.b16 %v839
        %v3540 = vunpack.c.h.b16 %v839
        %v3541 = vunpack.c.l.b16 %v840
        %v3542 = vunpack.c.h.b16 %v840
        %v3543 = vunpack.c.l.b16 %v841
        %v3544 = vunpack.c.h.b16 %v841
        %v3545 = vunpack.c.l.b16 %v842
        %v3546 = vunpack.c.h.b16 %v842
        %v3547 = vunpack.c.l.b16 %v843
        %v3548 = vunpack.c.h.b16 %v843
        %v3549 = vunpack.c.l.b16 %v844
        %v3550 = vunpack.c.h.b16 %v844
        %v3551 = vunpack.c.l.b16 %v845
        %v3552 = vunpack.c.h.b16 %v845
        %v3553 = vunpack.c.l.b16 %v846
        %v3554 = vunpack.c.h.b16 %v846
        %v3555 = vunpack.c.l.b16 %v847
        %v3556 = vunpack.c.h.b16 %v847
        %v3557 = vunpack.c.l.b16 %v848
        %v3558 = vunpack.c.h.b16 %v848
        %v3559 = vunpack.c.l.b16 %v849
        %v3560 = vunpack.c.h.b16 %v849
        %v3561 = vunpack.c.l.b16 %v850
        %v3562 = vunpack.c.h.b16 %v850
        %v3563 = vunpack.c.l.b16 %v851
        %v3564 = vunpack.c.h.b16 %v851
        %v3565 = vunpack.c.l.b16 %v852
        %v3566 = vunpack.c.h.b16 %v852
        %v3567 = vunpack.c.l.b16 %v853
        %v3568 = vunpack.c.h.b16 %v853
        %v3569 = vunpack.c.l.b16 %v854
        %v3570 = vunpack.c.h.b16 %v854
        %v3571 = vunpack.c.l.b16 %v855
        %v3572 = vunpack.c.h.b16 %v855
        %v3573 = vunpack.c.l.b16 %v856
        %v3574 = vunpack.c.h.b16 %v856
        %v3575 = vunpack.c.l.b16 %v857
        %v3576 = vunpack.c.h.b16 %v857
        %v3577 = vunpack.c.l.b16 %v858
        %v3578 = vunpack.c.h.b16 %v858
        %v3579 = vunpack.c.l.b16 %v859
        %v3580 = vunpack.c.h.b16 %v859
        %v3581 = vunpack.c.l.b16 %v860
        %v3582 = vunpack.c.h.b16 %v860
        %v3583 = vunpack.c.l.b16 %v861
        %v3584 = vunpack.c.h.b16 %v861
        %v3585 = vunpack.c.l.b16 %v862
        %v3586 = vunpack.c.h.b16 %v862
        %v3587 = vunpack.c.l.b16 %v863
        %v3588 = vunpack.c.h.b16 %v863
        %v3589 = vunpack.c.l.b16 %v864
        %v3590 = vunpack.c.h.b16 %v864
        %v3591 = vunpack.c.l.b16 %v865
        %v3592 = vunpack.c.h.b16 %v865
        %v3593 = vunpack.c.l.b16 %v866
        %v3594 = vunpack.c.h.b16 %v866
        %v3595 = vunpack.c.l.b16 %v867
        %v3596 = vunpack.c.h.b16 %v867
        %v3597 = vunpack.c.l.b16 %v868
        %v3598 = vunpack.c.h.b16 %v868
        %v3599 = vunpack.c.l.b16 %v869
        %v3600 = vunpack.c.h.b16 %v869
        %v3601 = vunpack.c.l.b16 %v870
        %v3602 = vunpack.c.h.b16 %v870
        %v3603 = vunpack.c.l.b16 %v871
        %v3604 = vunpack.c.h.b16 %v871
        %v3605 = vunpack.c.l.b16 %v872
        %v3606 = vunpack.c.h.b16 %v872
        %v3607 = vunpack.c.l.b16 %v873
        %v3608 = vunpack.c.h.b16 %v873
        %v3609 = vunpack.c.l.b16 %v874
        %v3610 = vunpack.c.h.b16 %v874
        %v3611 = vunpack.c.l.b16 %v875
        %v3612 = vunpack.c.h.b16 %v875
        %v3613 = vunpack.c.l.b16 %v876
        %v3614 = vunpack.c.h.b16 %v876
        %v3615 = vunpack.c.l.b16 %v877
        %v3616 = vunpack.c.h.b16 %v877
        %v3617 = vunpack.c.l.b16 %v878
        %v3618 = vunpack.c.h.b16 %v878
        %v3619 = vunpack.c.l.b16 %v879
        %v3620 = vunpack.c.h.b16 %v879
        %v3621 = vunpack.c.l.b16 %v880
        %v3622 = vunpack.c.h.b16 %v880
        %v3623 = vunpack.c.l.b16 %v881
        %v3624 = vunpack.c.h.b16 %v881
        %v3625 = vunpack.c.l.b16 %v882
        %v3626 = vunpack.c.h.b16 %v882
        %v3627 = vunpack.c.l.b16 %v883
        %v3628 = vunpack.c.h.b16 %v883
        %v3629 = vunpack.c.l.b16 %v884
        %v3630 = vunpack.c.h.b16 %v884
        %v3631 = vunpack.c.l.b16 %v885
        %v3632 = vunpack.c.h.b16 %v885
        %v3633 = vunpack.c.l.b16 %v886
        %v3634 = vunpack.c.h.b16 %v886
        %v3635 = vunpack.c.l.b16 %v887
        %v3636 = vunpack.c.h.b16 %v887
        %v3637 = vunpack.c.l.b16 %v888
        %v3638 = vunpack.c.h.b16 %v888
        %v3639 = vunpack.c.l.b16 %v889
        %v3640 = vunpack.c.h.b16 %v889
        %v3641 = vunpack.c.l.b16 %v890
        %v3642 = vunpack.c.h.b16 %v890
        %v3643 = vunpack.c.l.b16 %v891
        %v3644 = vunpack.c.h.b16 %v891
        %v3645 = vunpack.c.l.b16 %v892
        %v3646 = vunpack.c.h.b16 %v892
        %v3647 = vunpack.c.l.b16 %v893
        %v3648 = vunpack.c.h.b16 %v893
        %v3649 = vunpack.c.l.b16 %v894
        %v3650 = vunpack.c.h.b16 %v894
        %v3651 = vunpack.c.l.b16 %v895
        %v3652 = vunpack.c.h.b16 %v895
        %v3653 = vunpack.c.l.b16 %v896
        %v3654 = vunpack.c.h.b16 %v896
        %v3655 = vunpack.c.l.b16 %v897
        %v3656 = vunpack.c.h.b16 %v897
        %v3657 = vunpack.c.l.b16 %v898
        %v3658 = vunpack.c.h.b16 %v898
        %v3659 = vunpack.c.l.b16 %v899
        %v3660 = vunpack.c.h.b16 %v899
        %v3661 = vunpack.c.l.b16 %v900
        %v3662 = vunpack.c.h.b16 %v900
        %v3663 = vunpack.c.l.b16 %v901
        %v3664 = vunpack.c.h.b16 %v901
        %v3665 = vunpack.c.l.b16 %v902
        %v3666 = vunpack.c.h.b16 %v902
        %v3667 = vunpack.c.l.b16 %v903
        %v3668 = vunpack.c.h.b16 %v903
        %v3669 = vunpack.c.l.b16 %v904
        %v3670 = vunpack.c.h.b16 %v904
        %v3671 = vunpack.c.l.b16 %v905
        %v3672 = vunpack.c.h.b16 %v905
        %v3673 = vunpack.c.l.b16 %v906
        %v3674 = vunpack.c.h.b16 %v906
        %v3675 = vunpack.c.l.b16 %v907
        %v3676 = vunpack.c.h.b16 %v907
        %v3677 = vunpack.c.l.b16 %v908
        %v3678 = vunpack.c.h.b16 %v908
        %v3679 = vunpack.c.l.b16 %v909
        %v3680 = vunpack.c.h.b16 %v909
        %v3681 = vunpack.c.l.b16 %v910
        %v3682 = vunpack.c.h.b16 %v910
        %v3683 = vunpack.c.l.b16 %v911
        %v3684 = vunpack.c.h.b16 %v911
        %v3685 = vunpack.c.l.b16 %v912
        %v3686 = vunpack.c.h.b16 %v912
        %v3687 = vunpack.c.l.b16 %v913
        %v3688 = vunpack.c.h.b16 %v913
        %v3689 = vunpack.c.l.b16 %v914
        %v3690 = vunpack.c.h.b16 %v914
        %v3691 = vunpack.c.l.b16 %v915
        %v3692 = vunpack.c.h.b16 %v915
        %v3693 = vunpack.c.l.b16 %v916
        %v3694 = vunpack.c.h.b16 %v916
        %v3695 = vunpack.c.l.b16 %v917
        %v3696 = vunpack.c.h.b16 %v917
        %v3697 = vunpack.c.l.b16 %v918
        %v3698 = vunpack.c.h.b16 %v918
        %v3699 = vunpack.c.l.b16 %v919
        %v3700 = vunpack.c.h.b16 %v919
        %v3701 = vunpack.c.l.b16 %v920
        %v3702 = vunpack.c.h.b16 %v920
        %v3703 = vunpack.c.l.b16 %v921
        %v3704 = vunpack.c.h.b16 %v921
        %v3705 = vunpack.c.l.b16 %v922
        %v3706 = vunpack.c.h.b16 %v922
        %v3707 = vunpack.c.l.b16 %v923
        %v3708 = vunpack.c.h.b16 %v923
        %v3709 = vunpack.c.l.b16 %v924
        %v3710 = vunpack.c.h.b16 %v924
        %v3711 = vunpack.c.l.b16 %v925
        %v3712 = vunpack.c.h.b16 %v925
        %v3713 = vunpack.c.l.b16 %v926
        %v3714 = vunpack.c.h.b16 %v926
        %v3715 = vunpack.c.l.b16 %v927
        %v3716 = vunpack.c.h.b16 %v927
        %v3717 = vunpack.c.l.b16 %v928
        %v3718 = vunpack.c.h.b16 %v928
        %v3719 = vunpack.c.l.b16 %v929
        %v3720 = vunpack.c.h.b16 %v929
        %v3721 = vunpack.c.l.b16 %v930
        %v3722 = vunpack.c.h.b16 %v930
        %v3723 = vunpack.c.l.b16 %v931
        %v3724 = vunpack.c.h.b16 %v931
        %v3725 = vunpack.c.l.b16 %v932
        %v3726 = vunpack.c.h.b16 %v932
        %v3727 = vunpack.c.l.b16 %v933
        %v3728 = vunpack.c.h.b16 %v933
        %v3729 = vunpack.c.l.b16 %v934
        %v3730 = vunpack.c.h.b16 %v934
        %v3731 = vunpack.c.l.b16 %v935
        %v3732 = vunpack.c.h.b16 %v935
        %v3733 = vunpack.c.l.b16 %v936
        %v3734 = vunpack.c.h.b16 %v936
        %v3735 = vunpack.c.l.b16 %v937
        %v3736 = vunpack.c.h.b16 %v937
        %v3737 = vunpack.c.l.b16 %v938
        %v3738 = vunpack.c.h.b16 %v938
        %v3739 = vunpack.c.l.b16 %v939
        %v3740 = vunpack.c.h.b16 %v939
        %v3741 = vunpack.c.l.b16 %v940
        %v3742 = vunpack.c.h.b16 %v940
        %v3743 = vunpack.c.l.b16 %v941
        %v3744 = vunpack.c.h.b16 %v941
        %v3745 = vunpack.c.l.b16 %v942
        %v3746 = vunpack.c.h.b16 %v942
        %v3747 = vunpack.c.l.b16 %v943
        %v3748 = vunpack.c.h.b16 %v943
        %v3749 = vunpack.c.l.b16 %v944
        %v3750 = vunpack.c.h.b16 %v944
        %v3751 = vunpack.c.l.b16 %v945
        %v3752 = vunpack.c.h.b16 %v945
        %v3753 = vunpack.c.l.b16 %v946
        %v3754 = vunpack.c.h.b16 %v946
        %v3755 = vunpack.c.l.b16 %v947
        %v3756 = vunpack.c.h.b16 %v947
        %v3757 = vunpack.c.l.b16 %v948
        %v3758 = vunpack.c.h.b16 %v948
        %v3759 = vunpack.c.l.b16 %v949
        %v3760 = vunpack.c.h.b16 %v949
        %v3761 = vunpack.c.l.b16 %v950
        %v3762 = vunpack.c.h.b16 %v950
        %v3763 = vunpack.c.l.b16 %v951
        %v3764 = vunpack.c.h.b16 %v951
        %v3765 = vunpack.c.l.b16 %v952
        %v3766 = vunpack.c.h.b16 %v952
        %v3767 = vunpack.c.l.b16 %v953
        %v3768 = vunpack.c.h.b16 %v953
        %v3769 = vunpack.c.l.b16 %v954
        %v3770 = vunpack.c.h.b16 %v954
        %v3771 = vunpack.c.l.b16 %v955
        %v3772 = vunpack.c.h.b16 %v955
        %v3773 = vunpack.c.l.b16 %v956
        %v3774 = vunpack.c.h.b16 %v956
        %v3775 = vunpack.c.l.b16 %v957
        %v3776 = vunpack.c.h.b16 %v957
        %v3777 = vunpack.c.l.b16 %v958
        %v3778 = vunpack.c.h.b16 %v958
        %v3779 = vunpack.c.l.b16 %v959
        %v3780 = vunpack.c.h.b16 %v959
        %v3781 = vunpack.c.l.b16 %v960
        %v3782 = vunpack.c.h.b16 %v960
        %v3783 = vunpack.c.l.b16 %v961
        %v3784 = vunpack.c.h.b16 %v961
        %v3785 = vunpack.c.l.b16 %v962
        %v3786 = vunpack.c.h.b16 %v962
        %v3787 = vunpack.c.l.b16 %v963
        %v3788 = vunpack.c.h.b16 %v963
        %v3789 = vunpack.c.l.b16 %v964
        %v3790 = vunpack.c.h.b16 %v964
        %v3791 = vunpack.c.l.b16 %v965
        %v3792 = vunpack.c.h.b16 %v965
        %v3793 = vunpack.c.l.b16 %v966
        %v3794 = vunpack.c.h.b16 %v966
        %v3795 = vunpack.c.l.b16 %v967
        %v3796 = vunpack.c.h.b16 %v967
        %v3797 = vunpack.c.l.b16 %v968
        %v3798 = vunpack.c.h.b16 %v968
        %v3799 = vunpack.c.l.b16 %v969
        %v3800 = vunpack.c.h.b16 %v969
        %v3801 = vunpack.c.l.b16 %v970
        %v3802 = vunpack.c.h.b16 %v970
        %v3803 = vunpack.c.l.b16 %v971
        %v3804 = vunpack.c.h.b16 %v971
        %v3805 = vunpack.c.l.b16 %v972
        %v3806 = vunpack.c.h.b16 %v972
        %v3807 = vunpack.c.l.b16 %v973
        %v3808 = vunpack.c.h.b16 %v973
        %v3809 = vunpack.c.l.b16 %v974
        %v3810 = vunpack.c.h.b16 %v974
        %v3811 = vunpack.c.l.b16 %v975
        %v3812 = vunpack.c.h.b16 %v975
        %v3813 = vunpack.c.l.b16 %v976
        %v3814 = vunpack.c.h.b16 %v976
        %v3815 = vunpack.c.l.b16 %v977
        %v3816 = vunpack.c.h.b16 %v977
        %v3817 = vunpack.c.l.b16 %v978
        %v3818 = vunpack.c.h.b16 %v978
        %v3819 = vunpack.c.l.b16 %v979
        %v3820 = vunpack.c.h.b16 %v979
        %v3821 = vunpack.c.l.b16 %v980
        %v3822 = vunpack.c.h.b16 %v980
        %v3823 = vunpack.c.l.b16 %v981
        %v3824 = vunpack.c.h.b16 %v981
        %v3825 = vunpack.c.l.b16 %v982
        %v3826 = vunpack.c.h.b16 %v982
        %v3827 = vunpack.c.l.b16 %v983
        %v3828 = vunpack.c.h.b16 %v983
        %v3829 = vunpack.c.l.b16 %v984
        %v3830 = vunpack.c.h.b16 %v984
        %v3831 = vunpack.c.l.b16 %v985
        %v3832 = vunpack.c.h.b16 %v985
        %v3833 = vunpack.c.l.b16 %v986
        %v3834 = vunpack.c.h.b16 %v986
        %v3835 = vunpack.c.l.b16 %v987
        %v3836 = vunpack.c.h.b16 %v987
        %v3837 = vunpack.c.l.b16 %v988
        %v3838 = vunpack.c.h.b16 %v988
        %v3839 = vunpack.c.l.b16 %v989
        %v3840 = vunpack.c.h.b16 %v989
        %v3841 = vunpack.c.l.b16 %v990
        %v3842 = vunpack.c.h.b16 %v990
        %v3843 = vunpack.c.l.b16 %v991
        %v3844 = vunpack.c.h.b16 %v991
        %v3845 = vunpack.c.l.b16 %v992
        %v3846 = vunpack.c.h.b16 %v992
        %v3847 = vunpack.c.l.b16 %v993
        %v3848 = vunpack.c.h.b16 %v993
        %v3849 = vunpack.c.l.b16 %v994
        %v3850 = vunpack.c.h.b16 %v994
        %v3851 = vunpack.c.l.b16 %v995
        %v3852 = vunpack.c.h.b16 %v995
        %v3853 = vunpack.c.l.b16 %v996
        %v3854 = vunpack.c.h.b16 %v996
        %v3855 = vunpack.c.l.b16 %v997
        %v3856 = vunpack.c.h.b16 %v997
        %v3857 = vunpack.c.l.b16 %v998
        %v3858 = vunpack.c.h.b16 %v998
        %v3859 = vunpack.c.l.b16 %v999
        %v3860 = vunpack.c.h.b16 %v999
        %v3861 = vunpack.c.l.b16 %v1000
        %v3862 = vunpack.c.h.b16 %v1000
        %v3863 = vunpack.c.l.b16 %v1001
        %v3864 = vunpack.c.h.b16 %v1001
        %v3865 = vunpack.c.l.b16 %v1002
        %v3866 = vunpack.c.h.b16 %v1002
        %v3867 = vunpack.c.l.b16 %v1003
        %v3868 = vunpack.c.h.b16 %v1003
        %v3869 = vunpack.c.l.b16 %v1004
        %v3870 = vunpack.c.h.b16 %v1004
        %v3871 = vunpack.c.l.b16 %v1005
        %v3872 = vunpack.c.h.b16 %v1005
        %v3873 = vunpack.c.l.b16 %v1006
        %v3874 = vunpack.c.h.b16 %v1006
        %v3875 = vunpack.c.l.b16 %v1007
        %v3876 = vunpack.c.h.b16 %v1007
        %v3877 = vunpack.c.l.b16 %v1008
        %v3878 = vunpack.c.h.b16 %v1008
        %v3879 = vunpack.c.l.b16 %v1009
        %v3880 = vunpack.c.h.b16 %v1009
        %v3881 = vunpack.c.l.b16 %v1010
        %v3882 = vunpack.c.h.b16 %v1010
        %v3883 = vunpack.c.l.b16 %v1011
        %v3884 = vunpack.c.h.b16 %v1011
        %v3885 = vunpack.c.l.b16 %v1012
        %v3886 = vunpack.c.h.b16 %v1012
        %v3887 = vunpack.c.l.b16 %v1013
        %v3888 = vunpack.c.h.b16 %v1013
        %v3889 = vunpack.c.l.b16 %v1014
        %v3890 = vunpack.c.h.b16 %v1014
        %v3891 = vunpack.c.l.b16 %v1015
        %v3892 = vunpack.c.h.b16 %v1015
        %v3893 = vunpack.c.l.b16 %v1016
        %v3894 = vunpack.c.h.b16 %v1016
        %v3895 = vunpack.c.l.b16 %v1017
        %v3896 = vunpack.c.h.b16 %v1017
        %v3897 = vunpack.c.l.b16 %v1018
        %v3898 = vunpack.c.h.b16 %v1018
        %v3899 = vunpack.c.l.b16 %v1019
        %v3900 = vunpack.c.h.b16 %v1019
        %v3901 = vunpack.c.l.b16 %v1020
        %v3902 = vunpack.c.h.b16 %v1020
        %v3903 = vunpack.c.l.b16 %v1021
        %v3904 = vunpack.c.h.b16 %v1021
        %v3905 = vunpack.c.l.b16 %v1022
        %v3906 = vunpack.c.h.b16 %v1022
        %v3907 = vunpack.c.l.b16 %v1023
        %v3908 = vunpack.c.h.b16 %v1023
        %v3909 = vunpack.c.l.b16 %v1024
        %v3910 = vunpack.c.h.b16 %v1024
        %v3911 = vunpack.c.l.b16 %v1025
        %v3912 = vunpack.c.h.b16 %v1025
        %v3913 = vunpack.c.l.b16 %v1026
        %v3914 = vunpack.c.h.b16 %v1026
        %v3915 = vunpack.c.l.b16 %v1027
        %v3916 = vunpack.c.h.b16 %v1027
        %v3917 = vunpack.c.l.b16 %v1028
        %v3918 = vunpack.c.h.b16 %v1028
        %v3919 = vunpack.c.l.b16 %v1029
        %v3920 = vunpack.c.h.b16 %v1029
        %v3921 = vunpack.c.l.b16 %v1030
        %v3922 = vunpack.c.h.b16 %v1030
        %v3923 = vunpack.c.l.b16 %v1031
        %v3924 = vunpack.c.h.b16 %v1031
        %v3925 = vunpack.c.l.b16 %v1032
        %v3926 = vunpack.c.h.b16 %v1032
        %v3927 = vunpack.c.l.b16 %v1033
        %v3928 = vunpack.c.h.b16 %v1033
        %v3929 = vunpack.c.l.b16 %v1034
        %v3930 = vunpack.c.h.b16 %v1034
        %v3931 = vunpack.c.l.b16 %v1035
        %v3932 = vunpack.c.h.b16 %v1035
        %v3933 = vunpack.c.l.b16 %v1036
        %v3934 = vunpack.c.h.b16 %v1036
        %v3935 = vunpack.c.l.b16 %v1037
        %v3936 = vunpack.c.h.b16 %v1037
        %v3937 = vunpack.c.l.b16 %v1038
        %v3938 = vunpack.c.h.b16 %v1038
        %v3939 = vunpack.c.l.b16 %v1039
        %v3940 = vunpack.c.h.b16 %v1039
        %v3941 = vunpack.c.l.b16 %v1040
        %v3942 = vunpack.c.h.b16 %v1040
        %v3943 = vunpack.c.l.b16 %v1041
        %v3944 = vunpack.c.h.b16 %v1041
        %v3945 = vunpack.c.l.b16 %v1042
        %v3946 = vunpack.c.h.b16 %v1042
        %v3947 = vunpack.c.l.b16 %v1043
        %v3948 = vunpack.c.h.b16 %v1043
        %v3949 = vunpack.c.l.b16 %v1044
        %v3950 = vunpack.c.h.b16 %v1044
        %v3951 = vunpack.c.l.b16 %v1045
        %v3952 = vunpack.c.h.b16 %v1045
        %v3953 = vunpack.c.l.b16 %v1046
        %v3954 = vunpack.c.h.b16 %v1046
        %v3955 = vunpack.c.l.b16 %v1047
        %v3956 = vunpack.c.h.b16 %v1047
        %v3957 = vunpack.c.l.b16 %v1048
        %v3958 = vunpack.c.h.b16 %v1048
        %v3959 = vunpack.c.l.b16 %v1049
        %v3960 = vunpack.c.h.b16 %v1049
        %v3961 = vunpack.c.l.b16 %v1050
        %v3962 = vunpack.c.h.b16 %v1050
        %v3963 = vunpack.c.l.b16 %v1051
        %v3964 = vunpack.c.h.b16 %v1051
        %v3965 = vunpack.c.l.b16 %v1052
        %v3966 = vunpack.c.h.b16 %v1052
        %v3967 = vunpack.c.l.b16 %v1053
        %v3968 = vunpack.c.h.b16 %v1053
        %v3969 = vunpack.c.l.b16 %v1054
        %v3970 = vunpack.c.h.b16 %v1054
        %v3971 = vunpack.c.l.b16 %v1055
        %v3972 = vunpack.c.h.b16 %v1055
        %v3973 = vunpack.c.l.b16 %v1056
        %v3974 = vunpack.c.h.b16 %v1056
        %v3975 = vunpack.c.l.b16 %v1057
        %v3976 = vunpack.c.h.b16 %v1057
        %v3977 = vunpack.c.l.b16 %v1058
        %v3978 = vunpack.c.h.b16 %v1058
        %v3979 = vunpack.c.l.b16 %v1059
        %v3980 = vunpack.c.h.b16 %v1059
        %v3981 = vunpack.c.l.b16 %v1060
        %v3982 = vunpack.c.h.b16 %v1060
        %v3983 = vunpack.c.l.b16 %v1061
        %v3984 = vunpack.c.h.b16 %v1061
        %v3985 = vunpack.c.l.b16 %v1062
        %v3986 = vunpack.c.h.b16 %v1062
        %v3987 = vunpack.c.l.b16 %v1063
        %v3988 = vunpack.c.h.b16 %v1063
        %v3989 = vunpack.c.l.b16 %v1064
        %v3990 = vunpack.c.h.b16 %v1064
        %v3991 = vunpack.c.l.b16 %v1065
        %v3992 = vunpack.c.h.b16 %v1065
        %v3993 = vunpack.c.l.b16 %v1066
        %v3994 = vunpack.c.h.b16 %v1066
        %v3995 = vunpack.c.l.b16 %v1067
        %v3996 = vunpack.c.h.b16 %v1067
        %v3997 = vunpack.c.l.b16 %v1068
        %v3998 = vunpack.c.h.b16 %v1068
        %v3999 = vunpack.c.l.b16 %v1069
        %v4000 = vunpack.c.h.b16 %v1069
        %v4001 = vunpack.c.l.b16 %v1070
        %v4002 = vunpack.c.h.b16 %v1070
        %v4003 = vunpack.c.l.b16 %v1071
        %v4004 = vunpack.c.h.b16 %v1071
        %v4005 = vunpack.c.l.b16 %v1072
        %v4006 = vunpack.c.h.b16 %v1072
        %v4007 = vunpack.c.l.b16 %v1073
        %v4008 = vunpack.c.h.b16 %v1073
        %v4009 = vunpack.c.l.b16 %v1074
        %v4010 = vunpack.c.h.b16 %v1074
        %v4011 = vunpack.c.l.b16 %v1075
        %v4012 = vunpack.c.h.b16 %v1075
        %v4013 = vunpack.c.l.b16 %v1076
        %v4014 = vunpack.c.h.b16 %v1076
        %v4015 = vunpack.c.l.b16 %v1077
        %v4016 = vunpack.c.h.b16 %v1077
        %v4017 = vunpack.c.l.b16 %v1078
        %v4018 = vunpack.c.h.b16 %v1078
        %v4019 = vunpack.c.l.b16 %v1079
        %v4020 = vunpack.c.h.b16 %v1079
        %v4021 = vunpack.c.l.b16 %v1080
        %v4022 = vunpack.c.h.b16 %v1080
        %v4023 = vunpack.c.l.b16 %v1081
        %v4024 = vunpack.c.h.b16 %v1081
        %v4025 = vunpack.c.l.b16 %v1082
        %v4026 = vunpack.c.h.b16 %v1082
        %v4027 = vunpack.c.l.b16 %v1083
        %v4028 = vunpack.c.h.b16 %v1083
        %v4029 = vunpack.c.l.b16 %v1084
        %v4030 = vunpack.c.h.b16 %v1084
        %v4031 = vunpack.c.l.b16 %v1085
        %v4032 = vunpack.c.h.b16 %v1085
        %v4033 = vunpack.c.l.b16 %v1086
        %v4034 = vunpack.c.h.b16 %v1086
        %v4035 = vunpack.c.l.b16 %v1087
        %v4036 = vunpack.c.h.b16 %v1087
        %v4037 = vunpack.c.l.b16 %v1088
        %v4038 = vunpack.c.h.b16 %v1088
        %v4039 = vunpack.c.l.b16 %v1089
        %v4040 = vunpack.c.h.b16 %v1089
        %v4041 = vunpack.c.l.b16 %v1090
        %v4042 = vunpack.c.h.b16 %v1090
        %v4043 = vunpack.c.l.b16 %v1091
        %v4044 = vunpack.c.h.b16 %v1091
        %v4045 = vunpack.c.l.b16 %v1092
        %v4046 = vunpack.c.h.b16 %v1092
        %v4047 = vunpack.c.l.b16 %v1093
        %v4048 = vunpack.c.h.b16 %v1093
        %v4049 = vunpack.c.l.b16 %v1094
        %v4050 = vunpack.c.h.b16 %v1094
        %v4051 = vunpack.c.l.b16 %v1095
        %v4052 = vunpack.c.h.b16 %v1095
        %v4053 = vunpack.c.l.b16 %v1096
        %v4054 = vunpack.c.h.b16 %v1096
        %v4055 = vunpack.c.l.b16 %v1097
        %v4056 = vunpack.c.h.b16 %v1097
        %v4057 = vunpack.c.l.b16 %v1098
        %v4058 = vunpack.c.h.b16 %v1098
        %v4059 = vunpack.c.l.b16 %v1099
        %v4060 = vunpack.c.h.b16 %v1099
        %v4061 = vunpack.c.l.b16 %v1100
        %v4062 = vunpack.c.h.b16 %v1100
        %v4063 = vunpack.c.l.b16 %v1101
        %v4064 = vunpack.c.h.b16 %v1101
        %v4065 = vunpack.c.l.b16 %v1102
        %v4066 = vunpack.c.h.b16 %v1102
        %v4067 = vunpack.c.l.b16 %v1103
        %v4068 = vunpack.c.h.b16 %v1103
        %v4069 = vunpack.c.l.b16 %v1104
        %v4070 = vunpack.c.h.b16 %v1104
        %v4071 = vunpack.c.l.b16 %v1105
        %v4072 = vunpack.c.h.b16 %v1105
        %v4073 = vunpack.c.l.b16 %v1106
        %v4074 = vunpack.c.h.b16 %v1106
        %v4075 = vunpack.c.l.b16 %v1107
        %v4076 = vunpack.c.h.b16 %v1107
        %v4077 = vunpack.c.l.b16 %v1108
        %v4078 = vunpack.c.h.b16 %v1108
        %v4079 = vunpack.c.l.b16 %v1109
        %v4080 = vunpack.c.h.b16 %v1109
        %v4081 = vunpack.c.l.b16 %v1110
        %v4082 = vunpack.c.h.b16 %v1110
        %v4083 = vunpack.c.l.b16 %v1111
        %v4084 = vunpack.c.h.b16 %v1111
        %v4085 = vunpack.c.l.b16 %v1112
        %v4086 = vunpack.c.h.b16 %v1112
        %v4087 = vunpack.c.l.b16 %v1113
        %v4088 = vunpack.c.h.b16 %v1113
        %v4089 = vunpack.c.l.b16 %v1114
        %v4090 = vunpack.c.h.b16 %v1114
        %v4091 = vunpack.c.l.b16 %v1115
        %v4092 = vunpack.c.h.b16 %v1115
        %v4093 = vunpack.c.l.b16 %v1116
        %v4094 = vunpack.c.h.b16 %v1116
        %v4095 = vunpack.c.l.b16 %v1117
        %v4096 = vunpack.c.h.b16 %v1117
        %v4097 = vunpack.c.l.b16 %v1118
        %v4098 = vunpack.c.h.b16 %v1118
        %v4099 = vunpack.c.l.b16 %v1119
        %v4100 = vunpack.c.h.b16 %v1119
        %v4101 = vunpack.c.l.b16 %v1120
        %v4102 = vunpack.c.h.b16 %v1120
        %v4103 = vunpack.c.l.b16 %v1121
        %v4104 = vunpack.c.h.b16 %v1121
        %v4105 = vunpack.c.l.b16 %v1122
        %v4106 = vunpack.c.h.b16 %v1122
        %v4107 = vunpack.c.l.b16 %v1123
        %v4108 = vunpack.c.h.b16 %v1123
        %v4109 = vunpack.c.l.b16 %v1124
        %v4110 = vunpack.c.h.b16 %v1124
        %v4111 = vunpack.c.l.b16 %v1125
        %v4112 = vunpack.c.h.b16 %v1125
        %v4113 = vunpack.c.l.b16 %v1126
        %v4114 = vunpack.c.h.b16 %v1126
        %v4115 = vunpack.c.l.b16 %v1127
        %v4116 = vunpack.c.h.b16 %v1127
        %v4117 = vunpack.c.l.b16 %v1128
        %v4118 = vunpack.c.h.b16 %v1128
        %v4119 = vunpack.c.l.b16 %v1129
        %v4120 = vunpack.c.h.b16 %v1129
        %v4121 = vunpack.c.l.b16 %v1130
        %v4122 = vunpack.c.h.b16 %v1130
        %v4123 = vunpack.c.l.b16 %v1131
        %v4124 = vunpack.c.h.b16 %v1131
        %v4125 = vunpack.c.l.b16 %v1132
        %v4126 = vunpack.c.h.b16 %v1132
        %v4127 = vunpack.c.l.b16 %v1133
        %v4128 = vunpack.c.h.b16 %v1133
        %v4129 = vunpack.c.l.b16 %v1134
        %v4130 = vunpack.c.h.b16 %v1134
        %v4131 = vunpack.c.l.b16 %v1135
        %v4132 = vunpack.c.h.b16 %v1135
        %v4133 = vunpack.c.l.b16 %v1136
        %v4134 = vunpack.c.h.b16 %v1136
        %v4135 = vunpack.c.l.b16 %v1137
        %v4136 = vunpack.c.h.b16 %v1137
        %v4137 = vunpack.c.l.b16 %v1138
        %v4138 = vunpack.c.h.b16 %v1138
        %v4139 = vunpack.c.l.b16 %v1139
        %v4140 = vunpack.c.h.b16 %v1139
        %v4141 = vunpack.c.l.b16 %v1140
        %v4142 = vunpack.c.h.b16 %v1140
        %v4143 = vunpack.c.l.b16 %v1141
        %v4144 = vunpack.c.h.b16 %v1141
        %v4145 = vunpack.c.l.b16 %v1142
        %v4146 = vunpack.c.h.b16 %v1142
        %v4147 = vunpack.c.l.b16 %v1143
        %v4148 = vunpack.c.h.b16 %v1143
        %v4149 = vunpack.c.l.b16 %v1144
        %v4150 = vunpack.c.h.b16 %v1144
        %v4151 = vunpack.c.l.b16 %v1145
        %v4152 = vunpack.c.h.b16 %v1145
        %v4153 = vunpack.c.l.b16 %v1146
        %v4154 = vunpack.c.h.b16 %v1146
        %v4155 = vunpack.c.l.b16 %v1147
        %v4156 = vunpack.c.h.b16 %v1147
        %v4157 = vunpack.c.l.b16 %v1148
        %v4158 = vunpack.c.h.b16 %v1148
        %v4159 = vunpack.c.l.b16 %v1149
        %v4160 = vunpack.c.h.b16 %v1149
        %v4161 = vunpack.c.l.b16 %v1150
        %v4162 = vunpack.c.h.b16 %v1150
        %v4163 = vunpack.c.l.b16 %v1151
        %v4164 = vunpack.c.h.b16 %v1151
        %v4165 = vunpack.c.l.b16 %v1152
        %v4166 = vunpack.c.h.b16 %v1152
        %v4167 = vunpack.c.l.b16 %v1153
        %v4168 = vunpack.c.h.b16 %v1153
        %v4169 = vunpack.c.l.b16 %v1154
        %v4170 = vunpack.c.h.b16 %v1154
        %v4171 = vunpack.c.l.b16 %v1155
        %v4172 = vunpack.c.h.b16 %v1155
        %v4173 = vunpack.c.l.b16 %v1156
        %v4174 = vunpack.c.h.b16 %v1156
        %v4175 = vunpack.c.l.b16 %v1157
        %v4176 = vunpack.c.h.b16 %v1157
        %v4177 = vunpack.c.l.b16 %v1158
        %v4178 = vunpack.c.h.b16 %v1158
        %v4179 = vunpack.c.l.b16 %v1159
        %v4180 = vunpack.c.h.b16 %v1159
        %v4181 = vunpack.c.l.b16 %v1160
        %v4182 = vunpack.c.h.b16 %v1160
        %v4183 = vunpack.c.l.b16 %v1161
        %v4184 = vunpack.c.h.b16 %v1161
        %v4185 = vunpack.c.l.b16 %v1162
        %v4186 = vunpack.c.h.b16 %v1162
        %v4187 = vunpack.c.l.b16 %v1163
        %v4188 = vunpack.c.h.b16 %v1163
        %v4189 = vunpack.c.l.b16 %v1164
        %v4190 = vunpack.c.h.b16 %v1164
        %v4191 = vunpack.c.l.b16 %v1165
        %v4192 = vunpack.c.h.b16 %v1165
        %v4193 = vunpack.c.l.b16 %v1166
        %v4194 = vunpack.c.h.b16 %v1166
        %v4195 = vunpack.c.l.b16 %v1167
        %v4196 = vunpack.c.h.b16 %v1167
        %v4197 = vunpack.c.l.b16 %v1168
        %v4198 = vunpack.c.h.b16 %v1168
        %v4199 = vunpack.c.l.b16 %v1169
        %v4200 = vunpack.c.h.b16 %v1169
        %v4201 = vunpack.c.l.b16 %v1170
        %v4202 = vunpack.c.h.b16 %v1170
        %v4203 = vunpack.c.l.b16 %v1171
        %v4204 = vunpack.c.h.b16 %v1171
        %v4205 = vunpack.c.l.b16 %v1172
        %v4206 = vunpack.c.h.b16 %v1172
        %v4207 = vunpack.c.l.b16 %v1173
        %v4208 = vunpack.c.h.b16 %v1173
        %v4209 = vunpack.c.l.b16 %v1174
        %v4210 = vunpack.c.h.b16 %v1174
        %v4211 = vunpack.c.l.b16 %v1175
        %v4212 = vunpack.c.h.b16 %v1175
        %v4213 = vunpack.c.l.b16 %v1176
        %v4214 = vunpack.c.h.b16 %v1176
        %v4215 = vunpack.c.l.b16 %v1177
        %v4216 = vunpack.c.h.b16 %v1177
        %v4217 = vunpack.c.l.b16 %v1178
        %v4218 = vunpack.c.h.b16 %v1178
        %v4219 = vunpack.c.l.b16 %v1179
        %v4220 = vunpack.c.h.b16 %v1179
        %v4221 = vunpack.c.l.b16 %v1180
        %v4222 = vunpack.c.h.b16 %v1180
        %v4223 = vunpack.c.l.b16 %v1181
        %v4224 = vunpack.c.h.b16 %v1181
        %v4225 = vunpack.c.l.b16 %v1182
        %v4226 = vunpack.c.h.b16 %v1182
        %v4227 = vunpack.c.l.b16 %v1183
        %v4228 = vunpack.c.h.b16 %v1183
        %v4229 = vunpack.c.l.b16 %v1184
        %v4230 = vunpack.c.h.b16 %v1184
        %v4231 = vunpack.c.l.b16 %v1185
        %v4232 = vunpack.c.h.b16 %v1185
        %v4233 = vunpack.c.l.b16 %v1186
        %v4234 = vunpack.c.h.b16 %v1186
        %v4235 = vunpack.c.l.b16 %v1187
        %v4236 = vunpack.c.h.b16 %v1187
        %v4237 = vunpack.c.l.b16 %v1188
        %v4238 = vunpack.c.h.b16 %v1188
        %v4239 = vunpack.c.l.b16 %v1189
        %v4240 = vunpack.c.h.b16 %v1189
        %v4241 = vunpack.c.l.b16 %v1190
        %v4242 = vunpack.c.h.b16 %v1190
        %v4243 = vunpack.c.l.b16 %v1191
        %v4244 = vunpack.c.h.b16 %v1191
        %v4245 = vunpack.c.l.b16 %v1192
        %v4246 = vunpack.c.h.b16 %v1192
        %v4247 = vunpack.c.l.b16 %v1193
        %v4248 = vunpack.c.h.b16 %v1193
        %v4249 = vunpack.c.l.b16 %v1194
        %v4250 = vunpack.c.h.b16 %v1194
        %v4251 = vunpack.c.l.b16 %v1195
        %v4252 = vunpack.c.h.b16 %v1195
        %v4253 = vunpack.c.l.b16 %v1196
        %v4254 = vunpack.c.h.b16 %v1196
        %v4255 = vunpack.c.l.b16 %v1197
        %v4256 = vunpack.c.h.b16 %v1197
        %v4257 = vunpack.c.l.b16 %v1198
        %v4258 = vunpack.c.h.b16 %v1198
        %v4259 = vunpack.c.l.b16 %v1199
        %v4260 = vunpack.c.h.b16 %v1199
        %v4261 = vunpack.c.l.b16 %v1200
        %v4262 = vunpack.c.h.b16 %v1200
        %v4263 = vunpack.c.l.b16 %v1201
        %v4264 = vunpack.c.h.b16 %v1201
        %v4265 = vunpack.c.l.b16 %v1202
        %v4266 = vunpack.c.h.b16 %v1202
        %v4267 = vunpack.c.l.b16 %v1203
        %v4268 = vunpack.c.h.b16 %v1203
        %v4269 = vunpack.c.l.b16 %v1204
        %v4270 = vunpack.c.h.b16 %v1204
        %v4271 = vunpack.c.l.b16 %v1205
        %v4272 = vunpack.c.h.b16 %v1205
        %v4273 = vunpack.c.l.b16 %v1206
        %v4274 = vunpack.c.h.b16 %v1206
        %v4275 = vunpack.c.l.b16 %v1207
        %v4276 = vunpack.c.h.b16 %v1207
        %v4277 = vunpack.c.l.b16 %v1208
        %v4278 = vunpack.c.h.b16 %v1208
        %v4279 = vunpack.c.l.b16 %v1209
        %v4280 = vunpack.c.h.b16 %v1209
        %v4281 = vunpack.c.l.b16 %v1210
        %v4282 = vunpack.c.h.b16 %v1210
        %v4283 = vunpack.c.l.b16 %v1211
        %v4284 = vunpack.c.h.b16 %v1211
        %v4285 = vunpack.c.l.b16 %v1212
        %v4286 = vunpack.c.h.b16 %v1212
        %v4287 = vunpack.c.l.b16 %v1213
        %v4288 = vunpack.c.h.b16 %v1213
        %v4289 = vunpack.c.l.b16 %v1214
        %v4290 = vunpack.c.h.b16 %v1214
        %v4291 = vunpack.c.l.b16 %v1215
        %v4292 = vunpack.c.h.b16 %v1215
        %v4293 = vunpack.c.l.b16 %v1216
        %v4294 = vunpack.c.h.b16 %v1216
        %v4295 = vunpack.c.l.b16 %v1217
        %v4296 = vunpack.c.h.b16 %v1217
        %v4297 = vunpack.c.l.b16 %v1218
        %v4298 = vunpack.c.h.b16 %v1218
        %v4299 = vunpack.c.l.b16 %v1219
        %v4300 = vunpack.c.h.b16 %v1219
        %v4301 = vunpack.c.l.b16 %v1220
        %v4302 = vunpack.c.h.b16 %v1220
        %v4303 = vunpack.c.l.b16 %v1221
        %v4304 = vunpack.c.h.b16 %v1221
        %v4305 = vunpack.c.l.b16 %v1222
        %v4306 = vunpack.c.h.b16 %v1222
        %v4307 = vunpack.c.l.b16 %v1223
        %v4308 = vunpack.c.h.b16 %v1223
        %v4309 = vunpack.c.l.b16 %v1224
        %v4310 = vunpack.c.h.b16 %v1224
        %v4311 = vunpack.c.l.b16 %v1225
        %v4312 = vunpack.c.h.b16 %v1225
        %v4313 = vunpack.c.l.b16 %v1226
        %v4314 = vunpack.c.h.b16 %v1226
        %v4315 = vunpack.c.l.b16 %v1227
        %v4316 = vunpack.c.h.b16 %v1227
        %v4317 = vunpack.c.l.b16 %v1228
        %v4318 = vunpack.c.h.b16 %v1228
        %v4319 = vunpack.c.l.b16 %v1229
        %v4320 = vunpack.c.h.b16 %v1229
        %v4321 = vunpack.c.l.b16 %v1230
        %v4322 = vunpack.c.h.b16 %v1230
        %v4323 = vunpack.c.l.b16 %v1231
        %v4324 = vunpack.c.h.b16 %v1231
        %v4325 = vunpack.c.l.b16 %v1232
        %v4326 = vunpack.c.h.b16 %v1232
        %v4327 = vunpack.c.l.b16 %v1233
        %v4328 = vunpack.c.h.b16 %v1233
        %v4329 = vunpack.c.l.b16 %v1234
        %v4330 = vunpack.c.h.b16 %v1234
        %v4331 = vunpack.c.l.b16 %v1235
        %v4332 = vunpack.c.h.b16 %v1235
        %v4333 = vunpack.c.l.b16 %v1236
        %v4334 = vunpack.c.h.b16 %v1236
        %v4335 = vunpack.c.l.b16 %v1237
        %v4336 = vunpack.c.h.b16 %v1237
        %v4337 = vunpack.c.l.b16 %v1238
        %v4338 = vunpack.c.h.b16 %v1238
        %v4339 = vunpack.c.l.b16 %v1239
        %v4340 = vunpack.c.h.b16 %v1239
        %v4341 = vunpack.c.l.b16 %v1240
        %v4342 = vunpack.c.h.b16 %v1240
        %v4343 = vunpack.c.l.b16 %v1241
        %v4344 = vunpack.c.h.b16 %v1241
        %v4345 = vunpack.c.l.b16 %v1242
        %v4346 = vunpack.c.h.b16 %v1242
        %v4347 = vunpack.c.l.b16 %v1243
        %v4348 = vunpack.c.h.b16 %v1243
        %v4349 = vunpack.c.l.b16 %v1244
        %v4350 = vunpack.c.h.b16 %v1244
        %v4351 = vunpack.c.l.b16 %v1245
        %v4352 = vunpack.c.h.b16 %v1245
        %v4353 = vunpack.c.l.b16 %v1246
        %v4354 = vunpack.c.h.b16 %v1246
        %v4355 = vunpack.c.l.b16 %v1247
        %v4356 = vunpack.c.h.b16 %v1247
        %v4357 = vunpack.c.l.b16 %v1248
        %v4358 = vunpack.c.h.b16 %v1248
        %v4359 = vunpack.c.l.b16 %v1249
        %v4360 = vunpack.c.h.b16 %v1249
        %v4361 = vunpack.c.l.b16 %v1250
        %v4362 = vunpack.c.h.b16 %v1250
        %v4363 = vunpack.c.l.b16 %v1251
        %v4364 = vunpack.c.h.b16 %v1251
        %v4365 = vunpack.c.l.b16 %v1252
        %v4366 = vunpack.c.h.b16 %v1252
        %v4367 = vunpack.c.l.b16 %v1253
        %v4368 = vunpack.c.h.b16 %v1253
        %v4369 = vunpack.c.l.b16 %v1254
        %v4370 = vunpack.c.h.b16 %v1254
        %v4371 = vunpack.c.l.b16 %v1255
        %v4372 = vunpack.c.h.b16 %v1255
        %v4373 = vunpack.c.l.b16 %v1256
        %v4374 = vunpack.c.h.b16 %v1256
        %v4375 = vunpack.c.l.b16 %v1257
        %v4376 = vunpack.c.h.b16 %v1257
        %v4377 = vunpack.c.l.b16 %v1258
        %v4378 = vunpack.c.h.b16 %v1258
        %v4379 = vunpack.c.l.b16 %v1259
        %v4380 = vunpack.c.h.b16 %v1259
        %v4381 = vunpack.c.l.b16 %v1260
        %v4382 = vunpack.c.h.b16 %v1260
        %v4383 = vunpack.c.l.b16 %v1261
        %v4384 = vunpack.c.h.b16 %v1261
        %v4385 = vunpack.c.l.b16 %v1262
        %v4386 = vunpack.c.h.b16 %v1262
        %v4387 = vunpack.c.l.b16 %v1263
        %v4388 = vunpack.c.h.b16 %v1263
        %v4389 = vunpack.c.l.b16 %v1264
        %v4390 = vunpack.c.h.b16 %v1264
        %v4391 = vunpack.c.l.b16 %v1265
        %v4392 = vunpack.c.h.b16 %v1265
        %v4393 = vunpack.c.l.b16 %v1266
        %v4394 = vunpack.c.h.b16 %v1266
        %v4395 = vunpack.c.l.b16 %v1267
        %v4396 = vunpack.c.h.b16 %v1267
        %v4397 = vunpack.c.l.b16 %v1268
        %v4398 = vunpack.c.h.b16 %v1268
        %v4399 = vunpack.c.l.b16 %v1269
        %v4400 = vunpack.c.h.b16 %v1269
        %v4401 = vunpack.c.l.b16 %v1270
        %v4402 = vunpack.c.h.b16 %v1270
        %v4403 = vunpack.c.l.b16 %v1271
        %v4404 = vunpack.c.h.b16 %v1271
        %v4405 = vunpack.c.l.b16 %v1272
        %v4406 = vunpack.c.h.b16 %v1272
        %v4407 = vunpack.c.l.b16 %v1273
        %v4408 = vunpack.c.h.b16 %v1273
        %v4409 = vunpack.c.l.b16 %v1274
        %v4410 = vunpack.c.h.b16 %v1274
        %v4411 = vunpack.c.l.b16 %v1275
        %v4412 = vunpack.c.h.b16 %v1275
        %v4413 = vunpack.c.l.b16 %v1276
        %v4414 = vunpack.c.h.b16 %v1276
        %v4415 = vunpack.c.l.b16 %v1277
        %v4416 = vunpack.c.h.b16 %v1277
        %v4417 = vunpack.c.l.b16 %v1278
        %v4418 = vunpack.c.h.b16 %v1278
        %v4419 = vunpack.c.l.b16 %v1279
        %v4420 = vunpack.c.h.b16 %v1279
        %v4421 = vunpack.c.l.b16 %v1280
        %v4422 = vunpack.c.h.b16 %v1280
        %v4423 = vunpack.c.l.b16 %v1281
        %v4424 = vunpack.c.h.b16 %v1281
        %v4425 = vunpack.c.l.b16 %v1282
        %v4426 = vunpack.c.h.b16 %v1282
        %v4427 = vunpack.c.l.b16 %v1283
        %v4428 = vunpack.c.h.b16 %v1283
        %v4429 = vunpack.c.l.b16 %v1284
        %v4430 = vunpack.c.h.b16 %v1284
        %v4431 = vunpack.c.l.b16 %v1285
        %v4432 = vunpack.c.h.b16 %v1285
        %v4433 = vunpack.c.l.b16 %v1286
        %v4434 = vunpack.c.h.b16 %v1286
        %v4435 = vunpack.c.l.b16 %v1287
        %v4436 = vunpack.c.h.b16 %v1287
        %v4437 = vunpack.c.l.b16 %v1288
        %v4438 = vunpack.c.h.b16 %v1288
        %v4439 = vunpack.c.l.b16 %v1289
        %v4440 = vunpack.c.h.b16 %v1289
        %v4441 = vunpack.c.l.b16 %v1290
        %v4442 = vunpack.c.h.b16 %v1290
        %v4443 = vunpack.c.l.b16 %v1291
        %v4444 = vunpack.c.h.b16 %v1291
        %v4445 = vunpack.c.l.b16 %v1292
        %v4446 = vunpack.c.h.b16 %v1292
        %v4447 = vunpack.c.l.b16 %v1293
        %v4448 = vunpack.c.h.b16 %v1293
        %v4449 = vunpack.c.l.b16 %v1294
        %v4450 = vunpack.c.h.b16 %v1294
        %v4451 = vunpack.c.l.b16 %v1295
        %v4452 = vunpack.c.h.b16 %v1295
        %v4453 = vunpack.c.l.b16 %v1296
        %v4454 = vunpack.c.h.b16 %v1296
        %v4455 = vunpack.c.l.b16 %v1297
        %v4456 = vunpack.c.h.b16 %v1297
        %v4457 = vunpack.c.l.b16 %v1298
        %v4458 = vunpack.c.h.b16 %v1298
        %v4459 = vunpack.c.l.b16 %v1299
        %v4460 = vunpack.c.h.b16 %v1299
        %v4461 = vunpack.c.l.b16 %v1300
        %v4462 = vunpack.c.h.b16 %v1300
        %v4463 = vunpack.c.l.b16 %v1301
        %v4464 = vunpack.c.h.b16 %v1301
        %v4465 = vunpack.c.l.b16 %v1302
        %v4466 = vunpack.c.h.b16 %v1302
        %v4467 = vunpack.c.l.b16 %v1303
        %v4468 = vunpack.c.h.b16 %v1303
        %v4469 = vunpack.c.l.b16 %v1304
        %v4470 = vunpack.c.h.b16 %v1304
        %v4471 = vunpack.c.l.b16 %v1305
        %v4472 = vunpack.c.h.b16 %v1305
        %v4473 = vunpack.c.l.b16 %v1306
        %v4474 = vunpack.c.h.b16 %v1306
        %v4475 = vunpack.c.l.b16 %v1307
        %v4476 = vunpack.c.h.b16 %v1307
        %v4477 = vunpack.c.l.b16 %v1308
        %v4478 = vunpack.c.h.b16 %v1308
        %v4479 = vunpack.c.l.b16 %v1309
        %v4480 = vunpack.c.h.b16 %v1309
        %v4481 = vunpack.c.l.b16 %v1310
        %v4482 = vunpack.c.h.b16 %v1310
        %v4483 = vunpack.c.l.b16 %v1311
        %v4484 = vunpack.c.h.b16 %v1311
        %v4485 = vunpack.c.l.b16 %v1312
        %v4486 = vunpack.c.h.b16 %v1312
        %v4487 = vunpack.c.l.b16 %v1313
        %v4488 = vunpack.c.h.b16 %v1313
        %v4489 = vunpack.c.l.b16 %v1314
        %v4490 = vunpack.c.h.b16 %v1314
        %v4491 = vunpack.c.l.b16 %v1315
        %v4492 = vunpack.c.h.b16 %v1315
        %v4493 = vunpack.c.l.b16 %v1316
        %v4494 = vunpack.c.h.b16 %v1316
        %v4495 = vunpack.c.l.b16 %v1317
        %v4496 = vunpack.c.h.b16 %v1317
        %v4497 = vunpack.c.l.b16 %v1318
        %v4498 = vunpack.c.h.b16 %v1318
        %v4499 = vunpack.c.l.b16 %v1319
        %v4500 = vunpack.c.h.b16 %v1319
        %v4501 = vunpack.c.l.b16 %v1320
        %v4502 = vunpack.c.h.b16 %v1320
        %v4503 = vunpack.c.l.b16 %v1321
        %v4504 = vunpack.c.h.b16 %v1321
        %v4505 = vunpack.c.l.b16 %v1322
        %v4506 = vunpack.c.h.b16 %v1322
        %v4507 = vunpack.c.l.b16 %v1323
        %v4508 = vunpack.c.h.b16 %v1323
        %v4509 = vunpack.c.l.b16 %v1324
        %v4510 = vunpack.c.h.b16 %v1324
        %v4511 = vunpack.c.l.b16 %v1325
        %v4512 = vunpack.c.h.b16 %v1325
        %v4513 = vunpack.c.l.b16 %v1326
        %v4514 = vunpack.c.h.b16 %v1326
        %v4515 = vunpack.c.l.b16 %v1327
        %v4516 = vunpack.c.h.b16 %v1327
        %v4517 = vunpack.c.l.b16 %v1328
        %v4518 = vunpack.c.h.b16 %v1328
        %v4519 = vunpack.c.l.b16 %v1329
        %v4520 = vunpack.c.h.b16 %v1329
        %v4521 = vunpack.c.l.b16 %v1330
        %v4522 = vunpack.c.h.b16 %v1330
        %v4523 = vunpack.c.l.b16 %v1331
        %v4524 = vunpack.c.h.b16 %v1331
        %v4525 = vunpack.c.l.b16 %v1332
        %v4526 = vunpack.c.h.b16 %v1332
        %v4527 = vunpack.c.l.b16 %v1333
        %v4528 = vunpack.c.h.b16 %v1333
        %v4529 = vunpack.c.l.b16 %v1334
        %v4530 = vunpack.c.h.b16 %v1334
        %v4531 = vunpack.c.l.b16 %v1335
        %v4532 = vunpack.c.h.b16 %v1335
        %v4533 = vunpack.c.l.b16 %v1336
        %v4534 = vunpack.c.h.b16 %v1336
        %v4535 = vunpack.c.l.b16 %v1337
        %v4536 = vunpack.c.h.b16 %v1337
        %v4537 = vunpack.c.l.b16 %v1338
        %v4538 = vunpack.c.h.b16 %v1338
        %v4539 = vunpack.c.l.b16 %v1339
        %v4540 = vunpack.c.h.b16 %v1339
        %v4541 = vunpack.c.l.b16 %v1340
        %v4542 = vunpack.c.h.b16 %v1340
        %v4543 = vunpack.c.l.b16 %v1341
        %v4544 = vunpack.c.h.b16 %v1341
        %v4545 = vunpack.c.l.b16 %v1342
        %v4546 = vunpack.c.h.b16 %v1342
        %v4547 = vunpack.c.l.b16 %v1343
        %v4548 = vunpack.c.h.b16 %v1343
        %v4549 = vunpack.c.l.b16 %v1344
        %v4550 = vunpack.c.h.b16 %v1344
        %v4551 = vunpack.c.l.b16 %v1345
        %v4552 = vunpack.c.h.b16 %v1345
        %v4553 = vunpack.c.l.b16 %v1346
        %v4554 = vunpack.c.h.b16 %v1346
        %v4555 = vunpack.c.l.b16 %v1347
        %v4556 = vunpack.c.h.b16 %v1347
        %v4557 = vunpack.c.l.b16 %v1348
        %v4558 = vunpack.c.h.b16 %v1348
        %v4559 = vunpack.c.l.b16 %v1349
        %v4560 = vunpack.c.h.b16 %v1349
        %v4561 = vunpack.c.l.b16 %v1350
        %v4562 = vunpack.c.h.b16 %v1350
        %v4563 = vunpack.c.l.b16 %v1351
        %v4564 = vunpack.c.h.b16 %v1351
        %v4565 = vunpack.c.l.b16 %v1352
        %v4566 = vunpack.c.h.b16 %v1352
        %v4567 = vunpack.c.l.b16 %v1353
        %v4568 = vunpack.c.h.b16 %v1353
        %v4569 = vunpack.c.l.b16 %v1354
        %v4570 = vunpack.c.h.b16 %v1354
        %v4571 = vunpack.c.l.b16 %v1355
        %v4572 = vunpack.c.h.b16 %v1355
        %v4573 = vunpack.c.l.b16 %v1356
        %v4574 = vunpack.c.h.b16 %v1356
        %v4575 = vunpack.c.l.b16 %v1357
        %v4576 = vunpack.c.h.b16 %v1357
        %v4577 = vunpack.c.l.b16 %v1358
        %v4578 = vunpack.c.h.b16 %v1358
        %v4579 = vunpack.c.l.b16 %v1359
        %v4580 = vunpack.c.h.b16 %v1359
        %v4581 = vunpack.c.l.b16 %v1360
        %v4582 = vunpack.c.h.b16 %v1360
        %v4583 = vunpack.c.l.b16 %v1361
        %v4584 = vunpack.c.h.b16 %v1361
        %v4585 = vunpack.c.l.b16 %v1362
        %v4586 = vunpack.c.h.b16 %v1362
        %v4587 = vunpack.c.l.b16 %v1363
        %v4588 = vunpack.c.h.b16 %v1363
        %v4589 = vunpack.c.l.b16 %v1364
        %v4590 = vunpack.c.h.b16 %v1364
        %v4591 = vunpack.c.l.b16 %v1365
        %v4592 = vunpack.c.h.b16 %v1365
        %v4593 = vunpack.c.l.b16 %v1366
        %v4594 = vunpack.c.h.b16 %v1366
        %v4595 = vunpack.c.l.b16 %v1367
        %v4596 = vunpack.c.h.b16 %v1367
        %v4597 = vunpack.c.l.b16 %v1368
        %v4598 = vunpack.c.h.b16 %v1368
        %v4599 = vunpack.c.l.b16 %v1369
        %v4600 = vunpack.c.h.b16 %v1369
        %v4601 = vunpack.c.l.b16 %v1370
        %v4602 = vunpack.c.h.b16 %v1370
        %v4603 = vunpack.c.l.b16 %v1371
        %v4604 = vunpack.c.h.b16 %v1371
        %v4605 = vunpack.c.l.b16 %v1372
        %v4606 = vunpack.c.h.b16 %v1372
        %v4607 = vunpack.c.l.b16 %v1373
        %v4608 = vunpack.c.h.b16 %v1373
        %v4609 = vunpack.c.l.b16 %v1374
        %v4610 = vunpack.c.h.b16 %v1374
        %v4611 = vunpack.c.l.b16 %v1375
        %v4612 = vunpack.c.h.b16 %v1375
        %v4613 = vunpack.c.l.b16 %v1376
        %v4614 = vunpack.c.h.b16 %v1376
        %v4615 = vunpack.c.l.b16 %v1377
        %v4616 = vunpack.c.h.b16 %v1377
        %v4617 = vunpack.c.l.b16 %v1378
        %v4618 = vunpack.c.h.b16 %v1378
        %v4619 = vunpack.c.l.b16 %v1379
        %v4620 = vunpack.c.h.b16 %v1379
        %v4621 = vunpack.c.l.b16 %v1380
        %v4622 = vunpack.c.h.b16 %v1380
        %v4623 = vunpack.c.l.b16 %v1381
        %v4624 = vunpack.c.h.b16 %v1381
        %v4625 = vunpack.c.l.b16 %v1382
        %v4626 = vunpack.c.h.b16 %v1382
        %v4627 = vunpack.c.l.b16 %v1383
        %v4628 = vunpack.c.h.b16 %v1383
        %v4629 = vunpack.c.l.b16 %v1384
        %v4630 = vunpack.c.h.b16 %v1384
        %v4631 = vunpack.c.l.b16 %v1385
        %v4632 = vunpack.c.h.b16 %v1385
        %v4633 = vunpack.c.l.b16 %v1386
        %v4634 = vunpack.c.h.b16 %v1386
        %v4635 = vunpack.c.l.b16 %v1387
        %v4636 = vunpack.c.h.b16 %v1387
        %v4637 = vunpack.c.l.b16 %v1388
        %v4638 = vunpack.c.h.b16 %v1388
        %v4639 = vunpack.c.l.b16 %v1389
        %v4640 = vunpack.c.h.b16 %v1389
        %v4641 = vunpack.c.l.b16 %v1390
        %v4642 = vunpack.c.h.b16 %v1390
        %v4643 = vunpack.c.l.b16 %v1391
        %v4644 = vunpack.c.h.b16 %v1391
        %v4645 = vunpack.c.l.b16 %v1392
        %v4646 = vunpack.c.h.b16 %v1392
        %v4647 = vpack.c.b16 %v2603, %v2599
        %v4648 = vpack.c.b16 %v2604, %v2600
        %v4649 = vpack.c.b16 %v2605, %v2601
        %v4650 = vpack.c.b16 %v2606, %v2602
        %v4651 = vpack.c.b16 %v2611, %v2607
        %v4652 = vpack.c.b16 %v2612, %v2608
        %v4653 = vpack.c.b16 %v2613, %v2609
        %v4654 = vpack.c.b16 %v2614, %v2610
        %v4655 = vpack.c.b16 %v2619, %v2615
        %v4656 = vpack.c.b16 %v2620, %v2616
        %v4657 = vpack.c.b16 %v2621, %v2617
        %v4658 = vpack.c.b16 %v2622, %v2618
        %v4659 = vpack.c.b16 %v2627, %v2623
        %v4660 = vpack.c.b16 %v2628, %v2624
        %v4661 = vpack.c.b16 %v2629, %v2625
        %v4662 = vpack.c.b16 %v2630, %v2626
        %v4663 = vpack.c.b16 %v2635, %v2631
        %v4664 = vpack.c.b16 %v2636, %v2632
        %v4665 = vpack.c.b16 %v2637, %v2633
        %v4666 = vpack.c.b16 %v2638, %v2634
        %v4667 = vpack.c.b16 %v2643, %v2639
        %v4668 = vpack.c.b16 %v2644, %v2640
        %v4669 = vpack.c.b16 %v2645, %v2641
        %v4670 = vpack.c.b16 %v2646, %v2642
        %v4671 = vpack.c.b16 %v2651, %v2647
        %v4672 = vpack.c.b16 %v2652, %v2648
        %v4673 = vpack.c.b16 %v2653, %v2649
        %v4674 = vpack.c.b16 %v2654, %v2650
        %v4675 = vpack.c.b16 %v2659, %v2655
        %v4676 = vpack.c.b16 %v2660, %v2656
        %v4677 = vpack.c.b16 %v2661, %v2657
        %v4678 = vpack.c.b16 %v2662, %v2658
        %v4679 = vpack.c.b16 %v2667, %v2663
        %v4680 = vpack.c.b16 %v2668, %v2664
        %v4681 = vpack.c.b16 %v2669, %v2665
        %v4682 = vpack.c.b16 %v2670, %v2666
        %v4683 = vpack.c.b16 %v2675, %v2671
        %v4684 = vpack.c.b16 %v2676, %v2672
        %v4685 = vpack.c.b16 %v2677, %v2673
        %v4686 = vpack.c.b16 %v2678, %v2674
        %v4687 = vpack.c.b16 %v2683, %v2679
        %v4688 = vpack.c.b16 %v2684, %v2680
        %v4689 = vpack.c.b16 %v2685, %v2681
        %v4690 = vpack.c.b16 %v2686, %v2682
        %v4691 = vpack.c.b16 %v2691, %v2687
        %v4692 = vpack.c.b16 %v2692, %v2688
        %v4693 = vpack.c.b16 %v2693, %v2689
        %v4694 = vpack.c.b16 %v2694, %v2690
        %v4695 = vpack.c.b16 %v2699, %v2695
        %v4696 = vpack.c.b16 %v2700, %v2696
        %v4697 = vpack.c.b16 %v2701, %v2697
        %v4698 = vpack.c.b16 %v2702, %v2698
        %v4699 = vpack.c.b16 %v2707, %v2703
        %v4700 = vpack.c.b16 %v2708, %v2704
        %v4701 = vpack.c.b16 %v2709, %v2705
        %v4702 = vpack.c.b16 %v2710, %v2706
        %v4703 = vpack.c.b16 %v2715, %v2711
        %v4704 = vpack.c.b16 %v2716, %v2712
        %v4705 = vpack.c.b16 %v2717, %v2713
        %v4706 = vpack.c.b16 %v2718, %v2714
        %v4707 = vpack.c.b16 %v2723, %v2719
        %v4708 = vpack.c.b16 %v2724, %v2720
        %v4709 = vpack.c.b16 %v2725, %v2721
        %v4710 = vpack.c.b16 %v2726, %v2722
        %v4711 = vpack.c.b16 %v2731, %v2727
        %v4712 = vpack.c.b16 %v2732, %v2728
        %v4713 = vpack.c.b16 %v2733, %v2729
        %v4714 = vpack.c.b16 %v2734, %v2730
        %v4715 = vpack.c.b16 %v2739, %v2735
        %v4716 = vpack.c.b16 %v2740, %v2736
        %v4717 = vpack.c.b16 %v2741, %v2737
        %v4718 = vpack.c.b16 %v2742, %v2738
        %v4719 = vpack.c.b16 %v2747, %v2743
        %v4720 = vpack.c.b16 %v2748, %v2744
        %v4721 = vpack.c.b16 %v2749, %v2745
        %v4722 = vpack.c.b16 %v2750, %v2746
        %v4723 = vpack.c.b16 %v2755, %v2751
        %v4724 = vpack.c.b16 %v2756, %v2752
        %v4725 = vpack.c.b16 %v2757, %v2753
        %v4726 = vpack.c.b16 %v2758, %v2754
        %v4727 = vpack.c.b16 %v2763, %v2759
        %v4728 = vpack.c.b16 %v2764, %v2760
        %v4729 = vpack.c.b16 %v2765, %v2761
        %v4730 = vpack.c.b16 %v2766, %v2762
        %v4731 = vpack.c.b16 %v2771, %v2767
        %v4732 = vpack.c.b16 %v2772, %v2768
        %v4733 = vpack.c.b16 %v2773, %v2769
        %v4734 = vpack.c.b16 %v2774, %v2770
        %v4735 = vpack.c.b16 %v2779, %v2775
        %v4736 = vpack.c.b16 %v2780, %v2776
        %v4737 = vpack.c.b16 %v2781, %v2777
        %v4738 = vpack.c.b16 %v2782, %v2778
        %v4739 = vpack.c.b16 %v2787, %v2783
        %v4740 = vpack.c.b16 %v2788, %v2784
        %v4741 = vpack.c.b16 %v2789, %v2785
        %v4742 = vpack.c.b16 %v2790, %v2786
        %v4743 = vpack.c.b16 %v2795, %v2791
        %v4744 = vpack.c.b16 %v2796, %v2792
        %v4745 = vpack.c.b16 %v2797, %v2793
        %v4746 = vpack.c.b16 %v2798, %v2794
        %v4747 = vpack.c.b16 %v2803, %v2799
        %v4748 = vpack.c.b16 %v2804, %v2800
        %v4749 = vpack.c.b16 %v2805, %v2801
        %v4750 = vpack.c.b16 %v2806, %v2802
        %v4751 = vpack.c.b16 %v2811, %v2807
        %v4752 = vpack.c.b16 %v2812, %v2808
        %v4753 = vpack.c.b16 %v2813, %v2809
        %v4754 = vpack.c.b16 %v2814, %v2810
        %v4755 = vpack.c.b16 %v2819, %v2815
        %v4756 = vpack.c.b16 %v2820, %v2816
        %v4757 = vpack.c.b16 %v2821, %v2817
        %v4758 = vpack.c.b16 %v2822, %v2818
        %v4759 = vpack.c.b16 %v2827, %v2823
        %v4760 = vpack.c.b16 %v2828, %v2824
        %v4761 = vpack.c.b16 %v2829, %v2825
        %v4762 = vpack.c.b16 %v2830, %v2826
        %v4763 = vpack.c.b16 %v2835, %v2831
        %v4764 = vpack.c.b16 %v2836, %v2832
        %v4765 = vpack.c.b16 %v2837, %v2833
        %v4766 = vpack.c.b16 %v2838, %v2834
        %v4767 = vpack.c.b16 %v2843, %v2839
        %v4768 = vpack.c.b16 %v2844, %v2840
        %v4769 = vpack.c.b16 %v2845, %v2841
        %v4770 = vpack.c.b16 %v2846, %v2842
        %v4771 = vpack.c.b16 %v2851, %v2847
        %v4772 = vpack.c.b16 %v2852, %v2848
        %v4773 = vpack.c.b16 %v2853, %v2849
        %v4774 = vpack.c.b16 %v2854, %v2850
        %v4775 = vpack.c.b16 %v2859, %v2855
        %v4776 = vpack.c.b16 %v2860, %v2856
        %v4777 = vpack.c.b16 %v2861, %v2857
        %v4778 = vpack.c.b16 %v2862, %v2858
        %v4779 = vpack.c.b16 %v2867, %v2863
        %v4780 = vpack.c.b16 %v2868, %v2864
        %v4781 = vpack.c.b16 %v2869, %v2865
        %v4782 = vpack.c.b16 %v2870, %v2866
        %v4783 = vpack.c.b16 %v2875, %v2871
        %v4784 = vpack.c.b16 %v2876, %v2872
        %v4785 = vpack.c.b16 %v2877, %v2873
        %v4786 = vpack.c.b16 %v2878, %v2874
        %v4787 = vpack.c.b16 %v2883, %v2879
        %v4788 = vpack.c.b16 %v2884, %v2880
        %v4789 = vpack.c.b16 %v2885, %v2881
        %v4790 = vpack.c.b16 %v2886, %v2882
        %v4791 = vpack.c.b16 %v2891, %v2887
        %v4792 = vpack.c.b16 %v2892, %v2888
        %v4793 = vpack.c.b16 %v2893, %v2889
        %v4794 = vpack.c.b16 %v2894, %v2890
        %v4795 = vpack.c.b16 %v2899, %v2895
        %v4796 = vpack.c.b16 %v2900, %v2896
        %v4797 = vpack.c.b16 %v2901, %v2897
        %v4798 = vpack.c.b16 %v2902, %v2898
        %v4799 = vpack.c.b16 %v2907, %v2903
        %v4800 = vpack.c.b16 %v2908, %v2904
        %v4801 = vpack.c.b16 %v2909, %v2905
        %v4802 = vpack.c.b16 %v2910, %v2906
        %v4803 = vpack.c.b16 %v2915, %v2911
        %v4804 = vpack.c.b16 %v2916, %v2912
        %v4805 = vpack.c.b16 %v2917, %v2913
        %v4806 = vpack.c.b16 %v2918, %v2914
        %v4807 = vpack.c.b16 %v2923, %v2919
        %v4808 = vpack.c.b16 %v2924, %v2920
        %v4809 = vpack.c.b16 %v2925, %v2921
        %v4810 = vpack.c.b16 %v2926, %v2922
        %v4811 = vpack.c.b16 %v2931, %v2927
        %v4812 = vpack.c.b16 %v2932, %v2928
        %v4813 = vpack.c.b16 %v2933, %v2929
        %v4814 = vpack.c.b16 %v2934, %v2930
        %v4815 = vpack.c.b16 %v2939, %v2935
        %v4816 = vpack.c.b16 %v2940, %v2936
        %v4817 = vpack.c.b16 %v2941, %v2937
        %v4818 = vpack.c.b16 %v2942, %v2938
        %v4819 = vpack.c.b16 %v2947, %v2943
        %v4820 = vpack.c.b16 %v2948, %v2944
        %v4821 = vpack.c.b16 %v2949, %v2945
        %v4822 = vpack.c.b16 %v2950, %v2946
        %v4823 = vpack.c.b16 %v2955, %v2951
        %v4824 = vpack.c.b16 %v2956, %v2952
        %v4825 = vpack.c.b16 %v2957, %v2953
        %v4826 = vpack.c.b16 %v2958, %v2954
        %v4827 = vpack.c.b16 %v2963, %v2959
        %v4828 = vpack.c.b16 %v2964, %v2960
        %v4829 = vpack.c.b16 %v2965, %v2961
        %v4830 = vpack.c.b16 %v2966, %v2962
        %v4831 = vpack.c.b16 %v2971, %v2967
        %v4832 = vpack.c.b16 %v2972, %v2968
        %v4833 = vpack.c.b16 %v2973, %v2969
        %v4834 = vpack.c.b16 %v2974, %v2970
        %v4835 = vpack.c.b16 %v2979, %v2975
        %v4836 = vpack.c.b16 %v2980, %v2976
        %v4837 = vpack.c.b16 %v2981, %v2977
        %v4838 = vpack.c.b16 %v2982, %v2978
        %v4839 = vpack.c.b16 %v2987, %v2983
        %v4840 = vpack.c.b16 %v2988, %v2984
        %v4841 = vpack.c.b16 %v2989, %v2985
        %v4842 = vpack.c.b16 %v2990, %v2986
        %v4843 = vpack.c.b16 %v2995, %v2991
        %v4844 = vpack.c.b16 %v2996, %v2992
        %v4845 = vpack.c.b16 %v2997, %v2993
        %v4846 = vpack.c.b16 %v2998, %v2994
        %v4847 = vpack.c.b16 %v3003, %v2999
        %v4848 = vpack.c.b16 %v3004, %v3000
        %v4849 = vpack.c.b16 %v3005, %v3001
        %v4850 = vpack.c.b16 %v3006, %v3002
        %v4851 = vpack.c.b16 %v3011, %v3007
        %v4852 = vpack.c.b16 %v3012, %v3008
        %v4853 = vpack.c.b16 %v3013, %v3009
        %v4854 = vpack.c.b16 %v3014, %v3010
        %v4855 = vpack.c.b16 %v3019, %v3015
        %v4856 = vpack.c.b16 %v3020, %v3016
        %v4857 = vpack.c.b16 %v3021, %v3017
        %v4858 = vpack.c.b16 %v3022, %v3018
        %v4859 = vpack.c.b16 %v3027, %v3023
        %v4860 = vpack.c.b16 %v3028, %v3024
        %v4861 = vpack.c.b16 %v3029, %v3025
        %v4862 = vpack.c.b16 %v3030, %v3026
        %v4863 = vpack.c.b16 %v3035, %v3031
        %v4864 = vpack.c.b16 %v3036, %v3032
        %v4865 = vpack.c.b16 %v3037, %v3033
        %v4866 = vpack.c.b16 %v3038, %v3034
        %v4867 = vpack.c.b16 %v3043, %v3039
        %v4868 = vpack.c.b16 %v3044, %v3040
        %v4869 = vpack.c.b16 %v3045, %v3041
        %v4870 = vpack.c.b16 %v3046, %v3042
        %v4871 = vpack.c.b16 %v3051, %v3047
        %v4872 = vpack.c.b16 %v3052, %v3048
        %v4873 = vpack.c.b16 %v3053, %v3049
        %v4874 = vpack.c.b16 %v3054, %v3050
        %v4875 = vpack.c.b16 %v3059, %v3055
        %v4876 = vpack.c.b16 %v3060, %v3056
        %v4877 = vpack.c.b16 %v3061, %v3057
        %v4878 = vpack.c.b16 %v3062, %v3058
        %v4879 = vpack.c.b16 %v3067, %v3063
        %v4880 = vpack.c.b16 %v3068, %v3064
        %v4881 = vpack.c.b16 %v3069, %v3065
        %v4882 = vpack.c.b16 %v3070, %v3066
        %v4883 = vpack.c.b16 %v3075, %v3071
        %v4884 = vpack.c.b16 %v3076, %v3072
        %v4885 = vpack.c.b16 %v3077, %v3073
        %v4886 = vpack.c.b16 %v3078, %v3074
        %v4887 = vpack.c.b16 %v3083, %v3079
        %v4888 = vpack.c.b16 %v3084, %v3080
        %v4889 = vpack.c.b16 %v3085, %v3081
        %v4890 = vpack.c.b16 %v3086, %v3082
        %v4891 = vpack.c.b16 %v3091, %v3087
        %v4892 = vpack.c.b16 %v3092, %v3088
        %v4893 = vpack.c.b16 %v3093, %v3089
        %v4894 = vpack.c.b16 %v3094, %v3090
        %v4895 = vpack.c.b16 %v3099, %v3095
        %v4896 = vpack.c.b16 %v3100, %v3096
        %v4897 = vpack.c.b16 %v3101, %v3097
        %v4898 = vpack.c.b16 %v3102, %v3098
        %v4899 = vpack.c.b16 %v3107, %v3103
        %v4900 = vpack.c.b16 %v3108, %v3104
        %v4901 = vpack.c.b16 %v3109, %v3105
        %v4902 = vpack.c.b16 %v3110, %v3106
        %v4903 = vpack.c.b16 %v3115, %v3111
        %v4904 = vpack.c.b16 %v3116, %v3112
        %v4905 = vpack.c.b16 %v3117, %v3113
        %v4906 = vpack.c.b16 %v3118, %v3114
        %v4907 = vpack.c.b16 %v3123, %v3119
        %v4908 = vpack.c.b16 %v3124, %v3120
        %v4909 = vpack.c.b16 %v3125, %v3121
        %v4910 = vpack.c.b16 %v3126, %v3122
        %v4911 = vpack.c.b16 %v3131, %v3127
        %v4912 = vpack.c.b16 %v3132, %v3128
        %v4913 = vpack.c.b16 %v3133, %v3129
        %v4914 = vpack.c.b16 %v3134, %v3130
        %v4915 = vpack.c.b16 %v3139, %v3135
        %v4916 = vpack.c.b16 %v3140, %v3136
        %v4917 = vpack.c.b16 %v3141, %v3137
        %v4918 = vpack.c.b16 %v3142, %v3138
        %v4919 = vpack.c.b16 %v3147, %v3143
        %v4920 = vpack.c.b16 %v3148, %v3144
        %v4921 = vpack.c.b16 %v3149, %v3145
        %v4922 = vpack.c.b16 %v3150, %v3146
        %v4923 = vpack.c.b16 %v3155, %v3151
        %v4924 = vpack.c.b16 %v3156, %v3152
        %v4925 = vpack.c.b16 %v3157, %v3153
        %v4926 = vpack.c.b16 %v3158, %v3154
        %v4927 = vpack.c.b16 %v3163, %v3159
        %v4928 = vpack.c.b16 %v3164, %v3160
        %v4929 = vpack.c.b16 %v3165, %v3161
        %v4930 = vpack.c.b16 %v3166, %v3162
        %v4931 = vpack.c.b16 %v3171, %v3167
        %v4932 = vpack.c.b16 %v3172, %v3168
        %v4933 = vpack.c.b16 %v3173, %v3169
        %v4934 = vpack.c.b16 %v3174, %v3170
        %v4935 = vpack.c.b16 %v3179, %v3175
        %v4936 = vpack.c.b16 %v3180, %v3176
        %v4937 = vpack.c.b16 %v3181, %v3177
        %v4938 = vpack.c.b16 %v3182, %v3178
        %v4939 = vpack.c.b16 %v3187, %v3183
        %v4940 = vpack.c.b16 %v3188, %v3184
        %v4941 = vpack.c.b16 %v3189, %v3185
        %v4942 = vpack.c.b16 %v3190, %v3186
        %v4943 = vpack.c.b16 %v3195, %v3191
        %v4944 = vpack.c.b16 %v3196, %v3192
        %v4945 = vpack.c.b16 %v3197, %v3193
        %v4946 = vpack.c.b16 %v3198, %v3194
        %v4947 = vpack.c.b16 %v3203, %v3199
        %v4948 = vpack.c.b16 %v3204, %v3200
        %v4949 = vpack.c.b16 %v3205, %v3201
        %v4950 = vpack.c.b16 %v3206, %v3202
        %v4951 = vpack.c.b16 %v3211, %v3207
        %v4952 = vpack.c.b16 %v3212, %v3208
        %v4953 = vpack.c.b16 %v3213, %v3209
        %v4954 = vpack.c.b16 %v3214, %v3210
        %v4955 = vpack.c.b16 %v3219, %v3215
        %v4956 = vpack.c.b16 %v3220, %v3216
        %v4957 = vpack.c.b16 %v3221, %v3217
        %v4958 = vpack.c.b16 %v3222, %v3218
        %v4959 = vpack.c.b16 %v3227, %v3223
        %v4960 = vpack.c.b16 %v3228, %v3224
        %v4961 = vpack.c.b16 %v3229, %v3225
        %v4962 = vpack.c.b16 %v3230, %v3226
        %v4963 = vpack.c.b16 %v3235, %v3231
        %v4964 = vpack.c.b16 %v3236, %v3232
        %v4965 = vpack.c.b16 %v3237, %v3233
        %v4966 = vpack.c.b16 %v3238, %v3234
        %v4967 = vpack.c.b16 %v3243, %v3239
        %v4968 = vpack.c.b16 %v3244, %v3240
        %v4969 = vpack.c.b16 %v3245, %v3241
        %v4970 = vpack.c.b16 %v3246, %v3242
        %v4971 = vpack.c.b16 %v3251, %v3247
        %v4972 = vpack.c.b16 %v3252, %v3248
        %v4973 = vpack.c.b16 %v3253, %v3249
        %v4974 = vpack.c.b16 %v3254, %v3250
        %v4975 = vpack.c.b16 %v3259, %v3255
        %v4976 = vpack.c.b16 %v3260, %v3256
        %v4977 = vpack.c.b16 %v3261, %v3257
        %v4978 = vpack.c.b16 %v3262, %v3258
        %v4979 = vpack.c.b16 %v3267, %v3263
        %v4980 = vpack.c.b16 %v3268, %v3264
        %v4981 = vpack.c.b16 %v3269, %v3265
        %v4982 = vpack.c.b16 %v3270, %v3266
        %v4983 = vpack.c.b16 %v3275, %v3271
        %v4984 = vpack.c.b16 %v3276, %v3272
        %v4985 = vpack.c.b16 %v3277, %v3273
        %v4986 = vpack.c.b16 %v3278, %v3274
        %v4987 = vpack.c.b16 %v3283, %v3279
        %v4988 = vpack.c.b16 %v3284, %v3280
        %v4989 = vpack.c.b16 %v3285, %v3281
        %v4990 = vpack.c.b16 %v3286, %v3282
        %v4991 = vpack.c.b16 %v3291, %v3287
        %v4992 = vpack.c.b16 %v3292, %v3288
        %v4993 = vpack.c.b16 %v3293, %v3289
        %v4994 = vpack.c.b16 %v3294, %v3290
        %v4995 = vpack.c.b16 %v3299, %v3295
        %v4996 = vpack.c.b16 %v3300, %v3296
        %v4997 = vpack.c.b16 %v3301, %v3297
        %v4998 = vpack.c.b16 %v3302, %v3298
        %v4999 = vpack.c.b16 %v3307, %v3303
        %v5000 = vpack.c.b16 %v3308, %v3304
        %v5001 = vpack.c.b16 %v3309, %v3305
        %v5002 = vpack.c.b16 %v3310, %v3306
        %v5003 = vpack.c.b16 %v3315, %v3311
        %v5004 = vpack.c.b16 %v3316, %v3312
        %v5005 = vpack.c.b16 %v3317, %v3313
        %v5006 = vpack.c.b16 %v3318, %v3314
        %v5007 = vpack.c.b16 %v3323, %v3319
        %v5008 = vpack.c.b16 %v3324, %v3320
        %v5009 = vpack.c.b16 %v3325, %v3321
        %v5010 = vpack.c.b16 %v3326, %v3322
        %v5011 = vpack.c.b16 %v3331, %v3327
        %v5012 = vpack.c.b16 %v3332, %v3328
        %v5013 = vpack.c.b16 %v3333, %v3329
        %v5014 = vpack.c.b16 %v3334, %v3330
        %v5015 = vpack.c.b16 %v3339, %v3335
        %v5016 = vpack.c.b16 %v3340, %v3336
        %v5017 = vpack.c.b16 %v3341, %v3337
        %v5018 = vpack.c.b16 %v3342, %v3338
        %v5019 = vpack.c.b16 %v3347, %v3343
        %v5020 = vpack.c.b16 %v3348, %v3344
        %v5021 = vpack.c.b16 %v3349, %v3345
        %v5022 = vpack.c.b16 %v3350, %v3346
        %v5023 = vpack.c.b16 %v3355, %v3351
        %v5024 = vpack.c.b16 %v3356, %v3352
        %v5025 = vpack.c.b16 %v3357, %v3353
        %v5026 = vpack.c.b16 %v3358, %v3354
        %v5027 = vpack.c.b16 %v3363, %v3359
        %v5028 = vpack.c.b16 %v3364, %v3360
        %v5029 = vpack.c.b16 %v3365, %v3361
        %v5030 = vpack.c.b16 %v3366, %v3362
        %v5031 = vpack.c.b16 %v3371, %v3367
        %v5032 = vpack.c.b16 %v3372, %v3368
        %v5033 = vpack.c.b16 %v3373, %v3369
        %v5034 = vpack.c.b16 %v3374, %v3370
        %v5035 = vpack.c.b16 %v3379, %v3375
        %v5036 = vpack.c.b16 %v3380, %v3376
        %v5037 = vpack.c.b16 %v3381, %v3377
        %v5038 = vpack.c.b16 %v3382, %v3378
        %v5039 = vpack.c.b16 %v3387, %v3383
        %v5040 = vpack.c.b16 %v3388, %v3384
        %v5041 = vpack.c.b16 %v3389, %v3385
        %v5042 = vpack.c.b16 %v3390, %v3386
        %v5043 = vpack.c.b16 %v3395, %v3391
        %v5044 = vpack.c.b16 %v3396, %v3392
        %v5045 = vpack.c.b16 %v3397, %v3393
        %v5046 = vpack.c.b16 %v3398, %v3394
        %v5047 = vpack.c.b16 %v3403, %v3399
        %v5048 = vpack.c.b16 %v3404, %v3400
        %v5049 = vpack.c.b16 %v3405, %v3401
        %v5050 = vpack.c.b16 %v3406, %v3402
        %v5051 = vpack.c.b16 %v3411, %v3407
        %v5052 = vpack.c.b16 %v3412, %v3408
        %v5053 = vpack.c.b16 %v3413, %v3409
        %v5054 = vpack.c.b16 %v3414, %v3410
        %v5055 = vpack.c.b16 %v3419, %v3415
        %v5056 = vpack.c.b16 %v3420, %v3416
        %v5057 = vpack.c.b16 %v3421, %v3417
        %v5058 = vpack.c.b16 %v3422, %v3418
        %v5059 = vpack.c.b16 %v3427, %v3423
        %v5060 = vpack.c.b16 %v3428, %v3424
        %v5061 = vpack.c.b16 %v3429, %v3425
        %v5062 = vpack.c.b16 %v3430, %v3426
        %v5063 = vpack.c.b16 %v3435, %v3431
        %v5064 = vpack.c.b16 %v3436, %v3432
        %v5065 = vpack.c.b16 %v3437, %v3433
        %v5066 = vpack.c.b16 %v3438, %v3434
        %v5067 = vpack.c.b16 %v3443, %v3439
        %v5068 = vpack.c.b16 %v3444, %v3440
        %v5069 = vpack.c.b16 %v3445, %v3441
        %v5070 = vpack.c.b16 %v3446, %v3442
        %v5071 = vpack.c.b16 %v3451, %v3447
        %v5072 = vpack.c.b16 %v3452, %v3448
        %v5073 = vpack.c.b16 %v3453, %v3449
        %v5074 = vpack.c.b16 %v3454, %v3450
        %v5075 = vpack.c.b16 %v3459, %v3455
        %v5076 = vpack.c.b16 %v3460, %v3456
        %v5077 = vpack.c.b16 %v3461, %v3457
        %v5078 = vpack.c.b16 %v3462, %v3458
        %v5079 = vpack.c.b16 %v3467, %v3463
        %v5080 = vpack.c.b16 %v3468, %v3464
        %v5081 = vpack.c.b16 %v3469, %v3465
        %v5082 = vpack.c.b16 %v3470, %v3466
        %v5083 = vpack.c.b16 %v3475, %v3471
        %v5084 = vpack.c.b16 %v3476, %v3472
        %v5085 = vpack.c.b16 %v3477, %v3473
        %v5086 = vpack.c.b16 %v3478, %v3474
        %v5087 = vpack.c.b16 %v3483, %v3479
        %v5088 = vpack.c.b16 %v3484, %v3480
        %v5089 = vpack.c.b16 %v3485, %v3481
        %v5090 = vpack.c.b16 %v3486, %v3482
        %v5091 = vpack.c.b16 %v3491, %v3487
        %v5092 = vpack.c.b16 %v3492, %v3488
        %v5093 = vpack.c.b16 %v3493, %v3489
        %v5094 = vpack.c.b16 %v3494, %v3490
        %v5095 = vpack.c.b16 %v3499, %v3495
        %v5096 = vpack.c.b16 %v3500, %v3496
        %v5097 = vpack.c.b16 %v3501, %v3497
        %v5098 = vpack.c.b16 %v3502, %v3498
        %v5099 = vpack.c.b16 %v3507, %v3503
        %v5100 = vpack.c.b16 %v3508, %v3504
        %v5101 = vpack.c.b16 %v3509, %v3505
        %v5102 = vpack.c.b16 %v3510, %v3506
        %v5103 = vpack.c.b16 %v3515, %v3511
        %v5104 = vpack.c.b16 %v3516, %v3512
        %v5105 = vpack.c.b16 %v3517, %v3513
        %v5106 = vpack.c.b16 %v3518, %v3514
        %v5107 = vpack.c.b16 %v3523, %v3519
        %v5108 = vpack.c.b16 %v3524, %v3520
        %v5109 = vpack.c.b16 %v3525, %v3521
        %v5110 = vpack.c.b16 %v3526, %v3522
        %v5111 = vpack.c.b16 %v3531, %v3527
        %v5112 = vpack.c.b16 %v3532, %v3528
        %v5113 = vpack.c.b16 %v3533, %v3529
        %v5114 = vpack.c.b16 %v3534, %v3530
        %v5115 = vpack.c.b16 %v3539, %v3535
        %v5116 = vpack.c.b16 %v3540, %v3536
        %v5117 = vpack.c.b16 %v3541, %v3537
        %v5118 = vpack.c.b16 %v3542, %v3538
        %v5119 = vpack.c.b16 %v3547, %v3543
        %v5120 = vpack.c.b16 %v3548, %v3544
        %v5121 = vpack.c.b16 %v3549, %v3545
        %v5122 = vpack.c.b16 %v3550, %v3546
        %v5123 = vpack.c.b16 %v3555, %v3551
        %v5124 = vpack.c.b16 %v3556, %v3552
        %v5125 = vpack.c.b16 %v3557, %v3553
        %v5126 = vpack.c.b16 %v3558, %v3554
        %v5127 = vpack.c.b16 %v3563, %v3559
        %v5128 = vpack.c.b16 %v3564, %v3560
        %v5129 = vpack.c.b16 %v3565, %v3561
        %v5130 = vpack.c.b16 %v3566, %v3562
        %v5131 = vpack.c.b16 %v3571, %v3567
        %v5132 = vpack.c.b16 %v3572, %v3568
        %v5133 = vpack.c.b16 %v3573, %v3569
        %v5134 = vpack.c.b16 %v3574, %v3570
        %v5135 = vpack.c.b16 %v3579, %v3575
        %v5136 = vpack.c.b16 %v3580, %v3576
        %v5137 = vpack.c.b16 %v3581, %v3577
        %v5138 = vpack.c.b16 %v3582, %v3578
        %v5139 = vpack.c.b16 %v3587, %v3583
        %v5140 = vpack.c.b16 %v3588, %v3584
        %v5141 = vpack.c.b16 %v3589, %v3585
        %v5142 = vpack.c.b16 %v3590, %v3586
        %v5143 = vpack.c.b16 %v3595, %v3591
        %v5144 = vpack.c.b16 %v3596, %v3592
        %v5145 = vpack.c.b16 %v3597, %v3593
        %v5146 = vpack.c.b16 %v3598, %v3594
        %v5147 = vpack.c.b16 %v3603, %v3599
        %v5148 = vpack.c.b16 %v3604, %v3600
        %v5149 = vpack.c.b16 %v3605, %v3601
        %v5150 = vpack.c.b16 %v3606, %v3602
        %v5151 = vpack.c.b16 %v3611, %v3607
        %v5152 = vpack.c.b16 %v3612, %v3608
        %v5153 = vpack.c.b16 %v3613, %v3609
        %v5154 = vpack.c.b16 %v3614, %v3610
        %v5155 = vpack.c.b16 %v3619, %v3615
        %v5156 = vpack.c.b16 %v3620, %v3616
        %v5157 = vpack.c.b16 %v3621, %v3617
        %v5158 = vpack.c.b16 %v3622, %v3618
        %v5159 = vpack.c.b16 %v3627, %v3623
        %v5160 = vpack.c.b16 %v3628, %v3624
        %v5161 = vpack.c.b16 %v3629, %v3625
        %v5162 = vpack.c.b16 %v3630, %v3626
        %v5163 = vpack.c.b16 %v3635, %v3631
        %v5164 = vpack.c.b16 %v3636, %v3632
        %v5165 = vpack.c.b16 %v3637, %v3633
        %v5166 = vpack.c.b16 %v3638, %v3634
        %v5167 = vpack.c.b16 %v3643, %v3639
        %v5168 = vpack.c.b16 %v3644, %v3640
        %v5169 = vpack.c.b16 %v3645, %v3641
        %v5170 = vpack.c.b16 %v3646, %v3642
        %v5171 = vpack.c.b16 %v3651, %v3647
        %v5172 = vpack.c.b16 %v3652, %v3648
        %v5173 = vpack.c.b16 %v3653, %v3649
        %v5174 = vpack.c.b16 %v3654, %v3650
        %v5175 = vpack.c.b16 %v3659, %v3655
        %v5176 = vpack.c.b16 %v3660, %v3656
        %v5177 = vpack.c.b16 %v3661, %v3657
        %v5178 = vpack.c.b16 %v3662, %v3658
        %v5179 = vpack.c.b16 %v3667, %v3663
        %v5180 = vpack.c.b16 %v3668, %v3664
        %v5181 = vpack.c.b16 %v3669, %v3665
        %v5182 = vpack.c.b16 %v3670, %v3666
        %v5183 = vpack.c.b16 %v3675, %v3671
        %v5184 = vpack.c.b16 %v3676, %v3672
        %v5185 = vpack.c.b16 %v3677, %v3673
        %v5186 = vpack.c.b16 %v3678, %v3674
        %v5187 = vpack.c.b16 %v3683, %v3679
        %v5188 = vpack.c.b16 %v3684, %v3680
        %v5189 = vpack.c.b16 %v3685, %v3681
        %v5190 = vpack.c.b16 %v3686, %v3682
        %v5191 = vpack.c.b16 %v3691, %v3687
        %v5192 = vpack.c.b16 %v3692, %v3688
        %v5193 = vpack.c.b16 %v3693, %v3689
        %v5194 = vpack.c.b16 %v3694, %v3690
        %v5195 = vpack.c.b16 %v3699, %v3695
        %v5196 = vpack.c.b16 %v3700, %v3696
        %v5197 = vpack.c.b16 %v3701, %v3697
        %v5198 = vpack.c.b16 %v3702, %v3698
        %v5199 = vpack.c.b16 %v3707, %v3703
        %v5200 = vpack.c.b16 %v3708, %v3704
        %v5201 = vpack.c.b16 %v3709, %v3705
        %v5202 = vpack.c.b16 %v3710, %v3706
        %v5203 = vpack.c.b16 %v3715, %v3711
        %v5204 = vpack.c.b16 %v3716, %v3712
        %v5205 = vpack.c.b16 %v3717, %v3713
        %v5206 = vpack.c.b16 %v3718, %v3714
        %v5207 = vpack.c.b16 %v3723, %v3719
        %v5208 = vpack.c.b16 %v3724, %v3720
        %v5209 = vpack.c.b16 %v3725, %v3721
        %v5210 = vpack.c.b16 %v3726, %v3722
        %v5211 = vpack.c.b16 %v3731, %v3727
        %v5212 = vpack.c.b16 %v3732, %v3728
        %v5213 = vpack.c.b16 %v3733, %v3729
        %v5214 = vpack.c.b16 %v3734, %v3730
        %v5215 = vpack.c.b16 %v3739, %v3735
        %v5216 = vpack.c.b16 %v3740, %v3736
        %v5217 = vpack.c.b16 %v3741, %v3737
        %v5218 = vpack.c.b16 %v3742, %v3738
        %v5219 = vpack.c.b16 %v3747, %v3743
        %v5220 = vpack.c.b16 %v3748, %v3744
        %v5221 = vpack.c.b16 %v3749, %v3745
        %v5222 = vpack.c.b16 %v3750, %v3746
        %v5223 = vpack.c.b16 %v3755, %v3751
        %v5224 = vpack.c.b16 %v3756, %v3752
        %v5225 = vpack.c.b16 %v3757, %v3753
        %v5226 = vpack.c.b16 %v3758, %v3754
        %v5227 = vpack.c.b16 %v3763, %v3759
        %v5228 = vpack.c.b16 %v3764, %v3760
        %v5229 = vpack.c.b16 %v3765, %v3761
        %v5230 = vpack.c.b16 %v3766, %v3762
        %v5231 = vpack.c.b16 %v3771, %v3767
        %v5232 = vpack.c.b16 %v3772, %v3768
        %v5233 = vpack.c.b16 %v3773, %v3769
        %v5234 = vpack.c.b16 %v3774, %v3770
        %v5235 = vpack.c.b16 %v3779, %v3775
        %v5236 = vpack.c.b16 %v3780, %v3776
        %v5237 = vpack.c.b16 %v3781, %v3777
        %v5238 = vpack.c.b16 %v3782, %v3778
        %v5239 = vpack.c.b16 %v3787, %v3783
        %v5240 = vpack.c.b16 %v3788, %v3784
        %v5241 = vpack.c.b16 %v3789, %v3785
        %v5242 = vpack.c.b16 %v3790, %v3786
        %v5243 = vpack.c.b16 %v3795, %v3791
        %v5244 = vpack.c.b16 %v3796, %v3792
        %v5245 = vpack.c.b16 %v3797, %v3793
        %v5246 = vpack.c.b16 %v3798, %v3794
        %v5247 = vpack.c.b16 %v3803, %v3799
        %v5248 = vpack.c.b16 %v3804, %v3800
        %v5249 = vpack.c.b16 %v3805, %v3801
        %v5250 = vpack.c.b16 %v3806, %v3802
        %v5251 = vpack.c.b16 %v3811, %v3807
        %v5252 = vpack.c.b16 %v3812, %v3808
        %v5253 = vpack.c.b16 %v3813, %v3809
        %v5254 = vpack.c.b16 %v3814, %v3810
        %v5255 = vpack.c.b16 %v3819, %v3815
        %v5256 = vpack.c.b16 %v3820, %v3816
        %v5257 = vpack.c.b16 %v3821, %v3817
        %v5258 = vpack.c.b16 %v3822, %v3818
        %v5259 = vpack.c.b16 %v3827, %v3823
        %v5260 = vpack.c.b16 %v3828, %v3824
        %v5261 = vpack.c.b16 %v3829, %v3825
        %v5262 = vpack.c.b16 %v3830, %v3826
        %v5263 = vpack.c.b16 %v3835, %v3831
        %v5264 = vpack.c.b16 %v3836, %v3832
        %v5265 = vpack.c.b16 %v3837, %v3833
        %v5266 = vpack.c.b16 %v3838, %v3834
        %v5267 = vpack.c.b16 %v3843, %v3839
        %v5268 = vpack.c.b16 %v3844, %v3840
        %v5269 = vpack.c.b16 %v3845, %v3841
        %v5270 = vpack.c.b16 %v3846, %v3842
        %v5271 = vpack.c.b16 %v3851, %v3847
        %v5272 = vpack.c.b16 %v3852, %v3848
        %v5273 = vpack.c.b16 %v3853, %v3849
        %v5274 = vpack.c.b16 %v3854, %v3850
        %v5275 = vpack.c.b16 %v3859, %v3855
        %v5276 = vpack.c.b16 %v3860, %v3856
        %v5277 = vpack.c.b16 %v3861, %v3857
        %v5278 = vpack.c.b16 %v3862, %v3858
        %v5279 = vpack.c.b16 %v3867, %v3863
        %v5280 = vpack.c.b16 %v3868, %v3864
        %v5281 = vpack.c.b16 %v3869, %v3865
        %v5282 = vpack.c.b16 %v3870, %v3866
        %v5283 = vpack.c.b16 %v3875, %v3871
        %v5284 = vpack.c.b16 %v3876, %v3872
        %v5285 = vpack.c.b16 %v3877, %v3873
        %v5286 = vpack.c.b16 %v3878, %v3874
        %v5287 = vpack.c.b16 %v3883, %v3879
        %v5288 = vpack.c.b16 %v3884, %v3880
        %v5289 = vpack.c.b16 %v3885, %v3881
        %v5290 = vpack.c.b16 %v3886, %v3882
        %v5291 = vpack.c.b16 %v3891, %v3887
        %v5292 = vpack.c.b16 %v3892, %v3888
        %v5293 = vpack.c.b16 %v3893, %v3889
        %v5294 = vpack.c.b16 %v3894, %v3890
        %v5295 = vpack.c.b16 %v3899, %v3895
        %v5296 = vpack.c.b16 %v3900, %v3896
        %v5297 = vpack.c.b16 %v3901, %v3897
        %v5298 = vpack.c.b16 %v3902, %v3898
        %v5299 = vpack.c.b16 %v3907, %v3903
        %v5300 = vpack.c.b16 %v3908, %v3904
        %v5301 = vpack.c.b16 %v3909, %v3905
        %v5302 = vpack.c.b16 %v3910, %v3906
        %v5303 = vpack.c.b16 %v3915, %v3911
        %v5304 = vpack.c.b16 %v3916, %v3912
        %v5305 = vpack.c.b16 %v3917, %v3913
        %v5306 = vpack.c.b16 %v3918, %v3914
        %v5307 = vpack.c.b16 %v3923, %v3919
        %v5308 = vpack.c.b16 %v3924, %v3920
        %v5309 = vpack.c.b16 %v3925, %v3921
        %v5310 = vpack.c.b16 %v3926, %v3922
        %v5311 = vpack.c.b16 %v3931, %v3927
        %v5312 = vpack.c.b16 %v3932, %v3928
        %v5313 = vpack.c.b16 %v3933, %v3929
        %v5314 = vpack.c.b16 %v3934, %v3930
        %v5315 = vpack.c.b16 %v3939, %v3935
        %v5316 = vpack.c.b16 %v3940, %v3936
        %v5317 = vpack.c.b16 %v3941, %v3937
        %v5318 = vpack.c.b16 %v3942, %v3938
        %v5319 = vpack.c.b16 %v3947, %v3943
        %v5320 = vpack.c.b16 %v3948, %v3944
        %v5321 = vpack.c.b16 %v3949, %v3945
        %v5322 = vpack.c.b16 %v3950, %v3946
        %v5323 = vpack.c.b16 %v3955, %v3951
        %v5324 = vpack.c.b16 %v3956, %v3952
        %v5325 = vpack.c.b16 %v3957, %v3953
        %v5326 = vpack.c.b16 %v3958, %v3954
        %v5327 = vpack.c.b16 %v3963, %v3959
        %v5328 = vpack.c.b16 %v3964, %v3960
        %v5329 = vpack.c.b16 %v3965, %v3961
        %v5330 = vpack.c.b16 %v3966, %v3962
        %v5331 = vpack.c.b16 %v3971, %v3967
        %v5332 = vpack.c.b16 %v3972, %v3968
        %v5333 = vpack.c.b16 %v3973, %v3969
        %v5334 = vpack.c.b16 %v3974, %v3970
        %v5335 = vpack.c.b16 %v3979, %v3975
        %v5336 = vpack.c.b16 %v3980, %v3976
        %v5337 = vpack.c.b16 %v3981, %v3977
        %v5338 = vpack.c.b16 %v3982, %v3978
        %v5339 = vpack.c.b16 %v3987, %v3983
        %v5340 = vpack.c.b16 %v3988, %v3984
        %v5341 = vpack.c.b16 %v3989, %v3985
        %v5342 = vpack.c.b16 %v3990, %v3986
        %v5343 = vpack.c.b16 %v3995, %v3991
        %v5344 = vpack.c.b16 %v3996, %v3992
        %v5345 = vpack.c.b16 %v3997, %v3993
        %v5346 = vpack.c.b16 %v3998, %v3994
        %v5347 = vpack.c.b16 %v4003, %v3999
        %v5348 = vpack.c.b16 %v4004, %v4000
        %v5349 = vpack.c.b16 %v4005, %v4001
        %v5350 = vpack.c.b16 %v4006, %v4002
        %v5351 = vpack.c.b16 %v4011, %v4007
        %v5352 = vpack.c.b16 %v4012, %v4008
        %v5353 = vpack.c.b16 %v4013, %v4009
        %v5354 = vpack.c.b16 %v4014, %v4010
        %v5355 = vpack.c.b16 %v4019, %v4015
        %v5356 = vpack.c.b16 %v4020, %v4016
        %v5357 = vpack.c.b16 %v4021, %v4017
        %v5358 = vpack.c.b16 %v4022, %v4018
        %v5359 = vpack.c.b16 %v4027, %v4023
        %v5360 = vpack.c.b16 %v4028, %v4024
        %v5361 = vpack.c.b16 %v4029, %v4025
        %v5362 = vpack.c.b16 %v4030, %v4026
        %v5363 = vpack.c.b16 %v4035, %v4031
        %v5364 = vpack.c.b16 %v4036, %v4032
        %v5365 = vpack.c.b16 %v4037, %v4033
        %v5366 = vpack.c.b16 %v4038, %v4034
        %v5367 = vpack.c.b16 %v4043, %v4039
        %v5368 = vpack.c.b16 %v4044, %v4040
        %v5369 = vpack.c.b16 %v4045, %v4041
        %v5370 = vpack.c.b16 %v4046, %v4042
        %v5371 = vpack.c.b16 %v4051, %v4047
        %v5372 = vpack.c.b16 %v4052, %v4048
        %v5373 = vpack.c.b16 %v4053, %v4049
        %v5374 = vpack.c.b16 %v4054, %v4050
        %v5375 = vpack.c.b16 %v4059, %v4055
        %v5376 = vpack.c.b16 %v4060, %v4056
        %v5377 = vpack.c.b16 %v4061, %v4057
        %v5378 = vpack.c.b16 %v4062, %v4058
        %v5379 = vpack.c.b16 %v4067, %v4063
        %v5380 = vpack.c.b16 %v4068, %v4064
        %v5381 = vpack.c.b16 %v4069, %v4065
        %v5382 = vpack.c.b16 %v4070, %v4066
        %v5383 = vpack.c.b16 %v4075, %v4071
        %v5384 = vpack.c.b16 %v4076, %v4072
        %v5385 = vpack.c.b16 %v4077, %v4073
        %v5386 = vpack.c.b16 %v4078, %v4074
        %v5387 = vpack.c.b16 %v4083, %v4079
        %v5388 = vpack.c.b16 %v4084, %v4080
        %v5389 = vpack.c.b16 %v4085, %v4081
        %v5390 = vpack.c.b16 %v4086, %v4082
        %v5391 = vpack.c.b16 %v4091, %v4087
        %v5392 = vpack.c.b16 %v4092, %v4088
        %v5393 = vpack.c.b16 %v4093, %v4089
        %v5394 = vpack.c.b16 %v4094, %v4090
        %v5395 = vpack.c.b16 %v4099, %v4095
        %v5396 = vpack.c.b16 %v4100, %v4096
        %v5397 = vpack.c.b16 %v4101, %v4097
        %v5398 = vpack.c.b16 %v4102, %v4098
        %v5399 = vpack.c.b16 %v4107, %v4103
        %v5400 = vpack.c.b16 %v4108, %v4104
        %v5401 = vpack.c.b16 %v4109, %v4105
        %v5402 = vpack.c.b16 %v4110, %v4106
        %v5403 = vpack.c.b16 %v4115, %v4111
        %v5404 = vpack.c.b16 %v4116, %v4112
        %v5405 = vpack.c.b16 %v4117, %v4113
        %v5406 = vpack.c.b16 %v4118, %v4114
        %v5407 = vpack.c.b16 %v4123, %v4119
        %v5408 = vpack.c.b16 %v4124, %v4120
        %v5409 = vpack.c.b16 %v4125, %v4121
        %v5410 = vpack.c.b16 %v4126, %v4122
        %v5411 = vpack.c.b16 %v4131, %v4127
        %v5412 = vpack.c.b16 %v4132, %v4128
        %v5413 = vpack.c.b16 %v4133, %v4129
        %v5414 = vpack.c.b16 %v4134, %v4130
        %v5415 = vpack.c.b16 %v4139, %v4135
        %v5416 = vpack.c.b16 %v4140, %v4136
        %v5417 = vpack.c.b16 %v4141, %v4137
        %v5418 = vpack.c.b16 %v4142, %v4138
        %v5419 = vpack.c.b16 %v4147, %v4143
        %v5420 = vpack.c.b16 %v4148, %v4144
        %v5421 = vpack.c.b16 %v4149, %v4145
        %v5422 = vpack.c.b16 %v4150, %v4146
        %v5423 = vpack.c.b16 %v4155, %v4151
        %v5424 = vpack.c.b16 %v4156, %v4152
        %v5425 = vpack.c.b16 %v4157, %v4153
        %v5426 = vpack.c.b16 %v4158, %v4154
        %v5427 = vpack.c.b16 %v4163, %v4159
        %v5428 = vpack.c.b16 %v4164, %v4160
        %v5429 = vpack.c.b16 %v4165, %v4161
        %v5430 = vpack.c.b16 %v4166, %v4162
        %v5431 = vpack.c.b16 %v4171, %v4167
        %v5432 = vpack.c.b16 %v4172, %v4168
        %v5433 = vpack.c.b16 %v4173, %v4169
        %v5434 = vpack.c.b16 %v4174, %v4170
        %v5435 = vpack.c.b16 %v4179, %v4175
        %v5436 = vpack.c.b16 %v4180, %v4176
        %v5437 = vpack.c.b16 %v4181, %v4177
        %v5438 = vpack.c.b16 %v4182, %v4178
        %v5439 = vpack.c.b16 %v4187, %v4183
        %v5440 = vpack.c.b16 %v4188, %v4184
        %v5441 = vpack.c.b16 %v4189, %v4185
        %v5442 = vpack.c.b16 %v4190, %v4186
        %v5443 = vpack.c.b16 %v4195, %v4191
        %v5444 = vpack.c.b16 %v4196, %v4192
        %v5445 = vpack.c.b16 %v4197, %v4193
        %v5446 = vpack.c.b16 %v4198, %v4194
        %v5447 = vpack.c.b16 %v4203, %v4199
        %v5448 = vpack.c.b16 %v4204, %v4200
        %v5449 = vpack.c.b16 %v4205, %v4201
        %v5450 = vpack.c.b16 %v4206, %v4202
        %v5451 = vpack.c.b16 %v4211, %v4207
        %v5452 = vpack.c.b16 %v4212, %v4208
        %v5453 = vpack.c.b16 %v4213, %v4209
        %v5454 = vpack.c.b16 %v4214, %v4210
        %v5455 = vpack.c.b16 %v4219, %v4215
        %v5456 = vpack.c.b16 %v4220, %v4216
        %v5457 = vpack.c.b16 %v4221, %v4217
        %v5458 = vpack.c.b16 %v4222, %v4218
        %v5459 = vpack.c.b16 %v4227, %v4223
        %v5460 = vpack.c.b16 %v4228, %v4224
        %v5461 = vpack.c.b16 %v4229, %v4225
        %v5462 = vpack.c.b16 %v4230, %v4226
        %v5463 = vpack.c.b16 %v4235, %v4231
        %v5464 = vpack.c.b16 %v4236, %v4232
        %v5465 = vpack.c.b16 %v4237, %v4233
        %v5466 = vpack.c.b16 %v4238, %v4234
        %v5467 = vpack.c.b16 %v4243, %v4239
        %v5468 = vpack.c.b16 %v4244, %v4240
        %v5469 = vpack.c.b16 %v4245, %v4241
        %v5470 = vpack.c.b16 %v4246, %v4242
        %v5471 = vpack.c.b16 %v4251, %v4247
        %v5472 = vpack.c.b16 %v4252, %v4248
        %v5473 = vpack.c.b16 %v4253, %v4249
        %v5474 = vpack.c.b16 %v4254, %v4250
        %v5475 = vpack.c.b16 %v4259, %v4255
        %v5476 = vpack.c.b16 %v4260, %v4256
        %v5477 = vpack.c.b16 %v4261, %v4257
        %v5478 = vpack.c.b16 %v4262, %v4258
        %v5479 = vpack.c.b16 %v4267, %v4263
        %v5480 = vpack.c.b16 %v4268, %v4264
        %v5481 = vpack.c.b16 %v4269, %v4265
        %v5482 = vpack.c.b16 %v4270, %v4266
        %v5483 = vpack.c.b16 %v4275, %v4271
        %v5484 = vpack.c.b16 %v4276, %v4272
        %v5485 = vpack.c.b16 %v4277, %v4273
        %v5486 = vpack.c.b16 %v4278, %v4274
        %v5487 = vpack.c.b16 %v4283, %v4279
        %v5488 = vpack.c.b16 %v4284, %v4280
        %v5489 = vpack.c.b16 %v4285, %v4281
        %v5490 = vpack.c.b16 %v4286, %v4282
        %v5491 = vpack.c.b16 %v4291, %v4287
        %v5492 = vpack.c.b16 %v4292, %v4288
        %v5493 = vpack.c.b16 %v4293, %v4289
        %v5494 = vpack.c.b16 %v4294, %v4290
        %v5495 = vpack.c.b16 %v4299, %v4295
        %v5496 = vpack.c.b16 %v4300, %v4296
        %v5497 = vpack.c.b16 %v4301, %v4297
        %v5498 = vpack.c.b16 %v4302, %v4298
        %v5499 = vpack.c.b16 %v4307, %v4303
        %v5500 = vpack.c.b16 %v4308, %v4304
        %v5501 = vpack.c.b16 %v4309, %v4305
        %v5502 = vpack.c.b16 %v4310, %v4306
        %v5503 = vpack.c.b16 %v4315, %v4311
        %v5504 = vpack.c.b16 %v4316, %v4312
        %v5505 = vpack.c.b16 %v4317, %v4313
        %v5506 = vpack.c.b16 %v4318, %v4314
        %v5507 = vpack.c.b16 %v4323, %v4319
        %v5508 = vpack.c.b16 %v4324, %v4320
        %v5509 = vpack.c.b16 %v4325, %v4321
        %v5510 = vpack.c.b16 %v4326, %v4322
        %v5511 = vpack.c.b16 %v4331, %v4327
        %v5512 = vpack.c.b16 %v4332, %v4328
        %v5513 = vpack.c.b16 %v4333, %v4329
        %v5514 = vpack.c.b16 %v4334, %v4330
        %v5515 = vpack.c.b16 %v4339, %v4335
        %v5516 = vpack.c.b16 %v4340, %v4336
        %v5517 = vpack.c.b16 %v4341, %v4337
        %v5518 = vpack.c.b16 %v4342, %v4338
        %v5519 = vpack.c.b16 %v4347, %v4343
        %v5520 = vpack.c.b16 %v4348, %v4344
        %v5521 = vpack.c.b16 %v4349, %v4345
        %v5522 = vpack.c.b16 %v4350, %v4346
        %v5523 = vpack.c.b16 %v4355, %v4351
        %v5524 = vpack.c.b16 %v4356, %v4352
        %v5525 = vpack.c.b16 %v4357, %v4353
        %v5526 = vpack.c.b16 %v4358, %v4354
        %v5527 = vpack.c.b16 %v4363, %v4359
        %v5528 = vpack.c.b16 %v4364, %v4360
        %v5529 = vpack.c.b16 %v4365, %v4361
        %v5530 = vpack.c.b16 %v4366, %v4362
        %v5531 = vpack.c.b16 %v4371, %v4367
        %v5532 = vpack.c.b16 %v4372, %v4368
        %v5533 = vpack.c.b16 %v4373, %v4369
        %v5534 = vpack.c.b16 %v4374, %v4370
        %v5535 = vpack.c.b16 %v4379, %v4375
        %v5536 = vpack.c.b16 %v4380, %v4376
        %v5537 = vpack.c.b16 %v4381, %v4377
        %v5538 = vpack.c.b16 %v4382, %v4378
        %v5539 = vpack.c.b16 %v4387, %v4383
        %v5540 = vpack.c.b16 %v4388, %v4384
        %v5541 = vpack.c.b16 %v4389, %v4385
        %v5542 = vpack.c.b16 %v4390, %v4386
        %v5543 = vpack.c.b16 %v4395, %v4391
        %v5544 = vpack.c.b16 %v4396, %v4392
        %v5545 = vpack.c.b16 %v4397, %v4393
        %v5546 = vpack.c.b16 %v4398, %v4394
        %v5547 = vpack.c.b16 %v4403, %v4399
        %v5548 = vpack.c.b16 %v4404, %v4400
        %v5549 = vpack.c.b16 %v4405, %v4401
        %v5550 = vpack.c.b16 %v4406, %v4402
        %v5551 = vpack.c.b16 %v4411, %v4407
        %v5552 = vpack.c.b16 %v4412, %v4408
        %v5553 = vpack.c.b16 %v4413, %v4409
        %v5554 = vpack.c.b16 %v4414, %v4410
        %v5555 = vpack.c.b16 %v4419, %v4415
        %v5556 = vpack.c.b16 %v4420, %v4416
        %v5557 = vpack.c.b16 %v4421, %v4417
        %v5558 = vpack.c.b16 %v4422, %v4418
        %v5559 = vpack.c.b16 %v4427, %v4423
        %v5560 = vpack.c.b16 %v4428, %v4424
        %v5561 = vpack.c.b16 %v4429, %v4425
        %v5562 = vpack.c.b16 %v4430, %v4426
        %v5563 = vpack.c.b16 %v4435, %v4431
        %v5564 = vpack.c.b16 %v4436, %v4432
        %v5565 = vpack.c.b16 %v4437, %v4433
        %v5566 = vpack.c.b16 %v4438, %v4434
        %v5567 = vpack.c.b16 %v4443, %v4439
        %v5568 = vpack.c.b16 %v4444, %v4440
        %v5569 = vpack.c.b16 %v4445, %v4441
        %v5570 = vpack.c.b16 %v4446, %v4442
        %v5571 = vpack.c.b16 %v4451, %v4447
        %v5572 = vpack.c.b16 %v4452, %v4448
        %v5573 = vpack.c.b16 %v4453, %v4449
        %v5574 = vpack.c.b16 %v4454, %v4450
        %v5575 = vpack.c.b16 %v4459, %v4455
        %v5576 = vpack.c.b16 %v4460, %v4456
        %v5577 = vpack.c.b16 %v4461, %v4457
        %v5578 = vpack.c.b16 %v4462, %v4458
        %v5579 = vpack.c.b16 %v4467, %v4463
        %v5580 = vpack.c.b16 %v4468, %v4464
        %v5581 = vpack.c.b16 %v4469, %v4465
        %v5582 = vpack.c.b16 %v4470, %v4466
        %v5583 = vpack.c.b16 %v4475, %v4471
        %v5584 = vpack.c.b16 %v4476, %v4472
        %v5585 = vpack.c.b16 %v4477, %v4473
        %v5586 = vpack.c.b16 %v4478, %v4474
        %v5587 = vpack.c.b16 %v4483, %v4479
        %v5588 = vpack.c.b16 %v4484, %v4480
        %v5589 = vpack.c.b16 %v4485, %v4481
        %v5590 = vpack.c.b16 %v4486, %v4482
        %v5591 = vpack.c.b16 %v4491, %v4487
        %v5592 = vpack.c.b16 %v4492, %v4488
        %v5593 = vpack.c.b16 %v4493, %v4489
        %v5594 = vpack.c.b16 %v4494, %v4490
        %v5595 = vpack.c.b16 %v4499, %v4495
        %v5596 = vpack.c.b16 %v4500, %v4496
        %v5597 = vpack.c.b16 %v4501, %v4497
        %v5598 = vpack.c.b16 %v4502, %v4498
        %v5599 = vpack.c.b16 %v4507, %v4503
        %v5600 = vpack.c.b16 %v4508, %v4504
        %v5601 = vpack.c.b16 %v4509, %v4505
        %v5602 = vpack.c.b16 %v4510, %v4506
        %v5603 = vpack.c.b16 %v4515, %v4511
        %v5604 = vpack.c.b16 %v4516, %v4512
        %v5605 = vpack.c.b16 %v4517, %v4513
        %v5606 = vpack.c.b16 %v4518, %v4514
        %v5607 = vpack.c.b16 %v4523, %v4519
        %v5608 = vpack.c.b16 %v4524, %v4520
        %v5609 = vpack.c.b16 %v4525, %v4521
        %v5610 = vpack.c.b16 %v4526, %v4522
        %v5611 = vpack.c.b16 %v4531, %v4527
        %v5612 = vpack.c.b16 %v4532, %v4528
        %v5613 = vpack.c.b16 %v4533, %v4529
        %v5614 = vpack.c.b16 %v4534, %v4530
        %v5615 = vpack.c.b16 %v4539, %v4535
        %v5616 = vpack.c.b16 %v4540, %v4536
        %v5617 = vpack.c.b16 %v4541, %v4537
        %v5618 = vpack.c.b16 %v4542, %v4538
        %v5619 = vpack.c.b16 %v4547, %v4543
        %v5620 = vpack.c.b16 %v4548, %v4544
        %v5621 = vpack.c.b16 %v4549, %v4545
        %v5622 = vpack.c.b16 %v4550, %v4546
        %v5623 = vpack.c.b16 %v4555, %v4551
        %v5624 = vpack.c.b16 %v4556, %v4552
        %v5625 = vpack.c.b16 %v4557, %v4553
        %v5626 = vpack.c.b16 %v4558, %v4554
        %v5627 = vpack.c.b16 %v4563, %v4559
        %v5628 = vpack.c.b16 %v4564, %v4560
        %v5629 = vpack.c.b16 %v4565, %v4561
        %v5630 = vpack.c.b16 %v4566, %v4562
        %v5631 = vpack.c.b16 %v4571, %v4567
        %v5632 = vpack.c.b16 %v4572, %v4568
        %v5633 = vpack.c.b16 %v4573, %v4569
        %v5634 = vpack.c.b16 %v4574, %v4570
        %v5635 = vpack.c.b16 %v4579, %v4575
        %v5636 = vpack.c.b16 %v4580, %v4576
        %v5637 = vpack.c.b16 %v4581, %v4577
        %v5638 = vpack.c.b16 %v4582, %v4578
        %v5639 = vpack.c.b16 %v4587, %v4583
        %v5640 = vpack.c.b16 %v4588, %v4584
        %v5641 = vpack.c.b16 %v4589, %v4585
        %v5642 = vpack.c.b16 %v4590, %v4586
        %v5643 = vpack.c.b16 %v4595, %v4591
        %v5644 = vpack.c.b16 %v4596, %v4592
        %v5645 = vpack.c.b16 %v4597, %v4593
        %v5646 = vpack.c.b16 %v4598, %v4594
        %v5647 = vpack.c.b16 %v4603, %v4599
        %v5648 = vpack.c.b16 %v4604, %v4600
        %v5649 = vpack.c.b16 %v4605, %v4601
        %v5650 = vpack.c.b16 %v4606, %v4602
        %v5651 = vpack.c.b16 %v4611, %v4607
        %v5652 = vpack.c.b16 %v4612, %v4608
        %v5653 = vpack.c.b16 %v4613, %v4609
        %v5654 = vpack.c.b16 %v4614, %v4610
        %v5655 = vpack.c.b16 %v4619, %v4615
        %v5656 = vpack.c.b16 %v4620, %v4616
        %v5657 = vpack.c.b16 %v4621, %v4617
        %v5658 = vpack.c.b16 %v4622, %v4618
        %v5659 = vpack.c.b16 %v4627, %v4623
        %v5660 = vpack.c.b16 %v4628, %v4624
        %v5661 = vpack.c.b16 %v4629, %v4625
        %v5662 = vpack.c.b16 %v4630, %v4626
        %v5663 = vpack.c.b16 %v4635, %v4631
        %v5664 = vpack.c.b16 %v4636, %v4632
        %v5665 = vpack.c.b16 %v4637, %v4633
        %v5666 = vpack.c.b16 %v4638, %v4634
        %v5667 = vpack.c.b16 %v4643, %v4639
        %v5668 = vpack.c.b16 %v4644, %v4640
        %v5669 = vpack.c.b16 %v4645, %v4641
        %v5670 = vpack.c.b16 %v4646, %v4642
        %6695 = vmatprep.subr.bf16.mxu0 %v4648
        %6696 = vmatpush1.bf16.msra.mxu0 %v4647
        %6697 = vmatprep.subr.bf16.mxu0 %v4652
        %6698 = vmatpush1.bf16.msra.mxu0 %v4651
        %6699 = vmatprep.subr.bf16.mxu0 %v4656
        %6700 = vmatpush1.bf16.msra.mxu0 %v4655
        %6701 = vmatprep.subr.bf16.mxu0 %v4660
        %6702 = vmatpush1.bf16.msra.mxu0 %v4659
        %6703 = vmatprep.subr.bf16.mxu0 %v4664
        %6704 = vmatpush1.bf16.msra.mxu0 %v4663
        %6705 = vmatprep.subr.bf16.mxu0 %v4668
        %6706 = vmatpush1.bf16.msra.mxu0 %v4667
        %6707 = vmatprep.subr.bf16.mxu0 %v4672
        %6708 = vmatpush1.bf16.msra.mxu0 %v4671
        %6709 = vmatprep.subr.bf16.mxu0 %v4676
        %6710 = vmatpush1.bf16.msra.mxu0 %v4675
        %6711 = vmatprep.subr.bf16.mxu0 %v4680
        %6712 = vmatpush1.bf16.msra.mxu0 %v4679
        %6713 = vmatprep.subr.bf16.mxu0 %v4684
        %6714 = vmatpush1.bf16.msra.mxu0 %v4683
        %6715 = vmatprep.subr.bf16.mxu0 %v4688
        %6716 = vmatpush1.bf16.msra.mxu0 %v4687
        %6717 = vmatprep.subr.bf16.mxu0 %v4692
        %6718 = vmatpush1.bf16.msra.mxu0 %v4691
        %6719 = vmatprep.subr.bf16.mxu0 %v4696
        %6720 = vmatpush1.bf16.msra.mxu0 %v4695
        %6721 = vmatprep.subr.bf16.mxu0 %v4700
        %6722 = vmatpush1.bf16.msra.mxu0 %v4699
        %6723 = vmatprep.subr.bf16.mxu0 %v4704
        %6724 = vmatpush1.bf16.msra.mxu0 %v4703
        %6725 = vmatprep.subr.bf16.mxu0 %v4708
        %6726 = vmatpush1.bf16.msra.mxu0 %v4707
        %6727 = vmatprep.mubr.bf16.mxu0 %v1512
        %6728 = vmatmul.mubr.bf16.gmra.mrb[0].mxu0 %v1511
        %v6729 = vpop.f32.mrb[0].mxu0
        %v6730 = vadd.f32 %v1398, %v6729
        %v6731 = vpop.f32.mrb[0].mxu0
        %v6732 = vadd.f32 %v1402, %v6731
        %v6733 = vpop.f32.mrb[0].mxu0
        %v6734 = vadd.f32 %v1398, %v6733
        %v6735 = vpop.f32.mrb[0].mxu0
        %v6736 = vadd.f32 %v1402, %v6735
        %6737 = vdwg.mxu0
        %6738 = vmatprep.subr.bf16.mxu0 %v4712
        %6739 = vmatpush1.bf16.msra.mxu0 %v4711
        %6740 = vmatprep.subr.bf16.mxu0 %v4716
        %6741 = vmatpush1.bf16.msra.mxu0 %v4715
        %6742 = vmatprep.subr.bf16.mxu0 %v4720
        %6743 = vmatpush1.bf16.msra.mxu0 %v4719
        %6744 = vmatprep.subr.bf16.mxu0 %v4724
        %6745 = vmatpush1.bf16.msra.mxu0 %v4723
        %6746 = vmatprep.subr.bf16.mxu0 %v4728
        %6747 = vmatpush1.bf16.msra.mxu0 %v4727
        %6748 = vmatprep.subr.bf16.mxu0 %v4732
        %6749 = vmatpush1.bf16.msra.mxu0 %v4731
        %6750 = vmatprep.subr.bf16.mxu0 %v4736
        %6751 = vmatpush1.bf16.msra.mxu0 %v4735
        %6752 = vmatprep.subr.bf16.mxu0 %v4740
        %6753 = vmatpush1.bf16.msra.mxu0 %v4739
        %6754 = vmatprep.subr.bf16.mxu0 %v4744
        %6755 = vmatpush1.bf16.msra.mxu0 %v4743
        %6756 = vmatprep.subr.bf16.mxu0 %v4748
        %6757 = vmatpush1.bf16.msra.mxu0 %v4747
        %6758 = vmatprep.subr.bf16.mxu0 %v4752
        %6759 = vmatpush1.bf16.msra.mxu0 %v4751
        %6760 = vmatprep.subr.bf16.mxu0 %v4756
        %6761 = vmatpush1.bf16.msra.mxu0 %v4755
        %6762 = vmatprep.subr.bf16.mxu0 %v4760
        %6763 = vmatpush1.bf16.msra.mxu0 %v4759
        %6764 = vmatprep.subr.bf16.mxu0 %v4764
        %6765 = vmatpush1.bf16.msra.mxu0 %v4763
        %6766 = vmatprep.subr.bf16.mxu0 %v4768
        %6767 = vmatpush1.bf16.msra.mxu0 %v4767
        %6768 = vmatprep.subr.bf16.mxu0 %v4772
        %6769 = vmatpush1.bf16.msra.mxu0 %v4771
        %6770 = vmatprep.mubr.bf16.mxu0 %v1514
        %6771 = vmatmul.mubr.bf16.gmra.mrb[0].mxu0 %v1513
        %v6772 = vpop.f32.mrb[0].mxu0
        %v6773 = vadd.f32 %v6730, %v6772
        %v6774 = vpop.f32.mrb[0].mxu0
        %v6775 = vadd.f32 %v6732, %v6774
        %v6776 = vpop.f32.mrb[0].mxu0
        %v6777 = vadd.f32 %v6734, %v6776
        %v6778 = vpop.f32.mrb[0].mxu0
        %v6779 = vadd.f32 %v6736, %v6778
        %6780 = vdwg.mxu0
        %6781 = vmatprep.subr.bf16.mxu0 %v4776
        %6782 = vmatpush1.bf16.msra.mxu0 %v4775
        %6783 = vmatprep.subr.bf16.mxu0 %v4780
        %6784 = vmatpush1.bf16.msra.mxu0 %v4779
        %6785 = vmatprep.subr.bf16.mxu0 %v4784
        %6786 = vmatpush1.bf16.msra.mxu0 %v4783
        %6787 = vmatprep.subr.bf16.mxu0 %v4788
        %6788 = vmatpush1.bf16.msra.mxu0 %v4787
        %6789 = vmatprep.subr.bf16.mxu0 %v4792
        %6790 = vmatpush1.bf16.msra.mxu0 %v4791
        %6791 = vmatprep.subr.bf16.mxu0 %v4796
        %6792 = vmatpush1.bf16.msra.mxu0 %v4795
        %6793 = vmatprep.subr.bf16.mxu0 %v4800
        %6794 = vmatpush1.bf16.msra.mxu0 %v4799
        %6795 = vmatprep.subr.bf16.mxu0 %v4804
        %6796 = vmatpush1.bf16.msra.mxu0 %v4803
        %6797 = vmatprep.subr.bf16.mxu0 %v4808
        %6798 = vmatpush1.bf16.msra.mxu0 %v4807
        %6799 = vmatprep.subr.bf16.mxu0 %v4812
        %6800 = vmatpush1.bf16.msra.mxu0 %v4811
        %6801 = vmatprep.subr.bf16.mxu0 %v4816
        %6802 = vmatpush1.bf16.msra.mxu0 %v4815
        %6803 = vmatprep.subr.bf16.mxu0 %v4820
        %6804 = vmatpush1.bf16.msra.mxu0 %v4819
        %6805 = vmatprep.subr.bf16.mxu0 %v4824
        %6806 = vmatpush1.bf16.msra.mxu0 %v4823
        %6807 = vmatprep.subr.bf16.mxu0 %v4828
        %6808 = vmatpush1.bf16.msra.mxu0 %v4827
        %6809 = vmatprep.subr.bf16.mxu0 %v4832
        %6810 = vmatpush1.bf16.msra.mxu0 %v4831
        %6811 = vmatprep.subr.bf16.mxu0 %v4836
        %6812 = vmatpush1.bf16.msra.mxu0 %v4835
        %6813 = vmatprep.mubr.bf16.mxu0 %v1516
        %6814 = vmatmul.mubr.bf16.gmra.mrb[0].mxu0 %v1515
        %v6815 = vpop.f32.mrb[0].mxu0
        %v6816 = vadd.f32 %v6773, %v6815
        %v6817 = vpop.f32.mrb[0].mxu0
        %v6818 = vadd.f32 %v6775, %v6817
        %v6819 = vpop.f32.mrb[0].mxu0
        %v6820 = vadd.f32 %v6777, %v6819
        %v6821 = vpop.f32.mrb[0].mxu0
        %v6822 = vadd.f32 %v6779, %v6821
        %6823 = vdwg.mxu0
        %6824 = vmatprep.subr.bf16.mxu0 %v4840
        %6825 = vmatpush1.bf16.msra.mxu0 %v4839
        %6826 = vmatprep.subr.bf16.mxu0 %v4844
        %6827 = vmatpush1.bf16.msra.mxu0 %v4843
        %6828 = vmatprep.subr.bf16.mxu0 %v4848
        %6829 = vmatpush1.bf16.msra.mxu0 %v4847
        %6830 = vmatprep.subr.bf16.mxu0 %v4852
        %6831 = vmatpush1.bf16.msra.mxu0 %v4851
        %6832 = vmatprep.subr.bf16.mxu0 %v4856
        %6833 = vmatpush1.bf16.msra.mxu0 %v4855
        %6834 = vmatprep.subr.bf16.mxu0 %v4860
        %6835 = vmatpush1.bf16.msra.mxu0 %v4859
        %6836 = vmatprep.subr.bf16.mxu0 %v4864
        %6837 = vmatpush1.bf16.msra.mxu0 %v4863
        %6838 = vmatprep.subr.bf16.mxu0 %v4868
        %6839 = vmatpush1.bf16.msra.mxu0 %v4867
        %6840 = vmatprep.subr.bf16.mxu0 %v4872
        %6841 = vmatpush1.bf16.msra.mxu0 %v4871
        %6842 = vmatprep.subr.bf16.mxu0 %v4876
        %6843 = vmatpush1.bf16.msra.mxu0 %v4875
        %6844 = vmatprep.subr.bf16.mxu0 %v4880
        %6845 = vmatpush1.bf16.msra.mxu0 %v4879
        %6846 = vmatprep.subr.bf16.mxu0 %v4884
        %6847 = vmatpush1.bf16.msra.mxu0 %v4883
        %6848 = vmatprep.subr.bf16.mxu0 %v4888
        %6849 = vmatpush1.bf16.msra.mxu0 %v4887
        %6850 = vmatprep.subr.bf16.mxu0 %v4892
        %6851 = vmatpush1.bf16.msra.mxu0 %v4891
        %6852 = vmatprep.subr.bf16.mxu0 %v4896
        %6853 = vmatpush1.bf16.msra.mxu0 %v4895
        %6854 = vmatprep.subr.bf16.mxu0 %v4900
        %6855 = vmatpush1.bf16.msra.mxu0 %v4899
        %6856 = vmatprep.mubr.bf16.mxu0 %v1518
        %6857 = vmatmul.mubr.bf16.gmra.mrb[0].mxu0 %v1517
        %v6858 = vpop.f32.mrb[0].mxu0
        %v6859 = vadd.f32 %v6816, %v6858
        %v6860 = vpop.f32.mrb[0].mxu0
        %v6861 = vadd.f32 %v6818, %v6860
        %v6862 = vpop.f32.mrb[0].mxu0
        %v6863 = vadd.f32 %v6820, %v6862
        %v6864 = vpop.f32.mrb[0].mxu0
        %v6865 = vadd.f32 %v6822, %v6864
        %6866 = vdwg.mxu0
        %6867 = vmatprep.subr.bf16.mxu0 %v4904
        %6868 = vmatpush1.bf16.msra.mxu0 %v4903
        %6869 = vmatprep.subr.bf16.mxu0 %v4908
        %6870 = vmatpush1.bf16.msra.mxu0 %v4907
        %6871 = vmatprep.subr.bf16.mxu0 %v4912
        %6872 = vmatpush1.bf16.msra.mxu0 %v4911
        %6873 = vmatprep.subr.bf16.mxu0 %v4916
        %6874 = vmatpush1.bf16.msra.mxu0 %v4915
        %6875 = vmatprep.subr.bf16.mxu0 %v4920
        %6876 = vmatpush1.bf16.msra.mxu0 %v4919
        %6877 = vmatprep.subr.bf16.mxu0 %v4924
        %6878 = vmatpush1.bf16.msra.mxu0 %v4923
        %6879 = vmatprep.subr.bf16.mxu0 %v4928
        %6880 = vmatpush1.bf16.msra.mxu0 %v4927
        %6881 = vmatprep.subr.bf16.mxu0 %v4932
        %6882 = vmatpush1.bf16.msra.mxu0 %v4931
        %6883 = vmatprep.subr.bf16.mxu0 %v4936
        %6884 = vmatpush1.bf16.msra.mxu0 %v4935
        %6885 = vmatprep.subr.bf16.mxu0 %v4940
        %6886 = vmatpush1.bf16.msra.mxu0 %v4939
        %6887 = vmatprep.subr.bf16.mxu0 %v4944
        %6888 = vmatpush1.bf16.msra.mxu0 %v4943
        %6889 = vmatprep.subr.bf16.mxu0 %v4948
        %6890 = vmatpush1.bf16.msra.mxu0 %v4947
        %6891 = vmatprep.subr.bf16.mxu0 %v4952
        %6892 = vmatpush1.bf16.msra.mxu0 %v4951
        %6893 = vmatprep.subr.bf16.mxu0 %v4956
        %6894 = vmatpush1.bf16.msra.mxu0 %v4955
        %6895 = vmatprep.subr.bf16.mxu0 %v4960
        %6896 = vmatpush1.bf16.msra.mxu0 %v4959
        %6897 = vmatprep.subr.bf16.mxu0 %v4964
        %6898 = vmatpush1.bf16.msra.mxu0 %v4963
        %6899 = vmatprep.mubr.bf16.mxu0 %v1520
        %6900 = vmatmul.mubr.bf16.gmra.mrb[0].mxu0 %v1519
        %v6901 = vpop.f32.mrb[0].mxu0
        %v6902 = vadd.f32 %v6859, %v6901
        %v6903 = vpop.f32.mrb[0].mxu0
        %v6904 = vadd.f32 %v6861, %v6903
        %v6905 = vpop.f32.mrb[0].mxu0
        %v6906 = vadd.f32 %v6863, %v6905
        %v6907 = vpop.f32.mrb[0].mxu0
        %v6908 = vadd.f32 %v6865, %v6907
        %6909 = vdwg.mxu0
        %6910 = vmatprep.subr.bf16.mxu0 %v4968
        %6911 = vmatpush1.bf16.msra.mxu0 %v4967
        %6912 = vmatprep.subr.bf16.mxu0 %v4972
        %6913 = vmatpush1.bf16.msra.mxu0 %v4971
        %6914 = vmatprep.subr.bf16.mxu0 %v4976
        %6915 = vmatpush1.bf16.msra.mxu0 %v4975
        %6916 = vmatprep.subr.bf16.mxu0 %v4980
        %6917 = vmatpush1.bf16.msra.mxu0 %v4979
        %6918 = vmatprep.subr.bf16.mxu0 %v4984
        %6919 = vmatpush1.bf16.msra.mxu0 %v4983
        %6920 = vmatprep.subr.bf16.mxu0 %v4988
        %6921 = vmatpush1.bf16.msra.mxu0 %v4987
        %6922 = vmatprep.subr.bf16.mxu0 %v4992
        %6923 = vmatpush1.bf16.msra.mxu0 %v4991
        %6924 = vmatprep.subr.bf16.mxu0 %v4996
        %6925 = vmatpush1.bf16.msra.mxu0 %v4995
        %6926 = vmatprep.subr.bf16.mxu0 %v5000
        %6927 = vmatpush1.bf16.msra.mxu0 %v4999
        %6928 = vmatprep.subr.bf16.mxu0 %v5004
        %6929 = vmatpush1.bf16.msra.mxu0 %v5003
        %6930 = vmatprep.subr.bf16.mxu0 %v5008
        %6931 = vmatpush1.bf16.msra.mxu0 %v5007
        %6932 = vmatprep.subr.bf16.mxu0 %v5012
        %6933 = vmatpush1.bf16.msra.mxu0 %v5011
        %6934 = vmatprep.subr.bf16.mxu0 %v5016
        %6935 = vmatpush1.bf16.msra.mxu0 %v5015
        %6936 = vmatprep.subr.bf16.mxu0 %v5020
        %6937 = vmatpush1.bf16.msra.mxu0 %v5019
        %6938 = vmatprep.subr.bf16.mxu0 %v5024
        %6939 = vmatpush1.bf16.msra.mxu0 %v5023
        %6940 = vmatprep.subr.bf16.mxu0 %v5028
        %6941 = vmatpush1.bf16.msra.mxu0 %v5027
        %6942 = vmatprep.mubr.bf16.mxu0 %v1522
        %6943 = vmatmul.mubr.bf16.gmra.mrb[0].mxu0 %v1521
        %v6944 = vpop.f32.mrb[0].mxu0
        %v6945 = vadd.f32 %v6902, %v6944
        %v6946 = vpop.f32.mrb[0].mxu0
        %v6947 = vadd.f32 %v6904, %v6946
        %v6948 = vpop.f32.mrb[0].mxu0
        %v6949 = vadd.f32 %v6906, %v6948
        %v6950 = vpop.f32.mrb[0].mxu0
        %v6951 = vadd.f32 %v6908, %v6950
        %6952 = vdwg.mxu0
        %6953 = vmatprep.subr.bf16.mxu0 %v5032
        %6954 = vmatpush1.bf16.msra.mxu0 %v5031
        %6955 = vmatprep.subr.bf16.mxu0 %v5036
        %6956 = vmatpush1.bf16.msra.mxu0 %v5035
        %6957 = vmatprep.subr.bf16.mxu0 %v5040
        %6958 = vmatpush1.bf16.msra.mxu0 %v5039
        %6959 = vmatprep.subr.bf16.mxu0 %v5044
        %6960 = vmatpush1.bf16.msra.mxu0 %v5043
        %6961 = vmatprep.subr.bf16.mxu0 %v5048
        %6962 = vmatpush1.bf16.msra.mxu0 %v5047
        %6963 = vmatprep.subr.bf16.mxu0 %v5052
        %6964 = vmatpush1.bf16.msra.mxu0 %v5051
        %6965 = vmatprep.subr.bf16.mxu0 %v5056
        %6966 = vmatpush1.bf16.msra.mxu0 %v5055
        %6967 = vmatprep.subr.bf16.mxu0 %v5060
        %6968 = vmatpush1.bf16.msra.mxu0 %v5059
        %6969 = vmatprep.subr.bf16.mxu0 %v5064
        %6970 = vmatpush1.bf16.msra.mxu0 %v5063
        %6971 = vmatprep.subr.bf16.mxu0 %v5068
        %6972 = vmatpush1.bf16.msra.mxu0 %v5067
        %6973 = vmatprep.subr.bf16.mxu0 %v5072
        %6974 = vmatpush1.bf16.msra.mxu0 %v5071
        %6975 = vmatprep.subr.bf16.mxu0 %v5076
        %6976 = vmatpush1.bf16.msra.mxu0 %v5075
        %6977 = vmatprep.subr.bf16.mxu0 %v5080
        %6978 = vmatpush1.bf16.msra.mxu0 %v5079
        %6979 = vmatprep.subr.bf16.mxu0 %v5084
        %6980 = vmatpush1.bf16.msra.mxu0 %v5083
        %6981 = vmatprep.subr.bf16.mxu0 %v5088
        %6982 = vmatpush1.bf16.msra.mxu0 %v5087
        %6983 = vmatprep.subr.bf16.mxu0 %v5092
        %6984 = vmatpush1.bf16.msra.mxu0 %v5091
        %6985 = vmatprep.mubr.bf16.mxu0 %v1524
        %6986 = vmatmul.mubr.bf16.gmra.mrb[0].mxu0 %v1523
        %v6987 = vpop.f32.mrb[0].mxu0
        %v6988 = vadd.f32 %v6945, %v6987
        %v6989 = vpop.f32.mrb[0].mxu0
        %v6990 = vadd.f32 %v6947, %v6989
        %v6991 = vpop.f32.mrb[0].mxu0
        %v6992 = vadd.f32 %v6949, %v6991
        %v6993 = vpop.f32.mrb[0].mxu0
        %v6994 = vadd.f32 %v6951, %v6993
        %6995 = vdwg.mxu0
        %6996 = vmatprep.subr.bf16.mxu0 %v5096
        %6997 = vmatpush1.bf16.msra.mxu0 %v5095
        %6998 = vmatprep.subr.bf16.mxu0 %v5100
        %6999 = vmatpush1.bf16.msra.mxu0 %v5099
        %7000 = vmatprep.subr.bf16.mxu0 %v5104
        %7001 = vmatpush1.bf16.msra.mxu0 %v5103
        %7002 = vmatprep.subr.bf16.mxu0 %v5108
        %7003 = vmatpush1.bf16.msra.mxu0 %v5107
        %7004 = vmatprep.subr.bf16.mxu0 %v5112
        %7005 = vmatpush1.bf16.msra.mxu0 %v5111
        %7006 = vmatprep.subr.bf16.mxu0 %v5116
        %7007 = vmatpush1.bf16.msra.mxu0 %v5115
        %7008 = vmatprep.subr.bf16.mxu0 %v5120
        %7009 = vmatpush1.bf16.msra.mxu0 %v5119
        %7010 = vmatprep.subr.bf16.mxu0 %v5124
        %7011 = vmatpush1.bf16.msra.mxu0 %v5123
        %7012 = vmatprep.subr.bf16.mxu0 %v5128
        %7013 = vmatpush1.bf16.msra.mxu0 %v5127
        %7014 = vmatprep.subr.bf16.mxu0 %v5132
        %7015 = vmatpush1.bf16.msra.mxu0 %v5131
        %7016 = vmatprep.subr.bf16.mxu0 %v5136
        %7017 = vmatpush1.bf16.msra.mxu0 %v5135
        %7018 = vmatprep.subr.bf16.mxu0 %v5140
        %7019 = vmatpush1.bf16.msra.mxu0 %v5139
        %7020 = vmatprep.subr.bf16.mxu0 %v5144
        %7021 = vmatpush1.bf16.msra.mxu0 %v5143
        %7022 = vmatprep.subr.bf16.mxu0 %v5148
        %7023 = vmatpush1.bf16.msra.mxu0 %v5147
        %7024 = vmatprep.subr.bf16.mxu0 %v5152
        %7025 = vmatpush1.bf16.msra.mxu0 %v5151
        %7026 = vmatprep.subr.bf16.mxu0 %v5156
        %7027 = vmatpush1.bf16.msra.mxu0 %v5155
        %7028 = vmatprep.mubr.bf16.mxu0 %v1526
        %7029 = vmatmul.mubr.bf16.gmra.mrb[0].mxu0 %v1525
        %v7030 = vpop.f32.mrb[0].mxu0
        %v7031 = vadd.f32 %v6988, %v7030
        %v7032 = vpop.f32.mrb[0].mxu0
        %v7033 = vadd.f32 %v6990, %v7032
        %v7034 = vpop.f32.mrb[0].mxu0
        %v7035 = vadd.f32 %v6992, %v7034
        %v7036 = vpop.f32.mrb[0].mxu0
        %v7037 = vadd.f32 %v6994, %v7036
        %7038 = vdwg.mxu0
        %7039 = vmatprep.subr.bf16.mxu0 %v5160
        %7040 = vmatpush1.bf16.msra.mxu0 %v5159
        %7041 = vmatprep.subr.bf16.mxu0 %v5164
        %7042 = vmatpush1.bf16.msra.mxu0 %v5163
        %7043 = vmatprep.subr.bf16.mxu0 %v5168
        %7044 = vmatpush1.bf16.msra.mxu0 %v5167
        %7045 = vmatprep.subr.bf16.mxu0 %v5172
        %7046 = vmatpush1.bf16.msra.mxu0 %v5171
        %7047 = vmatprep.subr.bf16.mxu0 %v5176
        %7048 = vmatpush1.bf16.msra.mxu0 %v5175
        %7049 = vmatprep.subr.bf16.mxu0 %v5180
        %7050 = vmatpush1.bf16.msra.mxu0 %v5179
        %7051 = vmatprep.subr.bf16.mxu0 %v5184
        %7052 = vmatpush1.bf16.msra.mxu0 %v5183
        %7053 = vmatprep.subr.bf16.mxu0 %v5188
        %7054 = vmatpush1.bf16.msra.mxu0 %v5187
        %7055 = vmatprep.subr.bf16.mxu0 %v5192
        %7056 = vmatpush1.bf16.msra.mxu0 %v5191
        %7057 = vmatprep.subr.bf16.mxu0 %v5196
        %7058 = vmatpush1.bf16.msra.mxu0 %v5195
        %7059 = vmatprep.subr.bf16.mxu0 %v5200
        %7060 = vmatpush1.bf16.msra.mxu0 %v5199
        %7061 = vmatprep.subr.bf16.mxu0 %v5204
        %7062 = vmatpush1.bf16.msra.mxu0 %v5203
        %7063 = vmatprep.subr.bf16.mxu0 %v5208
        %7064 = vmatpush1.bf16.msra.mxu0 %v5207
        %7065 = vmatprep.subr.bf16.mxu0 %v5212
        %7066 = vmatpush1.bf16.msra.mxu0 %v5211
        %7067 = vmatprep.subr.bf16.mxu0 %v5216
        %7068 = vmatpush1.bf16.msra.mxu0 %v5215
        %7069 = vmatprep.subr.bf16.mxu0 %v5220
        %7070 = vmatpush1.bf16.msra.mxu0 %v5219
        %7071 = vmatprep.mubr.bf16.mxu0 %v1528
        %7072 = vmatmul.mubr.bf16.gmra.mrb[0].mxu0 %v1527
        %v7073 = vpop.f32.mrb[0].mxu0
        %v7074 = vadd.f32 %v7031, %v7073
        %v7075 = vpop.f32.mrb[0].mxu0
        %v7076 = vadd.f32 %v7033, %v7075
        %v7077 = vpop.f32.mrb[0].mxu0
        %v7078 = vadd.f32 %v7035, %v7077
        %v7079 = vpop.f32.mrb[0].mxu0
        %v7080 = vadd.f32 %v7037, %v7079
        %7081 = vdwg.mxu0
        %7082 = vmatprep.subr.bf16.mxu0 %v5224
        %7083 = vmatpush1.bf16.msra.mxu0 %v5223
        %7084 = vmatprep.subr.bf16.mxu0 %v5228
        %7085 = vmatpush1.bf16.msra.mxu0 %v5227
        %7086 = vmatprep.subr.bf16.mxu0 %v5232
        %7087 = vmatpush1.bf16.msra.mxu0 %v5231
        %7088 = vmatprep.subr.bf16.mxu0 %v5236
        %7089 = vmatpush1.bf16.msra.mxu0 %v5235
        %7090 = vmatprep.subr.bf16.mxu0 %v5240
        %7091 = vmatpush1.bf16.msra.mxu0 %v5239
        %7092 = vmatprep.subr.bf16.mxu0 %v5244
        %7093 = vmatpush1.bf16.msra.mxu0 %v5243
        %7094 = vmatprep.subr.bf16.mxu0 %v5248
        %7095 = vmatpush1.bf16.msra.mxu0 %v5247
        %7096 = vmatprep.subr.bf16.mxu0 %v5252
        %7097 = vmatpush1.bf16.msra.mxu0 %v5251
        %7098 = vmatprep.subr.bf16.mxu0 %v5256
        %7099 = vmatpush1.bf16.msra.mxu0 %v5255
        %7100 = vmatprep.subr.bf16.mxu0 %v5260
        %7101 = vmatpush1.bf16.msra.mxu0 %v5259
        %7102 = vmatprep.subr.bf16.mxu0 %v5264
        %7103 = vmatpush1.bf16.msra.mxu0 %v5263
        %7104 = vmatprep.subr.bf16.mxu0 %v5268
        %7105 = vmatpush1.bf16.msra.mxu0 %v5267
        %7106 = vmatprep.subr.bf16.mxu0 %v5272
        %7107 = vmatpush1.bf16.msra.mxu0 %v5271
        %7108 = vmatprep.subr.bf16.mxu0 %v5276
        %7109 = vmatpush1.bf16.msra.mxu0 %v5275
        %7110 = vmatprep.subr.bf16.mxu0 %v5280
        %7111 = vmatpush1.bf16.msra.mxu0 %v5279
        %7112 = vmatprep.subr.bf16.mxu0 %v5284
        %7113 = vmatpush1.bf16.msra.mxu0 %v5283
        %7114 = vmatprep.mubr.bf16.mxu0 %v1530
        %7115 = vmatmul.mubr.bf16.gmra.mrb[0].mxu0 %v1529
        %v7116 = vpop.f32.mrb[0].mxu0
        %v7117 = vadd.f32 %v7074, %v7116
        %v7118 = vpop.f32.mrb[0].mxu0
        %v7119 = vadd.f32 %v7076, %v7118
        %v7120 = vpop.f32.mrb[0].mxu0
        %v7121 = vadd.f32 %v7078, %v7120
        %v7122 = vpop.f32.mrb[0].mxu0
        %v7123 = vadd.f32 %v7080, %v7122
        %7124 = vdwg.mxu0
        %7125 = vmatprep.subr.bf16.mxu0 %v5288
        %7126 = vmatpush1.bf16.msra.mxu0 %v5287
        %7127 = vmatprep.subr.bf16.mxu0 %v5292
        %7128 = vmatpush1.bf16.msra.mxu0 %v5291
        %7129 = vmatprep.subr.bf16.mxu0 %v5296
        %7130 = vmatpush1.bf16.msra.mxu0 %v5295
        %7131 = vmatprep.subr.bf16.mxu0 %v5300
        %7132 = vmatpush1.bf16.msra.mxu0 %v5299
        %7133 = vmatprep.subr.bf16.mxu0 %v5304
        %7134 = vmatpush1.bf16.msra.mxu0 %v5303
        %7135 = vmatprep.subr.bf16.mxu0 %v5308
        %7136 = vmatpush1.bf16.msra.mxu0 %v5307
        %7137 = vmatprep.subr.bf16.mxu0 %v5312
        %7138 = vmatpush1.bf16.msra.mxu0 %v5311
        %7139 = vmatprep.subr.bf16.mxu0 %v5316
        %7140 = vmatpush1.bf16.msra.mxu0 %v5315
        %7141 = vmatprep.subr.bf16.mxu0 %v5320
        %7142 = vmatpush1.bf16.msra.mxu0 %v5319
        %7143 = vmatprep.subr.bf16.mxu0 %v5324
        %7144 = vmatpush1.bf16.msra.mxu0 %v5323
        %7145 = vmatprep.subr.bf16.mxu0 %v5328
        %7146 = vmatpush1.bf16.msra.mxu0 %v5327
        %7147 = vmatprep.subr.bf16.mxu0 %v5332
        %7148 = vmatpush1.bf16.msra.mxu0 %v5331
        %7149 = vmatprep.subr.bf16.mxu0 %v5336
        %7150 = vmatpush1.bf16.msra.mxu0 %v5335
        %7151 = vmatprep.subr.bf16.mxu0 %v5340
        %7152 = vmatpush1.bf16.msra.mxu0 %v5339
        %7153 = vmatprep.subr.bf16.mxu0 %v5344
        %7154 = vmatpush1.bf16.msra.mxu0 %v5343
        %7155 = vmatprep.subr.bf16.mxu0 %v5348
        %7156 = vmatpush1.bf16.msra.mxu0 %v5347
        %7157 = vmatprep.mubr.bf16.mxu0 %v1532
        %7158 = vmatmul.mubr.bf16.gmra.mrb[0].mxu0 %v1531
        %v7159 = vpop.f32.mrb[0].mxu0
        %v7160 = vadd.f32 %v7117, %v7159
        %v7161 = vpop.f32.mrb[0].mxu0
        %v7162 = vadd.f32 %v7119, %v7161
        %v7163 = vpop.f32.mrb[0].mxu0
        %v7164 = vadd.f32 %v7121, %v7163
        %v7165 = vpop.f32.mrb[0].mxu0
        %v7166 = vadd.f32 %v7123, %v7165
        %7167 = vdwg.mxu0
        %7168 = vmatprep.subr.bf16.mxu0 %v5352
        %7169 = vmatpush1.bf16.msra.mxu0 %v5351
        %7170 = vmatprep.subr.bf16.mxu0 %v5356
        %7171 = vmatpush1.bf16.msra.mxu0 %v5355
        %7172 = vmatprep.subr.bf16.mxu0 %v5360
        %7173 = vmatpush1.bf16.msra.mxu0 %v5359
        %7174 = vmatprep.subr.bf16.mxu0 %v5364
        %7175 = vmatpush1.bf16.msra.mxu0 %v5363
        %7176 = vmatprep.subr.bf16.mxu0 %v5368
        %7177 = vmatpush1.bf16.msra.mxu0 %v5367
        %7178 = vmatprep.subr.bf16.mxu0 %v5372
        %7179 = vmatpush1.bf16.msra.mxu0 %v5371
        %7180 = vmatprep.subr.bf16.mxu0 %v5376
        %7181 = vmatpush1.bf16.msra.mxu0 %v5375
        %7182 = vmatprep.subr.bf16.mxu0 %v5380
        %7183 = vmatpush1.bf16.msra.mxu0 %v5379
        %7184 = vmatprep.subr.bf16.mxu0 %v5384
        %7185 = vmatpush1.bf16.msra.mxu0 %v5383
        %7186 = vmatprep.subr.bf16.mxu0 %v5388
        %7187 = vmatpush1.bf16.msra.mxu0 %v5387
        %7188 = vmatprep.subr.bf16.mxu0 %v5392
        %7189 = vmatpush1.bf16.msra.mxu0 %v5391
        %7190 = vmatprep.subr.bf16.mxu0 %v5396
        %7191 = vmatpush1.bf16.msra.mxu0 %v5395
        %7192 = vmatprep.subr.bf16.mxu0 %v5400
        %7193 = vmatpush1.bf16.msra.mxu0 %v5399
        %7194 = vmatprep.subr.bf16.mxu0 %v5404
        %7195 = vmatpush1.bf16.msra.mxu0 %v5403
        %7196 = vmatprep.subr.bf16.mxu0 %v5408
        %7197 = vmatpush1.bf16.msra.mxu0 %v5407
        %7198 = vmatprep.subr.bf16.mxu0 %v5412
        %7199 = vmatpush1.bf16.msra.mxu0 %v5411
        %7200 = vmatprep.mubr.bf16.mxu0 %v1534
        %7201 = vmatmul.mubr.bf16.gmra.mrb[0].mxu0 %v1533
        %v7202 = vpop.f32.mrb[0].mxu0
        %v7203 = vadd.f32 %v7160, %v7202
        %v7204 = vpop.f32.mrb[0].mxu0
        %v7205 = vadd.f32 %v7162, %v7204
        %v7206 = vpop.f32.mrb[0].mxu0
        %v7207 = vadd.f32 %v7164, %v7206
        %v7208 = vpop.f32.mrb[0].mxu0
        %v7209 = vadd.f32 %v7166, %v7208
        %7210 = vdwg.mxu0
        %7211 = vmatprep.subr.bf16.mxu0 %v5416
        %7212 = vmatpush1.bf16.msra.mxu0 %v5415
        %7213 = vmatprep.subr.bf16.mxu0 %v5420
        %7214 = vmatpush1.bf16.msra.mxu0 %v5419
        %7215 = vmatprep.subr.bf16.mxu0 %v5424
        %7216 = vmatpush1.bf16.msra.mxu0 %v5423
        %7217 = vmatprep.subr.bf16.mxu0 %v5428
        %7218 = vmatpush1.bf16.msra.mxu0 %v5427
        %7219 = vmatprep.subr.bf16.mxu0 %v5432
        %7220 = vmatpush1.bf16.msra.mxu0 %v5431
        %7221 = vmatprep.subr.bf16.mxu0 %v5436
        %7222 = vmatpush1.bf16.msra.mxu0 %v5435
        %7223 = vmatprep.subr.bf16.mxu0 %v5440
        %7224 = vmatpush1.bf16.msra.mxu0 %v5439
        %7225 = vmatprep.subr.bf16.mxu0 %v5444
        %7226 = vmatpush1.bf16.msra.mxu0 %v5443
        %7227 = vmatprep.subr.bf16.mxu0 %v5448
        %7228 = vmatpush1.bf16.msra.mxu0 %v5447
        %7229 = vmatprep.subr.bf16.mxu0 %v5452
        %7230 = vmatpush1.bf16.msra.mxu0 %v5451
        %7231 = vmatprep.subr.bf16.mxu0 %v5456
        %7232 = vmatpush1.bf16.msra.mxu0 %v5455
        %7233 = vmatprep.subr.bf16.mxu0 %v5460
        %7234 = vmatpush1.bf16.msra.mxu0 %v5459
        %7235 = vmatprep.subr.bf16.mxu0 %v5464
        %7236 = vmatpush1.bf16.msra.mxu0 %v5463
        %7237 = vmatprep.subr.bf16.mxu0 %v5468
        %7238 = vmatpush1.bf16.msra.mxu0 %v5467
        %7239 = vmatprep.subr.bf16.mxu0 %v5472
        %7240 = vmatpush1.bf16.msra.mxu0 %v5471
        %7241 = vmatprep.subr.bf16.mxu0 %v5476
        %7242 = vmatpush1.bf16.msra.mxu0 %v5475
        %7243 = vmatprep.mubr.bf16.mxu0 %v1536
        %7244 = vmatmul.mubr.bf16.gmra.mrb[0].mxu0 %v1535
        %v7245 = vpop.f32.mrb[0].mxu0
        %v7246 = vadd.f32 %v7203, %v7245
        %v7247 = vpop.f32.mrb[0].mxu0
        %v7248 = vadd.f32 %v7205, %v7247
        %v7249 = vpop.f32.mrb[0].mxu0
        %v7250 = vadd.f32 %v7207, %v7249
        %v7251 = vpop.f32.mrb[0].mxu0
        %v7252 = vadd.f32 %v7209, %v7251
        %7253 = vdwg.mxu0
        %7254 = vmatprep.subr.bf16.mxu0 %v5480
        %7255 = vmatpush1.bf16.msra.mxu0 %v5479
        %7256 = vmatprep.subr.bf16.mxu0 %v5484
        %7257 = vmatpush1.bf16.msra.mxu0 %v5483
        %7258 = vmatprep.subr.bf16.mxu0 %v5488
        %7259 = vmatpush1.bf16.msra.mxu0 %v5487
        %7260 = vmatprep.subr.bf16.mxu0 %v5492
        %7261 = vmatpush1.bf16.msra.mxu0 %v5491
        %7262 = vmatprep.subr.bf16.mxu0 %v5496
        %7263 = vmatpush1.bf16.msra.mxu0 %v5495
        %7264 = vmatprep.subr.bf16.mxu0 %v5500
        %7265 = vmatpush1.bf16.msra.mxu0 %v5499
        %7266 = vmatprep.subr.bf16.mxu0 %v5504
        %7267 = vmatpush1.bf16.msra.mxu0 %v5503
        %7268 = vmatprep.subr.bf16.mxu0 %v5508
        %7269 = vmatpush1.bf16.msra.mxu0 %v5507
        %7270 = vmatprep.subr.bf16.mxu0 %v5512
        %7271 = vmatpush1.bf16.msra.mxu0 %v5511
        %7272 = vmatprep.subr.bf16.mxu0 %v5516
        %7273 = vmatpush1.bf16.msra.mxu0 %v5515
        %7274 = vmatprep.subr.bf16.mxu0 %v5520
        %7275 = vmatpush1.bf16.msra.mxu0 %v5519
        %7276 = vmatprep.subr.bf16.mxu0 %v5524
        %7277 = vmatpush1.bf16.msra.mxu0 %v5523
        %7278 = vmatprep.subr.bf16.mxu0 %v5528
        %7279 = vmatpush1.bf16.msra.mxu0 %v5527
        %7280 = vmatprep.subr.bf16.mxu0 %v5532
        %7281 = vmatpush1.bf16.msra.mxu0 %v5531
        %7282 = vmatprep.subr.bf16.mxu0 %v5536
        %7283 = vmatpush1.bf16.msra.mxu0 %v5535
        %7284 = vmatprep.subr.bf16.mxu0 %v5540
        %7285 = vmatpush1.bf16.msra.mxu0 %v5539
        %7286 = vmatprep.mubr.bf16.mxu0 %v1538
        %7287 = vmatmul.mubr.bf16.gmra.mrb[0].mxu0 %v1537
        %v7288 = vpop.f32.mrb[0].mxu0
        %v7289 = vadd.f32 %v7246, %v7288
        %v7290 = vpop.f32.mrb[0].mxu0
        %v7291 = vadd.f32 %v7248, %v7290
        %v7292 = vpop.f32.mrb[0].mxu0
        %v7293 = vadd.f32 %v7250, %v7292
        %v7294 = vpop.f32.mrb[0].mxu0
        %v7295 = vadd.f32 %v7252, %v7294
        %7296 = vdwg.mxu0
        %7297 = vmatprep.subr.bf16.mxu0 %v5544
        %7298 = vmatpush1.bf16.msra.mxu0 %v5543
        %7299 = vmatprep.subr.bf16.mxu0 %v5548
        %7300 = vmatpush1.bf16.msra.mxu0 %v5547
        %7301 = vmatprep.subr.bf16.mxu0 %v5552
        %7302 = vmatpush1.bf16.msra.mxu0 %v5551
        %7303 = vmatprep.subr.bf16.mxu0 %v5556
        %7304 = vmatpush1.bf16.msra.mxu0 %v5555
        %7305 = vmatprep.subr.bf16.mxu0 %v5560
        %7306 = vmatpush1.bf16.msra.mxu0 %v5559
        %7307 = vmatprep.subr.bf16.mxu0 %v5564
        %7308 = vmatpush1.bf16.msra.mxu0 %v5563
        %7309 = vmatprep.subr.bf16.mxu0 %v5568
        %7310 = vmatpush1.bf16.msra.mxu0 %v5567
        %7311 = vmatprep.subr.bf16.mxu0 %v5572
        %7312 = vmatpush1.bf16.msra.mxu0 %v5571
        %7313 = vmatprep.subr.bf16.mxu0 %v5576
        %7314 = vmatpush1.bf16.msra.mxu0 %v5575
        %7315 = vmatprep.subr.bf16.mxu0 %v5580
        %7316 = vmatpush1.bf16.msra.mxu0 %v5579
        %7317 = vmatprep.subr.bf16.mxu0 %v5584
        %7318 = vmatpush1.bf16.msra.mxu0 %v5583
        %7319 = vmatprep.subr.bf16.mxu0 %v5588
        %7320 = vmatpush1.bf16.msra.mxu0 %v5587
        %7321 = vmatprep.subr.bf16.mxu0 %v5592
        %7322 = vmatpush1.bf16.msra.mxu0 %v5591
        %7323 = vmatprep.subr.bf16.mxu0 %v5596
        %7324 = vmatpush1.bf16.msra.mxu0 %v5595
        %7325 = vmatprep.subr.bf16.mxu0 %v5600
        %7326 = vmatpush1.bf16.msra.mxu0 %v5599
        %7327 = vmatprep.subr.bf16.mxu0 %v5604
        %7328 = vmatpush1.bf16.msra.mxu0 %v5603
        %7329 = vmatprep.mubr.bf16.mxu0 %v1540
        %7330 = vmatmul.mubr.bf16.gmra.mrb[0].mxu0 %v1539
        %v7331 = vpop.f32.mrb[0].mxu0
        %v7332 = vadd.f32 %v7289, %v7331
        %v7333 = vpop.f32.mrb[0].mxu0
        %v7334 = vadd.f32 %v7291, %v7333
        %v7335 = vpop.f32.mrb[0].mxu0
        %v7336 = vadd.f32 %v7293, %v7335
        %v7337 = vpop.f32.mrb[0].mxu0
        %v7338 = vadd.f32 %v7295, %v7337
        %7339 = vdwg.mxu0
        %7340 = vmatprep.subr.bf16.mxu0 %v5608
        %7341 = vmatpush1.bf16.msra.mxu0 %v5607
        %7342 = vmatprep.subr.bf16.mxu0 %v5612
        %7343 = vmatpush1.bf16.msra.mxu0 %v5611
        %7344 = vmatprep.subr.bf16.mxu0 %v5616
        %7345 = vmatpush1.bf16.msra.mxu0 %v5615
        %7346 = vmatprep.subr.bf16.mxu0 %v5620
        %7347 = vmatpush1.bf16.msra.mxu0 %v5619
        %7348 = vmatprep.subr.bf16.mxu0 %v5624
        %7349 = vmatpush1.bf16.msra.mxu0 %v5623
        %7350 = vmatprep.subr.bf16.mxu0 %v5628
        %7351 = vmatpush1.bf16.msra.mxu0 %v5627
        %7352 = vmatprep.subr.bf16.mxu0 %v5632
        %7353 = vmatpush1.bf16.msra.mxu0 %v5631
        %7354 = vmatprep.subr.bf16.mxu0 %v5636
        %7355 = vmatpush1.bf16.msra.mxu0 %v5635
        %7356 = vmatprep.subr.bf16.mxu0 %v5640
        %7357 = vmatpush1.bf16.msra.mxu0 %v5639
        %7358 = vmatprep.subr.bf16.mxu0 %v5644
        %7359 = vmatpush1.bf16.msra.mxu0 %v5643
        %7360 = vmatprep.subr.bf16.mxu0 %v5648
        %7361 = vmatpush1.bf16.msra.mxu0 %v5647
        %7362 = vmatprep.subr.bf16.mxu0 %v5652
        %7363 = vmatpush1.bf16.msra.mxu0 %v5651
        %7364 = vmatprep.subr.bf16.mxu0 %v5656
        %7365 = vmatpush1.bf16.msra.mxu0 %v5655
        %7366 = vmatprep.subr.bf16.mxu0 %v5660
        %7367 = vmatpush1.bf16.msra.mxu0 %v5659
        %7368 = vmatprep.subr.bf16.mxu0 %v5664
        %7369 = vmatpush1.bf16.msra.mxu0 %v5663
        %7370 = vmatprep.subr.bf16.mxu0 %v5668
        %7371 = vmatpush1.bf16.msra.mxu0 %v5667
        %7372 = vmatprep.mubr.bf16.mxu0 %v1542
        %7373 = vmatmul.mubr.bf16.gmra.mrb[0].mxu0 %v1541
        %v7374 = vpop.f32.mrb[0].mxu0
        %v7375 = vadd.f32 %v7332, %v7374
        %v7376 = vpop.f32.mrb[0].mxu0
        %v7377 = vadd.f32 %v7334, %v7376
        %v7378 = vpop.f32.mrb[0].mxu0
        %v7379 = vadd.f32 %v7336, %v7378
        %v7380 = vpop.f32.mrb[0].mxu0
        %v7381 = vadd.f32 %v7338, %v7380
        %7382 = vdwg.mxu0
        %7383 = vmatprep.subr.bf16.mxu0 %v4650
        %7384 = vmatpush1.bf16.msra.mxu0 %v4649
        %7385 = vmatprep.subr.bf16.mxu0 %v4654
        %7386 = vmatpush1.bf16.msra.mxu0 %v4653
        %7387 = vmatprep.subr.bf16.mxu0 %v4658
        %7388 = vmatpush1.bf16.msra.mxu0 %v4657
        %7389 = vmatprep.subr.bf16.mxu0 %v4662
        %7390 = vmatpush1.bf16.msra.mxu0 %v4661
        %7391 = vmatprep.subr.bf16.mxu0 %v4666
        %7392 = vmatpush1.bf16.msra.mxu0 %v4665
        %7393 = vmatprep.subr.bf16.mxu0 %v4670
        %7394 = vmatpush1.bf16.msra.mxu0 %v4669
        %7395 = vmatprep.subr.bf16.mxu0 %v4674
        %7396 = vmatpush1.bf16.msra.mxu0 %v4673
        %7397 = vmatprep.subr.bf16.mxu0 %v4678
        %7398 = vmatpush1.bf16.msra.mxu0 %v4677
        %7399 = vmatprep.subr.bf16.mxu0 %v4682
        %7400 = vmatpush1.bf16.msra.mxu0 %v4681
        %7401 = vmatprep.subr.bf16.mxu0 %v4686
        %7402 = vmatpush1.bf16.msra.mxu0 %v4685
        %7403 = vmatprep.subr.bf16.mxu0 %v4690
        %7404 = vmatpush1.bf16.msra.mxu0 %v4689
        %7405 = vmatprep.subr.bf16.mxu0 %v4694
        %7406 = vmatpush1.bf16.msra.mxu0 %v4693
        %7407 = vmatprep.subr.bf16.mxu0 %v4698
        %7408 = vmatpush1.bf16.msra.mxu0 %v4697
        %7409 = vmatprep.subr.bf16.mxu0 %v4702
        %7410 = vmatpush1.bf16.msra.mxu0 %v4701
        %7411 = vmatprep.subr.bf16.mxu0 %v4706
        %7412 = vmatpush1.bf16.msra.mxu0 %v4705
        %7413 = vmatprep.subr.bf16.mxu0 %v4710
        %7414 = vmatpush1.bf16.msra.mxu0 %v4709
        %7415 = vmatprep.mubr.bf16.mxu0 %v1512
        %7416 = vmatmul.mubr.bf16.gmra.mrb[0].mxu0 %v1511
        %v7417 = vpop.f32.mrb[0].mxu0
        %v7418 = vadd.f32 %v1406, %v7417
        %v7419 = vpop.f32.mrb[0].mxu0
        %v7420 = vadd.f32 %v1410, %v7419
        %v7421 = vpop.f32.mrb[0].mxu0
        %v7422 = vadd.f32 %v1406, %v7421
        %v7423 = vpop.f32.mrb[0].mxu0
        %v7424 = vadd.f32 %v1410, %v7423
        %7425 = vdwg.mxu0
        %7426 = vmatprep.subr.bf16.mxu0 %v4714
        %7427 = vmatpush1.bf16.msra.mxu0 %v4713
        %7428 = vmatprep.subr.bf16.mxu0 %v4718
        %7429 = vmatpush1.bf16.msra.mxu0 %v4717
        %7430 = vmatprep.subr.bf16.mxu0 %v4722
        %7431 = vmatpush1.bf16.msra.mxu0 %v4721
        %7432 = vmatprep.subr.bf16.mxu0 %v4726
        %7433 = vmatpush1.bf16.msra.mxu0 %v4725
        %7434 = vmatprep.subr.bf16.mxu0 %v4730
        %7435 = vmatpush1.bf16.msra.mxu0 %v4729
        %7436 = vmatprep.subr.bf16.mxu0 %v4734
        %7437 = vmatpush1.bf16.msra.mxu0 %v4733
        %7438 = vmatprep.subr.bf16.mxu0 %v4738
        %7439 = vmatpush1.bf16.msra.mxu0 %v4737
        %7440 = vmatprep.subr.bf16.mxu0 %v4742
        %7441 = vmatpush1.bf16.msra.mxu0 %v4741
        %7442 = vmatprep.subr.bf16.mxu0 %v4746
        %7443 = vmatpush1.bf16.msra.mxu0 %v4745
        %7444 = vmatprep.subr.bf16.mxu0 %v4750
        %7445 = vmatpush1.bf16.msra.mxu0 %v4749
        %7446 = vmatprep.subr.bf16.mxu0 %v4754
        %7447 = vmatpush1.bf16.msra.mxu0 %v4753
        %7448 = vmatprep.subr.bf16.mxu0 %v4758
        %7449 = vmatpush1.bf16.msra.mxu0 %v4757
        %7450 = vmatprep.subr.bf16.mxu0 %v4762
        %7451 = vmatpush1.bf16.msra.mxu0 %v4761
        %7452 = vmatprep.subr.bf16.mxu0 %v4766
        %7453 = vmatpush1.bf16.msra.mxu0 %v4765
        %7454 = vmatprep.subr.bf16.mxu0 %v4770
        %7455 = vmatpush1.bf16.msra.mxu0 %v4769
        %7456 = vmatprep.subr.bf16.mxu0 %v4774
        %7457 = vmatpush1.bf16.msra.mxu0 %v4773
        %7458 = vmatprep.mubr.bf16.mxu0 %v1514
        %7459 = vmatmul.mubr.bf16.gmra.mrb[0].mxu0 %v1513
        %v7460 = vpop.f32.mrb[0].mxu0
        %v7461 = vadd.f32 %v7418, %v7460
        %v7462 = vpop.f32.mrb[0].mxu0
        %v7463 = vadd.f32 %v7420, %v7462
        %v7464 = vpop.f32.mrb[0].mxu0
        %v7465 = vadd.f32 %v7422, %v7464
        %v7466 = vpop.f32.mrb[0].mxu0
        %v7467 = vadd.f32 %v7424, %v7466
        %7468 = vdwg.mxu0
        %7469 = vmatprep.subr.bf16.mxu0 %v4778
        %7470 = vmatpush1.bf16.msra.mxu0 %v4777
        %7471 = vmatprep.subr.bf16.mxu0 %v4782
        %7472 = vmatpush1.bf16.msra.mxu0 %v4781
        %7473 = vmatprep.subr.bf16.mxu0 %v4786
        %7474 = vmatpush1.bf16.msra.mxu0 %v4785
        %7475 = vmatprep.subr.bf16.mxu0 %v4790
        %7476 = vmatpush1.bf16.msra.mxu0 %v4789
        %7477 = vmatprep.subr.bf16.mxu0 %v4794
        %7478 = vmatpush1.bf16.msra.mxu0 %v4793
        %7479 = vmatprep.subr.bf16.mxu0 %v4798
        %7480 = vmatpush1.bf16.msra.mxu0 %v4797
        %7481 = vmatprep.subr.bf16.mxu0 %v4802
        %7482 = vmatpush1.bf16.msra.mxu0 %v4801
        %7483 = vmatprep.subr.bf16.mxu0 %v4806
        %7484 = vmatpush1.bf16.msra.mxu0 %v4805
        %7485 = vmatprep.subr.bf16.mxu0 %v4810
        %7486 = vmatpush1.bf16.msra.mxu0 %v4809
        %7487 = vmatprep.subr.bf16.mxu0 %v4814
        %7488 = vmatpush1.bf16.msra.mxu0 %v4813
        %7489 = vmatprep.subr.bf16.mxu0 %v4818
        %7490 = vmatpush1.bf16.msra.mxu0 %v4817
        %7491 = vmatprep.subr.bf16.mxu0 %v4822
        %7492 = vmatpush1.bf16.msra.mxu0 %v4821
        %7493 = vmatprep.subr.bf16.mxu0 %v4826
        %7494 = vmatpush1.bf16.msra.mxu0 %v4825
        %7495 = vmatprep.subr.bf16.mxu0 %v4830
        %7496 = vmatpush1.bf16.msra.mxu0 %v4829
        %7497 = vmatprep.subr.bf16.mxu0 %v4834
        %7498 = vmatpush1.bf16.msra.mxu0 %v4833
        %7499 = vmatprep.subr.bf16.mxu0 %v4838
        %7500 = vmatpush1.bf16.msra.mxu0 %v4837
        %7501 = vmatprep.mubr.bf16.mxu0 %v1516
        %7502 = vmatmul.mubr.bf16.gmra.mrb[0].mxu0 %v1515
        %v7503 = vpop.f32.mrb[0].mxu0
        %v7504 = vadd.f32 %v7461, %v7503
        %v7505 = vpop.f32.mrb[0].mxu0
        %v7506 = vadd.f32 %v7463, %v7505
        %v7507 = vpop.f32.mrb[0].mxu0
        %v7508 = vadd.f32 %v7465, %v7507
        %v7509 = vpop.f32.mrb[0].mxu0
        %v7510 = vadd.f32 %v7467, %v7509
        %7511 = vdwg.mxu0
        %7512 = vmatprep.subr.bf16.mxu0 %v4842
        %7513 = vmatpush1.bf16.msra.mxu0 %v4841
        %7514 = vmatprep.subr.bf16.mxu0 %v4846
        %7515 = vmatpush1.bf16.msra.mxu0 %v4845
        %7516 = vmatprep.subr.bf16.mxu0 %v4850
        %7517 = vmatpush1.bf16.msra.mxu0 %v4849
        %7518 = vmatprep.subr.bf16.mxu0 %v4854
        %7519 = vmatpush1.bf16.msra.mxu0 %v4853
        %7520 = vmatprep.subr.bf16.mxu0 %v4858
        %7521 = vmatpush1.bf16.msra.mxu0 %v4857
        %7522 = vmatprep.subr.bf16.mxu0 %v4862
        %7523 = vmatpush1.bf16.msra.mxu0 %v4861
        %7524 = vmatprep.subr.bf16.mxu0 %v4866
        %7525 = vmatpush1.bf16.msra.mxu0 %v4865
        %7526 = vmatprep.subr.bf16.mxu0 %v4870
        %7527 = vmatpush1.bf16.msra.mxu0 %v4869
        %7528 = vmatprep.subr.bf16.mxu0 %v4874
        %7529 = vmatpush1.bf16.msra.mxu0 %v4873
        %7530 = vmatprep.subr.bf16.mxu0 %v4878
        %7531 = vmatpush1.bf16.msra.mxu0 %v4877
        %7532 = vmatprep.subr.bf16.mxu0 %v4882
        %7533 = vmatpush1.bf16.msra.mxu0 %v4881
        %7534 = vmatprep.subr.bf16.mxu0 %v4886
        %7535 = vmatpush1.bf16.msra.mxu0 %v4885
        %7536 = vmatprep.subr.bf16.mxu0 %v4890
        %7537 = vmatpush1.bf16.msra.mxu0 %v4889
        %7538 = vmatprep.subr.bf16.mxu0 %v4894
        %7539 = vmatpush1.bf16.msra.mxu0 %v4893
        %7540 = vmatprep.subr.bf16.mxu0 %v4898
        %7541 = vmatpush1.bf16.msra.mxu0 %v4897
        %7542 = vmatprep.subr.bf16.mxu0 %v4902
        %7543 = vmatpush1.bf16.msra.mxu0 %v4901
        %7544 = vmatprep.mubr.bf16.mxu0 %v1518
        %7545 = vmatmul.mubr.bf16.gmra.mrb[0].mxu0 %v1517
        %v7546 = vpop.f32.mrb[0].mxu0
        %v7547 = vadd.f32 %v7504, %v7546
        %v7548 = vpop.f32.mrb[0].mxu0
        %v7549 = vadd.f32 %v7506, %v7548
        %v7550 = vpop.f32.mrb[0].mxu0
        %v7551 = vadd.f32 %v7508, %v7550
        %v7552 = vpop.f32.mrb[0].mxu0
        %v7553 = vadd.f32 %v7510, %v7552
        %7554 = vdwg.mxu0
        %7555 = vmatprep.subr.bf16.mxu0 %v4906
        %7556 = vmatpush1.bf16.msra.mxu0 %v4905
        %7557 = vmatprep.subr.bf16.mxu0 %v4910
        %7558 = vmatpush1.bf16.msra.mxu0 %v4909
        %7559 = vmatprep.subr.bf16.mxu0 %v4914
        %7560 = vmatpush1.bf16.msra.mxu0 %v4913
        %7561 = vmatprep.subr.bf16.mxu0 %v4918
        %7562 = vmatpush1.bf16.msra.mxu0 %v4917
        %7563 = vmatprep.subr.bf16.mxu0 %v4922
        %7564 = vmatpush1.bf16.msra.mxu0 %v4921
        %7565 = vmatprep.subr.bf16.mxu0 %v4926
        %7566 = vmatpush1.bf16.msra.mxu0 %v4925
        %7567 = vmatprep.subr.bf16.mxu0 %v4930
        %7568 = vmatpush1.bf16.msra.mxu0 %v4929
        %7569 = vmatprep.subr.bf16.mxu0 %v4934
        %7570 = vmatpush1.bf16.msra.mxu0 %v4933
        %7571 = vmatprep.subr.bf16.mxu0 %v4938
        %7572 = vmatpush1.bf16.msra.mxu0 %v4937
        %7573 = vmatprep.subr.bf16.mxu0 %v4942
        %7574 = vmatpush1.bf16.msra.mxu0 %v4941
        %7575 = vmatprep.subr.bf16.mxu0 %v4946
        %7576 = vmatpush1.bf16.msra.mxu0 %v4945
        %7577 = vmatprep.subr.bf16.mxu0 %v4950
        %7578 = vmatpush1.bf16.msra.mxu0 %v4949
        %7579 = vmatprep.subr.bf16.mxu0 %v4954
        %7580 = vmatpush1.bf16.msra.mxu0 %v4953
        %7581 = vmatprep.subr.bf16.mxu0 %v4958
        %7582 = vmatpush1.bf16.msra.mxu0 %v4957
        %7583 = vmatprep.subr.bf16.mxu0 %v4962
        %7584 = vmatpush1.bf16.msra.mxu0 %v4961
        %7585 = vmatprep.subr.bf16.mxu0 %v4966
        %7586 = vmatpush1.bf16.msra.mxu0 %v4965
        %7587 = vmatprep.mubr.bf16.mxu0 %v1520
        %7588 = vmatmul.mubr.bf16.gmra.mrb[0].mxu0 %v1519
        %v7589 = vpop.f32.mrb[0].mxu0
        %v7590 = vadd.f32 %v7547, %v7589
        %v7591 = vpop.f32.mrb[0].mxu0
        %v7592 = vadd.f32 %v7549, %v7591
        %v7593 = vpop.f32.mrb[0].mxu0
        %v7594 = vadd.f32 %v7551, %v7593
        %v7595 = vpop.f32.mrb[0].mxu0
        %v7596 = vadd.f32 %v7553, %v7595
        %7597 = vdwg.mxu0
        %7598 = vmatprep.subr.bf16.mxu0 %v4970
        %7599 = vmatpush1.bf16.msra.mxu0 %v4969
        %7600 = vmatprep.subr.bf16.mxu0 %v4974
        %7601 = vmatpush1.bf16.msra.mxu0 %v4973
        %7602 = vmatprep.subr.bf16.mxu0 %v4978
        %7603 = vmatpush1.bf16.msra.mxu0 %v4977
        %7604 = vmatprep.subr.bf16.mxu0 %v4982
        %7605 = vmatpush1.bf16.msra.mxu0 %v4981
        %7606 = vmatprep.subr.bf16.mxu0 %v4986
        %7607 = vmatpush1.bf16.msra.mxu0 %v4985
        %7608 = vmatprep.subr.bf16.mxu0 %v4990
        %7609 = vmatpush1.bf16.msra.mxu0 %v4989
        %7610 = vmatprep.subr.bf16.mxu0 %v4994
        %7611 = vmatpush1.bf16.msra.mxu0 %v4993
        %7612 = vmatprep.subr.bf16.mxu0 %v4998
        %7613 = vmatpush1.bf16.msra.mxu0 %v4997
        %7614 = vmatprep.subr.bf16.mxu0 %v5002
        %7615 = vmatpush1.bf16.msra.mxu0 %v5001
        %7616 = vmatprep.subr.bf16.mxu0 %v5006
        %7617 = vmatpush1.bf16.msra.mxu0 %v5005
        %7618 = vmatprep.subr.bf16.mxu0 %v5010
        %7619 = vmatpush1.bf16.msra.mxu0 %v5009
        %7620 = vmatprep.subr.bf16.mxu0 %v5014
        %7621 = vmatpush1.bf16.msra.mxu0 %v5013
        %7622 = vmatprep.subr.bf16.mxu0 %v5018
        %7623 = vmatpush1.bf16.msra.mxu0 %v5017
        %7624 = vmatprep.subr.bf16.mxu0 %v5022
        %7625 = vmatpush1.bf16.msra.mxu0 %v5021
        %7626 = vmatprep.subr.bf16.mxu0 %v5026
        %7627 = vmatpush1.bf16.msra.mxu0 %v5025
        %7628 = vmatprep.subr.bf16.mxu0 %v5030
        %7629 = vmatpush1.bf16.msra.mxu0 %v5029
        %7630 = vmatprep.mubr.bf16.mxu0 %v1522
        %7631 = vmatmul.mubr.bf16.gmra.mrb[0].mxu0 %v1521
        %v7632 = vpop.f32.mrb[0].mxu0
        %v7633 = vadd.f32 %v7590, %v7632
        %v7634 = vpop.f32.mrb[0].mxu0
        %v7635 = vadd.f32 %v7592, %v7634
        %v7636 = vpop.f32.mrb[0].mxu0
        %v7637 = vadd.f32 %v7594, %v7636
        %v7638 = vpop.f32.mrb[0].mxu0
        %v7639 = vadd.f32 %v7596, %v7638
        %7640 = vdwg.mxu0
        %7641 = vmatprep.subr.bf16.mxu0 %v5034
        %7642 = vmatpush1.bf16.msra.mxu0 %v5033
        %7643 = vmatprep.subr.bf16.mxu0 %v5038
        %7644 = vmatpush1.bf16.msra.mxu0 %v5037
        %7645 = vmatprep.subr.bf16.mxu0 %v5042
        %7646 = vmatpush1.bf16.msra.mxu0 %v5041
        %7647 = vmatprep.subr.bf16.mxu0 %v5046
        %7648 = vmatpush1.bf16.msra.mxu0 %v5045
        %7649 = vmatprep.subr.bf16.mxu0 %v5050
        %7650 = vmatpush1.bf16.msra.mxu0 %v5049
        %7651 = vmatprep.subr.bf16.mxu0 %v5054
        %7652 = vmatpush1.bf16.msra.mxu0 %v5053
        %7653 = vmatprep.subr.bf16.mxu0 %v5058
        %7654 = vmatpush1.bf16.msra.mxu0 %v5057
        %7655 = vmatprep.subr.bf16.mxu0 %v5062
        %7656 = vmatpush1.bf16.msra.mxu0 %v5061
        %7657 = vmatprep.subr.bf16.mxu0 %v5066
        %7658 = vmatpush1.bf16.msra.mxu0 %v5065
        %7659 = vmatprep.subr.bf16.mxu0 %v5070
        %7660 = vmatpush1.bf16.msra.mxu0 %v5069
        %7661 = vmatprep.subr.bf16.mxu0 %v5074
        %7662 = vmatpush1.bf16.msra.mxu0 %v5073
        %7663 = vmatprep.subr.bf16.mxu0 %v5078
        %7664 = vmatpush1.bf16.msra.mxu0 %v5077
        %7665 = vmatprep.subr.bf16.mxu0 %v5082
        %7666 = vmatpush1.bf16.msra.mxu0 %v5081
        %7667 = vmatprep.subr.bf16.mxu0 %v5086
        %7668 = vmatpush1.bf16.msra.mxu0 %v5085
        %7669 = vmatprep.subr.bf16.mxu0 %v5090
        %7670 = vmatpush1.bf16.msra.mxu0 %v5089
        %7671 = vmatprep.subr.bf16.mxu0 %v5094
        %7672 = vmatpush1.bf16.msra.mxu0 %v5093
        %7673 = vmatprep.mubr.bf16.mxu0 %v1524
        %7674 = vmatmul.mubr.bf16.gmra.mrb[0].mxu0 %v1523
        %v7675 = vpop.f32.mrb[0].mxu0
        %v7676 = vadd.f32 %v7633, %v7675
        %v7677 = vpop.f32.mrb[0].mxu0
        %v7678 = vadd.f32 %v7635, %v7677
        %v7679 = vpop.f32.mrb[0].mxu0
        %v7680 = vadd.f32 %v7637, %v7679
        %v7681 = vpop.f32.mrb[0].mxu0
        %v7682 = vadd.f32 %v7639, %v7681
        %7683 = vdwg.mxu0
        %7684 = vmatprep.subr.bf16.mxu0 %v5098
        %7685 = vmatpush1.bf16.msra.mxu0 %v5097
        %7686 = vmatprep.subr.bf16.mxu0 %v5102
        %7687 = vmatpush1.bf16.msra.mxu0 %v5101
        %7688 = vmatprep.subr.bf16.mxu0 %v5106
        %7689 = vmatpush1.bf16.msra.mxu0 %v5105
        %7690 = vmatprep.subr.bf16.mxu0 %v5110
        %7691 = vmatpush1.bf16.msra.mxu0 %v5109
        %7692 = vmatprep.subr.bf16.mxu0 %v5114
        %7693 = vmatpush1.bf16.msra.mxu0 %v5113
        %7694 = vmatprep.subr.bf16.mxu0 %v5118
        %7695 = vmatpush1.bf16.msra.mxu0 %v5117
        %7696 = vmatprep.subr.bf16.mxu0 %v5122
        %7697 = vmatpush1.bf16.msra.mxu0 %v5121
        %7698 = vmatprep.subr.bf16.mxu0 %v5126
        %7699 = vmatpush1.bf16.msra.mxu0 %v5125
        %7700 = vmatprep.subr.bf16.mxu0 %v5130
        %7701 = vmatpush1.bf16.msra.mxu0 %v5129
        %7702 = vmatprep.subr.bf16.mxu0 %v5134
        %7703 = vmatpush1.bf16.msra.mxu0 %v5133
        %7704 = vmatprep.subr.bf16.mxu0 %v5138
        %7705 = vmatpush1.bf16.msra.mxu0 %v5137
        %7706 = vmatprep.subr.bf16.mxu0 %v5142
        %7707 = vmatpush1.bf16.msra.mxu0 %v5141
        %7708 = vmatprep.subr.bf16.mxu0 %v5146
        %7709 = vmatpush1.bf16.msra.mxu0 %v5145
        %7710 = vmatprep.subr.bf16.mxu0 %v5150
        %7711 = vmatpush1.bf16.msra.mxu0 %v5149
        %7712 = vmatprep.subr.bf16.mxu0 %v5154
        %7713 = vmatpush1.bf16.msra.mxu0 %v5153
        %7714 = vmatprep.subr.bf16.mxu0 %v5158
        %7715 = vmatpush1.bf16.msra.mxu0 %v5157
        %7716 = vmatprep.mubr.bf16.mxu0 %v1526
        %7717 = vmatmul.mubr.bf16.gmra.mrb[0].mxu0 %v1525
        %v7718 = vpop.f32.mrb[0].mxu0
        %v7719 = vadd.f32 %v7676, %v7718
        %v7720 = vpop.f32.mrb[0].mxu0
        %v7721 = vadd.f32 %v7678, %v7720
        %v7722 = vpop.f32.mrb[0].mxu0
        %v7723 = vadd.f32 %v7680, %v7722
        %v7724 = vpop.f32.mrb[0].mxu0
        %v7725 = vadd.f32 %v7682, %v7724
        %7726 = vdwg.mxu0
        %7727 = vmatprep.subr.bf16.mxu0 %v5162
        %7728 = vmatpush1.bf16.msra.mxu0 %v5161
        %7729 = vmatprep.subr.bf16.mxu0 %v5166
        %7730 = vmatpush1.bf16.msra.mxu0 %v5165
        %7731 = vmatprep.subr.bf16.mxu0 %v5170
        %7732 = vmatpush1.bf16.msra.mxu0 %v5169
        %7733 = vmatprep.subr.bf16.mxu0 %v5174
        %7734 = vmatpush1.bf16.msra.mxu0 %v5173
        %7735 = vmatprep.subr.bf16.mxu0 %v5178
        %7736 = vmatpush1.bf16.msra.mxu0 %v5177
        %7737 = vmatprep.subr.bf16.mxu0 %v5182
        %7738 = vmatpush1.bf16.msra.mxu0 %v5181
        %7739 = vmatprep.subr.bf16.mxu0 %v5186
        %7740 = vmatpush1.bf16.msra.mxu0 %v5185
        %7741 = vmatprep.subr.bf16.mxu0 %v5190
        %7742 = vmatpush1.bf16.msra.mxu0 %v5189
        %7743 = vmatprep.subr.bf16.mxu0 %v5194
        %7744 = vmatpush1.bf16.msra.mxu0 %v5193
        %7745 = vmatprep.subr.bf16.mxu0 %v5198
        %7746 = vmatpush1.bf16.msra.mxu0 %v5197
        %7747 = vmatprep.subr.bf16.mxu0 %v5202
        %7748 = vmatpush1.bf16.msra.mxu0 %v5201
        %7749 = vmatprep.subr.bf16.mxu0 %v5206
        %7750 = vmatpush1.bf16.msra.mxu0 %v5205
        %7751 = vmatprep.subr.bf16.mxu0 %v5210
        %7752 = vmatpush1.bf16.msra.mxu0 %v5209
        %7753 = vmatprep.subr.bf16.mxu0 %v5214
        %7754 = vmatpush1.bf16.msra.mxu0 %v5213
        %7755 = vmatprep.subr.bf16.mxu0 %v5218
        %7756 = vmatpush1.bf16.msra.mxu0 %v5217
        %7757 = vmatprep.subr.bf16.mxu0 %v5222
        %7758 = vmatpush1.bf16.msra.mxu0 %v5221
        %7759 = vmatprep.mubr.bf16.mxu0 %v1528
        %7760 = vmatmul.mubr.bf16.gmra.mrb[0].mxu0 %v1527
        %v7761 = vpop.f32.mrb[0].mxu0
        %v7762 = vadd.f32 %v7719, %v7761
        %v7763 = vpop.f32.mrb[0].mxu0
        %v7764 = vadd.f32 %v7721, %v7763
        %v7765 = vpop.f32.mrb[0].mxu0
        %v7766 = vadd.f32 %v7723, %v7765
        %v7767 = vpop.f32.mrb[0].mxu0
        %v7768 = vadd.f32 %v7725, %v7767
        %7769 = vdwg.mxu0
        %7770 = vmatprep.subr.bf16.mxu0 %v5226
        %7771 = vmatpush1.bf16.msra.mxu0 %v5225
        %7772 = vmatprep.subr.bf16.mxu0 %v5230
        %7773 = vmatpush1.bf16.msra.mxu0 %v5229
        %7774 = vmatprep.subr.bf16.mxu0 %v5234
        %7775 = vmatpush1.bf16.msra.mxu0 %v5233
        %7776 = vmatprep.subr.bf16.mxu0 %v5238
        %7777 = vmatpush1.bf16.msra.mxu0 %v5237
        %7778 = vmatprep.subr.bf16.mxu0 %v5242
        %7779 = vmatpush1.bf16.msra.mxu0 %v5241
        %7780 = vmatprep.subr.bf16.mxu0 %v5246
        %7781 = vmatpush1.bf16.msra.mxu0 %v5245
        %7782 = vmatprep.subr.bf16.mxu0 %v5250
        %7783 = vmatpush1.bf16.msra.mxu0 %v5249
        %7784 = vmatprep.subr.bf16.mxu0 %v5254
        %7785 = vmatpush1.bf16.msra.mxu0 %v5253
        %7786 = vmatprep.subr.bf16.mxu0 %v5258
        %7787 = vmatpush1.bf16.msra.mxu0 %v5257
        %7788 = vmatprep.subr.bf16.mxu0 %v5262
        %7789 = vmatpush1.bf16.msra.mxu0 %v5261
        %7790 = vmatprep.subr.bf16.mxu0 %v5266
        %7791 = vmatpush1.bf16.msra.mxu0 %v5265
        %7792 = vmatprep.subr.bf16.mxu0 %v5270
        %7793 = vmatpush1.bf16.msra.mxu0 %v5269
        %7794 = vmatprep.subr.bf16.mxu0 %v5274
        %7795 = vmatpush1.bf16.msra.mxu0 %v5273
        %7796 = vmatprep.subr.bf16.mxu0 %v5278
        %7797 = vmatpush1.bf16.msra.mxu0 %v5277
        %7798 = vmatprep.subr.bf16.mxu0 %v5282
        %7799 = vmatpush1.bf16.msra.mxu0 %v5281
        %7800 = vmatprep.subr.bf16.mxu0 %v5286
        %7801 = vmatpush1.bf16.msra.mxu0 %v5285
        %7802 = vmatprep.mubr.bf16.mxu0 %v1530
        %7803 = vmatmul.mubr.bf16.gmra.mrb[0].mxu0 %v1529
        %v7804 = vpop.f32.mrb[0].mxu0
        %v7805 = vadd.f32 %v7762, %v7804
        %v7806 = vpop.f32.mrb[0].mxu0
        %v7807 = vadd.f32 %v7764, %v7806
        %v7808 = vpop.f32.mrb[0].mxu0
        %v7809 = vadd.f32 %v7766, %v7808
        %v7810 = vpop.f32.mrb[0].mxu0
        %v7811 = vadd.f32 %v7768, %v7810
        %7812 = vdwg.mxu0
        %7813 = vmatprep.subr.bf16.mxu0 %v5290
        %7814 = vmatpush1.bf16.msra.mxu0 %v5289
        %7815 = vmatprep.subr.bf16.mxu0 %v5294
        %7816 = vmatpush1.bf16.msra.mxu0 %v5293
        %7817 = vmatprep.subr.bf16.mxu0 %v5298
        %7818 = vmatpush1.bf16.msra.mxu0 %v5297
        %7819 = vmatprep.subr.bf16.mxu0 %v5302
        %7820 = vmatpush1.bf16.msra.mxu0 %v5301
        %7821 = vmatprep.subr.bf16.mxu0 %v5306
        %7822 = vmatpush1.bf16.msra.mxu0 %v5305
        %7823 = vmatprep.subr.bf16.mxu0 %v5310
        %7824 = vmatpush1.bf16.msra.mxu0 %v5309
        %7825 = vmatprep.subr.bf16.mxu0 %v5314
        %7826 = vmatpush1.bf16.msra.mxu0 %v5313
        %7827 = vmatprep.subr.bf16.mxu0 %v5318
        %7828 = vmatpush1.bf16.msra.mxu0 %v5317
        %7829 = vmatprep.subr.bf16.mxu0 %v5322
        %7830 = vmatpush1.bf16.msra.mxu0 %v5321
        %7831 = vmatprep.subr.bf16.mxu0 %v5326
        %7832 = vmatpush1.bf16.msra.mxu0 %v5325
        %7833 = vmatprep.subr.bf16.mxu0 %v5330
        %7834 = vmatpush1.bf16.msra.mxu0 %v5329
        %7835 = vmatprep.subr.bf16.mxu0 %v5334
        %7836 = vmatpush1.bf16.msra.mxu0 %v5333
        %7837 = vmatprep.subr.bf16.mxu0 %v5338
        %7838 = vmatpush1.bf16.msra.mxu0 %v5337
        %7839 = vmatprep.subr.bf16.mxu0 %v5342
        %7840 = vmatpush1.bf16.msra.mxu0 %v5341
        %7841 = vmatprep.subr.bf16.mxu0 %v5346
        %7842 = vmatpush1.bf16.msra.mxu0 %v5345
        %7843 = vmatprep.subr.bf16.mxu0 %v5350
        %7844 = vmatpush1.bf16.msra.mxu0 %v5349
        %7845 = vmatprep.mubr.bf16.mxu0 %v1532
        %7846 = vmatmul.mubr.bf16.gmra.mrb[0].mxu0 %v1531
        %v7847 = vpop.f32.mrb[0].mxu0
        %v7848 = vadd.f32 %v7805, %v7847
        %v7849 = vpop.f32.mrb[0].mxu0
        %v7850 = vadd.f32 %v7807, %v7849
        %v7851 = vpop.f32.mrb[0].mxu0
        %v7852 = vadd.f32 %v7809, %v7851
        %v7853 = vpop.f32.mrb[0].mxu0
        %v7854 = vadd.f32 %v7811, %v7853
        %7855 = vdwg.mxu0
        %7856 = vmatprep.subr.bf16.mxu0 %v5354
        %7857 = vmatpush1.bf16.msra.mxu0 %v5353
        %7858 = vmatprep.subr.bf16.mxu0 %v5358
        %7859 = vmatpush1.bf16.msra.mxu0 %v5357
        %7860 = vmatprep.subr.bf16.mxu0 %v5362
        %7861 = vmatpush1.bf16.msra.mxu0 %v5361
        %7862 = vmatprep.subr.bf16.mxu0 %v5366
        %7863 = vmatpush1.bf16.msra.mxu0 %v5365
        %7864 = vmatprep.subr.bf16.mxu0 %v5370
        %7865 = vmatpush1.bf16.msra.mxu0 %v5369
        %7866 = vmatprep.subr.bf16.mxu0 %v5374
        %7867 = vmatpush1.bf16.msra.mxu0 %v5373
        %7868 = vmatprep.subr.bf16.mxu0 %v5378
        %7869 = vmatpush1.bf16.msra.mxu0 %v5377
        %7870 = vmatprep.subr.bf16.mxu0 %v5382
        %7871 = vmatpush1.bf16.msra.mxu0 %v5381
        %7872 = vmatprep.subr.bf16.mxu0 %v5386
        %7873 = vmatpush1.bf16.msra.mxu0 %v5385
        %7874 = vmatprep.subr.bf16.mxu0 %v5390
        %7875 = vmatpush1.bf16.msra.mxu0 %v5389
        %7876 = vmatprep.subr.bf16.mxu0 %v5394
        %7877 = vmatpush1.bf16.msra.mxu0 %v5393
        %7878 = vmatprep.subr.bf16.mxu0 %v5398
        %7879 = vmatpush1.bf16.msra.mxu0 %v5397
        %7880 = vmatprep.subr.bf16.mxu0 %v5402
        %7881 = vmatpush1.bf16.msra.mxu0 %v5401
        %7882 = vmatprep.subr.bf16.mxu0 %v5406
        %7883 = vmatpush1.bf16.msra.mxu0 %v5405
        %7884 = vmatprep.subr.bf16.mxu0 %v5410
        %7885 = vmatpush1.bf16.msra.mxu0 %v5409
        %7886 = vmatprep.subr.bf16.mxu0 %v5414
        %7887 = vmatpush1.bf16.msra.mxu0 %v5413
        %7888 = vmatprep.mubr.bf16.mxu0 %v1534
        %7889 = vmatmul.mubr.bf16.gmra.mrb[0].mxu0 %v1533
        %v7890 = vpop.f32.mrb[0].mxu0
        %v7891 = vadd.f32 %v7848, %v7890
        %v7892 = vpop.f32.mrb[0].mxu0
        %v7893 = vadd.f32 %v7850, %v7892
        %v7894 = vpop.f32.mrb[0].mxu0
        %v7895 = vadd.f32 %v7852, %v7894
        %v7896 = vpop.f32.mrb[0].mxu0
        %v7897 = vadd.f32 %v7854, %v7896
        %7898 = vdwg.mxu0
        %7899 = vmatprep.subr.bf16.mxu0 %v5418
        %7900 = vmatpush1.bf16.msra.mxu0 %v5417
        %7901 = vmatprep.subr.bf16.mxu0 %v5422
        %7902 = vmatpush1.bf16.msra.mxu0 %v5421
        %7903 = vmatprep.subr.bf16.mxu0 %v5426
        %7904 = vmatpush1.bf16.msra.mxu0 %v5425
        %7905 = vmatprep.subr.bf16.mxu0 %v5430
        %7906 = vmatpush1.bf16.msra.mxu0 %v5429
        %7907 = vmatprep.subr.bf16.mxu0 %v5434
        %7908 = vmatpush1.bf16.msra.mxu0 %v5433
        %7909 = vmatprep.subr.bf16.mxu0 %v5438
        %7910 = vmatpush1.bf16.msra.mxu0 %v5437
        %7911 = vmatprep.subr.bf16.mxu0 %v5442
        %7912 = vmatpush1.bf16.msra.mxu0 %v5441
        %7913 = vmatprep.subr.bf16.mxu0 %v5446
        %7914 = vmatpush1.bf16.msra.mxu0 %v5445
        %7915 = vmatprep.subr.bf16.mxu0 %v5450
        %7916 = vmatpush1.bf16.msra.mxu0 %v5449
        %7917 = vmatprep.subr.bf16.mxu0 %v5454
        %7918 = vmatpush1.bf16.msra.mxu0 %v5453
        %7919 = vmatprep.subr.bf16.mxu0 %v5458
        %7920 = vmatpush1.bf16.msra.mxu0 %v5457
        %7921 = vmatprep.subr.bf16.mxu0 %v5462
        %7922 = vmatpush1.bf16.msra.mxu0 %v5461
        %7923 = vmatprep.subr.bf16.mxu0 %v5466
        %7924 = vmatpush1.bf16.msra.mxu0 %v5465
        %7925 = vmatprep.subr.bf16.mxu0 %v5470
        %7926 = vmatpush1.bf16.msra.mxu0 %v5469
        %7927 = vmatprep.subr.bf16.mxu0 %v5474
        %7928 = vmatpush1.bf16.msra.mxu0 %v5473
        %7929 = vmatprep.subr.bf16.mxu0 %v5478
        %7930 = vmatpush1.bf16.msra.mxu0 %v5477
        %7931 = vmatprep.mubr.bf16.mxu0 %v1536
        %7932 = vmatmul.mubr.bf16.gmra.mrb[0].mxu0 %v1535
        %v7933 = vpop.f32.mrb[0].mxu0
        %v7934 = vadd.f32 %v7891, %v7933
        %v7935 = vpop.f32.mrb[0].mxu0
        %v7936 = vadd.f32 %v7893, %v7935
        %v7937 = vpop.f32.mrb[0].mxu0
        %v7938 = vadd.f32 %v7895, %v7937
        %v7939 = vpop.f32.mrb[0].mxu0
        %v7940 = vadd.f32 %v7897, %v7939
        %7941 = vdwg.mxu0
        %7942 = vmatprep.subr.bf16.mxu0 %v5482
        %7943 = vmatpush1.bf16.msra.mxu0 %v5481
        %7944 = vmatprep.subr.bf16.mxu0 %v5486
        %7945 = vmatpush1.bf16.msra.mxu0 %v5485
        %7946 = vmatprep.subr.bf16.mxu0 %v5490
        %7947 = vmatpush1.bf16.msra.mxu0 %v5489
        %7948 = vmatprep.subr.bf16.mxu0 %v5494
        %7949 = vmatpush1.bf16.msra.mxu0 %v5493
        %7950 = vmatprep.subr.bf16.mxu0 %v5498
        %7951 = vmatpush1.bf16.msra.mxu0 %v5497
        %7952 = vmatprep.subr.bf16.mxu0 %v5502
        %7953 = vmatpush1.bf16.msra.mxu0 %v5501
        %7954 = vmatprep.subr.bf16.mxu0 %v5506
        %7955 = vmatpush1.bf16.msra.mxu0 %v5505
        %7956 = vmatprep.subr.bf16.mxu0 %v5510
        %7957 = vmatpush1.bf16.msra.mxu0 %v5509
        %7958 = vmatprep.subr.bf16.mxu0 %v5514
        %7959 = vmatpush1.bf16.msra.mxu0 %v5513
        %7960 = vmatprep.subr.bf16.mxu0 %v5518
        %7961 = vmatpush1.bf16.msra.mxu0 %v5517
        %7962 = vmatprep.subr.bf16.mxu0 %v5522
        %7963 = vmatpush1.bf16.msra.mxu0 %v5521
        %7964 = vmatprep.subr.bf16.mxu0 %v5526
        %7965 = vmatpush1.bf16.msra.mxu0 %v5525
        %7966 = vmatprep.subr.bf16.mxu0 %v5530
        %7967 = vmatpush1.bf16.msra.mxu0 %v5529
        %7968 = vmatprep.subr.bf16.mxu0 %v5534
        %7969 = vmatpush1.bf16.msra.mxu0 %v5533
        %7970 = vmatprep.subr.bf16.mxu0 %v5538
        %7971 = vmatpush1.bf16.msra.mxu0 %v5537
        %7972 = vmatprep.subr.bf16.mxu0 %v5542
        %7973 = vmatpush1.bf16.msra.mxu0 %v5541
        %7974 = vmatprep.mubr.bf16.mxu0 %v1538
        %7975 = vmatmul.mubr.bf16.gmra.mrb[0].mxu0 %v1537
        %v7976 = vpop.f32.mrb[0].mxu0
        %v7977 = vadd.f32 %v7934, %v7976
        %v7978 = vpop.f32.mrb[0].mxu0
        %v7979 = vadd.f32 %v7936, %v7978
        %v7980 = vpop.f32.mrb[0].mxu0
        %v7981 = vadd.f32 %v7938, %v7980
        %v7982 = vpop.f32.mrb[0].mxu0
        %v7983 = vadd.f32 %v7940, %v7982
        %7984 = vdwg.mxu0
        %7985 = vmatprep.subr.bf16.mxu0 %v5546
        %7986 = vmatpush1.bf16.msra.mxu0 %v5545
        %7987 = vmatprep.subr.bf16.mxu0 %v5550
        %7988 = vmatpush1.bf16.msra.mxu0 %v5549
        %7989 = vmatprep.subr.bf16.mxu0 %v5554
        %7990 = vmatpush1.bf16.msra.mxu0 %v5553
        %7991 = vmatprep.subr.bf16.mxu0 %v5558
        %7992 = vmatpush1.bf16.msra.mxu0 %v5557
        %7993 = vmatprep.subr.bf16.mxu0 %v5562
        %7994 = vmatpush1.bf16.msra.mxu0 %v5561
        %7995 = vmatprep.subr.bf16.mxu0 %v5566
        %7996 = vmatpush1.bf16.msra.mxu0 %v5565
        %7997 = vmatprep.subr.bf16.mxu0 %v5570
        %7998 = vmatpush1.bf16.msra.mxu0 %v5569
        %7999 = vmatprep.subr.bf16.mxu0 %v5574
        %8000 = vmatpush1.bf16.msra.mxu0 %v5573
        %8001 = vmatprep.subr.bf16.mxu0 %v5578
        %8002 = vmatpush1.bf16.msra.mxu0 %v5577
        %8003 = vmatprep.subr.bf16.mxu0 %v5582
        %8004 = vmatpush1.bf16.msra.mxu0 %v5581
        %8005 = vmatprep.subr.bf16.mxu0 %v5586
        %8006 = vmatpush1.bf16.msra.mxu0 %v5585
        %8007 = vmatprep.subr.bf16.mxu0 %v5590
        %8008 = vmatpush1.bf16.msra.mxu0 %v5589
        %8009 = vmatprep.subr.bf16.mxu0 %v5594
        %8010 = vmatpush1.bf16.msra.mxu0 %v5593
        %8011 = vmatprep.subr.bf16.mxu0 %v5598
        %8012 = vmatpush1.bf16.msra.mxu0 %v5597
        %8013 = vmatprep.subr.bf16.mxu0 %v5602
        %8014 = vmatpush1.bf16.msra.mxu0 %v5601
        %8015 = vmatprep.subr.bf16.mxu0 %v5606
        %8016 = vmatpush1.bf16.msra.mxu0 %v5605
        %8017 = vmatprep.mubr.bf16.mxu0 %v1540
        %8018 = vmatmul.mubr.bf16.gmra.mrb[0].mxu0 %v1539
        %v8019 = vpop.f32.mrb[0].mxu0
        %v8020 = vadd.f32 %v7977, %v8019
        %v8021 = vpop.f32.mrb[0].mxu0
        %v8022 = vadd.f32 %v7979, %v8021
        %v8023 = vpop.f32.mrb[0].mxu0
        %v8024 = vadd.f32 %v7981, %v8023
        %v8025 = vpop.f32.mrb[0].mxu0
        %v8026 = vadd.f32 %v7983, %v8025
        %8027 = vdwg.mxu0
        %8028 = vmatprep.subr.bf16.mxu0 %v5610
        %8029 = vmatpush1.bf16.msra.mxu0 %v5609
        %8030 = vmatprep.subr.bf16.mxu0 %v5614
        %8031 = vmatpush1.bf16.msra.mxu0 %v5613
        %8032 = vmatprep.subr.bf16.mxu0 %v5618
        %8033 = vmatpush1.bf16.msra.mxu0 %v5617
        %8034 = vmatprep.subr.bf16.mxu0 %v5622
        %8035 = vmatpush1.bf16.msra.mxu0 %v5621
        %8036 = vmatprep.subr.bf16.mxu0 %v5626
        %8037 = vmatpush1.bf16.msra.mxu0 %v5625
        %8038 = vmatprep.subr.bf16.mxu0 %v5630
        %8039 = vmatpush1.bf16.msra.mxu0 %v5629
        %8040 = vmatprep.subr.bf16.mxu0 %v5634
        %8041 = vmatpush1.bf16.msra.mxu0 %v5633
        %8042 = vmatprep.subr.bf16.mxu0 %v5638
        %8043 = vmatpush1.bf16.msra.mxu0 %v5637
        %8044 = vmatprep.subr.bf16.mxu0 %v5642
        %8045 = vmatpush1.bf16.msra.mxu0 %v5641
        %8046 = vmatprep.subr.bf16.mxu0 %v5646
        %8047 = vmatpush1.bf16.msra.mxu0 %v5645
        %8048 = vmatprep.subr.bf16.mxu0 %v5650
        %8049 = vmatpush1.bf16.msra.mxu0 %v5649
        %8050 = vmatprep.subr.bf16.mxu0 %v5654
        %8051 = vmatpush1.bf16.msra.mxu0 %v5653
        %8052 = vmatprep.subr.bf16.mxu0 %v5658
        %8053 = vmatpush1.bf16.msra.mxu0 %v5657
        %8054 = vmatprep.subr.bf16.mxu0 %v5662
        %8055 = vmatpush1.bf16.msra.mxu0 %v5661
        %8056 = vmatprep.subr.bf16.mxu0 %v5666
        %8057 = vmatpush1.bf16.msra.mxu0 %v5665
        %8058 = vmatprep.subr.bf16.mxu0 %v5670
        %8059 = vmatpush1.bf16.msra.mxu0 %v5669
        %8060 = vmatprep.mubr.bf16.mxu0 %v1542
        %8061 = vmatmul.mubr.bf16.gmra.mrb[0].mxu0 %v1541
        %v8062 = vpop.f32.mrb[0].mxu0
        %v8063 = vadd.f32 %v8020, %v8062
        %v8064 = vpop.f32.mrb[0].mxu0
        %v8065 = vadd.f32 %v8022, %v8064
        %v8066 = vpop.f32.mrb[0].mxu0
        %v8067 = vadd.f32 %v8024, %v8066
        %v8068 = vpop.f32.mrb[0].mxu0
        %v8069 = vadd.f32 %v8026, %v8068
        %8070 = vdwg.mxu0
        %v8071 = vld [vmem:[#allocation7] sm:$0x1]
        %p8072 = scmp.eq.s32.totalorder %s23, 0
        %s8073 = scalar_select %p8072, 1.0, 0.0
        %v8074 = vstv %s8073
        %v8075 = vmul.f32 %v8071, %v8074
        %v8076 = vpack.c.bf16 %v7379, %v7375
        %v8077 = vpack.c.bf16 %v7381, %v7377
        %v8078 = vpack.c.bf16 %v8067, %v8063
        %v8079 = vpack.c.bf16 %v8069, %v8065
        %v8080 = vld [vmem:[%s287] sm:$0xf]
        %v8081 = vld [vmem:[%s287 + $0x4] sm:$0xf]
        %v8082 = vld [vmem:[%s287 + $0x8] sm:$0xf]
        %v8083 = vld [vmem:[%s287 + $0xc] sm:$0xf]
        %v8084 = vld [vmem:[%s287 + $0x10] sm:$0xf]
        %v8085 = vld [vmem:[%s287 + $0x14] sm:$0xf]
        %v8086 = vld [vmem:[%s287 + $0x18] sm:$0xf]
        %v8087 = vld [vmem:[%s287 + $0x1c] sm:$0xf]
        %v8088 = vld [vmem:[%s287 + $0x20] sm:$0xf]
        %v8089 = vld [vmem:[%s287 + $0x24] sm:$0xf]
        %v8090 = vld [vmem:[%s287 + $0x28] sm:$0xf]
        %v8091 = vld [vmem:[%s287 + $0x2c] sm:$0xf]
        %v8092 = vld [vmem:[%s287 + $0x30] sm:$0xf]
        %v8093 = vld [vmem:[%s287 + $0x34] sm:$0xf]
        %v8094 = vld [vmem:[%s287 + $0x38] sm:$0xf]
        %v8095 = vld [vmem:[%s287 + $0x3c] sm:$0xf]
        %v8096 = vld [vmem:[%s287 + $0x40] sm:$0xf]
        %v8097 = vld [vmem:[%s287 + $0x44] sm:$0xf]
        %v8098 = vld [vmem:[%s287 + $0x48] sm:$0xf]
        %v8099 = vld [vmem:[%s287 + $0x4c] sm:$0xf]
        %v8100 = vld [vmem:[%s287 + $0x50] sm:$0xf]
        %v8101 = vld [vmem:[%s287 + $0x54] sm:$0xf]
        %v8102 = vld [vmem:[%s287 + $0x58] sm:$0xf]
        %v8103 = vld [vmem:[%s287 + $0x5c] sm:$0xf]
        %v8104 = vld [vmem:[%s287 + $0x60] sm:$0xf]
        %v8105 = vld [vmem:[%s287 + $0x64] sm:$0xf]
        %v8106 = vld [vmem:[%s287 + $0x68] sm:$0xf]
        %v8107 = vld [vmem:[%s287 + $0x6c] sm:$0xf]
        %v8108 = vld [vmem:[%s287 + $0x70] sm:$0xf]
        %v8109 = vld [vmem:[%s287 + $0x74] sm:$0xf]
        %v8110 = vld [vmem:[%s287 + $0x78] sm:$0xf]
        %v8111 = vld [vmem:[%s287 + $0x7c] sm:$0xf]
        %v8112 = vld [vmem:[%s287 + $0x80] sm:$0xf]
        %v8113 = vld [vmem:[%s287 + $0x84] sm:$0xf]
        %v8114 = vld [vmem:[%s287 + $0x88] sm:$0xf]
        %v8115 = vld [vmem:[%s287 + $0x8c] sm:$0xf]
        %v8116 = vld [vmem:[%s287 + $0x90] sm:$0xf]
        %v8117 = vld [vmem:[%s287 + $0x94] sm:$0xf]
        %v8118 = vld [vmem:[%s287 + $0x98] sm:$0xf]
        %v8119 = vld [vmem:[%s287 + $0x9c] sm:$0xf]
        %v8120 = vld [vmem:[%s287 + $0xa0] sm:$0xf]
        %v8121 = vld [vmem:[%s287 + $0xa4] sm:$0xf]
        %v8122 = vld [vmem:[%s287 + $0xa8] sm:$0xf]
        %v8123 = vld [vmem:[%s287 + $0xac] sm:$0xf]
        %v8124 = vld [vmem:[%s287 + $0xb0] sm:$0xf]
        %v8125 = vld [vmem:[%s287 + $0xb4] sm:$0xf]
        %v8126 = vld [vmem:[%s287 + $0xb8] sm:$0xf]
        %v8127 = vld [vmem:[%s287 + $0xbc] sm:$0xf]
        %v8128 = vld [vmem:[%s287 + $0xc0] sm:$0xf]
        %v8129 = vld [vmem:[%s287 + $0xc4] sm:$0xf]
        %v8130 = vld [vmem:[%s287 + $0xc8] sm:$0xf]
        %v8131 = vld [vmem:[%s287 + $0xcc] sm:$0xf]
        %v8132 = vld [vmem:[%s287 + $0xd0] sm:$0xf]
        %v8133 = vld [vmem:[%s287 + $0xd4] sm:$0xf]
        %v8134 = vld [vmem:[%s287 + $0xd8] sm:$0xf]
        %v8135 = vld [vmem:[%s287 + $0xdc] sm:$0xf]
        %v8136 = vld [vmem:[%s287 + $0xe0] sm:$0xf]
        %v8137 = vld [vmem:[%s287 + $0xe4] sm:$0xf]
        %v8138 = vld [vmem:[%s287 + $0xe8] sm:$0xf]
        %v8139 = vld [vmem:[%s287 + $0xec] sm:$0xf]
        %v8140 = vld [vmem:[%s287 + $0xf0] sm:$0xf]
        %v8141 = vld [vmem:[%s287 + $0xf4] sm:$0xf]
        %v8142 = vld [vmem:[%s287 + $0xf8] sm:$0xf]
        %v8143 = vld [vmem:[%s287 + $0xfc] sm:$0xf]
        %v8145 = vlaneseq
        %v8146 = vshrl.u32 %v8145, 7
        %v8147 = vsub.s32 0, %v8146
        %v8148 = vrot.slane %v8075, %v8147
        %v8214 = vunpack.c.l.b16 %v8080
        %v8215 = vunpack.c.l.b16 %v8081
        %v8216 = vunpack.c.l.b16 %v8082
        %v8217 = vunpack.c.l.b16 %v8083
        %v8218 = vunpack.c.l.b16 %v8084
        %v8219 = vunpack.c.l.b16 %v8085
        %v8220 = vunpack.c.l.b16 %v8086
        %v8221 = vunpack.c.l.b16 %v8087
        %v8222 = vunpack.c.l.b16 %v8088
        %v8223 = vunpack.c.l.b16 %v8089
        %v8224 = vunpack.c.l.b16 %v8090
        %v8225 = vunpack.c.l.b16 %v8091
        %v8226 = vunpack.c.l.b16 %v8092
        %v8227 = vunpack.c.l.b16 %v8093
        %v8228 = vunpack.c.l.b16 %v8094
        %v8229 = vunpack.c.l.b16 %v8095
        %v8230 = vunpack.c.l.b16 %v8096
        %v8231 = vunpack.c.l.b16 %v8097
        %v8232 = vunpack.c.l.b16 %v8098
        %v8233 = vunpack.c.l.b16 %v8099
        %v8234 = vunpack.c.l.b16 %v8100
        %v8235 = vunpack.c.l.b16 %v8101
        %v8236 = vunpack.c.l.b16 %v8102
        %v8237 = vunpack.c.l.b16 %v8103
        %v8238 = vunpack.c.l.b16 %v8104
        %v8239 = vunpack.c.l.b16 %v8105
        %v8240 = vunpack.c.l.b16 %v8106
        %v8241 = vunpack.c.l.b16 %v8107
        %v8242 = vunpack.c.l.b16 %v8108
        %v8243 = vunpack.c.l.b16 %v8109
        %v8244 = vunpack.c.l.b16 %v8110
        %v8245 = vunpack.c.l.b16 %v8111
        %v8246 = vunpack.c.l.b16 %v8112
        %v8247 = vunpack.c.l.b16 %v8113
        %v8248 = vunpack.c.l.b16 %v8114
        %v8249 = vunpack.c.l.b16 %v8115
        %v8250 = vunpack.c.l.b16 %v8116
        %v8251 = vunpack.c.l.b16 %v8117
        %v8252 = vunpack.c.l.b16 %v8118
        %v8253 = vunpack.c.l.b16 %v8119
        %v8254 = vunpack.c.l.b16 %v8120
        %v8255 = vunpack.c.l.b16 %v8121
        %v8256 = vunpack.c.l.b16 %v8122
        %v8257 = vunpack.c.l.b16 %v8123
        %v8258 = vunpack.c.l.b16 %v8124
        %v8259 = vunpack.c.l.b16 %v8125
        %v8260 = vunpack.c.l.b16 %v8126
        %v8261 = vunpack.c.l.b16 %v8127
        %v8262 = vunpack.c.l.b16 %v8128
        %v8263 = vunpack.c.l.b16 %v8129
        %v8264 = vunpack.c.l.b16 %v8130
        %v8265 = vunpack.c.l.b16 %v8131
        %v8266 = vunpack.c.l.b16 %v8132
        %v8267 = vunpack.c.l.b16 %v8133
        %v8268 = vunpack.c.l.b16 %v8134
        %v8269 = vunpack.c.l.b16 %v8135
        %v8270 = vunpack.c.l.b16 %v8136
        %v8271 = vunpack.c.l.b16 %v8137
        %v8272 = vunpack.c.l.b16 %v8138
        %v8273 = vunpack.c.l.b16 %v8139
        %v8274 = vunpack.c.l.b16 %v8140
        %v8275 = vunpack.c.l.b16 %v8141
        %v8276 = vunpack.c.l.b16 %v8142
        %v8277 = vunpack.c.l.b16 %v8143
        %v8278 = vpack.c.b16 %v8215, %v8214
        %v8279 = vpack.c.b16 %v8217, %v8216
        %v8280 = vpack.c.b16 %v8219, %v8218
        %v8281 = vpack.c.b16 %v8221, %v8220
        %v8282 = vpack.c.b16 %v8223, %v8222
        %v8283 = vpack.c.b16 %v8225, %v8224
        %v8284 = vpack.c.b16 %v8227, %v8226
        %v8285 = vpack.c.b16 %v8229, %v8228
        %v8286 = vpack.c.b16 %v8231, %v8230
        %v8287 = vpack.c.b16 %v8233, %v8232
        %v8288 = vpack.c.b16 %v8235, %v8234
        %v8289 = vpack.c.b16 %v8237, %v8236
        %v8290 = vpack.c.b16 %v8239, %v8238
        %v8291 = vpack.c.b16 %v8241, %v8240
        %v8292 = vpack.c.b16 %v8243, %v8242
        %v8293 = vpack.c.b16 %v8245, %v8244
        %v8294 = vpack.c.b16 %v8247, %v8246
        %v8295 = vpack.c.b16 %v8249, %v8248
        %v8296 = vpack.c.b16 %v8251, %v8250
        %v8297 = vpack.c.b16 %v8253, %v8252
        %v8298 = vpack.c.b16 %v8255, %v8254
        %v8299 = vpack.c.b16 %v8257, %v8256
        %v8300 = vpack.c.b16 %v8259, %v8258
        %v8301 = vpack.c.b16 %v8261, %v8260
        %v8302 = vpack.c.b16 %v8263, %v8262
        %v8303 = vpack.c.b16 %v8265, %v8264
        %v8304 = vpack.c.b16 %v8267, %v8266
        %v8305 = vpack.c.b16 %v8269, %v8268
        %v8306 = vpack.c.b16 %v8271, %v8270
        %v8307 = vpack.c.b16 %v8273, %v8272
        %v8308 = vpack.c.b16 %v8275, %v8274
        %v8309 = vpack.c.b16 %v8277, %v8276
        %8342 = vmatprep.subr.bf16.mxu0 0
        %8343 = vmatpush1.bf16.msra.mxu0 %v8278
        %8344 = vmatprep.subr.bf16.mxu0 0
        %8345 = vmatpush1.bf16.msra.mxu0 %v8279
        %8346 = vmatprep.subr.bf16.mxu0 0
        %8347 = vmatpush1.bf16.msra.mxu0 %v8280
        %8348 = vmatprep.subr.bf16.mxu0 0
        %8349 = vmatpush1.bf16.msra.mxu0 %v8281
        %8350 = vmatprep.subr.bf16.mxu0 0
        %8351 = vmatpush1.bf16.msra.mxu0 %v8282
        %8352 = vmatprep.subr.bf16.mxu0 0
        %8353 = vmatpush1.bf16.msra.mxu0 %v8283
        %8354 = vmatprep.subr.bf16.mxu0 0
        %8355 = vmatpush1.bf16.msra.mxu0 %v8284
        %8356 = vmatprep.subr.bf16.mxu0 0
        %8357 = vmatpush1.bf16.msra.mxu0 %v8285
        %8358 = vmatprep.subr.bf16.mxu0 0
        %8359 = vmatpush1.bf16.msra.mxu0 %v8286
        %8360 = vmatprep.subr.bf16.mxu0 0
        %8361 = vmatpush1.bf16.msra.mxu0 %v8287
        %8362 = vmatprep.subr.bf16.mxu0 0
        %8363 = vmatpush1.bf16.msra.mxu0 %v8288
        %8364 = vmatprep.subr.bf16.mxu0 0
        %8365 = vmatpush1.bf16.msra.mxu0 %v8289
        %8366 = vmatprep.subr.bf16.mxu0 0
        %8367 = vmatpush1.bf16.msra.mxu0 %v8290
        %8368 = vmatprep.subr.bf16.mxu0 0
        %8369 = vmatpush1.bf16.msra.mxu0 %v8291
        %8370 = vmatprep.subr.bf16.mxu0 0
        %8371 = vmatpush1.bf16.msra.mxu0 %v8292
        %8372 = vmatprep.subr.bf16.mxu0 0
        %8373 = vmatpush1.bf16.msra.mxu0 %v8293
        %8374 = vmatprep.mubr.bf16.mxu0 %v8077
        %8375 = vmatmul.mubr.bf16.gmra.mrb[0].mxu0 %v8076
        %v8376 = vpop.f32.mrb[0].mxu0
        %v8377 = vadd.f32 %v8148, %v8376
        %v8378 = vpop.f32.mrb[0].mxu0
        %v8379 = vpop.f32.mrb[0].mxu0
        %v8380 = vadd.f32 %v8148, %v8379
        %v8381 = vpop.f32.mrb[0].mxu0
        %8382 = vdwg.mxu0
        %8383 = vmatprep.subr.bf16.mxu0 0
        %8384 = vmatpush1.bf16.msra.mxu0 %v8294
        %8385 = vmatprep.subr.bf16.mxu0 0
        %8386 = vmatpush1.bf16.msra.mxu0 %v8295
        %8387 = vmatprep.subr.bf16.mxu0 0
        %8388 = vmatpush1.bf16.msra.mxu0 %v8296
        %8389 = vmatprep.subr.bf16.mxu0 0
        %8390 = vmatpush1.bf16.msra.mxu0 %v8297
        %8391 = vmatprep.subr.bf16.mxu0 0
        %8392 = vmatpush1.bf16.msra.mxu0 %v8298
        %8393 = vmatprep.subr.bf16.mxu0 0
        %8394 = vmatpush1.bf16.msra.mxu0 %v8299
        %8395 = vmatprep.subr.bf16.mxu0 0
        %8396 = vmatpush1.bf16.msra.mxu0 %v8300
        %8397 = vmatprep.subr.bf16.mxu0 0
        %8398 = vmatpush1.bf16.msra.mxu0 %v8301
        %8399 = vmatprep.subr.bf16.mxu0 0
        %8400 = vmatpush1.bf16.msra.mxu0 %v8302
        %8401 = vmatprep.subr.bf16.mxu0 0
        %8402 = vmatpush1.bf16.msra.mxu0 %v8303
        %8403 = vmatprep.subr.bf16.mxu0 0
        %8404 = vmatpush1.bf16.msra.mxu0 %v8304
        %8405 = vmatprep.subr.bf16.mxu0 0
        %8406 = vmatpush1.bf16.msra.mxu0 %v8305
        %8407 = vmatprep.subr.bf16.mxu0 0
        %8408 = vmatpush1.bf16.msra.mxu0 %v8306
        %8409 = vmatprep.subr.bf16.mxu0 0
        %8410 = vmatpush1.bf16.msra.mxu0 %v8307
        %8411 = vmatprep.subr.bf16.mxu0 0
        %8412 = vmatpush1.bf16.msra.mxu0 %v8308
        %8413 = vmatprep.subr.bf16.mxu0 0
        %8414 = vmatpush1.bf16.msra.mxu0 %v8309
        %8415 = vmatprep.mubr.bf16.mxu0 %v8079
        %8416 = vmatmul.mubr.bf16.gmra.mrb[0].mxu0 %v8078
        %v8417 = vpop.f32.mrb[0].mxu0
        %v8418 = vadd.f32 %v8377, %v8417
        %v8419 = vpop.f32.mrb[0].mxu0
        %v8420 = vpop.f32.mrb[0].mxu0
        %v8421 = vadd.f32 %v8380, %v8420
        %v8422 = vpop.f32.mrb[0].mxu0
        %8423 = vdwg.mxu0
        %8424 = vst [vmem:[%s335] sm:$0xff] %v8418
        %8425 = vst [vmem:[%s335 + $0x8] sm:$0x3f] %v8421
        %p8426 = scmp.lt.s32.totalorder %s23, 1
        %s8427 = scalar_select %p8426, %s23, 1
        %s8428 = smul.addr %s8427, 2
        %s8429 = smul.addr %s8428, 8
        %s8430 = scalar_lea.vmem %s5, %s8429
        // Predicated region
        $region57: #{discriminator_forward.2} parent=39 // pred_check
          %p8431 = pneg %p161
        $region58: #{discriminator_forward.2} parent=39 // pred_check_branch
          %8433 = sbr.rel (%p8431) target = $region60
        $region59: #{discriminator_forward.2} parent=39 // pred_region
          _
        $region60: #{discriminator_forward.2} parent=39 // pred_fallthru
          _
      $region40: #{discriminator_forward.2} parent=5 // pred_fallthru
        _
      %p8434 = scmp.le.s32.totalorder 2, %s18
      // Predicated region
      $region61: #{discriminator_forward.2} parent=5 // pred_check
        %p8435 = pneg %p8434
      $region62: #{discriminator_forward.2} parent=5 // pred_check_branch
        %8437 = sbr.rel (%p8435) target = $region64
      $region63: #{discriminator_forward.2} parent=5 // pred_region
        %s8438 = ssub.s32 %s18, 2
        // Predicated region
        $region65: #{discriminator_forward.2} parent=63 // pred_check
          %p8439 = pneg %p167
        $region66: #{discriminator_forward.2} parent=63 // pred_check_branch
          %8441 = sbr.rel (%p8439) target = $region68
        $region67: #{discriminator_forward.2} parent=63 // pred_region
          %p8442 = scmp.lt.s32.totalorder %s24, 1
          %s8443 = scalar_select %p8442, %s24, 1
          %s8444 = smul.addr %s8443, 2
          %s8445 = smul.addr %s8444, 8
          %s8446 = scalar_lea.vmem %s5, %s8445
        $region68: #{discriminator_forward.2} parent=63 // pred_fallthru
          _
      $region64: #{discriminator_forward.2} parent=5 // pred_fallthru
        _
    $region6: #{discriminator_forward.2} parent=1 // loop_footer
      %s22 = sadd.s32 1, %s18
    $region7: #{discriminator_forward.2} parent=1 // loop_footer_branch
      %17 = sbr.rel target = $region3
    $region8: #{discriminator_forward.2} parent=1 // loop_exit
      _
    %8447 = vsyncpa [#allocation3], 1
    %s8448 = scalar_lea.sflag [#allocation3], 1
    %8449 = vsyncpa %s8448, 1
    %8450 = vsyncpa [#allocation5], 1
    %s8451 = scalar_lea.sflag [#allocation5], 1
    %8452 = vsyncpa %s8451, 1
    %8453 = vsyncpa [#allocation8], 1

</llo_original>
